<compile_context>
chip_gen: v7x
topology: tpu7x:2x2x1
jax: 0.10.0
libtpu: 0.0.40
codegen_flags: <defaults>
</compile_context>

<pallas_src>
import math
import numpy as np
import jax
import jax.numpy as jnp
from jax import lax
from jax.experimental import pallas as pl
from jax.experimental.pallas import tpu as pltpu

NHEAD = 8          # nn.TransformerEncoderLayer(nhead=8)
NUM_LAYERS = 2     # nn.TransformerEncoder(..., num_layers=2)
NEG_BIG = -1e30    # finite "minus infinity" for the attention bias
FFN_CHUNK = 512    # lane-aligned FFN hidden-dim tile (keeps h1 in ~8 vregs)


def _layernorm(x, g, b, eps=1e-5):
    mu = jnp.mean(x, axis=-1, keepdims=True)
    var = jnp.mean(jnp.square(x - mu), axis=-1, keepdims=True)
    return (x - mu) * lax.rsqrt(var + eps) * g + b


def fused_encoder_kernel(src_ref, bias_ref,
                         wqkv_ref, bqkv_ref, wo_ref, bo_ref,
                         g1_ref, be1_ref,
                         w1_ref, b1_ref, w2_ref, b2_ref,
                         g2_ref, be2_ref,
                         fc1_w_ref, fc1_b_ref,
                         out_ref, ctx_scr):
    """2 post-norm encoder layers + fc_1(out[0,:,:]) for one batch element."""
    Sp, E = src_ref.shape[1], src_ref.shape[2]
    D = E // NHEAD
    F = w1_ref.shape[2]
    chunk = FFN_CHUNK if (F % FFN_CHUNK) == 0 else F

    x = src_ref[0]                 # (Sp, E) f32 activations for this batch
    bias = bias_ref[0]             # (1, Sp) additive key-padding bias

    for l in range(NUM_LAYERS):    # static layer loop; weights VMEM-resident
        # ---- multi-head self-attention -------------------------------------
        # Fused QKV projection: one MXU push with N = 3E.
        # The Q columns of wqkv/bqkv are pre-scaled by 1/sqrt(D) on the host.
        qkv = jnp.dot(x, wqkv_ref[l],
                      preferred_element_type=jnp.float32) + bqkv_ref[l]
        q = qkv[:, 0:E]
        k = qkv[:, E:2 * E]
        v = qkv[:, 2 * E:3 * E]

        for h in range(NHEAD):     # static head loop (8)
            c0 = h * D
            s = lax.dot_general(q[:, c0:c0 + D], k[:, c0:c0 + D],
                                (((1,), (1,)), ((), ())),
                                preferred_element_type=jnp.float32)  # (Sp, Sp)
            s = s + bias                                   # mask padded keys
            m = jnp.max(s, axis=-1, keepdims=True)
            p = jnp.exp(s - m)
            p = p * pl.reciprocal(jnp.sum(p, axis=-1, keepdims=True),
                                  approx=True)
            # head context lands at its static lane offset in the scratch slab
            ctx_scr[:, c0:c0 + D] = jnp.dot(p, v[:, c0:c0 + D],
                                            preferred_element_type=jnp.float32)

        # single out-projection over the concatenated heads
        attn = jnp.dot(ctx_scr[...], wo_ref[l],
                       preferred_element_type=jnp.float32) + bo_ref[l]

        x = _layernorm(x + attn, g1_ref[l], be1_ref[l])    # norm1(src + attn)

        # ---- feed-forward, chunked over the hidden dim (bf16 weights) -------
        xb = x.astype(jnp.bfloat16)
        ff = jnp.zeros((Sp, E), jnp.float32)
        for c in range(F // chunk):
            c0 = c * chunk
            h1 = jnp.dot(xb, w1_ref[l, :, c0:c0 + chunk],
                         preferred_element_type=jnp.float32)
            h1 = h1 + b1_ref[l, :, c0:c0 + chunk]
            h1 = jnp.maximum(h1, 0.0).astype(jnp.bfloat16)            # relu
            # w2 stored lane-dense as (E, F): contract the F dims (trans-B)
            ff = ff + lax.dot_general(h1, w2_ref[l, :, c0:c0 + chunk],
                                      (((1,), (1,)), ((), ())),
                                      preferred_element_type=jnp.float32)
        ff = ff + b2_ref[l]
        x = _layernorm(x + ff, g2_ref[l], be2_ref[l])      # norm2(x + ffn)

    # ---- out[0, :, :] for this batch -> fc_1 (BOS row is a static read) -----
    pooled = x[0:1, :]                                               # (1, E)
    res = jnp.dot(pooled, fc1_w_ref[...],
                  preferred_element_type=jnp.float32) + fc1_b_ref[...]
    out_ref[...] = jnp.broadcast_to(res, out_ref.shape)   # row 0 is the answer


def fused_transformer(src, bias, packed, fc1_w, fc1_b):
    B, Sp, E = src.shape
    weights = (packed["wqkv"], packed["bqkv"], packed["wo"], packed["bo"],
               packed["g1"], packed["be1"], packed["w1"], packed["b1"],
               packed["w2"], packed["b2"], packed["g2"], packed["be2"],
               fc1_w, fc1_b)

    def resident(arr):     # full-array block, constant index map => VMEM-resident
        n = arr.ndim
        return pl.BlockSpec(arr.shape, lambda b, n=n: (0,) * n)

    grid_spec = pltpu.PrefetchScalarGridSpec(
        num_scalar_prefetch=0,
        grid=(B,),
        in_specs=[pl.BlockSpec((1, Sp, E), lambda b: (b, 0, 0)),   # src block
                  pl.BlockSpec((1, 1, Sp), lambda b: (b, 0, 0))]   # key-pad bias
                 + [resident(w) for w in weights],
        out_specs=pl.BlockSpec((1, 8, E), lambda b: (b, 0, 0)),
        scratch_shapes=[pltpu.VMEM((Sp, E), jnp.float32)],
    )
    out = pl.pallas_call(
        fused_encoder_kernel,
        out_shape=jax.ShapeDtypeStruct((B, 8, E), jnp.float32),
        grid_spec=grid_spec,
        compiler_params=pltpu.CompilerParams(
            dimension_semantics=("parallel",)),
    )(src, bias, *weights)
    return out[:, 0, :]                                   # (B, E)


# ---------------- plain-JAX / host glue (padding, embedding, PE, masks) -------
# TODO(synk): token-list padding and the embedding row-gather stay in NumPy/XLA
# (dynamic gather has no clean tiny-shape Pallas equivalent); dropouts are
# eval-mode identities.

def make_pe_table(max_len, dim):
    position = np.arange(max_len, dtype=np.float32)[:, None]
    div_term = np.exp(np.arange(0, dim, 2, dtype=np.float32)
                      * -(math.log(10000.0) / dim))
    pe = np.zeros((max_len, dim), dtype=np.float32)
    pe[:, 0::2] = np.sin(position * div_term)
    pe[:, 1::2] = np.cos(position * div_term)
    return jnp.asarray(pe)


def pad_tokens(x, pad_len):
    seq = []
    for string in x:
        if len(string) > pad_len:
            seq.append(list(string[:pad_len]))
        else:
            seq.append(list(string) + [-2] * (pad_len - len(string)))
    return np.asarray(seq, dtype=np.int32)


def build_token_inputs(tokens_list, pad_len):
    enc = pad_tokens(tokens_list, pad_len)          # (B, pad_len)
    B = enc.shape[0]
    S = pad_len + 1                                 # + BOS
    Sp = ((S + 7) // 8) * 8                         # sublane-aligned sequence pad
    inputs = np.zeros((B, Sp), dtype=np.int32)      # extra positions keep pad id 0
    inputs[:, 0] = 1                                # BOS (=1)
    inputs[:, 1:S] = enc + 2
    key_padded = inputs == 0                        # (B, Sp) key_padding_mask
    # O(B*Sp) additive key-padding bias (finite, so no inf-inf NaN hazard).
    bias = np.where(key_padded, NEG_BIG, 0.0).astype(np.float32)[:, None, :]
    return inputs, bias                             # (B, Sp), (B, 1, Sp)


@jax.jit
def _forward(inputs, bias, emb_table, pe_rows, packed, fc1_w, fc1_b):
    E = emb_table.shape[1]
    emb = jnp.take(emb_table, inputs, axis=0)                        # (B, Sp, E)
    # PositionalEncoding: emb * sqrt(dim) + pe[:emb.size(0)]  (batch-indexed,
    # exactly as the original module applies it to a batch-first tensor).
    emb = emb * jnp.float32(math.sqrt(E)) + pe_rows[:, None, :]
    return fused_transformer(emb.astype(jnp.float32), bias,
                             packed, fc1_w, fc1_b)


def transformer_encoder_forward(tokens_list, params, pad_len):
    inputs, bias = build_token_inputs(tokens_list, pad_len)
    B = inputs.shape[0]
    return _forward(jnp.asarray(inputs), jnp.asarray(bias),
                    params["emb"], params["pe"][:B], params["packed"],
                    params["fc1_w"], params["fc1_b"])


# ---------------- deterministic parameter construction ------------------------

def init_params(key, vocab, E, F):
    keys = iter(jax.random.split(key, 64))

    def nrm(shape, s=0.05):
        return jax.random.normal(next(keys), shape, dtype=jnp.float32) * s

    D = E // NHEAD
    scale = 1.0 / math.sqrt(D)

    layers = []
    for _ in range(NUM_LAYERS):
        wq, wk, wv = nrm((E, E)), nrm((E, E)), nrm((E, E))   # in_proj, transposed
        bq, bk, bv = nrm((1, E), 0.01), nrm((1, E), 0.01), nrm((1, E), 0.01)
        layers.append(dict(
            # fused QKV with 1/sqrt(D) folded into the Q columns
            wqkv=jnp.concatenate([wq * scale, wk, wv], axis=1),     # (E, 3E)
            bqkv=jnp.concatenate([bq * scale, bk, bv], axis=1),     # (1, 3E)
            wo=nrm((E, E)), bo=nrm((1, E), 0.01),                   # out_proj.T
            g1=jnp.ones((1, E), jnp.float32), be1=jnp.zeros((1, E), jnp.float32),
            w1=nrm((E, F)).astype(jnp.bfloat16), b1=nrm((1, F), 0.01),  # linear1.T
            w2=nrm((E, F)).astype(jnp.bfloat16), b2=nrm((1, E), 0.01),  # linear2 (lane-dense)
            g2=jnp.ones((1, E), jnp.float32), be2=jnp.zeros((1, E), jnp.float32),
        ))

    def stack(name):
        return jnp.stack([lp[name] for lp in layers], axis=0)

    packed = {name: stack(name) for name in layers[0]}
    return dict(emb=nrm((vocab, E), 0.1), pe=make_pe_table(500, E),
                packed=packed,
                fc1_w=nrm((E, E)), fc1_b=nrm((1, E), 0.01))


if __name__ == "__main__":
    MAX_TOKENS = 50
    EMBEDDING_DIM = 32      # must be divisible by nhead=8
    PAD_LEN = 8             # sequence length becomes PAD_LEN + 1 (BOS), padded to 16
    FFN_DIM = 2048          # nn.TransformerEncoderLayer default dim_feedforward
    VOCAB = MAX_TOKENS + 2  # transformer_encoder(MAX_TOKENS + 2, ...)

    params = init_params(jax.random.PRNGKey(0), VOCAB, EMBEDDING_DIM, FFN_DIM)

    # deterministic "code token" sequences (batch=2); the second is longer than
    # pad_len (truncation path), the first exercises padding.
    x = [[3, 7, 1, 9, 4],
         [2, 5, 8, 1, 6, 0, 7, 3, 2, 9]]

    out = transformer_encoder_forward(x, params, PAD_LEN)
    out = jax.block_until_ready(out)
    assert out.shape == (2, EMBEDDING_DIM)
    assert bool(jnp.all(jnp.isfinite(out)))
    print("KERNEL_OK")
</pallas_src>

<mosaic_0001>
module attributes {stable_mosaic.version = 11 : i64} {
  func.func @fused_encoder_kernel(%arg0: i32, %arg1: memref<1x16x32xf32, #tpu.memory_space<vmem>>, %arg2: memref<1x1x16xf32, #tpu.memory_space<vmem>>, %arg3: memref<2x32x96xf32, #tpu.memory_space<vmem>>, %arg4: memref<2x1x96xf32, #tpu.memory_space<vmem>>, %arg5: memref<2x32x32xf32, #tpu.memory_space<vmem>>, %arg6: memref<2x1x32xf32, #tpu.memory_space<vmem>>, %arg7: memref<2x1x32xf32, #tpu.memory_space<vmem>>, %arg8: memref<2x1x32xf32, #tpu.memory_space<vmem>>, %arg9: memref<2x32x2048xbf16, #tpu.memory_space<vmem>>, %arg10: memref<2x1x2048xf32, #tpu.memory_space<vmem>>, %arg11: memref<2x32x2048xbf16, #tpu.memory_space<vmem>>, %arg12: memref<2x1x32xf32, #tpu.memory_space<vmem>>, %arg13: memref<2x1x32xf32, #tpu.memory_space<vmem>>, %arg14: memref<2x1x32xf32, #tpu.memory_space<vmem>>, %arg15: memref<32x32xf32, #tpu.memory_space<vmem>>, %arg16: memref<1x32xf32, #tpu.memory_space<vmem>>, %arg17: memref<1x8x32xf32, #tpu.memory_space<vmem>>, %arg18: memref<16x32xf32, #tpu.memory_space<vmem>>) attributes {dimension_semantics = [#tpu.dimension_semantics<parallel>], iteration_bounds = array<i64: 2>, scalar_prefetch = 0 : i64, scratch_operands = 1 : i64, tpu.core_type = #tpu.core_type<tc>, window_params = [{transform_indices = @transform_0, window_bounds = array<i64: 1, 16, 32>}, {transform_indices = @transform_1, window_bounds = array<i64: 1, 1, 16>}, {pipeline_mode = #tpu.pipeline_mode<synchronous>, transform_indices = @transform_2, window_bounds = array<i64: 2, 32, 96>}, {pipeline_mode = #tpu.pipeline_mode<synchronous>, transform_indices = @transform_3, window_bounds = array<i64: 2, 1, 96>}, {pipeline_mode = #tpu.pipeline_mode<synchronous>, transform_indices = @transform_4, window_bounds = array<i64: 2, 32, 32>}, {pipeline_mode = #tpu.pipeline_mode<synchronous>, transform_indices = @transform_5, window_bounds = array<i64: 2, 1, 32>}, {pipeline_mode = #tpu.pipeline_mode<synchronous>, transform_indices = @transform_6, window_bounds = array<i64: 2, 1, 32>}, {pipeline_mode = #tpu.pipeline_mode<synchronous>, transform_indices = @transform_7, window_bounds = array<i64: 2, 1, 32>}, {pipeline_mode = #tpu.pipeline_mode<synchronous>, transform_indices = @transform_8, window_bounds = array<i64: 2, 32, 2048>}, {pipeline_mode = #tpu.pipeline_mode<synchronous>, transform_indices = @transform_9, window_bounds = array<i64: 2, 1, 2048>}, {pipeline_mode = #tpu.pipeline_mode<synchronous>, transform_indices = @transform_10, window_bounds = array<i64: 2, 32, 2048>}, {pipeline_mode = #tpu.pipeline_mode<synchronous>, transform_indices = @transform_11, window_bounds = array<i64: 2, 1, 32>}, {pipeline_mode = #tpu.pipeline_mode<synchronous>, transform_indices = @transform_12, window_bounds = array<i64: 2, 1, 32>}, {pipeline_mode = #tpu.pipeline_mode<synchronous>, transform_indices = @transform_13, window_bounds = array<i64: 2, 1, 32>}, {pipeline_mode = #tpu.pipeline_mode<synchronous>, transform_indices = @transform_14, window_bounds = array<i64: 32, 32>}, {pipeline_mode = #tpu.pipeline_mode<synchronous>, transform_indices = @transform_15, window_bounds = array<i64: 1, 32>}, {transform_indices = @transform_16, window_bounds = array<i64: 1, 8, 32>}]} {
    %c0 = arith.constant 0 : index
    %c0_0 = arith.constant 0 : index
    %c0_1 = arith.constant 0 : index
    %0 = vector.load %arg1[%c0, %c0_0, %c0_1] : memref<1x16x32xf32, #tpu.memory_space<vmem>>, vector<1x16x32xf32>
    %1 = vector.shape_cast %0 : vector<1x16x32xf32> to vector<16x32xf32>
    %c0_2 = arith.constant 0 : index
    %c0_3 = arith.constant 0 : index
    %c0_4 = arith.constant 0 : index
    %2 = vector.load %arg2[%c0_2, %c0_3, %c0_4] : memref<1x1x16xf32, #tpu.memory_space<vmem>>, vector<1x1x16xf32>
    %3 = vector.shape_cast %2 : vector<1x1x16xf32> to vector<1x16xf32>
    %c0_5 = arith.constant 0 : index
    %c0_6 = arith.constant 0 : index
    %c0_7 = arith.constant 0 : index
    %4 = vector.load %arg3[%c0_5, %c0_6, %c0_7] : memref<2x32x96xf32, #tpu.memory_space<vmem>>, vector<1x32x96xf32>
    %5 = vector.shape_cast %4 : vector<1x32x96xf32> to vector<32x96xf32>
    %cst = arith.constant dense<0.000000e+00> : vector<16x96xf32>
    %6 = tpu.matmul %1, %5, %cst {dimension_numbers = #tpu.dot_dimension_numbers<[1], [0], [0], [1], [0, 0, 1, 1], [], []>} : vector<16x32xf32>, vector<32x96xf32>, vector<16x96xf32> -> vector<16x96xf32>
    %c0_8 = arith.constant 0 : index
    %c0_9 = arith.constant 0 : index
    %c0_10 = arith.constant 0 : index
    %7 = vector.load %arg4[%c0_8, %c0_9, %c0_10] : memref<2x1x96xf32, #tpu.memory_space<vmem>>, vector<1x1x96xf32>
    %8 = vector.shape_cast %7 : vector<1x1x96xf32> to vector<1x96xf32>
    %9 = vector.broadcast %8 : vector<1x96xf32> to vector<16x96xf32>
    %10 = arith.addf %6, %9 : vector<16x96xf32>
    %11 = vector.extract_strided_slice %10 {offsets = [0, 0], sizes = [16, 32], strides = [1, 1]} : vector<16x96xf32> to vector<16x32xf32>
    %12 = vector.extract_strided_slice %10 {offsets = [0, 32], sizes = [16, 32], strides = [1, 1]} : vector<16x96xf32> to vector<16x32xf32>
    %13 = vector.extract_strided_slice %10 {offsets = [0, 64], sizes = [16, 32], strides = [1, 1]} : vector<16x96xf32> to vector<16x32xf32>
    %14 = vector.extract_strided_slice %11 {offsets = [0, 0], sizes = [16, 4], strides = [1, 1]} : vector<16x32xf32> to vector<16x4xf32>
    %15 = vector.extract_strided_slice %12 {offsets = [0, 0], sizes = [16, 4], strides = [1, 1]} : vector<16x32xf32> to vector<16x4xf32>
    %cst_11 = arith.constant dense<0.000000e+00> : vector<16x16xf32>
    %16 = tpu.matmul %14, %15, %cst_11 {dimension_numbers = #tpu.dot_dimension_numbers<[1], [1], [0], [0], [0, 0, 1, 0], [], []>} : vector<16x4xf32>, vector<16x4xf32>, vector<16x16xf32> -> vector<16x16xf32>
    %17 = vector.broadcast %3 : vector<1x16xf32> to vector<16x16xf32>
    %18 = arith.addf %16, %17 : vector<16x16xf32>
    %cst_12 = arith.constant dense<0xFF800000> : vector<16xf32>
    %19 = vector.multi_reduction <maximumf>, %18, %cst_12 [1] : vector<16x16xf32> to vector<16xf32>
    %20 = vector.shape_cast %19 : vector<16xf32> to vector<16x1xf32>
    %21 = vector.broadcast %20 : vector<16x1xf32> to vector<16x16xf32>
    %22 = arith.subf %18, %21 : vector<16x16xf32>
    %23 = math.exp %22 : vector<16x16xf32>
    %cst_13 = arith.constant dense<0.000000e+00> : vector<16xf32>
    %24 = vector.multi_reduction <add>, %23, %cst_13 [1] : vector<16x16xf32> to vector<16xf32>
    %25 = vector.shape_cast %24 : vector<16xf32> to vector<16x1xf32>
    %26 = tpu.reciprocal %25 {approx = true} : vector<16x1xf32> -> vector<16x1xf32>
    %27 = vector.broadcast %26 : vector<16x1xf32> to vector<16x16xf32>
    %28 = arith.mulf %23, %27 : vector<16x16xf32>
    %29 = vector.extract_strided_slice %13 {offsets = [0, 0], sizes = [16, 4], strides = [1, 1]} : vector<16x32xf32> to vector<16x4xf32>
    %cst_14 = arith.constant dense<0.000000e+00> : vector<16x4xf32>
    %30 = tpu.matmul %28, %29, %cst_14 {dimension_numbers = #tpu.dot_dimension_numbers<[1], [0], [0], [1], [0, 0, 1, 1], [], []>} : vector<16x16xf32>, vector<16x4xf32>, vector<16x4xf32> -> vector<16x4xf32>
    %c0_15 = arith.constant 0 : index
    %c0_16 = arith.constant 0 : index
    %31 = vector.load %arg18[%c0_15, %c0_16] : memref<16x32xf32, #tpu.memory_space<vmem>>, vector<16x4xf32>
    tpu.vector_store %arg18[%c0_15, %c0_16], %30 {strides = array<i32>} : memref<16x32xf32, #tpu.memory_space<vmem>>, vector<16x4xf32>,
    %32 = vector.extract_strided_slice %11 {offsets = [0, 4], sizes = [16, 4], strides = [1, 1]} : vector<16x32xf32> to vector<16x4xf32>
    %33 = vector.extract_strided_slice %12 {offsets = [0, 4], sizes = [16, 4], strides = [1, 1]} : vector<16x32xf32> to vector<16x4xf32>
    %cst_17 = arith.constant dense<0.000000e+00> : vector<16x16xf32>
    %34 = tpu.matmul %32, %33, %cst_17 {dimension_numbers = #tpu.dot_dimension_numbers<[1], [1], [0], [0], [0, 0, 1, 0], [], []>} : vector<16x4xf32>, vector<16x4xf32>, vector<16x16xf32> -> vector<16x16xf32>
    %35 = vector.broadcast %3 : vector<1x16xf32> to vector<16x16xf32>
    %36 = arith.addf %34, %35 : vector<16x16xf32>
    %cst_18 = arith.constant dense<0xFF800000> : vector<16xf32>
    %37 = vector.multi_reduction <maximumf>, %36, %cst_18 [1] : vector<16x16xf32> to vector<16xf32>
    %38 = vector.shape_cast %37 : vector<16xf32> to vector<16x1xf32>
    %39 = vector.broadcast %38 : vector<16x1xf32> to vector<16x16xf32>
    %40 = arith.subf %36, %39 : vector<16x16xf32>
    %41 = math.exp %40 : vector<16x16xf32>
    %cst_19 = arith.constant dense<0.000000e+00> : vector<16xf32>
    %42 = vector.multi_reduction <add>, %41, %cst_19 [1] : vector<16x16xf32> to vector<16xf32>
    %43 = vector.shape_cast %42 : vector<16xf32> to vector<16x1xf32>
    %44 = tpu.reciprocal %43 {approx = true} : vector<16x1xf32> -> vector<16x1xf32>
    %45 = vector.broadcast %44 : vector<16x1xf32> to vector<16x16xf32>
    %46 = arith.mulf %41, %45 : vector<16x16xf32>
    %47 = vector.extract_strided_slice %13 {offsets = [0, 4], sizes = [16, 4], strides = [1, 1]} : vector<16x32xf32> to vector<16x4xf32>
    %cst_20 = arith.constant dense<0.000000e+00> : vector<16x4xf32>
    %48 = tpu.matmul %46, %47, %cst_20 {dimension_numbers = #tpu.dot_dimension_numbers<[1], [0], [0], [1], [0, 0, 1, 1], [], []>} : vector<16x16xf32>, vector<16x4xf32>, vector<16x4xf32> -> vector<16x4xf32>
    %c0_21 = arith.constant 0 : index
    %c4 = arith.constant 4 : index
    %49 = vector.load %arg18[%c0_21, %c4] : memref<16x32xf32, #tpu.memory_space<vmem>>, vector<16x4xf32>
    tpu.vector_store %arg18[%c0_21, %c4], %48 {strides = array<i32>} : memref<16x32xf32, #tpu.memory_space<vmem>>, vector<16x4xf32>,
    %50 = vector.extract_strided_slice %11 {offsets = [0, 8], sizes = [16, 4], strides = [1, 1]} : vector<16x32xf32> to vector<16x4xf32>
    %51 = vector.extract_strided_slice %12 {offsets = [0, 8], sizes = [16, 4], strides = [1, 1]} : vector<16x32xf32> to vector<16x4xf32>
    %cst_22 = arith.constant dense<0.000000e+00> : vector<16x16xf32>
    %52 = tpu.matmul %50, %51, %cst_22 {dimension_numbers = #tpu.dot_dimension_numbers<[1], [1], [0], [0], [0, 0, 1, 0], [], []>} : vector<16x4xf32>, vector<16x4xf32>, vector<16x16xf32> -> vector<16x16xf32>
    %53 = vector.broadcast %3 : vector<1x16xf32> to vector<16x16xf32>
    %54 = arith.addf %52, %53 : vector<16x16xf32>
    %cst_23 = arith.constant dense<0xFF800000> : vector<16xf32>
    %55 = vector.multi_reduction <maximumf>, %54, %cst_23 [1] : vector<16x16xf32> to vector<16xf32>
    %56 = vector.shape_cast %55 : vector<16xf32> to vector<16x1xf32>
    %57 = vector.broadcast %56 : vector<16x1xf32> to vector<16x16xf32>
    %58 = arith.subf %54, %57 : vector<16x16xf32>
    %59 = math.exp %58 : vector<16x16xf32>
    %cst_24 = arith.constant dense<0.000000e+00> : vector<16xf32>
    %60 = vector.multi_reduction <add>, %59, %cst_24 [1] : vector<16x16xf32> to vector<16xf32>
    %61 = vector.shape_cast %60 : vector<16xf32> to vector<16x1xf32>
    %62 = tpu.reciprocal %61 {approx = true} : vector<16x1xf32> -> vector<16x1xf32>
    %63 = vector.broadcast %62 : vector<16x1xf32> to vector<16x16xf32>
    %64 = arith.mulf %59, %63 : vector<16x16xf32>
    %65 = vector.extract_strided_slice %13 {offsets = [0, 8], sizes = [16, 4], strides = [1, 1]} : vector<16x32xf32> to vector<16x4xf32>
    %cst_25 = arith.constant dense<0.000000e+00> : vector<16x4xf32>
    %66 = tpu.matmul %64, %65, %cst_25 {dimension_numbers = #tpu.dot_dimension_numbers<[1], [0], [0], [1], [0, 0, 1, 1], [], []>} : vector<16x16xf32>, vector<16x4xf32>, vector<16x4xf32> -> vector<16x4xf32>
    %c0_26 = arith.constant 0 : index
    %c8 = arith.constant 8 : index
    %67 = vector.load %arg18[%c0_26, %c8] : memref<16x32xf32, #tpu.memory_space<vmem>>, vector<16x4xf32>
    tpu.vector_store %arg18[%c0_26, %c8], %66 {strides = array<i32>} : memref<16x32xf32, #tpu.memory_space<vmem>>, vector<16x4xf32>,
    %68 = vector.extract_strided_slice %11 {offsets = [0, 12], sizes = [16, 4], strides = [1, 1]} : vector<16x32xf32> to vector<16x4xf32>
    %69 = vector.extract_strided_slice %12 {offsets = [0, 12], sizes = [16, 4], strides = [1, 1]} : vector<16x32xf32> to vector<16x4xf32>
    %cst_27 = arith.constant dense<0.000000e+00> : vector<16x16xf32>
    %70 = tpu.matmul %68, %69, %cst_27 {dimension_numbers = #tpu.dot_dimension_numbers<[1], [1], [0], [0], [0, 0, 1, 0], [], []>} : vector<16x4xf32>, vector<16x4xf32>, vector<16x16xf32> -> vector<16x16xf32>
    %71 = vector.broadcast %3 : vector<1x16xf32> to vector<16x16xf32>
    %72 = arith.addf %70, %71 : vector<16x16xf32>
    %cst_28 = arith.constant dense<0xFF800000> : vector<16xf32>
    %73 = vector.multi_reduction <maximumf>, %72, %cst_28 [1] : vector<16x16xf32> to vector<16xf32>
    %74 = vector.shape_cast %73 : vector<16xf32> to vector<16x1xf32>
    %75 = vector.broadcast %74 : vector<16x1xf32> to vector<16x16xf32>
    %76 = arith.subf %72, %75 : vector<16x16xf32>
    %77 = math.exp %76 : vector<16x16xf32>
    %cst_29 = arith.constant dense<0.000000e+00> : vector<16xf32>
    %78 = vector.multi_reduction <add>, %77, %cst_29 [1] : vector<16x16xf32> to vector<16xf32>
    %79 = vector.shape_cast %78 : vector<16xf32> to vector<16x1xf32>
    %80 = tpu.reciprocal %79 {approx = true} : vector<16x1xf32> -> vector<16x1xf32>
    %81 = vector.broadcast %80 : vector<16x1xf32> to vector<16x16xf32>
    %82 = arith.mulf %77, %81 : vector<16x16xf32>
    %83 = vector.extract_strided_slice %13 {offsets = [0, 12], sizes = [16, 4], strides = [1, 1]} : vector<16x32xf32> to vector<16x4xf32>
    %cst_30 = arith.constant dense<0.000000e+00> : vector<16x4xf32>
    %84 = tpu.matmul %82, %83, %cst_30 {dimension_numbers = #tpu.dot_dimension_numbers<[1], [0], [0], [1], [0, 0, 1, 1], [], []>} : vector<16x16xf32>, vector<16x4xf32>, vector<16x4xf32> -> vector<16x4xf32>
    %c0_31 = arith.constant 0 : index
    %c12 = arith.constant 12 : index
    %85 = vector.load %arg18[%c0_31, %c12] : memref<16x32xf32, #tpu.memory_space<vmem>>, vector<16x4xf32>
    tpu.vector_store %arg18[%c0_31, %c12], %84 {strides = array<i32>} : memref<16x32xf32, #tpu.memory_space<vmem>>, vector<16x4xf32>,
    %86 = vector.extract_strided_slice %11 {offsets = [0, 16], sizes = [16, 4], strides = [1, 1]} : vector<16x32xf32> to vector<16x4xf32>
    %87 = vector.extract_strided_slice %12 {offsets = [0, 16], sizes = [16, 4], strides = [1, 1]} : vector<16x32xf32> to vector<16x4xf32>
    %cst_32 = arith.constant dense<0.000000e+00> : vector<16x16xf32>
    %88 = tpu.matmul %86, %87, %cst_32 {dimension_numbers = #tpu.dot_dimension_numbers<[1], [1], [0], [0], [0, 0, 1, 0], [], []>} : vector<16x4xf32>, vector<16x4xf32>, vector<16x16xf32> -> vector<16x16xf32>
    %89 = vector.broadcast %3 : vector<1x16xf32> to vector<16x16xf32>
    %90 = arith.addf %88, %89 : vector<16x16xf32>
    %cst_33 = arith.constant dense<0xFF800000> : vector<16xf32>
    %91 = vector.multi_reduction <maximumf>, %90, %cst_33 [1] : vector<16x16xf32> to vector<16xf32>
    %92 = vector.shape_cast %91 : vector<16xf32> to vector<16x1xf32>
    %93 = vector.broadcast %92 : vector<16x1xf32> to vector<16x16xf32>
    %94 = arith.subf %90, %93 : vector<16x16xf32>
    %95 = math.exp %94 : vector<16x16xf32>
    %cst_34 = arith.constant dense<0.000000e+00> : vector<16xf32>
    %96 = vector.multi_reduction <add>, %95, %cst_34 [1] : vector<16x16xf32> to vector<16xf32>
    %97 = vector.shape_cast %96 : vector<16xf32> to vector<16x1xf32>
    %98 = tpu.reciprocal %97 {approx = true} : vector<16x1xf32> -> vector<16x1xf32>
    %99 = vector.broadcast %98 : vector<16x1xf32> to vector<16x16xf32>
    %100 = arith.mulf %95, %99 : vector<16x16xf32>
    %101 = vector.extract_strided_slice %13 {offsets = [0, 16], sizes = [16, 4], strides = [1, 1]} : vector<16x32xf32> to vector<16x4xf32>
    %cst_35 = arith.constant dense<0.000000e+00> : vector<16x4xf32>
    %102 = tpu.matmul %100, %101, %cst_35 {dimension_numbers = #tpu.dot_dimension_numbers<[1], [0], [0], [1], [0, 0, 1, 1], [], []>} : vector<16x16xf32>, vector<16x4xf32>, vector<16x4xf32> -> vector<16x4xf32>
    %c0_36 = arith.constant 0 : index
    %c16 = arith.constant 16 : index
    %103 = vector.load %arg18[%c0_36, %c16] : memref<16x32xf32, #tpu.memory_space<vmem>>, vector<16x4xf32>
    tpu.vector_store %arg18[%c0_36, %c16], %102 {strides = array<i32>} : memref<16x32xf32, #tpu.memory_space<vmem>>, vector<16x4xf32>,
    %104 = vector.extract_strided_slice %11 {offsets = [0, 20], sizes = [16, 4], strides = [1, 1]} : vector<16x32xf32> to vector<16x4xf32>
    %105 = vector.extract_strided_slice %12 {offsets = [0, 20], sizes = [16, 4], strides = [1, 1]} : vector<16x32xf32> to vector<16x4xf32>
    %cst_37 = arith.constant dense<0.000000e+00> : vector<16x16xf32>
    %106 = tpu.matmul %104, %105, %cst_37 {dimension_numbers = #tpu.dot_dimension_numbers<[1], [1], [0], [0], [0, 0, 1, 0], [], []>} : vector<16x4xf32>, vector<16x4xf32>, vector<16x16xf32> -> vector<16x16xf32>
    %107 = vector.broadcast %3 : vector<1x16xf32> to vector<16x16xf32>
    %108 = arith.addf %106, %107 : vector<16x16xf32>
    %cst_38 = arith.constant dense<0xFF800000> : vector<16xf32>
    %109 = vector.multi_reduction <maximumf>, %108, %cst_38 [1] : vector<16x16xf32> to vector<16xf32>
    %110 = vector.shape_cast %109 : vector<16xf32> to vector<16x1xf32>
    %111 = vector.broadcast %110 : vector<16x1xf32> to vector<16x16xf32>
    %112 = arith.subf %108, %111 : vector<16x16xf32>
    %113 = math.exp %112 : vector<16x16xf32>
    %cst_39 = arith.constant dense<0.000000e+00> : vector<16xf32>
    %114 = vector.multi_reduction <add>, %113, %cst_39 [1] : vector<16x16xf32> to vector<16xf32>
    %115 = vector.shape_cast %114 : vector<16xf32> to vector<16x1xf32>
    %116 = tpu.reciprocal %115 {approx = true} : vector<16x1xf32> -> vector<16x1xf32>
    %117 = vector.broadcast %116 : vector<16x1xf32> to vector<16x16xf32>
    %118 = arith.mulf %113, %117 : vector<16x16xf32>
    %119 = vector.extract_strided_slice %13 {offsets = [0, 20], sizes = [16, 4], strides = [1, 1]} : vector<16x32xf32> to vector<16x4xf32>
    %cst_40 = arith.constant dense<0.000000e+00> : vector<16x4xf32>
    %120 = tpu.matmul %118, %119, %cst_40 {dimension_numbers = #tpu.dot_dimension_numbers<[1], [0], [0], [1], [0, 0, 1, 1], [], []>} : vector<16x16xf32>, vector<16x4xf32>, vector<16x4xf32> -> vector<16x4xf32>
    %c0_41 = arith.constant 0 : index
    %c20 = arith.constant 20 : index
    %121 = vector.load %arg18[%c0_41, %c20] : memref<16x32xf32, #tpu.memory_space<vmem>>, vector<16x4xf32>
    tpu.vector_store %arg18[%c0_41, %c20], %120 {strides = array<i32>} : memref<16x32xf32, #tpu.memory_space<vmem>>, vector<16x4xf32>,
    %122 = vector.extract_strided_slice %11 {offsets = [0, 24], sizes = [16, 4], strides = [1, 1]} : vector<16x32xf32> to vector<16x4xf32>
    %123 = vector.extract_strided_slice %12 {offsets = [0, 24], sizes = [16, 4], strides = [1, 1]} : vector<16x32xf32> to vector<16x4xf32>
    %cst_42 = arith.constant dense<0.000000e+00> : vector<16x16xf32>
    %124 = tpu.matmul %122, %123, %cst_42 {dimension_numbers = #tpu.dot_dimension_numbers<[1], [1], [0], [0], [0, 0, 1, 0], [], []>} : vector<16x4xf32>, vector<16x4xf32>, vector<16x16xf32> -> vector<16x16xf32>
    %125 = vector.broadcast %3 : vector<1x16xf32> to vector<16x16xf32>
    %126 = arith.addf %124, %125 : vector<16x16xf32>
    %cst_43 = arith.constant dense<0xFF800000> : vector<16xf32>
    %127 = vector.multi_reduction <maximumf>, %126, %cst_43 [1] : vector<16x16xf32> to vector<16xf32>
    %128 = vector.shape_cast %127 : vector<16xf32> to vector<16x1xf32>
    %129 = vector.broadcast %128 : vector<16x1xf32> to vector<16x16xf32>
    %130 = arith.subf %126, %129 : vector<16x16xf32>
    %131 = math.exp %130 : vector<16x16xf32>
    %cst_44 = arith.constant dense<0.000000e+00> : vector<16xf32>
    %132 = vector.multi_reduction <add>, %131, %cst_44 [1] : vector<16x16xf32> to vector<16xf32>
    %133 = vector.shape_cast %132 : vector<16xf32> to vector<16x1xf32>
    %134 = tpu.reciprocal %133 {approx = true} : vector<16x1xf32> -> vector<16x1xf32>
    %135 = vector.broadcast %134 : vector<16x1xf32> to vector<16x16xf32>
    %136 = arith.mulf %131, %135 : vector<16x16xf32>
    %137 = vector.extract_strided_slice %13 {offsets = [0, 24], sizes = [16, 4], strides = [1, 1]} : vector<16x32xf32> to vector<16x4xf32>
    %cst_45 = arith.constant dense<0.000000e+00> : vector<16x4xf32>
    %138 = tpu.matmul %136, %137, %cst_45 {dimension_numbers = #tpu.dot_dimension_numbers<[1], [0], [0], [1], [0, 0, 1, 1], [], []>} : vector<16x16xf32>, vector<16x4xf32>, vector<16x4xf32> -> vector<16x4xf32>
    %c0_46 = arith.constant 0 : index
    %c24 = arith.constant 24 : index
    %139 = vector.load %arg18[%c0_46, %c24] : memref<16x32xf32, #tpu.memory_space<vmem>>, vector<16x4xf32>
    tpu.vector_store %arg18[%c0_46, %c24], %138 {strides = array<i32>} : memref<16x32xf32, #tpu.memory_space<vmem>>, vector<16x4xf32>,
    %140 = vector.extract_strided_slice %11 {offsets = [0, 28], sizes = [16, 4], strides = [1, 1]} : vector<16x32xf32> to vector<16x4xf32>
    %141 = vector.extract_strided_slice %12 {offsets = [0, 28], sizes = [16, 4], strides = [1, 1]} : vector<16x32xf32> to vector<16x4xf32>
    %cst_47 = arith.constant dense<0.000000e+00> : vector<16x16xf32>
    %142 = tpu.matmul %140, %141, %cst_47 {dimension_numbers = #tpu.dot_dimension_numbers<[1], [1], [0], [0], [0, 0, 1, 0], [], []>} : vector<16x4xf32>, vector<16x4xf32>, vector<16x16xf32> -> vector<16x16xf32>
    %143 = vector.broadcast %3 : vector<1x16xf32> to vector<16x16xf32>
    %144 = arith.addf %142, %143 : vector<16x16xf32>
    %cst_48 = arith.constant dense<0xFF800000> : vector<16xf32>
    %145 = vector.multi_reduction <maximumf>, %144, %cst_48 [1] : vector<16x16xf32> to vector<16xf32>
    %146 = vector.shape_cast %145 : vector<16xf32> to vector<16x1xf32>
    %147 = vector.broadcast %146 : vector<16x1xf32> to vector<16x16xf32>
    %148 = arith.subf %144, %147 : vector<16x16xf32>
    %149 = math.exp %148 : vector<16x16xf32>
    %cst_49 = arith.constant dense<0.000000e+00> : vector<16xf32>
    %150 = vector.multi_reduction <add>, %149, %cst_49 [1] : vector<16x16xf32> to vector<16xf32>
    %151 = vector.shape_cast %150 : vector<16xf32> to vector<16x1xf32>
    %152 = tpu.reciprocal %151 {approx = true} : vector<16x1xf32> -> vector<16x1xf32>
    %153 = vector.broadcast %152 : vector<16x1xf32> to vector<16x16xf32>
    %154 = arith.mulf %149, %153 : vector<16x16xf32>
    %155 = vector.extract_strided_slice %13 {offsets = [0, 28], sizes = [16, 4], strides = [1, 1]} : vector<16x32xf32> to vector<16x4xf32>
    %cst_50 = arith.constant dense<0.000000e+00> : vector<16x4xf32>
    %156 = tpu.matmul %154, %155, %cst_50 {dimension_numbers = #tpu.dot_dimension_numbers<[1], [0], [0], [1], [0, 0, 1, 1], [], []>} : vector<16x16xf32>, vector<16x4xf32>, vector<16x4xf32> -> vector<16x4xf32>
    %c0_51 = arith.constant 0 : index
    %c28 = arith.constant 28 : index
    %157 = vector.load %arg18[%c0_51, %c28] : memref<16x32xf32, #tpu.memory_space<vmem>>, vector<16x4xf32>
    tpu.vector_store %arg18[%c0_51, %c28], %156 {strides = array<i32>} : memref<16x32xf32, #tpu.memory_space<vmem>>, vector<16x4xf32>,
    %c0_52 = arith.constant 0 : index
    %c0_53 = arith.constant 0 : index
    %158 = vector.load %arg18[%c0_52, %c0_53] : memref<16x32xf32, #tpu.memory_space<vmem>>, vector<16x32xf32>
    %c0_54 = arith.constant 0 : index
    %c0_55 = arith.constant 0 : index
    %c0_56 = arith.constant 0 : index
    %159 = vector.load %arg5[%c0_54, %c0_55, %c0_56] : memref<2x32x32xf32, #tpu.memory_space<vmem>>, vector<1x32x32xf32>
    %160 = vector.shape_cast %159 : vector<1x32x32xf32> to vector<32x32xf32>
    %cst_57 = arith.constant dense<0.000000e+00> : vector<16x32xf32>
    %161 = tpu.matmul %158, %160, %cst_57 {dimension_numbers = #tpu.dot_dimension_numbers<[1], [0], [0], [1], [0, 0, 1, 1], [], []>} : vector<16x32xf32>, vector<32x32xf32>, vector<16x32xf32> -> vector<16x32xf32>
    %c0_58 = arith.constant 0 : index
    %c0_59 = arith.constant 0 : index
    %c0_60 = arith.constant 0 : index
    %162 = vector.load %arg6[%c0_58, %c0_59, %c0_60] : memref<2x1x32xf32, #tpu.memory_space<vmem>>, vector<1x1x32xf32>
    %163 = vector.shape_cast %162 : vector<1x1x32xf32> to vector<1x32xf32>
    %164 = vector.broadcast %163 : vector<1x32xf32> to vector<16x32xf32>
    %165 = arith.addf %161, %164 : vector<16x32xf32>
    %166 = arith.addf %1, %165 : vector<16x32xf32>
    %c0_61 = arith.constant 0 : index
    %c0_62 = arith.constant 0 : index
    %c0_63 = arith.constant 0 : index
    %167 = vector.load %arg7[%c0_61, %c0_62, %c0_63] : memref<2x1x32xf32, #tpu.memory_space<vmem>>, vector<1x1x32xf32>
    %168 = vector.shape_cast %167 : vector<1x1x32xf32> to vector<1x32xf32>
    %c0_64 = arith.constant 0 : index
    %c0_65 = arith.constant 0 : index
    %c0_66 = arith.constant 0 : index
    %169 = vector.load %arg8[%c0_64, %c0_65, %c0_66] : memref<2x1x32xf32, #tpu.memory_space<vmem>>, vector<1x1x32xf32>
    %170 = vector.shape_cast %169 : vector<1x1x32xf32> to vector<1x32xf32>
    %cst_67 = arith.constant dense<0.000000e+00> : vector<16xf32>
    %171 = vector.multi_reduction <add>, %166, %cst_67 [1] : vector<16x32xf32> to vector<16xf32>
    %172 = vector.shape_cast %171 : vector<16xf32> to vector<16x1xf32>
    %cst_68 = arith.constant 3.200000e+01 : f32
    %173 = vector.broadcast %cst_68 : f32 to vector<16x1xf32>
    %174 = arith.divf %172, %173 : vector<16x1xf32>
    %175 = vector.broadcast %174 : vector<16x1xf32> to vector<16x32xf32>
    %176 = arith.subf %166, %175 : vector<16x32xf32>
    %177 = arith.mulf %176, %176 : vector<16x32xf32>
    %cst_69 = arith.constant dense<0.000000e+00> : vector<16xf32>
    %178 = vector.multi_reduction <add>, %177, %cst_69 [1] : vector<16x32xf32> to vector<16xf32>
    %179 = vector.shape_cast %178 : vector<16xf32> to vector<16x1xf32>
    %cst_70 = arith.constant 3.200000e+01 : f32
    %180 = vector.broadcast %cst_70 : f32 to vector<16x1xf32>
    %181 = arith.divf %179, %180 : vector<16x1xf32>
    %182 = vector.broadcast %174 : vector<16x1xf32> to vector<16x32xf32>
    %183 = arith.subf %166, %182 : vector<16x32xf32>
    %cst_71 = arith.constant 9.99999974E-6 : f32
    %184 = vector.broadcast %cst_71 : f32 to vector<16x1xf32>
    %185 = arith.addf %181, %184 : vector<16x1xf32>
    %186 = math.rsqrt %185 : vector<16x1xf32>
    %187 = vector.broadcast %186 : vector<16x1xf32> to vector<16x32xf32>
    %188 = arith.mulf %183, %187 : vector<16x32xf32>
    %189 = vector.broadcast %168 : vector<1x32xf32> to vector<16x32xf32>
    %190 = arith.mulf %188, %189 : vector<16x32xf32>
    %191 = vector.broadcast %170 : vector<1x32xf32> to vector<16x32xf32>
    %192 = arith.addf %190, %191 : vector<16x32xf32>
    %193 = arith.truncf %192 : vector<16x32xf32> to vector<16x32xbf16>
    %cst_72 = arith.constant 0.000000e+00 : f32
    %194 = vector.broadcast %cst_72 : f32 to vector<16x32xf32>
    %c0_73 = arith.constant 0 : index
    %c0_74 = arith.constant 0 : index
    %c0_75 = arith.constant 0 : index
    %195 = vector.load %arg9[%c0_73, %c0_74, %c0_75] : memref<2x32x2048xbf16, #tpu.memory_space<vmem>>, vector<1x32x512xbf16>
    %196 = vector.shape_cast %195 : vector<1x32x512xbf16> to vector<32x512xbf16>
    %cst_76 = arith.constant dense<0.000000e+00> : vector<16x512xf32>
    %197 = tpu.matmul %193, %196, %cst_76 {dimension_numbers = #tpu.dot_dimension_numbers<[1], [0], [0], [1], [0, 0, 1, 1], [], []>} : vector<16x32xbf16>, vector<32x512xbf16>, vector<16x512xf32> -> vector<16x512xf32>
    %c0_77 = arith.constant 0 : index
    %c0_78 = arith.constant 0 : index
    %c0_79 = arith.constant 0 : index
    %198 = vector.load %arg10[%c0_77, %c0_78, %c0_79] : memref<2x1x2048xf32, #tpu.memory_space<vmem>>, vector<1x1x512xf32>
    %199 = vector.shape_cast %198 : vector<1x1x512xf32> to vector<1x512xf32>
    %200 = vector.broadcast %199 : vector<1x512xf32> to vector<16x512xf32>
    %201 = arith.addf %197, %200 : vector<16x512xf32>
    %cst_80 = arith.constant 0.000000e+00 : f32
    %202 = vector.broadcast %cst_80 : f32 to vector<16x512xf32>
    %203 = arith.maximumf %201, %202 : vector<16x512xf32>
    %204 = arith.truncf %203 : vector<16x512xf32> to vector<16x512xbf16>
    %c0_81 = arith.constant 0 : index
    %c0_82 = arith.constant 0 : index
    %c0_83 = arith.constant 0 : index
    %205 = vector.load %arg11[%c0_81, %c0_82, %c0_83] : memref<2x32x2048xbf16, #tpu.memory_space<vmem>>, vector<1x32x512xbf16>
    %206 = vector.shape_cast %205 : vector<1x32x512xbf16> to vector<32x512xbf16>
    %cst_84 = arith.constant dense<0.000000e+00> : vector<16x32xf32>
    %207 = tpu.matmul %204, %206, %cst_84 {dimension_numbers = #tpu.dot_dimension_numbers<[1], [1], [0], [0], [0, 0, 1, 0], [], []>} : vector<16x512xbf16>, vector<32x512xbf16>, vector<16x32xf32> -> vector<16x32xf32>
    %208 = arith.addf %194, %207 : vector<16x32xf32>
    %c0_85 = arith.constant 0 : index
    %c0_86 = arith.constant 0 : index
    %c512 = arith.constant 512 : index
    %209 = vector.load %arg9[%c0_85, %c0_86, %c512] : memref<2x32x2048xbf16, #tpu.memory_space<vmem>>, vector<1x32x512xbf16>
    %210 = vector.shape_cast %209 : vector<1x32x512xbf16> to vector<32x512xbf16>
    %cst_87 = arith.constant dense<0.000000e+00> : vector<16x512xf32>
    %211 = tpu.matmul %193, %210, %cst_87 {dimension_numbers = #tpu.dot_dimension_numbers<[1], [0], [0], [1], [0, 0, 1, 1], [], []>} : vector<16x32xbf16>, vector<32x512xbf16>, vector<16x512xf32> -> vector<16x512xf32>
    %c0_88 = arith.constant 0 : index
    %c0_89 = arith.constant 0 : index
    %c512_90 = arith.constant 512 : index
    %212 = vector.load %arg10[%c0_88, %c0_89, %c512_90] : memref<2x1x2048xf32, #tpu.memory_space<vmem>>, vector<1x1x512xf32>
    %213 = vector.shape_cast %212 : vector<1x1x512xf32> to vector<1x512xf32>
    %214 = vector.broadcast %213 : vector<1x512xf32> to vector<16x512xf32>
    %215 = arith.addf %211, %214 : vector<16x512xf32>
    %cst_91 = arith.constant 0.000000e+00 : f32
    %216 = vector.broadcast %cst_91 : f32 to vector<16x512xf32>
    %217 = arith.maximumf %215, %216 : vector<16x512xf32>
    %218 = arith.truncf %217 : vector<16x512xf32> to vector<16x512xbf16>
    %c0_92 = arith.constant 0 : index
    %c0_93 = arith.constant 0 : index
    %c512_94 = arith.constant 512 : index
    %219 = vector.load %arg11[%c0_92, %c0_93, %c512_94] : memref<2x32x2048xbf16, #tpu.memory_space<vmem>>, vector<1x32x512xbf16>
    %220 = vector.shape_cast %219 : vector<1x32x512xbf16> to vector<32x512xbf16>
    %cst_95 = arith.constant dense<0.000000e+00> : vector<16x32xf32>
    %221 = tpu.matmul %218, %220, %cst_95 {dimension_numbers = #tpu.dot_dimension_numbers<[1], [1], [0], [0], [0, 0, 1, 0], [], []>} : vector<16x512xbf16>, vector<32x512xbf16>, vector<16x32xf32> -> vector<16x32xf32>
    %222 = arith.addf %208, %221 : vector<16x32xf32>
    %c0_96 = arith.constant 0 : index
    %c0_97 = arith.constant 0 : index
    %c1024 = arith.constant 1024 : index
    %223 = vector.load %arg9[%c0_96, %c0_97, %c1024] : memref<2x32x2048xbf16, #tpu.memory_space<vmem>>, vector<1x32x512xbf16>
    %224 = vector.shape_cast %223 : vector<1x32x512xbf16> to vector<32x512xbf16>
    %cst_98 = arith.constant dense<0.000000e+00> : vector<16x512xf32>
    %225 = tpu.matmul %193, %224, %cst_98 {dimension_numbers = #tpu.dot_dimension_numbers<[1], [0], [0], [1], [0, 0, 1, 1], [], []>} : vector<16x32xbf16>, vector<32x512xbf16>, vector<16x512xf32> -> vector<16x512xf32>
    %c0_99 = arith.constant 0 : index
    %c0_100 = arith.constant 0 : index
    %c1024_101 = arith.constant 1024 : index
    %226 = vector.load %arg10[%c0_99, %c0_100, %c1024_101] : memref<2x1x2048xf32, #tpu.memory_space<vmem>>, vector<1x1x512xf32>
    %227 = vector.shape_cast %226 : vector<1x1x512xf32> to vector<1x512xf32>
    %228 = vector.broadcast %227 : vector<1x512xf32> to vector<16x512xf32>
    %229 = arith.addf %225, %228 : vector<16x512xf32>
    %cst_102 = arith.constant 0.000000e+00 : f32
    %230 = vector.broadcast %cst_102 : f32 to vector<16x512xf32>
    %231 = arith.maximumf %229, %230 : vector<16x512xf32>
    %232 = arith.truncf %231 : vector<16x512xf32> to vector<16x512xbf16>
    %c0_103 = arith.constant 0 : index
    %c0_104 = arith.constant 0 : index
    %c1024_105 = arith.constant 1024 : index
    %233 = vector.load %arg11[%c0_103, %c0_104, %c1024_105] : memref<2x32x2048xbf16, #tpu.memory_space<vmem>>, vector<1x32x512xbf16>
    %234 = vector.shape_cast %233 : vector<1x32x512xbf16> to vector<32x512xbf16>
    %cst_106 = arith.constant dense<0.000000e+00> : vector<16x32xf32>
    %235 = tpu.matmul %232, %234, %cst_106 {dimension_numbers = #tpu.dot_dimension_numbers<[1], [1], [0], [0], [0, 0, 1, 0], [], []>} : vector<16x512xbf16>, vector<32x512xbf16>, vector<16x32xf32> -> vector<16x32xf32>
    %236 = arith.addf %222, %235 : vector<16x32xf32>
    %c0_107 = arith.constant 0 : index
    %c0_108 = arith.constant 0 : index
    %c1536 = arith.constant 1536 : index
    %237 = vector.load %arg9[%c0_107, %c0_108, %c1536] : memref<2x32x2048xbf16, #tpu.memory_space<vmem>>, vector<1x32x512xbf16>
    %238 = vector.shape_cast %237 : vector<1x32x512xbf16> to vector<32x512xbf16>
    %cst_109 = arith.constant dense<0.000000e+00> : vector<16x512xf32>
    %239 = tpu.matmul %193, %238, %cst_109 {dimension_numbers = #tpu.dot_dimension_numbers<[1], [0], [0], [1], [0, 0, 1, 1], [], []>} : vector<16x32xbf16>, vector<32x512xbf16>, vector<16x512xf32> -> vector<16x512xf32>
    %c0_110 = arith.constant 0 : index
    %c0_111 = arith.constant 0 : index
    %c1536_112 = arith.constant 1536 : index
    %240 = vector.load %arg10[%c0_110, %c0_111, %c1536_112] : memref<2x1x2048xf32, #tpu.memory_space<vmem>>, vector<1x1x512xf32>
    %241 = vector.shape_cast %240 : vector<1x1x512xf32> to vector<1x512xf32>
    %242 = vector.broadcast %241 : vector<1x512xf32> to vector<16x512xf32>
    %243 = arith.addf %239, %242 : vector<16x512xf32>
    %cst_113 = arith.constant 0.000000e+00 : f32
    %244 = vector.broadcast %cst_113 : f32 to vector<16x512xf32>
    %245 = arith.maximumf %243, %244 : vector<16x512xf32>
    %246 = arith.truncf %245 : vector<16x512xf32> to vector<16x512xbf16>
    %c0_114 = arith.constant 0 : index
    %c0_115 = arith.constant 0 : index
    %c1536_116 = arith.constant 1536 : index
    %247 = vector.load %arg11[%c0_114, %c0_115, %c1536_116] : memref<2x32x2048xbf16, #tpu.memory_space<vmem>>, vector<1x32x512xbf16>
    %248 = vector.shape_cast %247 : vector<1x32x512xbf16> to vector<32x512xbf16>
    %cst_117 = arith.constant dense<0.000000e+00> : vector<16x32xf32>
    %249 = tpu.matmul %246, %248, %cst_117 {dimension_numbers = #tpu.dot_dimension_numbers<[1], [1], [0], [0], [0, 0, 1, 0], [], []>} : vector<16x512xbf16>, vector<32x512xbf16>, vector<16x32xf32> -> vector<16x32xf32>
    %250 = arith.addf %236, %249 : vector<16x32xf32>
    %c0_118 = arith.constant 0 : index
    %c0_119 = arith.constant 0 : index
    %c0_120 = arith.constant 0 : index
    %251 = vector.load %arg12[%c0_118, %c0_119, %c0_120] : memref<2x1x32xf32, #tpu.memory_space<vmem>>, vector<1x1x32xf32>
    %252 = vector.shape_cast %251 : vector<1x1x32xf32> to vector<1x32xf32>
    %253 = vector.broadcast %252 : vector<1x32xf32> to vector<16x32xf32>
    %254 = arith.addf %250, %253 : vector<16x32xf32>
    %255 = arith.addf %192, %254 : vector<16x32xf32>
    %c0_121 = arith.constant 0 : index
    %c0_122 = arith.constant 0 : index
    %c0_123 = arith.constant 0 : index
    %256 = vector.load %arg13[%c0_121, %c0_122, %c0_123] : memref<2x1x32xf32, #tpu.memory_space<vmem>>, vector<1x1x32xf32>
    %257 = vector.shape_cast %256 : vector<1x1x32xf32> to vector<1x32xf32>
    %c0_124 = arith.constant 0 : index
    %c0_125 = arith.constant 0 : index
    %c0_126 = arith.constant 0 : index
    %258 = vector.load %arg14[%c0_124, %c0_125, %c0_126] : memref<2x1x32xf32, #tpu.memory_space<vmem>>, vector<1x1x32xf32>
    %259 = vector.shape_cast %258 : vector<1x1x32xf32> to vector<1x32xf32>
    %cst_127 = arith.constant dense<0.000000e+00> : vector<16xf32>
    %260 = vector.multi_reduction <add>, %255, %cst_127 [1] : vector<16x32xf32> to vector<16xf32>
    %261 = vector.shape_cast %260 : vector<16xf32> to vector<16x1xf32>
    %cst_128 = arith.constant 3.200000e+01 : f32
    %262 = vector.broadcast %cst_128 : f32 to vector<16x1xf32>
    %263 = arith.divf %261, %262 : vector<16x1xf32>
    %264 = vector.broadcast %263 : vector<16x1xf32> to vector<16x32xf32>
    %265 = arith.subf %255, %264 : vector<16x32xf32>
    %266 = arith.mulf %265, %265 : vector<16x32xf32>
    %cst_129 = arith.constant dense<0.000000e+00> : vector<16xf32>
    %267 = vector.multi_reduction <add>, %266, %cst_129 [1] : vector<16x32xf32> to vector<16xf32>
    %268 = vector.shape_cast %267 : vector<16xf32> to vector<16x1xf32>
    %cst_130 = arith.constant 3.200000e+01 : f32
    %269 = vector.broadcast %cst_130 : f32 to vector<16x1xf32>
    %270 = arith.divf %268, %269 : vector<16x1xf32>
    %271 = vector.broadcast %263 : vector<16x1xf32> to vector<16x32xf32>
    %272 = arith.subf %255, %271 : vector<16x32xf32>
    %cst_131 = arith.constant 9.99999974E-6 : f32
    %273 = vector.broadcast %cst_131 : f32 to vector<16x1xf32>
    %274 = arith.addf %270, %273 : vector<16x1xf32>
    %275 = math.rsqrt %274 : vector<16x1xf32>
    %276 = vector.broadcast %275 : vector<16x1xf32> to vector<16x32xf32>
    %277 = arith.mulf %272, %276 : vector<16x32xf32>
    %278 = vector.broadcast %257 : vector<1x32xf32> to vector<16x32xf32>
    %279 = arith.mulf %277, %278 : vector<16x32xf32>
    %280 = vector.broadcast %259 : vector<1x32xf32> to vector<16x32xf32>
    %281 = arith.addf %279, %280 : vector<16x32xf32>
    %c1 = arith.constant 1 : index
    %c0_132 = arith.constant 0 : index
    %c0_133 = arith.constant 0 : index
    %282 = vector.load %arg3[%c1, %c0_132, %c0_133] : memref<2x32x96xf32, #tpu.memory_space<vmem>>, vector<1x32x96xf32>
    %283 = vector.shape_cast %282 : vector<1x32x96xf32> to vector<32x96xf32>
    %cst_134 = arith.constant dense<0.000000e+00> : vector<16x96xf32>
    %284 = tpu.matmul %281, %283, %cst_134 {dimension_numbers = #tpu.dot_dimension_numbers<[1], [0], [0], [1], [0, 0, 1, 1], [], []>} : vector<16x32xf32>, vector<32x96xf32>, vector<16x96xf32> -> vector<16x96xf32>
    %c1_135 = arith.constant 1 : index
    %c0_136 = arith.constant 0 : index
    %c0_137 = arith.constant 0 : index
    %285 = vector.load %arg4[%c1_135, %c0_136, %c0_137] : memref<2x1x96xf32, #tpu.memory_space<vmem>>, vector<1x1x96xf32>
    %286 = vector.shape_cast %285 : vector<1x1x96xf32> to vector<1x96xf32>
    %287 = vector.broadcast %286 : vector<1x96xf32> to vector<16x96xf32>
    %288 = arith.addf %284, %287 : vector<16x96xf32>
    %289 = vector.extract_strided_slice %288 {offsets = [0, 0], sizes = [16, 32], strides = [1, 1]} : vector<16x96xf32> to vector<16x32xf32>
    %290 = vector.extract_strided_slice %288 {offsets = [0, 32], sizes = [16, 32], strides = [1, 1]} : vector<16x96xf32> to vector<16x32xf32>
    %291 = vector.extract_strided_slice %288 {offsets = [0, 64], sizes = [16, 32], strides = [1, 1]} : vector<16x96xf32> to vector<16x32xf32>
    %292 = vector.extract_strided_slice %289 {offsets = [0, 0], sizes = [16, 4], strides = [1, 1]} : vector<16x32xf32> to vector<16x4xf32>
    %293 = vector.extract_strided_slice %290 {offsets = [0, 0], sizes = [16, 4], strides = [1, 1]} : vector<16x32xf32> to vector<16x4xf32>
    %cst_138 = arith.constant dense<0.000000e+00> : vector<16x16xf32>
    %294 = tpu.matmul %292, %293, %cst_138 {dimension_numbers = #tpu.dot_dimension_numbers<[1], [1], [0], [0], [0, 0, 1, 0], [], []>} : vector<16x4xf32>, vector<16x4xf32>, vector<16x16xf32> -> vector<16x16xf32>
    %295 = vector.broadcast %3 : vector<1x16xf32> to vector<16x16xf32>
    %296 = arith.addf %294, %295 : vector<16x16xf32>
    %cst_139 = arith.constant dense<0xFF800000> : vector<16xf32>
    %297 = vector.multi_reduction <maximumf>, %296, %cst_139 [1] : vector<16x16xf32> to vector<16xf32>
    %298 = vector.shape_cast %297 : vector<16xf32> to vector<16x1xf32>
    %299 = vector.broadcast %298 : vector<16x1xf32> to vector<16x16xf32>
    %300 = arith.subf %296, %299 : vector<16x16xf32>
    %301 = math.exp %300 : vector<16x16xf32>
    %cst_140 = arith.constant dense<0.000000e+00> : vector<16xf32>
    %302 = vector.multi_reduction <add>, %301, %cst_140 [1] : vector<16x16xf32> to vector<16xf32>
    %303 = vector.shape_cast %302 : vector<16xf32> to vector<16x1xf32>
    %304 = tpu.reciprocal %303 {approx = true} : vector<16x1xf32> -> vector<16x1xf32>
    %305 = vector.broadcast %304 : vector<16x1xf32> to vector<16x16xf32>
    %306 = arith.mulf %301, %305 : vector<16x16xf32>
    %307 = vector.extract_strided_slice %291 {offsets = [0, 0], sizes = [16, 4], strides = [1, 1]} : vector<16x32xf32> to vector<16x4xf32>
    %cst_141 = arith.constant dense<0.000000e+00> : vector<16x4xf32>
    %308 = tpu.matmul %306, %307, %cst_141 {dimension_numbers = #tpu.dot_dimension_numbers<[1], [0], [0], [1], [0, 0, 1, 1], [], []>} : vector<16x16xf32>, vector<16x4xf32>, vector<16x4xf32> -> vector<16x4xf32>
    %c0_142 = arith.constant 0 : index
    %c0_143 = arith.constant 0 : index
    %309 = vector.load %arg18[%c0_142, %c0_143] : memref<16x32xf32, #tpu.memory_space<vmem>>, vector<16x4xf32>
    tpu.vector_store %arg18[%c0_142, %c0_143], %308 {strides = array<i32>} : memref<16x32xf32, #tpu.memory_space<vmem>>, vector<16x4xf32>,
    %310 = vector.extract_strided_slice %289 {offsets = [0, 4], sizes = [16, 4], strides = [1, 1]} : vector<16x32xf32> to vector<16x4xf32>
    %311 = vector.extract_strided_slice %290 {offsets = [0, 4], sizes = [16, 4], strides = [1, 1]} : vector<16x32xf32> to vector<16x4xf32>
    %cst_144 = arith.constant dense<0.000000e+00> : vector<16x16xf32>
    %312 = tpu.matmul %310, %311, %cst_144 {dimension_numbers = #tpu.dot_dimension_numbers<[1], [1], [0], [0], [0, 0, 1, 0], [], []>} : vector<16x4xf32>, vector<16x4xf32>, vector<16x16xf32> -> vector<16x16xf32>
    %313 = vector.broadcast %3 : vector<1x16xf32> to vector<16x16xf32>
    %314 = arith.addf %312, %313 : vector<16x16xf32>
    %cst_145 = arith.constant dense<0xFF800000> : vector<16xf32>
    %315 = vector.multi_reduction <maximumf>, %314, %cst_145 [1] : vector<16x16xf32> to vector<16xf32>
    %316 = vector.shape_cast %315 : vector<16xf32> to vector<16x1xf32>
    %317 = vector.broadcast %316 : vector<16x1xf32> to vector<16x16xf32>
    %318 = arith.subf %314, %317 : vector<16x16xf32>
    %319 = math.exp %318 : vector<16x16xf32>
    %cst_146 = arith.constant dense<0.000000e+00> : vector<16xf32>
    %320 = vector.multi_reduction <add>, %319, %cst_146 [1] : vector<16x16xf32> to vector<16xf32>
    %321 = vector.shape_cast %320 : vector<16xf32> to vector<16x1xf32>
    %322 = tpu.reciprocal %321 {approx = true} : vector<16x1xf32> -> vector<16x1xf32>
    %323 = vector.broadcast %322 : vector<16x1xf32> to vector<16x16xf32>
    %324 = arith.mulf %319, %323 : vector<16x16xf32>
    %325 = vector.extract_strided_slice %291 {offsets = [0, 4], sizes = [16, 4], strides = [1, 1]} : vector<16x32xf32> to vector<16x4xf32>
    %cst_147 = arith.constant dense<0.000000e+00> : vector<16x4xf32>
    %326 = tpu.matmul %324, %325, %cst_147 {dimension_numbers = #tpu.dot_dimension_numbers<[1], [0], [0], [1], [0, 0, 1, 1], [], []>} : vector<16x16xf32>, vector<16x4xf32>, vector<16x4xf32> -> vector<16x4xf32>
    %c0_148 = arith.constant 0 : index
    %c4_149 = arith.constant 4 : index
    %327 = vector.load %arg18[%c0_148, %c4_149] : memref<16x32xf32, #tpu.memory_space<vmem>>, vector<16x4xf32>
    tpu.vector_store %arg18[%c0_148, %c4_149], %326 {strides = array<i32>} : memref<16x32xf32, #tpu.memory_space<vmem>>, vector<16x4xf32>,
    %328 = vector.extract_strided_slice %289 {offsets = [0, 8], sizes = [16, 4], strides = [1, 1]} : vector<16x32xf32> to vector<16x4xf32>
    %329 = vector.extract_strided_slice %290 {offsets = [0, 8], sizes = [16, 4], strides = [1, 1]} : vector<16x32xf32> to vector<16x4xf32>
    %cst_150 = arith.constant dense<0.000000e+00> : vector<16x16xf32>
    %330 = tpu.matmul %328, %329, %cst_150 {dimension_numbers = #tpu.dot_dimension_numbers<[1], [1], [0], [0], [0, 0, 1, 0], [], []>} : vector<16x4xf32>, vector<16x4xf32>, vector<16x16xf32> -> vector<16x16xf32>
    %331 = vector.broadcast %3 : vector<1x16xf32> to vector<16x16xf32>
    %332 = arith.addf %330, %331 : vector<16x16xf32>
    %cst_151 = arith.constant dense<0xFF800000> : vector<16xf32>
    %333 = vector.multi_reduction <maximumf>, %332, %cst_151 [1] : vector<16x16xf32> to vector<16xf32>
    %334 = vector.shape_cast %333 : vector<16xf32> to vector<16x1xf32>
    %335 = vector.broadcast %334 : vector<16x1xf32> to vector<16x16xf32>
    %336 = arith.subf %332, %335 : vector<16x16xf32>
    %337 = math.exp %336 : vector<16x16xf32>
    %cst_152 = arith.constant dense<0.000000e+00> : vector<16xf32>
    %338 = vector.multi_reduction <add>, %337, %cst_152 [1] : vector<16x16xf32> to vector<16xf32>
    %339 = vector.shape_cast %338 : vector<16xf32> to vector<16x1xf32>
    %340 = tpu.reciprocal %339 {approx = true} : vector<16x1xf32> -> vector<16x1xf32>
    %341 = vector.broadcast %340 : vector<16x1xf32> to vector<16x16xf32>
    %342 = arith.mulf %337, %341 : vector<16x16xf32>
    %343 = vector.extract_strided_slice %291 {offsets = [0, 8], sizes = [16, 4], strides = [1, 1]} : vector<16x32xf32> to vector<16x4xf32>
    %cst_153 = arith.constant dense<0.000000e+00> : vector<16x4xf32>
    %344 = tpu.matmul %342, %343, %cst_153 {dimension_numbers = #tpu.dot_dimension_numbers<[1], [0], [0], [1], [0, 0, 1, 1], [], []>} : vector<16x16xf32>, vector<16x4xf32>, vector<16x4xf32> -> vector<16x4xf32>
    %c0_154 = arith.constant 0 : index
    %c8_155 = arith.constant 8 : index
    %345 = vector.load %arg18[%c0_154, %c8_155] : memref<16x32xf32, #tpu.memory_space<vmem>>, vector<16x4xf32>
    tpu.vector_store %arg18[%c0_154, %c8_155], %344 {strides = array<i32>} : memref<16x32xf32, #tpu.memory_space<vmem>>, vector<16x4xf32>,
    %346 = vector.extract_strided_slice %289 {offsets = [0, 12], sizes = [16, 4], strides = [1, 1]} : vector<16x32xf32> to vector<16x4xf32>
    %347 = vector.extract_strided_slice %290 {offsets = [0, 12], sizes = [16, 4], strides = [1, 1]} : vector<16x32xf32> to vector<16x4xf32>
    %cst_156 = arith.constant dense<0.000000e+00> : vector<16x16xf32>
    %348 = tpu.matmul %346, %347, %cst_156 {dimension_numbers = #tpu.dot_dimension_numbers<[1], [1], [0], [0], [0, 0, 1, 0], [], []>} : vector<16x4xf32>, vector<16x4xf32>, vector<16x16xf32> -> vector<16x16xf32>
    %349 = vector.broadcast %3 : vector<1x16xf32> to vector<16x16xf32>
    %350 = arith.addf %348, %349 : vector<16x16xf32>
    %cst_157 = arith.constant dense<0xFF800000> : vector<16xf32>
    %351 = vector.multi_reduction <maximumf>, %350, %cst_157 [1] : vector<16x16xf32> to vector<16xf32>
    %352 = vector.shape_cast %351 : vector<16xf32> to vector<16x1xf32>
    %353 = vector.broadcast %352 : vector<16x1xf32> to vector<16x16xf32>
    %354 = arith.subf %350, %353 : vector<16x16xf32>
    %355 = math.exp %354 : vector<16x16xf32>
    %cst_158 = arith.constant dense<0.000000e+00> : vector<16xf32>
    %356 = vector.multi_reduction <add>, %355, %cst_158 [1] : vector<16x16xf32> to vector<16xf32>
    %357 = vector.shape_cast %356 : vector<16xf32> to vector<16x1xf32>
    %358 = tpu.reciprocal %357 {approx = true} : vector<16x1xf32> -> vector<16x1xf32>
    %359 = vector.broadcast %358 : vector<16x1xf32> to vector<16x16xf32>
    %360 = arith.mulf %355, %359 : vector<16x16xf32>
    %361 = vector.extract_strided_slice %291 {offsets = [0, 12], sizes = [16, 4], strides = [1, 1]} : vector<16x32xf32> to vector<16x4xf32>
    %cst_159 = arith.constant dense<0.000000e+00> : vector<16x4xf32>
    %362 = tpu.matmul %360, %361, %cst_159 {dimension_numbers = #tpu.dot_dimension_numbers<[1], [0], [0], [1], [0, 0, 1, 1], [], []>} : vector<16x16xf32>, vector<16x4xf32>, vector<16x4xf32> -> vector<16x4xf32>
    %c0_160 = arith.constant 0 : index
    %c12_161 = arith.constant 12 : index
    %363 = vector.load %arg18[%c0_160, %c12_161] : memref<16x32xf32, #tpu.memory_space<vmem>>, vector<16x4xf32>
    tpu.vector_store %arg18[%c0_160, %c12_161], %362 {strides = array<i32>} : memref<16x32xf32, #tpu.memory_space<vmem>>, vector<16x4xf32>,
    %364 = vector.extract_strided_slice %289 {offsets = [0, 16], sizes = [16, 4], strides = [1, 1]} : vector<16x32xf32> to vector<16x4xf32>
    %365 = vector.extract_strided_slice %290 {offsets = [0, 16], sizes = [16, 4], strides = [1, 1]} : vector<16x32xf32> to vector<16x4xf32>
    %cst_162 = arith.constant dense<0.000000e+00> : vector<16x16xf32>
    %366 = tpu.matmul %364, %365, %cst_162 {dimension_numbers = #tpu.dot_dimension_numbers<[1], [1], [0], [0], [0, 0, 1, 0], [], []>} : vector<16x4xf32>, vector<16x4xf32>, vector<16x16xf32> -> vector<16x16xf32>
    %367 = vector.broadcast %3 : vector<1x16xf32> to vector<16x16xf32>
    %368 = arith.addf %366, %367 : vector<16x16xf32>
    %cst_163 = arith.constant dense<0xFF800000> : vector<16xf32>
    %369 = vector.multi_reduction <maximumf>, %368, %cst_163 [1] : vector<16x16xf32> to vector<16xf32>
    %370 = vector.shape_cast %369 : vector<16xf32> to vector<16x1xf32>
    %371 = vector.broadcast %370 : vector<16x1xf32> to vector<16x16xf32>
    %372 = arith.subf %368, %371 : vector<16x16xf32>
    %373 = math.exp %372 : vector<16x16xf32>
    %cst_164 = arith.constant dense<0.000000e+00> : vector<16xf32>
    %374 = vector.multi_reduction <add>, %373, %cst_164 [1] : vector<16x16xf32> to vector<16xf32>
    %375 = vector.shape_cast %374 : vector<16xf32> to vector<16x1xf32>
    %376 = tpu.reciprocal %375 {approx = true} : vector<16x1xf32> -> vector<16x1xf32>
    %377 = vector.broadcast %376 : vector<16x1xf32> to vector<16x16xf32>
    %378 = arith.mulf %373, %377 : vector<16x16xf32>
    %379 = vector.extract_strided_slice %291 {offsets = [0, 16], sizes = [16, 4], strides = [1, 1]} : vector<16x32xf32> to vector<16x4xf32>
    %cst_165 = arith.constant dense<0.000000e+00> : vector<16x4xf32>
    %380 = tpu.matmul %378, %379, %cst_165 {dimension_numbers = #tpu.dot_dimension_numbers<[1], [0], [0], [1], [0, 0, 1, 1], [], []>} : vector<16x16xf32>, vector<16x4xf32>, vector<16x4xf32> -> vector<16x4xf32>
    %c0_166 = arith.constant 0 : index
    %c16_167 = arith.constant 16 : index
    %381 = vector.load %arg18[%c0_166, %c16_167] : memref<16x32xf32, #tpu.memory_space<vmem>>, vector<16x4xf32>
    tpu.vector_store %arg18[%c0_166, %c16_167], %380 {strides = array<i32>} : memref<16x32xf32, #tpu.memory_space<vmem>>, vector<16x4xf32>,
    %382 = vector.extract_strided_slice %289 {offsets = [0, 20], sizes = [16, 4], strides = [1, 1]} : vector<16x32xf32> to vector<16x4xf32>
    %383 = vector.extract_strided_slice %290 {offsets = [0, 20], sizes = [16, 4], strides = [1, 1]} : vector<16x32xf32> to vector<16x4xf32>
    %cst_168 = arith.constant dense<0.000000e+00> : vector<16x16xf32>
    %384 = tpu.matmul %382, %383, %cst_168 {dimension_numbers = #tpu.dot_dimension_numbers<[1], [1], [0], [0], [0, 0, 1, 0], [], []>} : vector<16x4xf32>, vector<16x4xf32>, vector<16x16xf32> -> vector<16x16xf32>
    %385 = vector.broadcast %3 : vector<1x16xf32> to vector<16x16xf32>
    %386 = arith.addf %384, %385 : vector<16x16xf32>
    %cst_169 = arith.constant dense<0xFF800000> : vector<16xf32>
    %387 = vector.multi_reduction <maximumf>, %386, %cst_169 [1] : vector<16x16xf32> to vector<16xf32>
    %388 = vector.shape_cast %387 : vector<16xf32> to vector<16x1xf32>
    %389 = vector.broadcast %388 : vector<16x1xf32> to vector<16x16xf32>
    %390 = arith.subf %386, %389 : vector<16x16xf32>
    %391 = math.exp %390 : vector<16x16xf32>
    %cst_170 = arith.constant dense<0.000000e+00> : vector<16xf32>
    %392 = vector.multi_reduction <add>, %391, %cst_170 [1] : vector<16x16xf32> to vector<16xf32>
    %393 = vector.shape_cast %392 : vector<16xf32> to vector<16x1xf32>
    %394 = tpu.reciprocal %393 {approx = true} : vector<16x1xf32> -> vector<16x1xf32>
    %395 = vector.broadcast %394 : vector<16x1xf32> to vector<16x16xf32>
    %396 = arith.mulf %391, %395 : vector<16x16xf32>
    %397 = vector.extract_strided_slice %291 {offsets = [0, 20], sizes = [16, 4], strides = [1, 1]} : vector<16x32xf32> to vector<16x4xf32>
    %cst_171 = arith.constant dense<0.000000e+00> : vector<16x4xf32>
    %398 = tpu.matmul %396, %397, %cst_171 {dimension_numbers = #tpu.dot_dimension_numbers<[1], [0], [0], [1], [0, 0, 1, 1], [], []>} : vector<16x16xf32>, vector<16x4xf32>, vector<16x4xf32> -> vector<16x4xf32>
    %c0_172 = arith.constant 0 : index
    %c20_173 = arith.constant 20 : index
    %399 = vector.load %arg18[%c0_172, %c20_173] : memref<16x32xf32, #tpu.memory_space<vmem>>, vector<16x4xf32>
    tpu.vector_store %arg18[%c0_172, %c20_173], %398 {strides = array<i32>} : memref<16x32xf32, #tpu.memory_space<vmem>>, vector<16x4xf32>,
    %400 = vector.extract_strided_slice %289 {offsets = [0, 24], sizes = [16, 4], strides = [1, 1]} : vector<16x32xf32> to vector<16x4xf32>
    %401 = vector.extract_strided_slice %290 {offsets = [0, 24], sizes = [16, 4], strides = [1, 1]} : vector<16x32xf32> to vector<16x4xf32>
    %cst_174 = arith.constant dense<0.000000e+00> : vector<16x16xf32>
    %402 = tpu.matmul %400, %401, %cst_174 {dimension_numbers = #tpu.dot_dimension_numbers<[1], [1], [0], [0], [0, 0, 1, 0], [], []>} : vector<16x4xf32>, vector<16x4xf32>, vector<16x16xf32> -> vector<16x16xf32>
    %403 = vector.broadcast %3 : vector<1x16xf32> to vector<16x16xf32>
    %404 = arith.addf %402, %403 : vector<16x16xf32>
    %cst_175 = arith.constant dense<0xFF800000> : vector<16xf32>
    %405 = vector.multi_reduction <maximumf>, %404, %cst_175 [1] : vector<16x16xf32> to vector<16xf32>
    %406 = vector.shape_cast %405 : vector<16xf32> to vector<16x1xf32>
    %407 = vector.broadcast %406 : vector<16x1xf32> to vector<16x16xf32>
    %408 = arith.subf %404, %407 : vector<16x16xf32>
    %409 = math.exp %408 : vector<16x16xf32>
    %cst_176 = arith.constant dense<0.000000e+00> : vector<16xf32>
    %410 = vector.multi_reduction <add>, %409, %cst_176 [1] : vector<16x16xf32> to vector<16xf32>
    %411 = vector.shape_cast %410 : vector<16xf32> to vector<16x1xf32>
    %412 = tpu.reciprocal %411 {approx = true} : vector<16x1xf32> -> vector<16x1xf32>
    %413 = vector.broadcast %412 : vector<16x1xf32> to vector<16x16xf32>
    %414 = arith.mulf %409, %413 : vector<16x16xf32>
    %415 = vector.extract_strided_slice %291 {offsets = [0, 24], sizes = [16, 4], strides = [1, 1]} : vector<16x32xf32> to vector<16x4xf32>
    %cst_177 = arith.constant dense<0.000000e+00> : vector<16x4xf32>
    %416 = tpu.matmul %414, %415, %cst_177 {dimension_numbers = #tpu.dot_dimension_numbers<[1], [0], [0], [1], [0, 0, 1, 1], [], []>} : vector<16x16xf32>, vector<16x4xf32>, vector<16x4xf32> -> vector<16x4xf32>
    %c0_178 = arith.constant 0 : index
    %c24_179 = arith.constant 24 : index
    %417 = vector.load %arg18[%c0_178, %c24_179] : memref<16x32xf32, #tpu.memory_space<vmem>>, vector<16x4xf32>
    tpu.vector_store %arg18[%c0_178, %c24_179], %416 {strides = array<i32>} : memref<16x32xf32, #tpu.memory_space<vmem>>, vector<16x4xf32>,
    %418 = vector.extract_strided_slice %289 {offsets = [0, 28], sizes = [16, 4], strides = [1, 1]} : vector<16x32xf32> to vector<16x4xf32>
    %419 = vector.extract_strided_slice %290 {offsets = [0, 28], sizes = [16, 4], strides = [1, 1]} : vector<16x32xf32> to vector<16x4xf32>
    %cst_180 = arith.constant dense<0.000000e+00> : vector<16x16xf32>
    %420 = tpu.matmul %418, %419, %cst_180 {dimension_numbers = #tpu.dot_dimension_numbers<[1], [1], [0], [0], [0, 0, 1, 0], [], []>} : vector<16x4xf32>, vector<16x4xf32>, vector<16x16xf32> -> vector<16x16xf32>
    %421 = vector.broadcast %3 : vector<1x16xf32> to vector<16x16xf32>
    %422 = arith.addf %420, %421 : vector<16x16xf32>
    %cst_181 = arith.constant dense<0xFF800000> : vector<16xf32>
    %423 = vector.multi_reduction <maximumf>, %422, %cst_181 [1] : vector<16x16xf32> to vector<16xf32>
    %424 = vector.shape_cast %423 : vector<16xf32> to vector<16x1xf32>
    %425 = vector.broadcast %424 : vector<16x1xf32> to vector<16x16xf32>
    %426 = arith.subf %422, %425 : vector<16x16xf32>
    %427 = math.exp %426 : vector<16x16xf32>
    %cst_182 = arith.constant dense<0.000000e+00> : vector<16xf32>
    %428 = vector.multi_reduction <add>, %427, %cst_182 [1] : vector<16x16xf32> to vector<16xf32>
    %429 = vector.shape_cast %428 : vector<16xf32> to vector<16x1xf32>
    %430 = tpu.reciprocal %429 {approx = true} : vector<16x1xf32> -> vector<16x1xf32>
    %431 = vector.broadcast %430 : vector<16x1xf32> to vector<16x16xf32>
    %432 = arith.mulf %427, %431 : vector<16x16xf32>
    %433 = vector.extract_strided_slice %291 {offsets = [0, 28], sizes = [16, 4], strides = [1, 1]} : vector<16x32xf32> to vector<16x4xf32>
    %cst_183 = arith.constant dense<0.000000e+00> : vector<16x4xf32>
    %434 = tpu.matmul %432, %433, %cst_183 {dimension_numbers = #tpu.dot_dimension_numbers<[1], [0], [0], [1], [0, 0, 1, 1], [], []>} : vector<16x16xf32>, vector<16x4xf32>, vector<16x4xf32> -> vector<16x4xf32>
    %c0_184 = arith.constant 0 : index
    %c28_185 = arith.constant 28 : index
    %435 = vector.load %arg18[%c0_184, %c28_185] : memref<16x32xf32, #tpu.memory_space<vmem>>, vector<16x4xf32>
    tpu.vector_store %arg18[%c0_184, %c28_185], %434 {strides = array<i32>} : memref<16x32xf32, #tpu.memory_space<vmem>>, vector<16x4xf32>,
    %c0_186 = arith.constant 0 : index
    %c0_187 = arith.constant 0 : index
    %436 = vector.load %arg18[%c0_186, %c0_187] : memref<16x32xf32, #tpu.memory_space<vmem>>, vector<16x32xf32>
    %c1_188 = arith.constant 1 : index
    %c0_189 = arith.constant 0 : index
    %c0_190 = arith.constant 0 : index
    %437 = vector.load %arg5[%c1_188, %c0_189, %c0_190] : memref<2x32x32xf32, #tpu.memory_space<vmem>>, vector<1x32x32xf32>
    %438 = vector.shape_cast %437 : vector<1x32x32xf32> to vector<32x32xf32>
    %cst_191 = arith.constant dense<0.000000e+00> : vector<16x32xf32>
    %439 = tpu.matmul %436, %438, %cst_191 {dimension_numbers = #tpu.dot_dimension_numbers<[1], [0], [0], [1], [0, 0, 1, 1], [], []>} : vector<16x32xf32>, vector<32x32xf32>, vector<16x32xf32> -> vector<16x32xf32>
    %c1_192 = arith.constant 1 : index
    %c0_193 = arith.constant 0 : index
    %c0_194 = arith.constant 0 : index
    %440 = vector.load %arg6[%c1_192, %c0_193, %c0_194] : memref<2x1x32xf32, #tpu.memory_space<vmem>>, vector<1x1x32xf32>
    %441 = vector.shape_cast %440 : vector<1x1x32xf32> to vector<1x32xf32>
    %442 = vector.broadcast %441 : vector<1x32xf32> to vector<16x32xf32>
    %443 = arith.addf %439, %442 : vector<16x32xf32>
    %444 = arith.addf %281, %443 : vector<16x32xf32>
    %c1_195 = arith.constant 1 : index
    %c0_196 = arith.constant 0 : index
    %c0_197 = arith.constant 0 : index
    %445 = vector.load %arg7[%c1_195, %c0_196, %c0_197] : memref<2x1x32xf32, #tpu.memory_space<vmem>>, vector<1x1x32xf32>
    %446 = vector.shape_cast %445 : vector<1x1x32xf32> to vector<1x32xf32>
    %c1_198 = arith.constant 1 : index
    %c0_199 = arith.constant 0 : index
    %c0_200 = arith.constant 0 : index
    %447 = vector.load %arg8[%c1_198, %c0_199, %c0_200] : memref<2x1x32xf32, #tpu.memory_space<vmem>>, vector<1x1x32xf32>
    %448 = vector.shape_cast %447 : vector<1x1x32xf32> to vector<1x32xf32>
    %cst_201 = arith.constant dense<0.000000e+00> : vector<16xf32>
    %449 = vector.multi_reduction <add>, %444, %cst_201 [1] : vector<16x32xf32> to vector<16xf32>
    %450 = vector.shape_cast %449 : vector<16xf32> to vector<16x1xf32>
    %cst_202 = arith.constant 3.200000e+01 : f32
    %451 = vector.broadcast %cst_202 : f32 to vector<16x1xf32>
    %452 = arith.divf %450, %451 : vector<16x1xf32>
    %453 = vector.broadcast %452 : vector<16x1xf32> to vector<16x32xf32>
    %454 = arith.subf %444, %453 : vector<16x32xf32>
    %455 = arith.mulf %454, %454 : vector<16x32xf32>
    %cst_203 = arith.constant dense<0.000000e+00> : vector<16xf32>
    %456 = vector.multi_reduction <add>, %455, %cst_203 [1] : vector<16x32xf32> to vector<16xf32>
    %457 = vector.shape_cast %456 : vector<16xf32> to vector<16x1xf32>
    %cst_204 = arith.constant 3.200000e+01 : f32
    %458 = vector.broadcast %cst_204 : f32 to vector<16x1xf32>
    %459 = arith.divf %457, %458 : vector<16x1xf32>
    %460 = vector.broadcast %452 : vector<16x1xf32> to vector<16x32xf32>
    %461 = arith.subf %444, %460 : vector<16x32xf32>
    %cst_205 = arith.constant 9.99999974E-6 : f32
    %462 = vector.broadcast %cst_205 : f32 to vector<16x1xf32>
    %463 = arith.addf %459, %462 : vector<16x1xf32>
    %464 = math.rsqrt %463 : vector<16x1xf32>
    %465 = vector.broadcast %464 : vector<16x1xf32> to vector<16x32xf32>
    %466 = arith.mulf %461, %465 : vector<16x32xf32>
    %467 = vector.broadcast %446 : vector<1x32xf32> to vector<16x32xf32>
    %468 = arith.mulf %466, %467 : vector<16x32xf32>
    %469 = vector.broadcast %448 : vector<1x32xf32> to vector<16x32xf32>
    %470 = arith.addf %468, %469 : vector<16x32xf32>
    %471 = arith.truncf %470 : vector<16x32xf32> to vector<16x32xbf16>
    %cst_206 = arith.constant 0.000000e+00 : f32
    %472 = vector.broadcast %cst_206 : f32 to vector<16x32xf32>
    %c1_207 = arith.constant 1 : index
    %c0_208 = arith.constant 0 : index
    %c0_209 = arith.constant 0 : index
    %473 = vector.load %arg9[%c1_207, %c0_208, %c0_209] : memref<2x32x2048xbf16, #tpu.memory_space<vmem>>, vector<1x32x512xbf16>
    %474 = vector.shape_cast %473 : vector<1x32x512xbf16> to vector<32x512xbf16>
    %cst_210 = arith.constant dense<0.000000e+00> : vector<16x512xf32>
    %475 = tpu.matmul %471, %474, %cst_210 {dimension_numbers = #tpu.dot_dimension_numbers<[1], [0], [0], [1], [0, 0, 1, 1], [], []>} : vector<16x32xbf16>, vector<32x512xbf16>, vector<16x512xf32> -> vector<16x512xf32>
    %c1_211 = arith.constant 1 : index
    %c0_212 = arith.constant 0 : index
    %c0_213 = arith.constant 0 : index
    %476 = vector.load %arg10[%c1_211, %c0_212, %c0_213] : memref<2x1x2048xf32, #tpu.memory_space<vmem>>, vector<1x1x512xf32>
    %477 = vector.shape_cast %476 : vector<1x1x512xf32> to vector<1x512xf32>
    %478 = vector.broadcast %477 : vector<1x512xf32> to vector<16x512xf32>
    %479 = arith.addf %475, %478 : vector<16x512xf32>
    %cst_214 = arith.constant 0.000000e+00 : f32
    %480 = vector.broadcast %cst_214 : f32 to vector<16x512xf32>
    %481 = arith.maximumf %479, %480 : vector<16x512xf32>
    %482 = arith.truncf %481 : vector<16x512xf32> to vector<16x512xbf16>
    %c1_215 = arith.constant 1 : index
    %c0_216 = arith.constant 0 : index
    %c0_217 = arith.constant 0 : index
    %483 = vector.load %arg11[%c1_215, %c0_216, %c0_217] : memref<2x32x2048xbf16, #tpu.memory_space<vmem>>, vector<1x32x512xbf16>
    %484 = vector.shape_cast %483 : vector<1x32x512xbf16> to vector<32x512xbf16>
    %cst_218 = arith.constant dense<0.000000e+00> : vector<16x32xf32>
    %485 = tpu.matmul %482, %484, %cst_218 {dimension_numbers = #tpu.dot_dimension_numbers<[1], [1], [0], [0], [0, 0, 1, 0], [], []>} : vector<16x512xbf16>, vector<32x512xbf16>, vector<16x32xf32> -> vector<16x32xf32>
    %486 = arith.addf %472, %485 : vector<16x32xf32>
    %c1_219 = arith.constant 1 : index
    %c0_220 = arith.constant 0 : index
    %c512_221 = arith.constant 512 : index
    %487 = vector.load %arg9[%c1_219, %c0_220, %c512_221] : memref<2x32x2048xbf16, #tpu.memory_space<vmem>>, vector<1x32x512xbf16>
    %488 = vector.shape_cast %487 : vector<1x32x512xbf16> to vector<32x512xbf16>
    %cst_222 = arith.constant dense<0.000000e+00> : vector<16x512xf32>
    %489 = tpu.matmul %471, %488, %cst_222 {dimension_numbers = #tpu.dot_dimension_numbers<[1], [0], [0], [1], [0, 0, 1, 1], [], []>} : vector<16x32xbf16>, vector<32x512xbf16>, vector<16x512xf32> -> vector<16x512xf32>
    %c1_223 = arith.constant 1 : index
    %c0_224 = arith.constant 0 : index
    %c512_225 = arith.constant 512 : index
    %490 = vector.load %arg10[%c1_223, %c0_224, %c512_225] : memref<2x1x2048xf32, #tpu.memory_space<vmem>>, vector<1x1x512xf32>
    %491 = vector.shape_cast %490 : vector<1x1x512xf32> to vector<1x512xf32>
    %492 = vector.broadcast %491 : vector<1x512xf32> to vector<16x512xf32>
    %493 = arith.addf %489, %492 : vector<16x512xf32>
    %cst_226 = arith.constant 0.000000e+00 : f32
    %494 = vector.broadcast %cst_226 : f32 to vector<16x512xf32>
    %495 = arith.maximumf %493, %494 : vector<16x512xf32>
    %496 = arith.truncf %495 : vector<16x512xf32> to vector<16x512xbf16>
    %c1_227 = arith.constant 1 : index
    %c0_228 = arith.constant 0 : index
    %c512_229 = arith.constant 512 : index
    %497 = vector.load %arg11[%c1_227, %c0_228, %c512_229] : memref<2x32x2048xbf16, #tpu.memory_space<vmem>>, vector<1x32x512xbf16>
    %498 = vector.shape_cast %497 : vector<1x32x512xbf16> to vector<32x512xbf16>
    %cst_230 = arith.constant dense<0.000000e+00> : vector<16x32xf32>
    %499 = tpu.matmul %496, %498, %cst_230 {dimension_numbers = #tpu.dot_dimension_numbers<[1], [1], [0], [0], [0, 0, 1, 0], [], []>} : vector<16x512xbf16>, vector<32x512xbf16>, vector<16x32xf32> -> vector<16x32xf32>
    %500 = arith.addf %486, %499 : vector<16x32xf32>
    %c1_231 = arith.constant 1 : index
    %c0_232 = arith.constant 0 : index
    %c1024_233 = arith.constant 1024 : index
    %501 = vector.load %arg9[%c1_231, %c0_232, %c1024_233] : memref<2x32x2048xbf16, #tpu.memory_space<vmem>>, vector<1x32x512xbf16>
    %502 = vector.shape_cast %501 : vector<1x32x512xbf16> to vector<32x512xbf16>
    %cst_234 = arith.constant dense<0.000000e+00> : vector<16x512xf32>
    %503 = tpu.matmul %471, %502, %cst_234 {dimension_numbers = #tpu.dot_dimension_numbers<[1], [0], [0], [1], [0, 0, 1, 1], [], []>} : vector<16x32xbf16>, vector<32x512xbf16>, vector<16x512xf32> -> vector<16x512xf32>
    %c1_235 = arith.constant 1 : index
    %c0_236 = arith.constant 0 : index
    %c1024_237 = arith.constant 1024 : index
    %504 = vector.load %arg10[%c1_235, %c0_236, %c1024_237] : memref<2x1x2048xf32, #tpu.memory_space<vmem>>, vector<1x1x512xf32>
    %505 = vector.shape_cast %504 : vector<1x1x512xf32> to vector<1x512xf32>
    %506 = vector.broadcast %505 : vector<1x512xf32> to vector<16x512xf32>
    %507 = arith.addf %503, %506 : vector<16x512xf32>
    %cst_238 = arith.constant 0.000000e+00 : f32
    %508 = vector.broadcast %cst_238 : f32 to vector<16x512xf32>
    %509 = arith.maximumf %507, %508 : vector<16x512xf32>
    %510 = arith.truncf %509 : vector<16x512xf32> to vector<16x512xbf16>
    %c1_239 = arith.constant 1 : index
    %c0_240 = arith.constant 0 : index
    %c1024_241 = arith.constant 1024 : index
    %511 = vector.load %arg11[%c1_239, %c0_240, %c1024_241] : memref<2x32x2048xbf16, #tpu.memory_space<vmem>>, vector<1x32x512xbf16>
    %512 = vector.shape_cast %511 : vector<1x32x512xbf16> to vector<32x512xbf16>
    %cst_242 = arith.constant dense<0.000000e+00> : vector<16x32xf32>
    %513 = tpu.matmul %510, %512, %cst_242 {dimension_numbers = #tpu.dot_dimension_numbers<[1], [1], [0], [0], [0, 0, 1, 0], [], []>} : vector<16x512xbf16>, vector<32x512xbf16>, vector<16x32xf32> -> vector<16x32xf32>
    %514 = arith.addf %500, %513 : vector<16x32xf32>
    %c1_243 = arith.constant 1 : index
    %c0_244 = arith.constant 0 : index
    %c1536_245 = arith.constant 1536 : index
    %515 = vector.load %arg9[%c1_243, %c0_244, %c1536_245] : memref<2x32x2048xbf16, #tpu.memory_space<vmem>>, vector<1x32x512xbf16>
    %516 = vector.shape_cast %515 : vector<1x32x512xbf16> to vector<32x512xbf16>
    %cst_246 = arith.constant dense<0.000000e+00> : vector<16x512xf32>
    %517 = tpu.matmul %471, %516, %cst_246 {dimension_numbers = #tpu.dot_dimension_numbers<[1], [0], [0], [1], [0, 0, 1, 1], [], []>} : vector<16x32xbf16>, vector<32x512xbf16>, vector<16x512xf32> -> vector<16x512xf32>
    %c1_247 = arith.constant 1 : index
    %c0_248 = arith.constant 0 : index
    %c1536_249 = arith.constant 1536 : index
    %518 = vector.load %arg10[%c1_247, %c0_248, %c1536_249] : memref<2x1x2048xf32, #tpu.memory_space<vmem>>, vector<1x1x512xf32>
    %519 = vector.shape_cast %518 : vector<1x1x512xf32> to vector<1x512xf32>
    %520 = vector.broadcast %519 : vector<1x512xf32> to vector<16x512xf32>
    %521 = arith.addf %517, %520 : vector<16x512xf32>
    %cst_250 = arith.constant 0.000000e+00 : f32
    %522 = vector.broadcast %cst_250 : f32 to vector<16x512xf32>
    %523 = arith.maximumf %521, %522 : vector<16x512xf32>
    %524 = arith.truncf %523 : vector<16x512xf32> to vector<16x512xbf16>
    %c1_251 = arith.constant 1 : index
    %c0_252 = arith.constant 0 : index
    %c1536_253 = arith.constant 1536 : index
    %525 = vector.load %arg11[%c1_251, %c0_252, %c1536_253] : memref<2x32x2048xbf16, #tpu.memory_space<vmem>>, vector<1x32x512xbf16>
    %526 = vector.shape_cast %525 : vector<1x32x512xbf16> to vector<32x512xbf16>
    %cst_254 = arith.constant dense<0.000000e+00> : vector<16x32xf32>
    %527 = tpu.matmul %524, %526, %cst_254 {dimension_numbers = #tpu.dot_dimension_numbers<[1], [1], [0], [0], [0, 0, 1, 0], [], []>} : vector<16x512xbf16>, vector<32x512xbf16>, vector<16x32xf32> -> vector<16x32xf32>
    %528 = arith.addf %514, %527 : vector<16x32xf32>
    %c1_255 = arith.constant 1 : index
    %c0_256 = arith.constant 0 : index
    %c0_257 = arith.constant 0 : index
    %529 = vector.load %arg12[%c1_255, %c0_256, %c0_257] : memref<2x1x32xf32, #tpu.memory_space<vmem>>, vector<1x1x32xf32>
    %530 = vector.shape_cast %529 : vector<1x1x32xf32> to vector<1x32xf32>
    %531 = vector.broadcast %530 : vector<1x32xf32> to vector<16x32xf32>
    %532 = arith.addf %528, %531 : vector<16x32xf32>
    %533 = arith.addf %470, %532 : vector<16x32xf32>
    %c1_258 = arith.constant 1 : index
    %c0_259 = arith.constant 0 : index
    %c0_260 = arith.constant 0 : index
    %534 = vector.load %arg13[%c1_258, %c0_259, %c0_260] : memref<2x1x32xf32, #tpu.memory_space<vmem>>, vector<1x1x32xf32>
    %535 = vector.shape_cast %534 : vector<1x1x32xf32> to vector<1x32xf32>
    %c1_261 = arith.constant 1 : index
    %c0_262 = arith.constant 0 : index
    %c0_263 = arith.constant 0 : index
    %536 = vector.load %arg14[%c1_261, %c0_262, %c0_263] : memref<2x1x32xf32, #tpu.memory_space<vmem>>, vector<1x1x32xf32>
    %537 = vector.shape_cast %536 : vector<1x1x32xf32> to vector<1x32xf32>
    %cst_264 = arith.constant dense<0.000000e+00> : vector<16xf32>
    %538 = vector.multi_reduction <add>, %533, %cst_264 [1] : vector<16x32xf32> to vector<16xf32>
    %539 = vector.shape_cast %538 : vector<16xf32> to vector<16x1xf32>
    %cst_265 = arith.constant 3.200000e+01 : f32
    %540 = vector.broadcast %cst_265 : f32 to vector<16x1xf32>
    %541 = arith.divf %539, %540 : vector<16x1xf32>
    %542 = vector.broadcast %541 : vector<16x1xf32> to vector<16x32xf32>
    %543 = arith.subf %533, %542 : vector<16x32xf32>
    %544 = arith.mulf %543, %543 : vector<16x32xf32>
    %cst_266 = arith.constant dense<0.000000e+00> : vector<16xf32>
    %545 = vector.multi_reduction <add>, %544, %cst_266 [1] : vector<16x32xf32> to vector<16xf32>
    %546 = vector.shape_cast %545 : vector<16xf32> to vector<16x1xf32>
    %cst_267 = arith.constant 3.200000e+01 : f32
    %547 = vector.broadcast %cst_267 : f32 to vector<16x1xf32>
    %548 = arith.divf %546, %547 : vector<16x1xf32>
    %549 = vector.broadcast %541 : vector<16x1xf32> to vector<16x32xf32>
    %550 = arith.subf %533, %549 : vector<16x32xf32>
    %cst_268 = arith.constant 9.99999974E-6 : f32
    %551 = vector.broadcast %cst_268 : f32 to vector<16x1xf32>
    %552 = arith.addf %548, %551 : vector<16x1xf32>
    %553 = math.rsqrt %552 : vector<16x1xf32>
    %554 = vector.broadcast %553 : vector<16x1xf32> to vector<16x32xf32>
    %555 = arith.mulf %550, %554 : vector<16x32xf32>
    %556 = vector.broadcast %535 : vector<1x32xf32> to vector<16x32xf32>
    %557 = arith.mulf %555, %556 : vector<16x32xf32>
    %558 = vector.broadcast %537 : vector<1x32xf32> to vector<16x32xf32>
    %559 = arith.addf %557, %558 : vector<16x32xf32>
    %560 = vector.extract_strided_slice %559 {offsets = [0, 0], sizes = [1, 32], strides = [1, 1]} : vector<16x32xf32> to vector<1x32xf32>
    %c0_269 = arith.constant 0 : index
    %c0_270 = arith.constant 0 : index
    %561 = vector.load %arg15[%c0_269, %c0_270] : memref<32x32xf32, #tpu.memory_space<vmem>>, vector<32x32xf32>
    %cst_271 = arith.constant dense<0.000000e+00> : vector<1x32xf32>
    %562 = tpu.matmul %560, %561, %cst_271 {dimension_numbers = #tpu.dot_dimension_numbers<[1], [0], [0], [1], [0, 0, 1, 1], [], []>} : vector<1x32xf32>, vector<32x32xf32>, vector<1x32xf32> -> vector<1x32xf32>
    %c0_272 = arith.constant 0 : index
    %c0_273 = arith.constant 0 : index
    %563 = vector.load %arg16[%c0_272, %c0_273] : memref<1x32xf32, #tpu.memory_space<vmem>>, vector<1x32xf32>
    %564 = arith.addf %562, %563 : vector<1x32xf32>
    %565 = vector.shape_cast %564 : vector<1x32xf32> to vector<1x1x32xf32>
    %566 = vector.broadcast %565 : vector<1x1x32xf32> to vector<1x8x32xf32>
    %c0_274 = arith.constant 0 : index
    %c0_275 = arith.constant 0 : index
    %c0_276 = arith.constant 0 : index
    %567 = vector.load %arg17[%c0_274, %c0_275, %c0_276] : memref<1x8x32xf32, #tpu.memory_space<vmem>>, vector<1x8x32xf32>
    tpu.vector_store %arg17[%c0_274, %c0_275, %c0_276], %566 {strides = array<i32>} : memref<1x8x32xf32, #tpu.memory_space<vmem>>, vector<1x8x32xf32>,
    return
  }
  func.func @transform_0(%arg0: i32) -> (i32, i32, i32) {
    %c0_i32 = arith.constant 0 : i32
    %c0_i32_0 = arith.constant 0 : i32
    %c0_i32_1 = arith.constant 0 : i32
    return %arg0, %c0_i32, %c0_i32_0 : i32, i32, i32
  }
  func.func @transform_1(%arg0: i32) -> (i32, i32, i32) {
    %c0_i32 = arith.constant 0 : i32
    %c0_i32_0 = arith.constant 0 : i32
    %c0_i32_1 = arith.constant 0 : i32
    return %arg0, %c0_i32, %c0_i32_0 : i32, i32, i32
  }
  func.func @transform_2(%arg0: i32) -> (i32, i32, i32) {
    %c0_i32 = arith.constant 0 : i32
    %c0_i32_0 = arith.constant 0 : i32
    %c0_i32_1 = arith.constant 0 : i32
    %c0_i32_2 = arith.constant 0 : i32
    return %c0_i32, %c0_i32_0, %c0_i32_1 : i32, i32, i32
  }
  func.func @transform_3(%arg0: i32) -> (i32, i32, i32) {
    %c0_i32 = arith.constant 0 : i32
    %c0_i32_0 = arith.constant 0 : i32
    %c0_i32_1 = arith.constant 0 : i32
    %c0_i32_2 = arith.constant 0 : i32
    return %c0_i32, %c0_i32_0, %c0_i32_1 : i32, i32, i32
  }
  func.func @transform_4(%arg0: i32) -> (i32, i32, i32) {
    %c0_i32 = arith.constant 0 : i32
    %c0_i32_0 = arith.constant 0 : i32
    %c0_i32_1 = arith.constant 0 : i32
    %c0_i32_2 = arith.constant 0 : i32
    return %c0_i32, %c0_i32_0, %c0_i32_1 : i32, i32, i32
  }
  func.func @transform_5(%arg0: i32) -> (i32, i32, i32) {
    %c0_i32 = arith.constant 0 : i32
    %c0_i32_0 = arith.constant 0 : i32
    %c0_i32_1 = arith.constant 0 : i32
    %c0_i32_2 = arith.constant 0 : i32
    return %c0_i32, %c0_i32_0, %c0_i32_1 : i32, i32, i32
  }
  func.func @transform_6(%arg0: i32) -> (i32, i32, i32) {
    %c0_i32 = arith.constant 0 : i32
    %c0_i32_0 = arith.constant 0 : i32
    %c0_i32_1 = arith.constant 0 : i32
    %c0_i32_2 = arith.constant 0 : i32
    return %c0_i32, %c0_i32_0, %c0_i32_1 : i32, i32, i32
  }
  func.func @transform_7(%arg0: i32) -> (i32, i32, i32) {
    %c0_i32 = arith.constant 0 : i32
    %c0_i32_0 = arith.constant 0 : i32
    %c0_i32_1 = arith.constant 0 : i32
    %c0_i32_2 = arith.constant 0 : i32
    return %c0_i32, %c0_i32_0, %c0_i32_1 : i32, i32, i32
  }
  func.func @transform_8(%arg0: i32) -> (i32, i32, i32) {
    %c0_i32 = arith.constant 0 : i32
    %c0_i32_0 = arith.constant 0 : i32
    %c0_i32_1 = arith.constant 0 : i32
    %c0_i32_2 = arith.constant 0 : i32
    return %c0_i32, %c0_i32_0, %c0_i32_1 : i32, i32, i32
  }
  func.func @transform_9(%arg0: i32) -> (i32, i32, i32) {
    %c0_i32 = arith.constant 0 : i32
    %c0_i32_0 = arith.constant 0 : i32
    %c0_i32_1 = arith.constant 0 : i32
    %c0_i32_2 = arith.constant 0 : i32
    return %c0_i32, %c0_i32_0, %c0_i32_1 : i32, i32, i32
  }
  func.func @transform_10(%arg0: i32) -> (i32, i32, i32) {
    %c0_i32 = arith.constant 0 : i32
    %c0_i32_0 = arith.constant 0 : i32
    %c0_i32_1 = arith.constant 0 : i32
    %c0_i32_2 = arith.constant 0 : i32
    return %c0_i32, %c0_i32_0, %c0_i32_1 : i32, i32, i32
  }
  func.func @transform_11(%arg0: i32) -> (i32, i32, i32) {
    %c0_i32 = arith.constant 0 : i32
    %c0_i32_0 = arith.constant 0 : i32
    %c0_i32_1 = arith.constant 0 : i32
    %c0_i32_2 = arith.constant 0 : i32
    return %c0_i32, %c0_i32_0, %c0_i32_1 : i32, i32, i32
  }
  func.func @transform_12(%arg0: i32) -> (i32, i32, i32) {
    %c0_i32 = arith.constant 0 : i32
    %c0_i32_0 = arith.constant 0 : i32
    %c0_i32_1 = arith.constant 0 : i32
    %c0_i32_2 = arith.constant 0 : i32
    return %c0_i32, %c0_i32_0, %c0_i32_1 : i32, i32, i32
  }
  func.func @transform_13(%arg0: i32) -> (i32, i32, i32) {
    %c0_i32 = arith.constant 0 : i32
    %c0_i32_0 = arith.constant 0 : i32
    %c0_i32_1 = arith.constant 0 : i32
    %c0_i32_2 = arith.constant 0 : i32
    return %c0_i32, %c0_i32_0, %c0_i32_1 : i32, i32, i32
  }
  func.func @transform_14(%arg0: i32) -> (i32, i32) {
    %c0_i32 = arith.constant 0 : i32
    %c0_i32_0 = arith.constant 0 : i32
    %c0_i32_1 = arith.constant 0 : i32
    return %c0_i32, %c0_i32_0 : i32, i32
  }
  func.func @transform_15(%arg0: i32) -> (i32, i32) {
    %c0_i32 = arith.constant 0 : i32
    %c0_i32_0 = arith.constant 0 : i32
    %c0_i32_1 = arith.constant 0 : i32
    return %c0_i32, %c0_i32_0 : i32, i32
  }
  func.func @transform_16(%arg0: i32) -> (i32, i32, i32) {
    %c0_i32 = arith.constant 0 : i32
    %c0_i32_0 = arith.constant 0 : i32
    %c0_i32_1 = arith.constant 0 : i32
    return %arg0, %c0_i32, %c0_i32_0 : i32, i32, i32
  }
}

</mosaic_0001>

<llo_original>
// kernel: _forward.1
$region0: #{_forward.1}
  #allocation0 [shape = 'u32[]', space=smem, size = 0x4, offset = 0x4, fixed_abs, tag = 'smem constant byte address 0x4 - core index']
  #allocation1 [shape = 'u32[144,128]{1,0:T(1,128)}', space=vmem, size = 0x12000, scoped, tag = 'internal scratch']
  #allocation2 [shape = 'f32[16,32]{1,0:T(8,128)}', space=vmem, size = 0x2000, scoped, tag = 'scratch operand']
  %s0 = inlined_call_operand.vmem [shape: f32[2,16,32], index: 0, kind: input, shape index: {}]
  %s1 = inlined_call_operand.vmem [shape: f32[2,1,16], index: 1, kind: input, shape index: {}]
  %s2 = inlined_call_operand.vmem [shape: f32[2,32,96], index: 2, kind: input, shape index: {}]
  %s3 = inlined_call_operand.vmem [shape: f32[2,1,96], index: 3, kind: input, shape index: {}]
  %s4 = inlined_call_operand.vmem [shape: f32[2,32,32], index: 4, kind: input, shape index: {}]
  %s5 = inlined_call_operand.vmem [shape: f32[2,1,32], index: 5, kind: input, shape index: {}]
  %s6 = inlined_call_operand.vmem [shape: f32[2,1,32], index: 6, kind: input, shape index: {}]
  %s7 = inlined_call_operand.vmem [shape: f32[2,1,32], index: 7, kind: input, shape index: {}]
  %s8 = inlined_call_operand.hbm [shape: bf16[2,32,2048], index: 8, kind: input, shape index: {}]
  %s9 = inlined_call_operand.vmem [shape: f32[2,1,2048], index: 9, kind: input, shape index: {}]
  %s10 = inlined_call_operand.hbm [shape: bf16[2,32,2048], index: 10, kind: input, shape index: {}]
  %s11 = inlined_call_operand.vmem [shape: f32[2,1,32], index: 11, kind: input, shape index: {}]
  %s12 = inlined_call_operand.vmem [shape: f32[2,1,32], index: 12, kind: input, shape index: {}]
  %s13 = inlined_call_operand.vmem [shape: f32[2,1,32], index: 13, kind: input, shape index: {}]
  %s14 = inlined_call_operand.vmem [shape: f32[32,32], index: 14, kind: input, shape index: {}]
  %s15 = inlined_call_operand.vmem [shape: f32[1,32], index: 15, kind: input, shape index: {}]
  %s16 = inlined_call_operand.vmem [shape: f32[2,8,32], index: 16, kind: output, shape index: {}]
  %s17 = sld [smem:[#allocation0]]
  $region105: #{_forward.1} parent=0
    _
  %s19 = ssub.s32 1, %s17
  %s20 = scalar_select 0, %s19, %s17
  $region1: #{_forward.1} parent=0
    #allocation3 [shape = 'u8[262144]{0}', space=vmem, size = 0x40000, scoped, tag = 'input window, operand 8, single buffered']
    #allocation4 [shape = 's32[2]{0}', space=sflag, size = 0x8, scoped, tag = 'scoped memory for _forward.1']
    #allocation5 [shape = 'u8[262144]{0}', space=vmem, size = 0x40000, scoped, tag = 'input window, operand 10, single buffered']
    #allocation6 [shape = 's32[1]{0}', space=sflag, size = 0x4, scoped, tag = 'scoped memory for _forward.1']
    %21 = vsyncpa [#allocation4], 0
    %22 = vsyncpa [#allocation6], 0
    loop: start=0, step=1, limit=4
    $region2: #{_forward.1} parent=1 // loop_pre_header
      _
    $region3: #{_forward.1} parent=1 // loop_header
      %s24 = sphi 0, %s28
      %p25 = scmp.ge.s32.totalorder %s24, 4
      %s34 = sphi 0, %s36
      %s37 = sphi 0, %s34
      %s38 = sphi 0, %s37
      %s54 = sphi 0, %s38
      %s60 = sphi 0, %s62
      %s63 = sphi 0, %s60
      %s64 = sphi 0, %s63
      %s80 = sphi 0, %s64
      %s84 = sphi 0, %s84
      %s86 = sphi 0, %s84
      %s87 = sphi 0, %s86
      %s101 = sphi 0, %s87
      %s105 = sphi 0, %s105
      %s107 = sphi 0, %s105
      %s108 = sphi 0, %s107
      %s122 = sphi 0, %s108
      %s126 = sphi 0, %s126
      %s128 = sphi 0, %s126
      %s129 = sphi 0, %s128
      %s143 = sphi 0, %s129
      %s147 = sphi 0, %s147
      %s149 = sphi 0, %s147
      %s150 = sphi 0, %s149
      %s164 = sphi 0, %s150
      %s168 = sphi 0, %s168
      %s170 = sphi 0, %s168
      %s171 = sphi 0, %s170
      %s185 = sphi 0, %s171
      %s189 = sphi 0, %s189
      %s191 = sphi 0, %s189
      %s192 = sphi 0, %s191
      %s206 = sphi 0, %s192
      %s210 = sphi 0, %s210
      %s212 = sphi 0, %s210
      %s213 = sphi 0, %s212
      %s227 = sphi 0, %s213
      %s231 = sphi 0, %s231
      %s233 = sphi 0, %s231
      %s234 = sphi 0, %s233
      %s248 = sphi 0, %s234
      %s252 = sphi 0, %s252
      %s254 = sphi 0, %s252
      %s255 = sphi 0, %s254
      %s269 = sphi 0, %s255
      %s273 = sphi 0, %s273
      %s275 = sphi 0, %s273
      %s276 = sphi 0, %s275
      %s290 = sphi 0, %s276
      %s294 = sphi 0, %s294
      %s296 = sphi 0, %s294
      %s297 = sphi 0, %s296
      %s311 = sphi 0, %s297
      %s315 = sphi 0, %s315
      %s317 = sphi 0, %s315
      %s318 = sphi 0, %s317
      %s332 = sphi 0, %s318
      %s336 = sphi 0, %s336
      %s338 = sphi 0, %s336
      %s339 = sphi 0, %s338
      %s353 = sphi 0, %s339
      %s357 = sphi 0, %s357
      %s359 = sphi 0, %s357
      %s360 = sphi 0, %s359
      %s374 = sphi 0, %s360
      %s380 = sphi 0, %s382
      %s383 = sphi 0, %s380
      %s384 = sphi 0, %s383
      %s400 = sphi 0, %s384
    $region4: #{_forward.1} parent=1 // loop_header_branch
      %27 = sbr.rel (%p25) target = $region8
    $region5: #{_forward.1} parent=1 // loop_body
      %s29 = ssub.s32 %s24, 1
      %s30 = ssub.s32 %s24, 2
      %s31 = sadd.s32 %s24, 1
      %s32 = ssub.s32 %s24, %s31
      %p33 = scmp.eq.s32.totalorder %s32, 0
      %s35 = sadd.s32 %s34, 1
      %s36 = scalar_select %p33, %s34, %s35
      %p39 = pneg %p33
      %p40 = scmp.eq.s32.totalorder %s24, 1
      %p41 = por %p39, %p40
      %p42 = scmp.ne.s32.totalorder %s34, %s37
      %p43 = scmp.eq.s32.totalorder %s24, 0
      %p44 = por %p42, %p43
      %p45 = scmp.ne.s32.totalorder %s34, %s37
      %p46 = scmp.eq.s32.totalorder %s29, 1
      %p47 = por %p45, %p46
      %p48 = scmp.ne.s32.totalorder %s37, %s38
      %p49 = scmp.eq.s32.totalorder %s29, 0
      %p50 = por %p48, %p49
      %p51 = scmp.ne.s32.totalorder %s37, %s38
      %p52 = scmp.eq.s32.totalorder %s30, 1
      %p53 = por %p51, %p52
      %p55 = scmp.ne.s32.totalorder %s38, %s54
      %p56 = scmp.eq.s32.totalorder %s30, 0
      %p57 = por %p55, %p56
      %s58 = ssub.s32 %s24, %s31
      %p59 = scmp.eq.s32.totalorder %s58, 0
      %s61 = sadd.s32 %s60, 1
      %s62 = scalar_select %p59, %s60, %s61
      %p65 = pneg %p59
      %p66 = scmp.eq.s32.totalorder %s24, 1
      %p67 = por %p65, %p66
      %p68 = scmp.ne.s32.totalorder %s60, %s63
      %p69 = scmp.eq.s32.totalorder %s24, 0
      %p70 = por %p68, %p69
      %p71 = scmp.ne.s32.totalorder %s60, %s63
      %p72 = scmp.eq.s32.totalorder %s29, 1
      %p73 = por %p71, %p72
      %p74 = scmp.ne.s32.totalorder %s63, %s64
      %p75 = scmp.eq.s32.totalorder %s29, 0
      %p76 = por %p74, %p75
      %p77 = scmp.ne.s32.totalorder %s63, %s64
      %p78 = scmp.eq.s32.totalorder %s30, 1
      %p79 = por %p77, %p78
      %p81 = scmp.ne.s32.totalorder %s64, %s80
      %p82 = scmp.eq.s32.totalorder %s30, 0
      %p83 = por %p81, %p82
      %s85 = sadd.s32 %s84, 1
      %p88 = scmp.eq.s32.totalorder %s24, 1
      %p89 = scmp.ne.s32.totalorder %s84, %s86
      %p90 = scmp.eq.s32.totalorder %s24, 0
      %p91 = por %p89, %p90
      %p92 = scmp.ne.s32.totalorder %s84, %s86
      %p93 = scmp.eq.s32.totalorder %s29, 1
      %p94 = por %p92, %p93
      %p95 = scmp.ne.s32.totalorder %s86, %s87
      %p96 = scmp.eq.s32.totalorder %s29, 0
      %p97 = por %p95, %p96
      %p98 = scmp.ne.s32.totalorder %s86, %s87
      %p99 = scmp.eq.s32.totalorder %s30, 1
      %p100 = por %p98, %p99
      %p102 = scmp.ne.s32.totalorder %s87, %s101
      %p103 = scmp.eq.s32.totalorder %s30, 0
      %p104 = por %p102, %p103
      %s106 = sadd.s32 %s105, 1
      %p109 = scmp.eq.s32.totalorder %s24, 1
      %p110 = scmp.ne.s32.totalorder %s105, %s107
      %p111 = scmp.eq.s32.totalorder %s24, 0
      %p112 = por %p110, %p111
      %p113 = scmp.ne.s32.totalorder %s105, %s107
      %p114 = scmp.eq.s32.totalorder %s29, 1
      %p115 = por %p113, %p114
      %p116 = scmp.ne.s32.totalorder %s107, %s108
      %p117 = scmp.eq.s32.totalorder %s29, 0
      %p118 = por %p116, %p117
      %p119 = scmp.ne.s32.totalorder %s107, %s108
      %p120 = scmp.eq.s32.totalorder %s30, 1
      %p121 = por %p119, %p120
      %p123 = scmp.ne.s32.totalorder %s108, %s122
      %p124 = scmp.eq.s32.totalorder %s30, 0
      %p125 = por %p123, %p124
      %s127 = sadd.s32 %s126, 1
      %p130 = scmp.eq.s32.totalorder %s24, 1
      %p131 = scmp.ne.s32.totalorder %s126, %s128
      %p132 = scmp.eq.s32.totalorder %s24, 0
      %p133 = por %p131, %p132
      %p134 = scmp.ne.s32.totalorder %s126, %s128
      %p135 = scmp.eq.s32.totalorder %s29, 1
      %p136 = por %p134, %p135
      %p137 = scmp.ne.s32.totalorder %s128, %s129
      %p138 = scmp.eq.s32.totalorder %s29, 0
      %p139 = por %p137, %p138
      %p140 = scmp.ne.s32.totalorder %s128, %s129
      %p141 = scmp.eq.s32.totalorder %s30, 1
      %p142 = por %p140, %p141
      %p144 = scmp.ne.s32.totalorder %s129, %s143
      %p145 = scmp.eq.s32.totalorder %s30, 0
      %p146 = por %p144, %p145
      %s148 = sadd.s32 %s147, 1
      %p151 = scmp.eq.s32.totalorder %s24, 1
      %p152 = scmp.ne.s32.totalorder %s147, %s149
      %p153 = scmp.eq.s32.totalorder %s24, 0
      %p154 = por %p152, %p153
      %p155 = scmp.ne.s32.totalorder %s147, %s149
      %p156 = scmp.eq.s32.totalorder %s29, 1
      %p157 = por %p155, %p156
      %p158 = scmp.ne.s32.totalorder %s149, %s150
      %p159 = scmp.eq.s32.totalorder %s29, 0
      %p160 = por %p158, %p159
      %p161 = scmp.ne.s32.totalorder %s149, %s150
      %p162 = scmp.eq.s32.totalorder %s30, 1
      %p163 = por %p161, %p162
      %p165 = scmp.ne.s32.totalorder %s150, %s164
      %p166 = scmp.eq.s32.totalorder %s30, 0
      %p167 = por %p165, %p166
      %s169 = sadd.s32 %s168, 1
      %p172 = scmp.eq.s32.totalorder %s24, 1
      %p173 = scmp.ne.s32.totalorder %s168, %s170
      %p174 = scmp.eq.s32.totalorder %s24, 0
      %p175 = por %p173, %p174
      %p176 = scmp.ne.s32.totalorder %s168, %s170
      %p177 = scmp.eq.s32.totalorder %s29, 1
      %p178 = por %p176, %p177
      %p179 = scmp.ne.s32.totalorder %s170, %s171
      %p180 = scmp.eq.s32.totalorder %s29, 0
      %p181 = por %p179, %p180
      %p182 = scmp.ne.s32.totalorder %s170, %s171
      %p183 = scmp.eq.s32.totalorder %s30, 1
      %p184 = por %p182, %p183
      %p186 = scmp.ne.s32.totalorder %s171, %s185
      %p187 = scmp.eq.s32.totalorder %s30, 0
      %p188 = por %p186, %p187
      %s190 = sadd.s32 %s189, 1
      %p193 = scmp.eq.s32.totalorder %s24, 1
      %p194 = scmp.ne.s32.totalorder %s189, %s191
      %p195 = scmp.eq.s32.totalorder %s24, 0
      %p196 = por %p194, %p195
      %p197 = scmp.ne.s32.totalorder %s189, %s191
      %p198 = scmp.eq.s32.totalorder %s29, 1
      %p199 = por %p197, %p198
      %p200 = scmp.ne.s32.totalorder %s191, %s192
      %p201 = scmp.eq.s32.totalorder %s29, 0
      %p202 = por %p200, %p201
      %p203 = scmp.ne.s32.totalorder %s191, %s192
      %p204 = scmp.eq.s32.totalorder %s30, 1
      %p205 = por %p203, %p204
      %p207 = scmp.ne.s32.totalorder %s192, %s206
      %p208 = scmp.eq.s32.totalorder %s30, 0
      %p209 = por %p207, %p208
      %s211 = sadd.s32 %s210, 1
      %p214 = scmp.eq.s32.totalorder %s24, 1
      %p215 = scmp.ne.s32.totalorder %s210, %s212
      %p216 = scmp.eq.s32.totalorder %s24, 0
      %p217 = por %p215, %p216
      %p218 = scmp.ne.s32.totalorder %s210, %s212
      %p219 = scmp.eq.s32.totalorder %s29, 1
      %p220 = por %p218, %p219
      %p221 = scmp.ne.s32.totalorder %s212, %s213
      %p222 = scmp.eq.s32.totalorder %s29, 0
      %p223 = por %p221, %p222
      %p224 = scmp.ne.s32.totalorder %s212, %s213
      %p225 = scmp.eq.s32.totalorder %s30, 1
      %p226 = por %p224, %p225
      %p228 = scmp.ne.s32.totalorder %s213, %s227
      %p229 = scmp.eq.s32.totalorder %s30, 0
      %p230 = por %p228, %p229
      %s232 = sadd.s32 %s231, 1
      %p235 = scmp.eq.s32.totalorder %s24, 1
      %p236 = scmp.ne.s32.totalorder %s231, %s233
      %p237 = scmp.eq.s32.totalorder %s24, 0
      %p238 = por %p236, %p237
      %p239 = scmp.ne.s32.totalorder %s231, %s233
      %p240 = scmp.eq.s32.totalorder %s29, 1
      %p241 = por %p239, %p240
      %p242 = scmp.ne.s32.totalorder %s233, %s234
      %p243 = scmp.eq.s32.totalorder %s29, 0
      %p244 = por %p242, %p243
      %p245 = scmp.ne.s32.totalorder %s233, %s234
      %p246 = scmp.eq.s32.totalorder %s30, 1
      %p247 = por %p245, %p246
      %p249 = scmp.ne.s32.totalorder %s234, %s248
      %p250 = scmp.eq.s32.totalorder %s30, 0
      %p251 = por %p249, %p250
      %s253 = sadd.s32 %s252, 1
      %p256 = scmp.eq.s32.totalorder %s24, 1
      %p257 = scmp.ne.s32.totalorder %s252, %s254
      %p258 = scmp.eq.s32.totalorder %s24, 0
      %p259 = por %p257, %p258
      %p260 = scmp.ne.s32.totalorder %s252, %s254
      %p261 = scmp.eq.s32.totalorder %s29, 1
      %p262 = por %p260, %p261
      %p263 = scmp.ne.s32.totalorder %s254, %s255
      %p264 = scmp.eq.s32.totalorder %s29, 0
      %p265 = por %p263, %p264
      %p266 = scmp.ne.s32.totalorder %s254, %s255
      %p267 = scmp.eq.s32.totalorder %s30, 1
      %p268 = por %p266, %p267
      %p270 = scmp.ne.s32.totalorder %s255, %s269
      %p271 = scmp.eq.s32.totalorder %s30, 0
      %p272 = por %p270, %p271
      %s274 = sadd.s32 %s273, 1
      %p277 = scmp.eq.s32.totalorder %s24, 1
      %p278 = scmp.ne.s32.totalorder %s273, %s275
      %p279 = scmp.eq.s32.totalorder %s24, 0
      %p280 = por %p278, %p279
      %p281 = scmp.ne.s32.totalorder %s273, %s275
      %p282 = scmp.eq.s32.totalorder %s29, 1
      %p283 = por %p281, %p282
      %p284 = scmp.ne.s32.totalorder %s275, %s276
      %p285 = scmp.eq.s32.totalorder %s29, 0
      %p286 = por %p284, %p285
      %p287 = scmp.ne.s32.totalorder %s275, %s276
      %p288 = scmp.eq.s32.totalorder %s30, 1
      %p289 = por %p287, %p288
      %p291 = scmp.ne.s32.totalorder %s276, %s290
      %p292 = scmp.eq.s32.totalorder %s30, 0
      %p293 = por %p291, %p292
      %s295 = sadd.s32 %s294, 1
      %p298 = scmp.eq.s32.totalorder %s24, 1
      %p299 = scmp.ne.s32.totalorder %s294, %s296
      %p300 = scmp.eq.s32.totalorder %s24, 0
      %p301 = por %p299, %p300
      %p302 = scmp.ne.s32.totalorder %s294, %s296
      %p303 = scmp.eq.s32.totalorder %s29, 1
      %p304 = por %p302, %p303
      %p305 = scmp.ne.s32.totalorder %s296, %s297
      %p306 = scmp.eq.s32.totalorder %s29, 0
      %p307 = por %p305, %p306
      %p308 = scmp.ne.s32.totalorder %s296, %s297
      %p309 = scmp.eq.s32.totalorder %s30, 1
      %p310 = por %p308, %p309
      %p312 = scmp.ne.s32.totalorder %s297, %s311
      %p313 = scmp.eq.s32.totalorder %s30, 0
      %p314 = por %p312, %p313
      %s316 = sadd.s32 %s315, 1
      %p319 = scmp.eq.s32.totalorder %s24, 1
      %p320 = scmp.ne.s32.totalorder %s315, %s317
      %p321 = scmp.eq.s32.totalorder %s24, 0
      %p322 = por %p320, %p321
      %p323 = scmp.ne.s32.totalorder %s315, %s317
      %p324 = scmp.eq.s32.totalorder %s29, 1
      %p325 = por %p323, %p324
      %p326 = scmp.ne.s32.totalorder %s317, %s318
      %p327 = scmp.eq.s32.totalorder %s29, 0
      %p328 = por %p326, %p327
      %p329 = scmp.ne.s32.totalorder %s317, %s318
      %p330 = scmp.eq.s32.totalorder %s30, 1
      %p331 = por %p329, %p330
      %p333 = scmp.ne.s32.totalorder %s318, %s332
      %p334 = scmp.eq.s32.totalorder %s30, 0
      %p335 = por %p333, %p334
      %s337 = sadd.s32 %s336, 1
      %p340 = scmp.eq.s32.totalorder %s24, 1
      %p341 = scmp.ne.s32.totalorder %s336, %s338
      %p342 = scmp.eq.s32.totalorder %s24, 0
      %p343 = por %p341, %p342
      %p344 = scmp.ne.s32.totalorder %s336, %s338
      %p345 = scmp.eq.s32.totalorder %s29, 1
      %p346 = por %p344, %p345
      %p347 = scmp.ne.s32.totalorder %s338, %s339
      %p348 = scmp.eq.s32.totalorder %s29, 0
      %p349 = por %p347, %p348
      %p350 = scmp.ne.s32.totalorder %s338, %s339
      %p351 = scmp.eq.s32.totalorder %s30, 1
      %p352 = por %p350, %p351
      %p354 = scmp.ne.s32.totalorder %s339, %s353
      %p355 = scmp.eq.s32.totalorder %s30, 0
      %p356 = por %p354, %p355
      %s358 = sadd.s32 %s357, 1
      %p361 = scmp.eq.s32.totalorder %s24, 1
      %p362 = scmp.ne.s32.totalorder %s357, %s359
      %p363 = scmp.eq.s32.totalorder %s24, 0
      %p364 = por %p362, %p363
      %p365 = scmp.ne.s32.totalorder %s357, %s359
      %p366 = scmp.eq.s32.totalorder %s29, 1
      %p367 = por %p365, %p366
      %p368 = scmp.ne.s32.totalorder %s359, %s360
      %p369 = scmp.eq.s32.totalorder %s29, 0
      %p370 = por %p368, %p369
      %p371 = scmp.ne.s32.totalorder %s359, %s360
      %p372 = scmp.eq.s32.totalorder %s30, 1
      %p373 = por %p371, %p372
      %p375 = scmp.ne.s32.totalorder %s360, %s374
      %p376 = scmp.eq.s32.totalorder %s30, 0
      %p377 = por %p375, %p376
      %s378 = ssub.s32 %s24, %s31
      %p379 = scmp.eq.s32.totalorder %s378, 0
      %s381 = sadd.s32 %s380, 1
      %s382 = scalar_select %p379, %s380, %s381
      %p385 = pneg %p379
      %p386 = scmp.eq.s32.totalorder %s24, 1
      %p387 = por %p385, %p386
      %p388 = scmp.ne.s32.totalorder %s380, %s383
      %p389 = scmp.eq.s32.totalorder %s24, 0
      %p390 = por %p388, %p389
      %p391 = scmp.ne.s32.totalorder %s380, %s383
      %p392 = scmp.eq.s32.totalorder %s29, 1
      %p393 = por %p391, %p392
      %p394 = scmp.ne.s32.totalorder %s383, %s384
      %p395 = scmp.eq.s32.totalorder %s29, 0
      %p396 = por %p394, %p395
      %p397 = scmp.ne.s32.totalorder %s383, %s384
      %p398 = scmp.eq.s32.totalorder %s30, 1
      %p399 = por %p397, %p398
      %p401 = scmp.ne.s32.totalorder %s384, %s400
      %p402 = scmp.eq.s32.totalorder %s30, 0
      %p403 = por %p401, %p402
      %p404 = scmp.le.s32.totalorder 1, %s24
      %p405 = scmp.lt.s32.totalorder %s24, 3
      %p406 = pnand %p404, %p405
      %p407 = pneg %p406
      // Predicated region
      $region9: #{_forward.1} parent=5 // pred_check
        _
      $region10: #{_forward.1} parent=5 // pred_check_branch
        %409 = sbr.rel (%p406) target = $region12
      $region11: #{_forward.1} parent=5 // pred_region
        %s410 = ssub.s32 %s24, 1
        // Predicated region
        $region13: #{_forward.1} parent=11 // pred_check
          %p411 = pneg %p97
        $region14: #{_forward.1} parent=11 // pred_check_branch
          %413 = sbr.rel (%p411) target = $region16
        $region15: #{_forward.1} parent=11 // pred_region
          _
        $region16: #{_forward.1} parent=11 // pred_fallthru
          _
        // Predicated region
        $region17: #{_forward.1} parent=11 // pred_check
          %p414 = pneg %p118
        $region18: #{_forward.1} parent=11 // pred_check_branch
          %416 = sbr.rel (%p414) target = $region20
        $region19: #{_forward.1} parent=11 // pred_region
          _
        $region20: #{_forward.1} parent=11 // pred_fallthru
          _
        // Predicated region
        $region21: #{_forward.1} parent=11 // pred_check
          %p417 = pneg %p139
        $region22: #{_forward.1} parent=11 // pred_check_branch
          %419 = sbr.rel (%p417) target = $region24
        $region23: #{_forward.1} parent=11 // pred_region
          _
        $region24: #{_forward.1} parent=11 // pred_fallthru
          _
        // Predicated region
        $region25: #{_forward.1} parent=11 // pred_check
          %p420 = pneg %p160
        $region26: #{_forward.1} parent=11 // pred_check_branch
          %422 = sbr.rel (%p420) target = $region28
        $region27: #{_forward.1} parent=11 // pred_region
          _
        $region28: #{_forward.1} parent=11 // pred_fallthru
          _
        // Predicated region
        $region29: #{_forward.1} parent=11 // pred_check
          %p423 = pneg %p181
        $region30: #{_forward.1} parent=11 // pred_check_branch
          %425 = sbr.rel (%p423) target = $region32
        $region31: #{_forward.1} parent=11 // pred_region
          _
        $region32: #{_forward.1} parent=11 // pred_fallthru
          _
        // Predicated region
        $region33: #{_forward.1} parent=11 // pred_check
          %p426 = pneg %p202
        $region34: #{_forward.1} parent=11 // pred_check_branch
          %428 = sbr.rel (%p426) target = $region36
        $region35: #{_forward.1} parent=11 // pred_region
          _
        $region36: #{_forward.1} parent=11 // pred_fallthru
          _
        // Predicated region
        $region37: #{_forward.1} parent=11 // pred_check
          %p429 = pneg %p223
        $region38: #{_forward.1} parent=11 // pred_check_branch
          %431 = sbr.rel (%p429) target = $region40
        $region39: #{_forward.1} parent=11 // pred_region
          %s433 = ssub.s32 8192, 8192
          %434 = vsyncadd [#allocation4], %s433
          %s435 = sshll.u32 [#allocation3], 4
          %s436 = int_to_ptr.vmem [resolvable:$true] %s435
          %441 = dma.hbm_to_vmem [thread:$0]  %s8, 8192, %s436, [#allocation4], 1024, 1024, 64
        $region40: #{_forward.1} parent=11 // pred_fallthru
          _
        // Predicated region
        $region41: #{_forward.1} parent=11 // pred_check
          %p442 = pneg %p244
        $region42: #{_forward.1} parent=11 // pred_check_branch
          %444 = sbr.rel (%p442) target = $region44
        $region43: #{_forward.1} parent=11 // pred_region
          _
        $region44: #{_forward.1} parent=11 // pred_fallthru
          _
        // Predicated region
        $region45: #{_forward.1} parent=11 // pred_check
          %p445 = pneg %p265
        $region46: #{_forward.1} parent=11 // pred_check_branch
          %447 = sbr.rel (%p445) target = $region48
        $region47: #{_forward.1} parent=11 // pred_region
          %s449 = ssub.s32 8192, 8192
          %450 = vsyncadd [#allocation6], %s449
          %s451 = sshll.u32 [#allocation5], 4
          %s452 = int_to_ptr.vmem [resolvable:$true] %s451
          %457 = dma.hbm_to_vmem [thread:$0]  %s10, 8192, %s452, [#allocation6], 1024, 1024, 64
        $region48: #{_forward.1} parent=11 // pred_fallthru
          _
        // Predicated region
        $region49: #{_forward.1} parent=11 // pred_check
          %p458 = pneg %p286
        $region50: #{_forward.1} parent=11 // pred_check_branch
          %460 = sbr.rel (%p458) target = $region52
        $region51: #{_forward.1} parent=11 // pred_region
          _
        $region52: #{_forward.1} parent=11 // pred_fallthru
          _
        // Predicated region
        $region53: #{_forward.1} parent=11 // pred_check
          %p461 = pneg %p307
        $region54: #{_forward.1} parent=11 // pred_check_branch
          %463 = sbr.rel (%p461) target = $region56
        $region55: #{_forward.1} parent=11 // pred_region
          _
        $region56: #{_forward.1} parent=11 // pred_fallthru
          _
        // Predicated region
        $region57: #{_forward.1} parent=11 // pred_check
          %p464 = pneg %p328
        $region58: #{_forward.1} parent=11 // pred_check_branch
          %466 = sbr.rel (%p464) target = $region60
        $region59: #{_forward.1} parent=11 // pred_region
          _
        $region60: #{_forward.1} parent=11 // pred_fallthru
          _
        // Predicated region
        $region61: #{_forward.1} parent=11 // pred_check
          %p467 = pneg %p349
        $region62: #{_forward.1} parent=11 // pred_check_branch
          %469 = sbr.rel (%p467) target = $region64
        $region63: #{_forward.1} parent=11 // pred_region
          _
        $region64: #{_forward.1} parent=11 // pred_fallthru
          _
        // Predicated region
        $region65: #{_forward.1} parent=11 // pred_check
          %p470 = pneg %p370
        $region66: #{_forward.1} parent=11 // pred_check_branch
          %472 = sbr.rel (%p470) target = $region68
        $region67: #{_forward.1} parent=11 // pred_region
          _
        $region68: #{_forward.1} parent=11 // pred_fallthru
          _
      $region12: #{_forward.1} parent=5 // pred_fallthru
        _
      %p473 = scmp.lt.s32.totalorder %s24, 2
      // Predicated region
      $region69: #{_forward.1} parent=5 // pred_check
        %p474 = pneg %p473
      $region70: #{_forward.1} parent=5 // pred_check_branch
        %476 = sbr.rel (%p474) target = $region72
      $region71: #{_forward.1} parent=5 // pred_region
        // Predicated region
        $region73: #{_forward.1} parent=71 // pred_check
          %p477 = pneg %p44
        $region74: #{_forward.1} parent=71 // pred_check_branch
          %479 = sbr.rel (%p477) target = $region76
        $region75: #{_forward.1} parent=71 // pred_region
          %p480 = scmp.lt.s32.totalorder %s24, 1
          %s481 = scalar_select %p480, %s24, 1
          %s482 = smul.addr %s481, 2
          %s483 = smul.addr %s482, 8
          %s484 = scalar_lea.vmem %s0, %s483
        $region76: #{_forward.1} parent=71 // pred_fallthru
          _
        // Predicated region
        $region77: #{_forward.1} parent=71 // pred_check
          %p485 = pneg %p70
        $region78: #{_forward.1} parent=71 // pred_check_branch
          %487 = sbr.rel (%p485) target = $region80
        $region79: #{_forward.1} parent=71 // pred_region
          %p488 = scmp.lt.s32.totalorder %s24, 1
          %s489 = scalar_select %p488, %s24, 1
          %s490 = scalar_lea.vmem %s1, %s489
        $region80: #{_forward.1} parent=71 // pred_fallthru
          _
      $region72: #{_forward.1} parent=5 // pred_fallthru
        _
      %p491 = scmp.le.s32.totalorder 1, %s24
      %p492 = scmp.lt.s32.totalorder %s24, 3
      %p493 = pnand %p491, %p492
      %p494 = pneg %p493
      // Predicated region
      $region81: #{_forward.1} parent=5 // pred_check
        _
      $region82: #{_forward.1} parent=5 // pred_check_branch
        %496 = sbr.rel (%p493) target = $region84
      $region83: #{_forward.1} parent=5 // pred_region
        %s497 = ssub.s32 %s24, 1
        // Predicated region
        $region85: #{_forward.1} parent=83 // pred_check
          %p498 = pneg %p223
        $region86: #{_forward.1} parent=83 // pred_check_branch
          %500 = sbr.rel (%p498) target = $region88
        $region87: #{_forward.1} parent=83 // pred_region
          %501 = dma.done [#allocation4], 8192
        $region88: #{_forward.1} parent=83 // pred_fallthru
          _
        // Predicated region
        $region89: #{_forward.1} parent=83 // pred_check
          %p502 = pneg %p265
        $region90: #{_forward.1} parent=83 // pred_check_branch
          %504 = sbr.rel (%p502) target = $region92
        $region91: #{_forward.1} parent=83 // pred_region
          %505 = dma.done [#allocation6], 8192
        $region92: #{_forward.1} parent=83 // pred_fallthru
          _
        %p506 = scmp.lt.s32.totalorder %s29, 1
        %s507 = scalar_select %p506, %s29, 1
        %s508 = smul.addr %s507, 2
        %s509 = smul.addr %s508, 8
        %s510 = scalar_lea.vmem %s0, %s509
        %p511 = pneg %p50
        %p512 = pneg %p47
        %p513 = scmp.lt.s32.totalorder %s29, 1
        %s514 = scalar_select %p513, %s29, 1
        %s515 = scalar_lea.vmem %s1, %s514
        %p516 = pneg %p76
        %p517 = pneg %p73
        %p518 = pneg %p97
        %p519 = pneg %p94
        %p520 = pneg %p118
        %p521 = pneg %p115
        %p522 = pneg %p139
        %p523 = pneg %p136
        %p524 = pneg %p160
        %p525 = pneg %p157
        %p526 = pneg %p181
        %p527 = pneg %p178
        %p528 = pneg %p202
        %p529 = pneg %p199
        %p530 = pneg %p223
        %p531 = pneg %p220
        %p532 = pneg %p244
        %p533 = pneg %p241
        %p534 = pneg %p265
        %p535 = pneg %p262
        %p536 = pneg %p286
        %p537 = pneg %p283
        %p538 = pneg %p307
        %p539 = pneg %p304
        %p540 = pneg %p328
        %p541 = pneg %p325
        %p542 = pneg %p349
        %p543 = pneg %p346
        %p544 = pneg %p370
        %p545 = pneg %p367
        %p546 = pneg %p396
        %p547 = pneg %p393
        %p548 = scmp.lt.s32.totalorder %s29, 1
        %s549 = scalar_select %p548, %s29, 1
        %s550 = smul.addr %s549, 8
        %s551 = scalar_lea.vmem %s16, %s550
        %p552 = scmp.lt.s32.totalorder %s29, 1
        %s553 = scalar_select %p552, %s29, 1
        %s554 = smul.addr %s553, 2
        %s555 = smul.addr %s554, 8
        %s556 = scalar_lea.vmem %s0, %s555
        %p557 = scmp.lt.s32.totalorder %s29, 1
        %s558 = scalar_select %p557, %s29, 1
        %s559 = scalar_lea.vmem %s1, %s558
        %p560 = scmp.lt.s32.totalorder %s29, 1
        %s561 = scalar_select %p560, %s29, 1
        %s562 = smul.addr %s561, 8
        %s563 = scalar_lea.vmem %s16, %s562
        %v565 = vld [vmem:[%s556] sm:$0xff]
        %v566 = vld [vmem:[%s556 + $0x8] sm:$0xff]
        %v567 = vld [vmem:[%s559] sm:$0x1]
        %v568 = vld [vmem:[%s2] sm:$0xff]
        %v569 = vld [vmem:[%s2 + $0x8] sm:$0xff]
        %v570 = vld [vmem:[%s2 + $0x10] sm:$0xff]
        %v571 = vld [vmem:[%s2 + $0x18] sm:$0xff]
        %v572 = vld [vmem:[%s3] sm:$0x1]
        %v574 = vlaneseq
        %v575 = vshrl.u32 %v574, 7
        %v576 = vsub.s32 0, %v575
        %v577 = vrot.slane %v572, %v576
        %vm579 = vcmask 261120
        %v581 = vsel %vm579, %v565, 0
        %v584 = vsel %vm579, %v566, 0
        %586 = vmatprep.subr.mxu0 0.0
        %587 = vmatpush1.msra.mxu0 %v568
        %588 = vmatprep.subr.mxu0 0.0
        %589 = vmatpush1.msra.mxu0 %v569
        %590 = vmatprep.subr.mxu0 0.0
        %591 = vmatpush1.msra.mxu0 %v570
        %592 = vmatprep.subr.mxu0 0.0
        %593 = vmatpush1.msra.mxu0 %v571
        %594 = vmatprep.subr.mxu0 0.0
        %595 = vmatpush1.msra.mxu0 0.0
        %596 = vmatprep.subr.mxu0 0.0
        %597 = vmatpush1.msra.mxu0 0.0
        %598 = vmatprep.subr.mxu0 0.0
        %599 = vmatpush1.msra.mxu0 0.0
        %600 = vmatprep.subr.mxu0 0.0
        %601 = vmatpush1.msra.mxu0 0.0
        %602 = vmatprep.subr.mxu0 0.0
        %603 = vmatpush1.msra.mxu0 0.0
        %604 = vmatprep.subr.mxu0 0.0
        %605 = vmatpush1.msra.mxu0 0.0
        %606 = vmatprep.subr.mxu0 0.0
        %607 = vmatpush1.msra.mxu0 0.0
        %608 = vmatprep.subr.mxu0 0.0
        %609 = vmatpush1.msra.mxu0 0.0
        %610 = vmatprep.subr.mxu0 0.0
        %611 = vmatpush1.msra.mxu0 0.0
        %612 = vmatprep.subr.mxu0 0.0
        %613 = vmatpush1.msra.mxu0 0.0
        %614 = vmatprep.subr.mxu0 0.0
        %615 = vmatpush1.msra.mxu0 0.0
        %616 = vmatprep.subr.mxu0 0.0
        %617 = vmatpush1.msra.mxu0 0.0
        %618 = vmatprep.subr.mxu0 0.0
        %619 = vmatpush1.msra.mxu0 0.0
        %620 = vmatprep.subr.mxu0 0.0
        %621 = vmatpush1.msra.mxu0 0.0
        %622 = vmatprep.subr.mxu0 0.0
        %623 = vmatpush1.msra.mxu0 0.0
        %624 = vmatprep.subr.mxu0 0.0
        %625 = vmatpush1.msra.mxu0 0.0
        %626 = vmatprep.subr.mxu0 0.0
        %627 = vmatpush1.msra.mxu0 0.0
        %628 = vmatprep.subr.mxu0 0.0
        %629 = vmatpush1.msra.mxu0 0.0
        %630 = vmatprep.subr.mxu0 0.0
        %631 = vmatpush1.msra.mxu0 0.0
        %632 = vmatprep.subr.mxu0 0.0
        %633 = vmatpush1.msra.mxu0 0.0
        %634 = vmatprep.subr.mxu0 0.0
        %635 = vmatpush1.msra.mxu0 0.0
        %636 = vmatprep.subr.mxu0 0.0
        %637 = vmatpush1.msra.mxu0 0.0
        %638 = vmatprep.subr.mxu0 0.0
        %639 = vmatpush1.msra.mxu0 0.0
        %640 = vmatprep.subr.mxu0 0.0
        %641 = vmatpush1.msra.mxu0 0.0
        %642 = vmatprep.subr.mxu0 0.0
        %643 = vmatpush1.msra.mxu0 0.0
        %644 = vmatprep.subr.mxu0 0.0
        %645 = vmatpush1.msra.mxu0 0.0
        %646 = vmatprep.subr.mxu0 0.0
        %647 = vmatpush1.msra.mxu0 0.0
        %648 = vmatprep.subr.mxu0 0.0
        %649 = vmatpush1.msra.mxu0 0.0
        %650 = vmatprep.mubr.f32.mxu0 0.0
        %651 = vmatmul.mubr.f32.gmra.mrb[0].mxu0 %v581
        %v652 = vpop.f32.mrb[0].mxu0
        %v653 = vadd.f32 %v577, %v652
        %v654 = vpop.f32.mrb[0].mxu0
        %655 = vmatprep.mubr.f32.mxu0 0.0
        %656 = vmatmul.mubr.f32.gmra.mrb[0].mxu0 %v584
        %v657 = vpop.f32.mrb[0].mxu0
        %v658 = vadd.f32 %v577, %v657
        %v659 = vpop.f32.mrb[0].mxu0
        %660 = vdwg.mxu0
        %v662 = vlaneseq
        %v663 = vshrl.u32 %v662, 7
        %v664 = vsub.s32 0, %v663
        %v665 = vrot.slane %v567, %v664
        %669 = vrot.lane.b32.xlu0 %v653, 96
        %v670 = vpop.permute.xlu0 %669
        %671 = vrot.lane.b32.xlu0 %v658, 96
        %v672 = vpop.permute.xlu0 %671
        %vm673 = vcmask 31744
        %v674 = vsel %vm673, %v653, 0
        %v676 = vsel %vm673, %v658, 0
        %v678 = vsel %vm673, %v670, 0
        %v680 = vsel %vm673, %v672, 0
        %682 = vmatprep.subr.mxu0 0.0
        %683 = vmatpush1.xpose.msra.mxu0 %v678
        %684 = vmatprep.subr.mxu0 0.0
        %685 = vmatpush1.xpose.msra.mxu0 %v680
        %686 = vmatprep.subr.mxu0 0.0
        %687 = vmatpush1.xpose.msra.mxu0 0.0
        %688 = vmatprep.subr.mxu0 0.0
        %689 = vmatpush1.xpose.msra.mxu0 0.0
        %690 = vmatprep.subr.mxu0 0.0
        %691 = vmatpush1.xpose.msra.mxu0 0.0
        %692 = vmatprep.subr.mxu0 0.0
        %693 = vmatpush1.xpose.msra.mxu0 0.0
        %694 = vmatprep.subr.mxu0 0.0
        %695 = vmatpush1.xpose.msra.mxu0 0.0
        %696 = vmatprep.subr.mxu0 0.0
        %697 = vmatpush1.xpose.msra.mxu0 0.0
        %698 = vmatprep.subr.mxu0 0.0
        %699 = vmatpush1.xpose.msra.mxu0 0.0
        %700 = vmatprep.subr.mxu0 0.0
        %701 = vmatpush1.xpose.msra.mxu0 0.0
        %702 = vmatprep.subr.mxu0 0.0
        %703 = vmatpush1.xpose.msra.mxu0 0.0
        %704 = vmatprep.subr.mxu0 0.0
        %705 = vmatpush1.xpose.msra.mxu0 0.0
        %706 = vmatprep.subr.mxu0 0.0
        %707 = vmatpush1.xpose.msra.mxu0 0.0
        %708 = vmatprep.subr.mxu0 0.0
        %709 = vmatpush1.xpose.msra.mxu0 0.0
        %710 = vmatprep.subr.mxu0 0.0
        %711 = vmatpush1.xpose.msra.mxu0 0.0
        %712 = vmatprep.subr.mxu0 0.0
        %713 = vmatpush1.xpose.msra.mxu0 0.0
        %714 = vmatprep.subr.mxu0 0.0
        %715 = vmatpush1.xpose.msra.mxu0 0.0
        %716 = vmatprep.subr.mxu0 0.0
        %717 = vmatpush1.xpose.msra.mxu0 0.0
        %718 = vmatprep.subr.mxu0 0.0
        %719 = vmatpush1.xpose.msra.mxu0 0.0
        %720 = vmatprep.subr.mxu0 0.0
        %721 = vmatpush1.xpose.msra.mxu0 0.0
        %722 = vmatprep.subr.mxu0 0.0
        %723 = vmatpush1.xpose.msra.mxu0 0.0
        %724 = vmatprep.subr.mxu0 0.0
        %725 = vmatpush1.xpose.msra.mxu0 0.0
        %726 = vmatprep.subr.mxu0 0.0
        %727 = vmatpush1.xpose.msra.mxu0 0.0
        %728 = vmatprep.subr.mxu0 0.0
        %729 = vmatpush1.xpose.msra.mxu0 0.0
        %730 = vmatprep.subr.mxu0 0.0
        %731 = vmatpush1.xpose.msra.mxu0 0.0
        %732 = vmatprep.subr.mxu0 0.0
        %733 = vmatpush1.xpose.msra.mxu0 0.0
        %734 = vmatprep.subr.mxu0 0.0
        %735 = vmatpush1.xpose.msra.mxu0 0.0
        %736 = vmatprep.subr.mxu0 0.0
        %737 = vmatpush1.xpose.msra.mxu0 0.0
        %738 = vmatprep.subr.mxu0 0.0
        %739 = vmatpush1.xpose.msra.mxu0 0.0
        %740 = vmatprep.subr.mxu0 0.0
        %741 = vmatpush1.xpose.msra.mxu0 0.0
        %742 = vmatprep.subr.mxu0 0.0
        %743 = vmatpush1.xpose.msra.mxu0 0.0
        %744 = vmatprep.subr.mxu0 0.0
        %745 = vmatpush1.xpose.msra.mxu0 0.0
        %746 = vmatprep.mubr.f32.mxu0 0.0
        %747 = vmatmul.mubr.f32.gmra.mrb[0].mxu0 %v674
        %v748 = vpop.f32.mrb[0].mxu0
        %v749 = vadd.f32 %v665, %v748
        %v750 = vpop.f32.mrb[0].mxu0
        %751 = vmatprep.mubr.f32.mxu0 0.0
        %752 = vmatmul.mubr.f32.gmra.mrb[0].mxu0 %v676
        %v753 = vpop.f32.mrb[0].mxu0
        %v754 = vadd.f32 %v665, %v753
        %v755 = vpop.f32.mrb[0].mxu0
        %756 = vdwg.mxu0
        %vm757 = vcmask 130048
        %v758 = vsel %vm757, %v749, -inf
        %759 = vmax.xlane.f32.xlu0 %v758
        %v760 = vpop.xlane.xlu0 %759
        %v761 = vsel %vm757, %v754, -inf
        %762 = vmax.xlane.f32.xlu0 %v761
        %v763 = vpop.xlane.xlu0 %762
        %v764 = vsub.f32 %v749, %v760
        %v765 = vsub.f32 %v754, %v763
        %v766 = vmul.f32 %v764, 1.442695
        %v767 = vpow.pop %v766
        %v768 = vmul.f32 %v765, 1.442695
        %v769 = vpow.pop %v768
        %v770 = vsel %vm757, %v767, 0.0
        %771 = vadd.xlane.f32.xlu0 %v770
        %v772 = vpop.xlane.xlu0 %771
        %v773 = vsel %vm757, %v769, 0.0
        %774 = vadd.xlane.f32.xlu0 %v773
        %v775 = vpop.xlane.xlu0 %774
        %v776 = vrcp.pop %v772
        %v777 = vrcp.pop %v775
        %v778 = vmul.f32 %v767, %v776
        %v779 = vmul.f32 %v769, %v777
        %780 = vrot.lane.b32.xlu0 %v653, 64
        %v781 = vpop.permute.xlu0 %780
        %782 = vrot.lane.b32.xlu0 %v658, 64
        %v783 = vpop.permute.xlu0 %782
        %v787 = vsel %vm757, %v778, 0
        %v790 = vsel %vm757, %v779, 0
        %792 = vmatprep.subr.mxu0 0.0
        %793 = vmatpush1.msra.mxu0 %v781
        %794 = vmatprep.subr.mxu0 0.0
        %795 = vmatpush1.msra.mxu0 %v783
        %796 = vmatprep.subr.mxu0 0.0
        %797 = vmatpush1.msra.mxu0 0.0
        %798 = vmatprep.subr.mxu0 0.0
        %799 = vmatpush1.msra.mxu0 0.0
        %800 = vmatprep.subr.mxu0 0.0
        %801 = vmatpush1.msra.mxu0 0.0
        %802 = vmatprep.subr.mxu0 0.0
        %803 = vmatpush1.msra.mxu0 0.0
        %804 = vmatprep.subr.mxu0 0.0
        %805 = vmatpush1.msra.mxu0 0.0
        %806 = vmatprep.subr.mxu0 0.0
        %807 = vmatpush1.msra.mxu0 0.0
        %808 = vmatprep.subr.mxu0 0.0
        %809 = vmatpush1.msra.mxu0 0.0
        %810 = vmatprep.subr.mxu0 0.0
        %811 = vmatpush1.msra.mxu0 0.0
        %812 = vmatprep.subr.mxu0 0.0
        %813 = vmatpush1.msra.mxu0 0.0
        %814 = vmatprep.subr.mxu0 0.0
        %815 = vmatpush1.msra.mxu0 0.0
        %816 = vmatprep.subr.mxu0 0.0
        %817 = vmatpush1.msra.mxu0 0.0
        %818 = vmatprep.subr.mxu0 0.0
        %819 = vmatpush1.msra.mxu0 0.0
        %820 = vmatprep.subr.mxu0 0.0
        %821 = vmatpush1.msra.mxu0 0.0
        %822 = vmatprep.subr.mxu0 0.0
        %823 = vmatpush1.msra.mxu0 0.0
        %824 = vmatprep.subr.mxu0 0.0
        %825 = vmatpush1.msra.mxu0 0.0
        %826 = vmatprep.subr.mxu0 0.0
        %827 = vmatpush1.msra.mxu0 0.0
        %828 = vmatprep.subr.mxu0 0.0
        %829 = vmatpush1.msra.mxu0 0.0
        %830 = vmatprep.subr.mxu0 0.0
        %831 = vmatpush1.msra.mxu0 0.0
        %832 = vmatprep.subr.mxu0 0.0
        %833 = vmatpush1.msra.mxu0 0.0
        %834 = vmatprep.subr.mxu0 0.0
        %835 = vmatpush1.msra.mxu0 0.0
        %836 = vmatprep.subr.mxu0 0.0
        %837 = vmatpush1.msra.mxu0 0.0
        %838 = vmatprep.subr.mxu0 0.0
        %839 = vmatpush1.msra.mxu0 0.0
        %840 = vmatprep.subr.mxu0 0.0
        %841 = vmatpush1.msra.mxu0 0.0
        %842 = vmatprep.subr.mxu0 0.0
        %843 = vmatpush1.msra.mxu0 0.0
        %844 = vmatprep.subr.mxu0 0.0
        %845 = vmatpush1.msra.mxu0 0.0
        %846 = vmatprep.subr.mxu0 0.0
        %847 = vmatpush1.msra.mxu0 0.0
        %848 = vmatprep.subr.mxu0 0.0
        %849 = vmatpush1.msra.mxu0 0.0
        %850 = vmatprep.subr.mxu0 0.0
        %851 = vmatpush1.msra.mxu0 0.0
        %852 = vmatprep.subr.mxu0 0.0
        %853 = vmatpush1.msra.mxu0 0.0
        %854 = vmatprep.subr.mxu0 0.0
        %855 = vmatpush1.msra.mxu0 0.0
        %856 = vmatprep.mubr.f32.mxu0 0.0
        %857 = vmatmul.mubr.f32.gmra.mrb[0].mxu0 %v787
        %v858 = vpop.f32.mrb[0].mxu0
        %v859 = vadd.f32 0.0, %v858
        %v860 = vpop.f32.mrb[0].mxu0
        %861 = vmatprep.mubr.f32.mxu0 0.0
        %862 = vmatmul.mubr.f32.gmra.mrb[0].mxu0 %v790
        %v863 = vpop.f32.mrb[0].mxu0
        %v864 = vadd.f32 0.0, %v863
        %v865 = vpop.f32.mrb[0].mxu0
        %866 = vdwg.mxu0
        %867 = vst.msk [vmem:[#allocation2] sm:$0xff] %vm673, %v859
        %868 = vst.msk [vmem:[#allocation2 + $0x8] sm:$0xff] %vm673, %v864
        %869 = vrot.lane.b32.xlu0 %v653, 124
        %v870 = vpop.permute.xlu0 %869
        %871 = vrot.lane.b32.xlu0 %v658, 124
        %v872 = vpop.permute.xlu0 %871
        %873 = vrot.lane.b32.xlu0 %v653, 92
        %v874 = vpop.permute.xlu0 %873
        %875 = vrot.lane.b32.xlu0 %v658, 92
        %v876 = vpop.permute.xlu0 %875
        %v877 = vsel %vm673, %v870, 0
        %v879 = vsel %vm673, %v872, 0
        %v881 = vsel %vm673, %v874, 0
        %v883 = vsel %vm673, %v876, 0
        %885 = vmatprep.subr.mxu0 0.0
        %886 = vmatpush1.xpose.msra.mxu0 %v881
        %887 = vmatprep.subr.mxu0 0.0
        %888 = vmatpush1.xpose.msra.mxu0 %v883
        %889 = vmatprep.subr.mxu0 0.0
        %890 = vmatpush1.xpose.msra.mxu0 0.0
        %891 = vmatprep.subr.mxu0 0.0
        %892 = vmatpush1.xpose.msra.mxu0 0.0
        %893 = vmatprep.subr.mxu0 0.0
        %894 = vmatpush1.xpose.msra.mxu0 0.0
        %895 = vmatprep.subr.mxu0 0.0
        %896 = vmatpush1.xpose.msra.mxu0 0.0
        %897 = vmatprep.subr.mxu0 0.0
        %898 = vmatpush1.xpose.msra.mxu0 0.0
        %899 = vmatprep.subr.mxu0 0.0
        %900 = vmatpush1.xpose.msra.mxu0 0.0
        %901 = vmatprep.subr.mxu0 0.0
        %902 = vmatpush1.xpose.msra.mxu0 0.0
        %903 = vmatprep.subr.mxu0 0.0
        %904 = vmatpush1.xpose.msra.mxu0 0.0
        %905 = vmatprep.subr.mxu0 0.0
        %906 = vmatpush1.xpose.msra.mxu0 0.0
        %907 = vmatprep.subr.mxu0 0.0
        %908 = vmatpush1.xpose.msra.mxu0 0.0
        %909 = vmatprep.subr.mxu0 0.0
        %910 = vmatpush1.xpose.msra.mxu0 0.0
        %911 = vmatprep.subr.mxu0 0.0
        %912 = vmatpush1.xpose.msra.mxu0 0.0
        %913 = vmatprep.subr.mxu0 0.0
        %914 = vmatpush1.xpose.msra.mxu0 0.0
        %915 = vmatprep.subr.mxu0 0.0
        %916 = vmatpush1.xpose.msra.mxu0 0.0
        %917 = vmatprep.subr.mxu0 0.0
        %918 = vmatpush1.xpose.msra.mxu0 0.0
        %919 = vmatprep.subr.mxu0 0.0
        %920 = vmatpush1.xpose.msra.mxu0 0.0
        %921 = vmatprep.subr.mxu0 0.0
        %922 = vmatpush1.xpose.msra.mxu0 0.0
        %923 = vmatprep.subr.mxu0 0.0
        %924 = vmatpush1.xpose.msra.mxu0 0.0
        %925 = vmatprep.subr.mxu0 0.0
        %926 = vmatpush1.xpose.msra.mxu0 0.0
        %927 = vmatprep.subr.mxu0 0.0
        %928 = vmatpush1.xpose.msra.mxu0 0.0
        %929 = vmatprep.subr.mxu0 0.0
        %930 = vmatpush1.xpose.msra.mxu0 0.0
        %931 = vmatprep.subr.mxu0 0.0
        %932 = vmatpush1.xpose.msra.mxu0 0.0
        %933 = vmatprep.subr.mxu0 0.0
        %934 = vmatpush1.xpose.msra.mxu0 0.0
        %935 = vmatprep.subr.mxu0 0.0
        %936 = vmatpush1.xpose.msra.mxu0 0.0
        %937 = vmatprep.subr.mxu0 0.0
        %938 = vmatpush1.xpose.msra.mxu0 0.0
        %939 = vmatprep.subr.mxu0 0.0
        %940 = vmatpush1.xpose.msra.mxu0 0.0
        %941 = vmatprep.subr.mxu0 0.0
        %942 = vmatpush1.xpose.msra.mxu0 0.0
        %943 = vmatprep.subr.mxu0 0.0
        %944 = vmatpush1.xpose.msra.mxu0 0.0
        %945 = vmatprep.subr.mxu0 0.0
        %946 = vmatpush1.xpose.msra.mxu0 0.0
        %947 = vmatprep.subr.mxu0 0.0
        %948 = vmatpush1.xpose.msra.mxu0 0.0
        %949 = vmatprep.mubr.f32.mxu0 0.0
        %950 = vmatmul.mubr.f32.gmra.mrb[0].mxu0 %v877
        %v951 = vpop.f32.mrb[0].mxu0
        %v952 = vadd.f32 %v665, %v951
        %v953 = vpop.f32.mrb[0].mxu0
        %954 = vmatprep.mubr.f32.mxu0 0.0
        %955 = vmatmul.mubr.f32.gmra.mrb[0].mxu0 %v879
        %v956 = vpop.f32.mrb[0].mxu0
        %v957 = vadd.f32 %v665, %v956
        %v958 = vpop.f32.mrb[0].mxu0
        %959 = vdwg.mxu0
        %v960 = vsel %vm757, %v952, -inf
        %961 = vmax.xlane.f32.xlu0 %v960
        %v962 = vpop.xlane.xlu0 %961
        %v963 = vsel %vm757, %v957, -inf
        %964 = vmax.xlane.f32.xlu0 %v963
        %v965 = vpop.xlane.xlu0 %964
        %v966 = vsub.f32 %v952, %v962
        %v967 = vsub.f32 %v957, %v965
        %v968 = vmul.f32 %v966, 1.442695
        %v969 = vpow.pop %v968
        %v970 = vmul.f32 %v967, 1.442695
        %v971 = vpow.pop %v970
        %v972 = vsel %vm757, %v969, 0.0
        %973 = vadd.xlane.f32.xlu0 %v972
        %v974 = vpop.xlane.xlu0 %973
        %v975 = vsel %vm757, %v971, 0.0
        %976 = vadd.xlane.f32.xlu0 %v975
        %v977 = vpop.xlane.xlu0 %976
        %v978 = vrcp.pop %v974
        %v979 = vrcp.pop %v977
        %v980 = vmul.f32 %v969, %v978
        %v981 = vmul.f32 %v971, %v979
        %982 = vrot.lane.b32.xlu0 %v653, 60
        %v983 = vpop.permute.xlu0 %982
        %984 = vrot.lane.b32.xlu0 %v658, 60
        %v985 = vpop.permute.xlu0 %984
        %v989 = vsel %vm757, %v980, 0
        %v992 = vsel %vm757, %v981, 0
        %994 = vmatprep.subr.mxu0 0.0
        %995 = vmatpush1.msra.mxu0 %v983
        %996 = vmatprep.subr.mxu0 0.0
        %997 = vmatpush1.msra.mxu0 %v985
        %998 = vmatprep.subr.mxu0 0.0
        %999 = vmatpush1.msra.mxu0 0.0
        %1000 = vmatprep.subr.mxu0 0.0
        %1001 = vmatpush1.msra.mxu0 0.0
        %1002 = vmatprep.subr.mxu0 0.0
        %1003 = vmatpush1.msra.mxu0 0.0
        %1004 = vmatprep.subr.mxu0 0.0
        %1005 = vmatpush1.msra.mxu0 0.0
        %1006 = vmatprep.subr.mxu0 0.0
        %1007 = vmatpush1.msra.mxu0 0.0
        %1008 = vmatprep.subr.mxu0 0.0
        %1009 = vmatpush1.msra.mxu0 0.0
        %1010 = vmatprep.subr.mxu0 0.0
        %1011 = vmatpush1.msra.mxu0 0.0
        %1012 = vmatprep.subr.mxu0 0.0
        %1013 = vmatpush1.msra.mxu0 0.0
        %1014 = vmatprep.subr.mxu0 0.0
        %1015 = vmatpush1.msra.mxu0 0.0
        %1016 = vmatprep.subr.mxu0 0.0
        %1017 = vmatpush1.msra.mxu0 0.0
        %1018 = vmatprep.subr.mxu0 0.0
        %1019 = vmatpush1.msra.mxu0 0.0
        %1020 = vmatprep.subr.mxu0 0.0
        %1021 = vmatpush1.msra.mxu0 0.0
        %1022 = vmatprep.subr.mxu0 0.0
        %1023 = vmatpush1.msra.mxu0 0.0
        %1024 = vmatprep.subr.mxu0 0.0
        %1025 = vmatpush1.msra.mxu0 0.0
        %1026 = vmatprep.subr.mxu0 0.0
        %1027 = vmatpush1.msra.mxu0 0.0
        %1028 = vmatprep.subr.mxu0 0.0
        %1029 = vmatpush1.msra.mxu0 0.0
        %1030 = vmatprep.subr.mxu0 0.0
        %1031 = vmatpush1.msra.mxu0 0.0
        %1032 = vmatprep.subr.mxu0 0.0
        %1033 = vmatpush1.msra.mxu0 0.0
        %1034 = vmatprep.subr.mxu0 0.0
        %1035 = vmatpush1.msra.mxu0 0.0
        %1036 = vmatprep.subr.mxu0 0.0
        %1037 = vmatpush1.msra.mxu0 0.0
        %1038 = vmatprep.subr.mxu0 0.0
        %1039 = vmatpush1.msra.mxu0 0.0
        %1040 = vmatprep.subr.mxu0 0.0
        %1041 = vmatpush1.msra.mxu0 0.0
        %1042 = vmatprep.subr.mxu0 0.0
        %1043 = vmatpush1.msra.mxu0 0.0
        %1044 = vmatprep.subr.mxu0 0.0
        %1045 = vmatpush1.msra.mxu0 0.0
        %1046 = vmatprep.subr.mxu0 0.0
        %1047 = vmatpush1.msra.mxu0 0.0
        %1048 = vmatprep.subr.mxu0 0.0
        %1049 = vmatpush1.msra.mxu0 0.0
        %1050 = vmatprep.subr.mxu0 0.0
        %1051 = vmatpush1.msra.mxu0 0.0
        %1052 = vmatprep.subr.mxu0 0.0
        %1053 = vmatpush1.msra.mxu0 0.0
        %1054 = vmatprep.subr.mxu0 0.0
        %1055 = vmatpush1.msra.mxu0 0.0
        %1056 = vmatprep.subr.mxu0 0.0
        %1057 = vmatpush1.msra.mxu0 0.0
        %1058 = vmatprep.mubr.f32.mxu0 0.0
        %1059 = vmatmul.mubr.f32.gmra.mrb[0].mxu0 %v989
        %v1060 = vpop.f32.mrb[0].mxu0
        %v1061 = vadd.f32 0.0, %v1060
        %v1062 = vpop.f32.mrb[0].mxu0
        %1063 = vmatprep.mubr.f32.mxu0 0.0
        %1064 = vmatmul.mubr.f32.gmra.mrb[0].mxu0 %v992
        %v1065 = vpop.f32.mrb[0].mxu0
        %v1066 = vadd.f32 0.0, %v1065
        %v1067 = vpop.f32.mrb[0].mxu0
        %1068 = vdwg.mxu0
        %1071 = vrot.lane.b32.xlu0 %v1061, 4
        %v1072 = vpop.permute.xlu0 %1071
        %1073 = vrot.lane.b32.xlu0 %v1066, 4
        %v1074 = vpop.permute.xlu0 %1073
        %vm1077 = vcmask 64544
        %1078 = vst.msk [vmem:[#allocation2] sm:$0xff] %vm1077, %v1072
        %1079 = vst.msk [vmem:[#allocation2 + $0x8] sm:$0xff] %vm1077, %v1074
        %1080 = vrot.lane.b32.xlu0 %v653, 120
        %v1081 = vpop.permute.xlu0 %1080
        %1082 = vrot.lane.b32.xlu0 %v658, 120
        %v1083 = vpop.permute.xlu0 %1082
        %1084 = vrot.lane.b32.xlu0 %v653, 88
        %v1085 = vpop.permute.xlu0 %1084
        %1086 = vrot.lane.b32.xlu0 %v658, 88
        %v1087 = vpop.permute.xlu0 %1086
        %v1088 = vsel %vm673, %v1081, 0
        %v1090 = vsel %vm673, %v1083, 0
        %v1092 = vsel %vm673, %v1085, 0
        %v1094 = vsel %vm673, %v1087, 0
        %1096 = vmatprep.subr.mxu0 0.0
        %1097 = vmatpush1.xpose.msra.mxu0 %v1092
        %1098 = vmatprep.subr.mxu0 0.0
        %1099 = vmatpush1.xpose.msra.mxu0 %v1094
        %1100 = vmatprep.subr.mxu0 0.0
        %1101 = vmatpush1.xpose.msra.mxu0 0.0
        %1102 = vmatprep.subr.mxu0 0.0
        %1103 = vmatpush1.xpose.msra.mxu0 0.0
        %1104 = vmatprep.subr.mxu0 0.0
        %1105 = vmatpush1.xpose.msra.mxu0 0.0
        %1106 = vmatprep.subr.mxu0 0.0
        %1107 = vmatpush1.xpose.msra.mxu0 0.0
        %1108 = vmatprep.subr.mxu0 0.0
        %1109 = vmatpush1.xpose.msra.mxu0 0.0
        %1110 = vmatprep.subr.mxu0 0.0
        %1111 = vmatpush1.xpose.msra.mxu0 0.0
        %1112 = vmatprep.subr.mxu0 0.0
        %1113 = vmatpush1.xpose.msra.mxu0 0.0
        %1114 = vmatprep.subr.mxu0 0.0
        %1115 = vmatpush1.xpose.msra.mxu0 0.0
        %1116 = vmatprep.subr.mxu0 0.0
        %1117 = vmatpush1.xpose.msra.mxu0 0.0
        %1118 = vmatprep.subr.mxu0 0.0
        %1119 = vmatpush1.xpose.msra.mxu0 0.0
        %1120 = vmatprep.subr.mxu0 0.0
        %1121 = vmatpush1.xpose.msra.mxu0 0.0
        %1122 = vmatprep.subr.mxu0 0.0
        %1123 = vmatpush1.xpose.msra.mxu0 0.0
        %1124 = vmatprep.subr.mxu0 0.0
        %1125 = vmatpush1.xpose.msra.mxu0 0.0
        %1126 = vmatprep.subr.mxu0 0.0
        %1127 = vmatpush1.xpose.msra.mxu0 0.0
        %1128 = vmatprep.subr.mxu0 0.0
        %1129 = vmatpush1.xpose.msra.mxu0 0.0
        %1130 = vmatprep.subr.mxu0 0.0
        %1131 = vmatpush1.xpose.msra.mxu0 0.0
        %1132 = vmatprep.subr.mxu0 0.0
        %1133 = vmatpush1.xpose.msra.mxu0 0.0
        %1134 = vmatprep.subr.mxu0 0.0
        %1135 = vmatpush1.xpose.msra.mxu0 0.0
        %1136 = vmatprep.subr.mxu0 0.0
        %1137 = vmatpush1.xpose.msra.mxu0 0.0
        %1138 = vmatprep.subr.mxu0 0.0
        %1139 = vmatpush1.xpose.msra.mxu0 0.0
        %1140 = vmatprep.subr.mxu0 0.0
        %1141 = vmatpush1.xpose.msra.mxu0 0.0
        %1142 = vmatprep.subr.mxu0 0.0
        %1143 = vmatpush1.xpose.msra.mxu0 0.0
        %1144 = vmatprep.subr.mxu0 0.0
        %1145 = vmatpush1.xpose.msra.mxu0 0.0
        %1146 = vmatprep.subr.mxu0 0.0
        %1147 = vmatpush1.xpose.msra.mxu0 0.0
        %1148 = vmatprep.subr.mxu0 0.0
        %1149 = vmatpush1.xpose.msra.mxu0 0.0
        %1150 = vmatprep.subr.mxu0 0.0
        %1151 = vmatpush1.xpose.msra.mxu0 0.0
        %1152 = vmatprep.subr.mxu0 0.0
        %1153 = vmatpush1.xpose.msra.mxu0 0.0
        %1154 = vmatprep.subr.mxu0 0.0
        %1155 = vmatpush1.xpose.msra.mxu0 0.0
        %1156 = vmatprep.subr.mxu0 0.0
        %1157 = vmatpush1.xpose.msra.mxu0 0.0
        %1158 = vmatprep.subr.mxu0 0.0
        %1159 = vmatpush1.xpose.msra.mxu0 0.0
        %1160 = vmatprep.mubr.f32.mxu0 0.0
        %1161 = vmatmul.mubr.f32.gmra.mrb[0].mxu0 %v1088
        %v1162 = vpop.f32.mrb[0].mxu0
        %v1163 = vadd.f32 %v665, %v1162
        %v1164 = vpop.f32.mrb[0].mxu0
        %1165 = vmatprep.mubr.f32.mxu0 0.0
        %1166 = vmatmul.mubr.f32.gmra.mrb[0].mxu0 %v1090
        %v1167 = vpop.f32.mrb[0].mxu0
        %v1168 = vadd.f32 %v665, %v1167
        %v1169 = vpop.f32.mrb[0].mxu0
        %1170 = vdwg.mxu0
        %v1171 = vsel %vm757, %v1163, -inf
        %1172 = vmax.xlane.f32.xlu0 %v1171
        %v1173 = vpop.xlane.xlu0 %1172
        %v1174 = vsel %vm757, %v1168, -inf
        %1175 = vmax.xlane.f32.xlu0 %v1174
        %v1176 = vpop.xlane.xlu0 %1175
        %v1177 = vsub.f32 %v1163, %v1173
        %v1178 = vsub.f32 %v1168, %v1176
        %v1179 = vmul.f32 %v1177, 1.442695
        %v1180 = vpow.pop %v1179
        %v1181 = vmul.f32 %v1178, 1.442695
        %v1182 = vpow.pop %v1181
        %v1183 = vsel %vm757, %v1180, 0.0
        %1184 = vadd.xlane.f32.xlu0 %v1183
        %v1185 = vpop.xlane.xlu0 %1184
        %v1186 = vsel %vm757, %v1182, 0.0
        %1187 = vadd.xlane.f32.xlu0 %v1186
        %v1188 = vpop.xlane.xlu0 %1187
        %v1189 = vrcp.pop %v1185
        %v1190 = vrcp.pop %v1188
        %v1191 = vmul.f32 %v1180, %v1189
        %v1192 = vmul.f32 %v1182, %v1190
        %1193 = vrot.lane.b32.xlu0 %v653, 56
        %v1194 = vpop.permute.xlu0 %1193
        %1195 = vrot.lane.b32.xlu0 %v658, 56
        %v1196 = vpop.permute.xlu0 %1195
        %v1200 = vsel %vm757, %v1191, 0
        %v1203 = vsel %vm757, %v1192, 0
        %1205 = vmatprep.subr.mxu0 0.0
        %1206 = vmatpush1.msra.mxu0 %v1194
        %1207 = vmatprep.subr.mxu0 0.0
        %1208 = vmatpush1.msra.mxu0 %v1196
        %1209 = vmatprep.subr.mxu0 0.0
        %1210 = vmatpush1.msra.mxu0 0.0
        %1211 = vmatprep.subr.mxu0 0.0
        %1212 = vmatpush1.msra.mxu0 0.0
        %1213 = vmatprep.subr.mxu0 0.0
        %1214 = vmatpush1.msra.mxu0 0.0
        %1215 = vmatprep.subr.mxu0 0.0
        %1216 = vmatpush1.msra.mxu0 0.0
        %1217 = vmatprep.subr.mxu0 0.0
        %1218 = vmatpush1.msra.mxu0 0.0
        %1219 = vmatprep.subr.mxu0 0.0
        %1220 = vmatpush1.msra.mxu0 0.0
        %1221 = vmatprep.subr.mxu0 0.0
        %1222 = vmatpush1.msra.mxu0 0.0
        %1223 = vmatprep.subr.mxu0 0.0
        %1224 = vmatpush1.msra.mxu0 0.0
        %1225 = vmatprep.subr.mxu0 0.0
        %1226 = vmatpush1.msra.mxu0 0.0
        %1227 = vmatprep.subr.mxu0 0.0
        %1228 = vmatpush1.msra.mxu0 0.0
        %1229 = vmatprep.subr.mxu0 0.0
        %1230 = vmatpush1.msra.mxu0 0.0
        %1231 = vmatprep.subr.mxu0 0.0
        %1232 = vmatpush1.msra.mxu0 0.0
        %1233 = vmatprep.subr.mxu0 0.0
        %1234 = vmatpush1.msra.mxu0 0.0
        %1235 = vmatprep.subr.mxu0 0.0
        %1236 = vmatpush1.msra.mxu0 0.0
        %1237 = vmatprep.subr.mxu0 0.0
        %1238 = vmatpush1.msra.mxu0 0.0
        %1239 = vmatprep.subr.mxu0 0.0
        %1240 = vmatpush1.msra.mxu0 0.0
        %1241 = vmatprep.subr.mxu0 0.0
        %1242 = vmatpush1.msra.mxu0 0.0
        %1243 = vmatprep.subr.mxu0 0.0
        %1244 = vmatpush1.msra.mxu0 0.0
        %1245 = vmatprep.subr.mxu0 0.0
        %1246 = vmatpush1.msra.mxu0 0.0
        %1247 = vmatprep.subr.mxu0 0.0
        %1248 = vmatpush1.msra.mxu0 0.0
        %1249 = vmatprep.subr.mxu0 0.0
        %1250 = vmatpush1.msra.mxu0 0.0
        %1251 = vmatprep.subr.mxu0 0.0
        %1252 = vmatpush1.msra.mxu0 0.0
        %1253 = vmatprep.subr.mxu0 0.0
        %1254 = vmatpush1.msra.mxu0 0.0
        %1255 = vmatprep.subr.mxu0 0.0
        %1256 = vmatpush1.msra.mxu0 0.0
        %1257 = vmatprep.subr.mxu0 0.0
        %1258 = vmatpush1.msra.mxu0 0.0
        %1259 = vmatprep.subr.mxu0 0.0
        %1260 = vmatpush1.msra.mxu0 0.0
        %1261 = vmatprep.subr.mxu0 0.0
        %1262 = vmatpush1.msra.mxu0 0.0
        %1263 = vmatprep.subr.mxu0 0.0
        %1264 = vmatpush1.msra.mxu0 0.0
        %1265 = vmatprep.subr.mxu0 0.0
        %1266 = vmatpush1.msra.mxu0 0.0
        %1267 = vmatprep.subr.mxu0 0.0
        %1268 = vmatpush1.msra.mxu0 0.0
        %1269 = vmatprep.mubr.f32.mxu0 0.0
        %1270 = vmatmul.mubr.f32.gmra.mrb[0].mxu0 %v1200
        %v1271 = vpop.f32.mrb[0].mxu0
        %v1272 = vadd.f32 0.0, %v1271
        %v1273 = vpop.f32.mrb[0].mxu0
        %1274 = vmatprep.mubr.f32.mxu0 0.0
        %1275 = vmatmul.mubr.f32.gmra.mrb[0].mxu0 %v1203
        %v1276 = vpop.f32.mrb[0].mxu0
        %v1277 = vadd.f32 0.0, %v1276
        %v1278 = vpop.f32.mrb[0].mxu0
        %1279 = vdwg.mxu0
        %1282 = vrot.lane.b32.xlu0 %v1272, 8
        %v1283 = vpop.permute.xlu0 %1282
        %1284 = vrot.lane.b32.xlu0 %v1277, 8
        %v1285 = vpop.permute.xlu0 %1284
        %vm1288 = vcmask 97344
        %1289 = vst.msk [vmem:[#allocation2] sm:$0xff] %vm1288, %v1283
        %1290 = vst.msk [vmem:[#allocation2 + $0x8] sm:$0xff] %vm1288, %v1285
        %1291 = vrot.lane.b32.xlu0 %v653, 116
        %v1292 = vpop.permute.xlu0 %1291
        %1293 = vrot.lane.b32.xlu0 %v658, 116
        %v1294 = vpop.permute.xlu0 %1293
        %1295 = vrot.lane.b32.xlu0 %v653, 84
        %v1296 = vpop.permute.xlu0 %1295
        %1297 = vrot.lane.b32.xlu0 %v658, 84
        %v1298 = vpop.permute.xlu0 %1297
        %v1299 = vsel %vm673, %v1292, 0
        %v1301 = vsel %vm673, %v1294, 0
        %v1303 = vsel %vm673, %v1296, 0
        %v1305 = vsel %vm673, %v1298, 0
        %1307 = vmatprep.subr.mxu0 0.0
        %1308 = vmatpush1.xpose.msra.mxu0 %v1303
        %1309 = vmatprep.subr.mxu0 0.0
        %1310 = vmatpush1.xpose.msra.mxu0 %v1305
        %1311 = vmatprep.subr.mxu0 0.0
        %1312 = vmatpush1.xpose.msra.mxu0 0.0
        %1313 = vmatprep.subr.mxu0 0.0
        %1314 = vmatpush1.xpose.msra.mxu0 0.0
        %1315 = vmatprep.subr.mxu0 0.0
        %1316 = vmatpush1.xpose.msra.mxu0 0.0
        %1317 = vmatprep.subr.mxu0 0.0
        %1318 = vmatpush1.xpose.msra.mxu0 0.0
        %1319 = vmatprep.subr.mxu0 0.0
        %1320 = vmatpush1.xpose.msra.mxu0 0.0
        %1321 = vmatprep.subr.mxu0 0.0
        %1322 = vmatpush1.xpose.msra.mxu0 0.0
        %1323 = vmatprep.subr.mxu0 0.0
        %1324 = vmatpush1.xpose.msra.mxu0 0.0
        %1325 = vmatprep.subr.mxu0 0.0
        %1326 = vmatpush1.xpose.msra.mxu0 0.0
        %1327 = vmatprep.subr.mxu0 0.0
        %1328 = vmatpush1.xpose.msra.mxu0 0.0
        %1329 = vmatprep.subr.mxu0 0.0
        %1330 = vmatpush1.xpose.msra.mxu0 0.0
        %1331 = vmatprep.subr.mxu0 0.0
        %1332 = vmatpush1.xpose.msra.mxu0 0.0
        %1333 = vmatprep.subr.mxu0 0.0
        %1334 = vmatpush1.xpose.msra.mxu0 0.0
        %1335 = vmatprep.subr.mxu0 0.0
        %1336 = vmatpush1.xpose.msra.mxu0 0.0
        %1337 = vmatprep.subr.mxu0 0.0
        %1338 = vmatpush1.xpose.msra.mxu0 0.0
        %1339 = vmatprep.subr.mxu0 0.0
        %1340 = vmatpush1.xpose.msra.mxu0 0.0
        %1341 = vmatprep.subr.mxu0 0.0
        %1342 = vmatpush1.xpose.msra.mxu0 0.0
        %1343 = vmatprep.subr.mxu0 0.0
        %1344 = vmatpush1.xpose.msra.mxu0 0.0
        %1345 = vmatprep.subr.mxu0 0.0
        %1346 = vmatpush1.xpose.msra.mxu0 0.0
        %1347 = vmatprep.subr.mxu0 0.0
        %1348 = vmatpush1.xpose.msra.mxu0 0.0
        %1349 = vmatprep.subr.mxu0 0.0
        %1350 = vmatpush1.xpose.msra.mxu0 0.0
        %1351 = vmatprep.subr.mxu0 0.0
        %1352 = vmatpush1.xpose.msra.mxu0 0.0
        %1353 = vmatprep.subr.mxu0 0.0
        %1354 = vmatpush1.xpose.msra.mxu0 0.0
        %1355 = vmatprep.subr.mxu0 0.0
        %1356 = vmatpush1.xpose.msra.mxu0 0.0
        %1357 = vmatprep.subr.mxu0 0.0
        %1358 = vmatpush1.xpose.msra.mxu0 0.0
        %1359 = vmatprep.subr.mxu0 0.0
        %1360 = vmatpush1.xpose.msra.mxu0 0.0
        %1361 = vmatprep.subr.mxu0 0.0
        %1362 = vmatpush1.xpose.msra.mxu0 0.0
        %1363 = vmatprep.subr.mxu0 0.0
        %1364 = vmatpush1.xpose.msra.mxu0 0.0
        %1365 = vmatprep.subr.mxu0 0.0
        %1366 = vmatpush1.xpose.msra.mxu0 0.0
        %1367 = vmatprep.subr.mxu0 0.0
        %1368 = vmatpush1.xpose.msra.mxu0 0.0
        %1369 = vmatprep.subr.mxu0 0.0
        %1370 = vmatpush1.xpose.msra.mxu0 0.0
        %1371 = vmatprep.mubr.f32.mxu0 0.0
        %1372 = vmatmul.mubr.f32.gmra.mrb[0].mxu0 %v1299
        %v1373 = vpop.f32.mrb[0].mxu0
        %v1374 = vadd.f32 %v665, %v1373
        %v1375 = vpop.f32.mrb[0].mxu0
        %1376 = vmatprep.mubr.f32.mxu0 0.0
        %1377 = vmatmul.mubr.f32.gmra.mrb[0].mxu0 %v1301
        %v1378 = vpop.f32.mrb[0].mxu0
        %v1379 = vadd.f32 %v665, %v1378
        %v1380 = vpop.f32.mrb[0].mxu0
        %1381 = vdwg.mxu0
        %v1382 = vsel %vm757, %v1374, -inf
        %1383 = vmax.xlane.f32.xlu0 %v1382
        %v1384 = vpop.xlane.xlu0 %1383
        %v1385 = vsel %vm757, %v1379, -inf
        %1386 = vmax.xlane.f32.xlu0 %v1385
        %v1387 = vpop.xlane.xlu0 %1386
        %v1388 = vsub.f32 %v1374, %v1384
        %v1389 = vsub.f32 %v1379, %v1387
        %v1390 = vmul.f32 %v1388, 1.442695
        %v1391 = vpow.pop %v1390
        %v1392 = vmul.f32 %v1389, 1.442695
        %v1393 = vpow.pop %v1392
        %v1394 = vsel %vm757, %v1391, 0.0
        %1395 = vadd.xlane.f32.xlu0 %v1394
        %v1396 = vpop.xlane.xlu0 %1395
        %v1397 = vsel %vm757, %v1393, 0.0
        %1398 = vadd.xlane.f32.xlu0 %v1397
        %v1399 = vpop.xlane.xlu0 %1398
        %v1400 = vrcp.pop %v1396
        %v1401 = vrcp.pop %v1399
        %v1402 = vmul.f32 %v1391, %v1400
        %v1403 = vmul.f32 %v1393, %v1401
        %1404 = vrot.lane.b32.xlu0 %v653, 52
        %v1405 = vpop.permute.xlu0 %1404
        %1406 = vrot.lane.b32.xlu0 %v658, 52
        %v1407 = vpop.permute.xlu0 %1406
        %v1411 = vsel %vm757, %v1402, 0
        %v1414 = vsel %vm757, %v1403, 0
        %1416 = vmatprep.subr.mxu0 0.0
        %1417 = vmatpush1.msra.mxu0 %v1405
        %1418 = vmatprep.subr.mxu0 0.0
        %1419 = vmatpush1.msra.mxu0 %v1407
        %1420 = vmatprep.subr.mxu0 0.0
        %1421 = vmatpush1.msra.mxu0 0.0
        %1422 = vmatprep.subr.mxu0 0.0
        %1423 = vmatpush1.msra.mxu0 0.0
        %1424 = vmatprep.subr.mxu0 0.0
        %1425 = vmatpush1.msra.mxu0 0.0
        %1426 = vmatprep.subr.mxu0 0.0
        %1427 = vmatpush1.msra.mxu0 0.0
        %1428 = vmatprep.subr.mxu0 0.0
        %1429 = vmatpush1.msra.mxu0 0.0
        %1430 = vmatprep.subr.mxu0 0.0
        %1431 = vmatpush1.msra.mxu0 0.0
        %1432 = vmatprep.subr.mxu0 0.0
        %1433 = vmatpush1.msra.mxu0 0.0
        %1434 = vmatprep.subr.mxu0 0.0
        %1435 = vmatpush1.msra.mxu0 0.0
        %1436 = vmatprep.subr.mxu0 0.0
        %1437 = vmatpush1.msra.mxu0 0.0
        %1438 = vmatprep.subr.mxu0 0.0
        %1439 = vmatpush1.msra.mxu0 0.0
        %1440 = vmatprep.subr.mxu0 0.0
        %1441 = vmatpush1.msra.mxu0 0.0
        %1442 = vmatprep.subr.mxu0 0.0
        %1443 = vmatpush1.msra.mxu0 0.0
        %1444 = vmatprep.subr.mxu0 0.0
        %1445 = vmatpush1.msra.mxu0 0.0
        %1446 = vmatprep.subr.mxu0 0.0
        %1447 = vmatpush1.msra.mxu0 0.0
        %1448 = vmatprep.subr.mxu0 0.0
        %1449 = vmatpush1.msra.mxu0 0.0
        %1450 = vmatprep.subr.mxu0 0.0
        %1451 = vmatpush1.msra.mxu0 0.0
        %1452 = vmatprep.subr.mxu0 0.0
        %1453 = vmatpush1.msra.mxu0 0.0
        %1454 = vmatprep.subr.mxu0 0.0
        %1455 = vmatpush1.msra.mxu0 0.0
        %1456 = vmatprep.subr.mxu0 0.0
        %1457 = vmatpush1.msra.mxu0 0.0
        %1458 = vmatprep.subr.mxu0 0.0
        %1459 = vmatpush1.msra.mxu0 0.0
        %1460 = vmatprep.subr.mxu0 0.0
        %1461 = vmatpush1.msra.mxu0 0.0
        %1462 = vmatprep.subr.mxu0 0.0
        %1463 = vmatpush1.msra.mxu0 0.0
        %1464 = vmatprep.subr.mxu0 0.0
        %1465 = vmatpush1.msra.mxu0 0.0
        %1466 = vmatprep.subr.mxu0 0.0
        %1467 = vmatpush1.msra.mxu0 0.0
        %1468 = vmatprep.subr.mxu0 0.0
        %1469 = vmatpush1.msra.mxu0 0.0
        %1470 = vmatprep.subr.mxu0 0.0
        %1471 = vmatpush1.msra.mxu0 0.0
        %1472 = vmatprep.subr.mxu0 0.0
        %1473 = vmatpush1.msra.mxu0 0.0
        %1474 = vmatprep.subr.mxu0 0.0
        %1475 = vmatpush1.msra.mxu0 0.0
        %1476 = vmatprep.subr.mxu0 0.0
        %1477 = vmatpush1.msra.mxu0 0.0
        %1478 = vmatprep.subr.mxu0 0.0
        %1479 = vmatpush1.msra.mxu0 0.0
        %1480 = vmatprep.mubr.f32.mxu0 0.0
        %1481 = vmatmul.mubr.f32.gmra.mrb[0].mxu0 %v1411
        %v1482 = vpop.f32.mrb[0].mxu0
        %v1483 = vadd.f32 0.0, %v1482
        %v1484 = vpop.f32.mrb[0].mxu0
        %1485 = vmatprep.mubr.f32.mxu0 0.0
        %1486 = vmatmul.mubr.f32.gmra.mrb[0].mxu0 %v1414
        %v1487 = vpop.f32.mrb[0].mxu0
        %v1488 = vadd.f32 0.0, %v1487
        %v1489 = vpop.f32.mrb[0].mxu0
        %1490 = vdwg.mxu0
        %1493 = vrot.lane.b32.xlu0 %v1483, 12
        %v1494 = vpop.permute.xlu0 %1493
        %1495 = vrot.lane.b32.xlu0 %v1488, 12
        %v1496 = vpop.permute.xlu0 %1495
        %vm1499 = vcmask 130144
        %1500 = vst.msk [vmem:[#allocation2] sm:$0xff] %vm1499, %v1494
        %1501 = vst.msk [vmem:[#allocation2 + $0x8] sm:$0xff] %vm1499, %v1496
        %1502 = vrot.lane.b32.xlu0 %v653, 112
        %v1503 = vpop.permute.xlu0 %1502
        %1504 = vrot.lane.b32.xlu0 %v658, 112
        %v1505 = vpop.permute.xlu0 %1504
        %1506 = vrot.lane.b32.xlu0 %v653, 80
        %v1507 = vpop.permute.xlu0 %1506
        %1508 = vrot.lane.b32.xlu0 %v658, 80
        %v1509 = vpop.permute.xlu0 %1508
        %v1510 = vsel %vm673, %v1503, 0
        %v1512 = vsel %vm673, %v1505, 0
        %v1514 = vsel %vm673, %v1507, 0
        %v1516 = vsel %vm673, %v1509, 0
        %1518 = vmatprep.subr.mxu0 0.0
        %1519 = vmatpush1.xpose.msra.mxu0 %v1514
        %1520 = vmatprep.subr.mxu0 0.0
        %1521 = vmatpush1.xpose.msra.mxu0 %v1516
        %1522 = vmatprep.subr.mxu0 0.0
        %1523 = vmatpush1.xpose.msra.mxu0 0.0
        %1524 = vmatprep.subr.mxu0 0.0
        %1525 = vmatpush1.xpose.msra.mxu0 0.0
        %1526 = vmatprep.subr.mxu0 0.0
        %1527 = vmatpush1.xpose.msra.mxu0 0.0
        %1528 = vmatprep.subr.mxu0 0.0
        %1529 = vmatpush1.xpose.msra.mxu0 0.0
        %1530 = vmatprep.subr.mxu0 0.0
        %1531 = vmatpush1.xpose.msra.mxu0 0.0
        %1532 = vmatprep.subr.mxu0 0.0
        %1533 = vmatpush1.xpose.msra.mxu0 0.0
        %1534 = vmatprep.subr.mxu0 0.0
        %1535 = vmatpush1.xpose.msra.mxu0 0.0
        %1536 = vmatprep.subr.mxu0 0.0
        %1537 = vmatpush1.xpose.msra.mxu0 0.0
        %1538 = vmatprep.subr.mxu0 0.0
        %1539 = vmatpush1.xpose.msra.mxu0 0.0
        %1540 = vmatprep.subr.mxu0 0.0
        %1541 = vmatpush1.xpose.msra.mxu0 0.0
        %1542 = vmatprep.subr.mxu0 0.0
        %1543 = vmatpush1.xpose.msra.mxu0 0.0
        %1544 = vmatprep.subr.mxu0 0.0
        %1545 = vmatpush1.xpose.msra.mxu0 0.0
        %1546 = vmatprep.subr.mxu0 0.0
        %1547 = vmatpush1.xpose.msra.mxu0 0.0
        %1548 = vmatprep.subr.mxu0 0.0
        %1549 = vmatpush1.xpose.msra.mxu0 0.0
        %1550 = vmatprep.subr.mxu0 0.0
        %1551 = vmatpush1.xpose.msra.mxu0 0.0
        %1552 = vmatprep.subr.mxu0 0.0
        %1553 = vmatpush1.xpose.msra.mxu0 0.0
        %1554 = vmatprep.subr.mxu0 0.0
        %1555 = vmatpush1.xpose.msra.mxu0 0.0
        %1556 = vmatprep.subr.mxu0 0.0
        %1557 = vmatpush1.xpose.msra.mxu0 0.0
        %1558 = vmatprep.subr.mxu0 0.0
        %1559 = vmatpush1.xpose.msra.mxu0 0.0
        %1560 = vmatprep.subr.mxu0 0.0
        %1561 = vmatpush1.xpose.msra.mxu0 0.0
        %1562 = vmatprep.subr.mxu0 0.0
        %1563 = vmatpush1.xpose.msra.mxu0 0.0
        %1564 = vmatprep.subr.mxu0 0.0
        %1565 = vmatpush1.xpose.msra.mxu0 0.0
        %1566 = vmatprep.subr.mxu0 0.0
        %1567 = vmatpush1.xpose.msra.mxu0 0.0
        %1568 = vmatprep.subr.mxu0 0.0
        %1569 = vmatpush1.xpose.msra.mxu0 0.0
        %1570 = vmatprep.subr.mxu0 0.0
        %1571 = vmatpush1.xpose.msra.mxu0 0.0
        %1572 = vmatprep.subr.mxu0 0.0
        %1573 = vmatpush1.xpose.msra.mxu0 0.0
        %1574 = vmatprep.subr.mxu0 0.0
        %1575 = vmatpush1.xpose.msra.mxu0 0.0
        %1576 = vmatprep.subr.mxu0 0.0
        %1577 = vmatpush1.xpose.msra.mxu0 0.0
        %1578 = vmatprep.subr.mxu0 0.0
        %1579 = vmatpush1.xpose.msra.mxu0 0.0
        %1580 = vmatprep.subr.mxu0 0.0
        %1581 = vmatpush1.xpose.msra.mxu0 0.0
        %1582 = vmatprep.mubr.f32.mxu0 0.0
        %1583 = vmatmul.mubr.f32.gmra.mrb[0].mxu0 %v1510
        %v1584 = vpop.f32.mrb[0].mxu0
        %v1585 = vadd.f32 %v665, %v1584
        %v1586 = vpop.f32.mrb[0].mxu0
        %1587 = vmatprep.mubr.f32.mxu0 0.0
        %1588 = vmatmul.mubr.f32.gmra.mrb[0].mxu0 %v1512
        %v1589 = vpop.f32.mrb[0].mxu0
        %v1590 = vadd.f32 %v665, %v1589
        %v1591 = vpop.f32.mrb[0].mxu0
        %1592 = vdwg.mxu0
        %v1593 = vsel %vm757, %v1585, -inf
        %1594 = vmax.xlane.f32.xlu0 %v1593
        %v1595 = vpop.xlane.xlu0 %1594
        %v1596 = vsel %vm757, %v1590, -inf
        %1597 = vmax.xlane.f32.xlu0 %v1596
        %v1598 = vpop.xlane.xlu0 %1597
        %v1599 = vsub.f32 %v1585, %v1595
        %v1600 = vsub.f32 %v1590, %v1598
        %v1601 = vmul.f32 %v1599, 1.442695
        %v1602 = vpow.pop %v1601
        %v1603 = vmul.f32 %v1600, 1.442695
        %v1604 = vpow.pop %v1603
        %v1605 = vsel %vm757, %v1602, 0.0
        %1606 = vadd.xlane.f32.xlu0 %v1605
        %v1607 = vpop.xlane.xlu0 %1606
        %v1608 = vsel %vm757, %v1604, 0.0
        %1609 = vadd.xlane.f32.xlu0 %v1608
        %v1610 = vpop.xlane.xlu0 %1609
        %v1611 = vrcp.pop %v1607
        %v1612 = vrcp.pop %v1610
        %v1613 = vmul.f32 %v1602, %v1611
        %v1614 = vmul.f32 %v1604, %v1612
        %1615 = vrot.lane.b32.xlu0 %v653, 48
        %v1616 = vpop.permute.xlu0 %1615
        %1617 = vrot.lane.b32.xlu0 %v658, 48
        %v1618 = vpop.permute.xlu0 %1617
        %v1622 = vsel %vm757, %v1613, 0
        %v1625 = vsel %vm757, %v1614, 0
        %1627 = vmatprep.subr.mxu0 0.0
        %1628 = vmatpush1.msra.mxu0 %v1616
        %1629 = vmatprep.subr.mxu0 0.0
        %1630 = vmatpush1.msra.mxu0 %v1618
        %1631 = vmatprep.subr.mxu0 0.0
        %1632 = vmatpush1.msra.mxu0 0.0
        %1633 = vmatprep.subr.mxu0 0.0
        %1634 = vmatpush1.msra.mxu0 0.0
        %1635 = vmatprep.subr.mxu0 0.0
        %1636 = vmatpush1.msra.mxu0 0.0
        %1637 = vmatprep.subr.mxu0 0.0
        %1638 = vmatpush1.msra.mxu0 0.0
        %1639 = vmatprep.subr.mxu0 0.0
        %1640 = vmatpush1.msra.mxu0 0.0
        %1641 = vmatprep.subr.mxu0 0.0
        %1642 = vmatpush1.msra.mxu0 0.0
        %1643 = vmatprep.subr.mxu0 0.0
        %1644 = vmatpush1.msra.mxu0 0.0
        %1645 = vmatprep.subr.mxu0 0.0
        %1646 = vmatpush1.msra.mxu0 0.0
        %1647 = vmatprep.subr.mxu0 0.0
        %1648 = vmatpush1.msra.mxu0 0.0
        %1649 = vmatprep.subr.mxu0 0.0
        %1650 = vmatpush1.msra.mxu0 0.0
        %1651 = vmatprep.subr.mxu0 0.0
        %1652 = vmatpush1.msra.mxu0 0.0
        %1653 = vmatprep.subr.mxu0 0.0
        %1654 = vmatpush1.msra.mxu0 0.0
        %1655 = vmatprep.subr.mxu0 0.0
        %1656 = vmatpush1.msra.mxu0 0.0
        %1657 = vmatprep.subr.mxu0 0.0
        %1658 = vmatpush1.msra.mxu0 0.0
        %1659 = vmatprep.subr.mxu0 0.0
        %1660 = vmatpush1.msra.mxu0 0.0
        %1661 = vmatprep.subr.mxu0 0.0
        %1662 = vmatpush1.msra.mxu0 0.0
        %1663 = vmatprep.subr.mxu0 0.0
        %1664 = vmatpush1.msra.mxu0 0.0
        %1665 = vmatprep.subr.mxu0 0.0
        %1666 = vmatpush1.msra.mxu0 0.0
        %1667 = vmatprep.subr.mxu0 0.0
        %1668 = vmatpush1.msra.mxu0 0.0
        %1669 = vmatprep.subr.mxu0 0.0
        %1670 = vmatpush1.msra.mxu0 0.0
        %1671 = vmatprep.subr.mxu0 0.0
        %1672 = vmatpush1.msra.mxu0 0.0
        %1673 = vmatprep.subr.mxu0 0.0
        %1674 = vmatpush1.msra.mxu0 0.0
        %1675 = vmatprep.subr.mxu0 0.0
        %1676 = vmatpush1.msra.mxu0 0.0
        %1677 = vmatprep.subr.mxu0 0.0
        %1678 = vmatpush1.msra.mxu0 0.0
        %1679 = vmatprep.subr.mxu0 0.0
        %1680 = vmatpush1.msra.mxu0 0.0
        %1681 = vmatprep.subr.mxu0 0.0
        %1682 = vmatpush1.msra.mxu0 0.0
        %1683 = vmatprep.subr.mxu0 0.0
        %1684 = vmatpush1.msra.mxu0 0.0
        %1685 = vmatprep.subr.mxu0 0.0
        %1686 = vmatpush1.msra.mxu0 0.0
        %1687 = vmatprep.subr.mxu0 0.0
        %1688 = vmatpush1.msra.mxu0 0.0
        %1689 = vmatprep.subr.mxu0 0.0
        %1690 = vmatpush1.msra.mxu0 0.0
        %1691 = vmatprep.mubr.f32.mxu0 0.0
        %1692 = vmatmul.mubr.f32.gmra.mrb[0].mxu0 %v1622
        %v1693 = vpop.f32.mrb[0].mxu0
        %v1694 = vadd.f32 0.0, %v1693
        %v1695 = vpop.f32.mrb[0].mxu0
        %1696 = vmatprep.mubr.f32.mxu0 0.0
        %1697 = vmatmul.mubr.f32.gmra.mrb[0].mxu0 %v1625
        %v1698 = vpop.f32.mrb[0].mxu0
        %v1699 = vadd.f32 0.0, %v1698
        %v1700 = vpop.f32.mrb[0].mxu0
        %1701 = vdwg.mxu0
        %1704 = vrot.lane.b32.xlu0 %v1694, 16
        %v1705 = vpop.permute.xlu0 %1704
        %1706 = vrot.lane.b32.xlu0 %v1699, 16
        %v1707 = vpop.permute.xlu0 %1706
        %vm1710 = vcmask 162944
        %1711 = vst.msk [vmem:[#allocation2] sm:$0xff] %vm1710, %v1705
        %1712 = vst.msk [vmem:[#allocation2 + $0x8] sm:$0xff] %vm1710, %v1707
        %1713 = vrot.lane.b32.xlu0 %v653, 108
        %v1714 = vpop.permute.xlu0 %1713
        %1715 = vrot.lane.b32.xlu0 %v658, 108
        %v1716 = vpop.permute.xlu0 %1715
        %1717 = vrot.lane.b32.xlu0 %v653, 76
        %v1718 = vpop.permute.xlu0 %1717
        %1719 = vrot.lane.b32.xlu0 %v658, 76
        %v1720 = vpop.permute.xlu0 %1719
        %v1721 = vsel %vm673, %v1714, 0
        %v1723 = vsel %vm673, %v1716, 0
        %v1725 = vsel %vm673, %v1718, 0
        %v1727 = vsel %vm673, %v1720, 0
        %1729 = vmatprep.subr.mxu0 0.0
        %1730 = vmatpush1.xpose.msra.mxu0 %v1725
        %1731 = vmatprep.subr.mxu0 0.0
        %1732 = vmatpush1.xpose.msra.mxu0 %v1727
        %1733 = vmatprep.subr.mxu0 0.0
        %1734 = vmatpush1.xpose.msra.mxu0 0.0
        %1735 = vmatprep.subr.mxu0 0.0
        %1736 = vmatpush1.xpose.msra.mxu0 0.0
        %1737 = vmatprep.subr.mxu0 0.0
        %1738 = vmatpush1.xpose.msra.mxu0 0.0
        %1739 = vmatprep.subr.mxu0 0.0
        %1740 = vmatpush1.xpose.msra.mxu0 0.0
        %1741 = vmatprep.subr.mxu0 0.0
        %1742 = vmatpush1.xpose.msra.mxu0 0.0
        %1743 = vmatprep.subr.mxu0 0.0
        %1744 = vmatpush1.xpose.msra.mxu0 0.0
        %1745 = vmatprep.subr.mxu0 0.0
        %1746 = vmatpush1.xpose.msra.mxu0 0.0
        %1747 = vmatprep.subr.mxu0 0.0
        %1748 = vmatpush1.xpose.msra.mxu0 0.0
        %1749 = vmatprep.subr.mxu0 0.0
        %1750 = vmatpush1.xpose.msra.mxu0 0.0
        %1751 = vmatprep.subr.mxu0 0.0
        %1752 = vmatpush1.xpose.msra.mxu0 0.0
        %1753 = vmatprep.subr.mxu0 0.0
        %1754 = vmatpush1.xpose.msra.mxu0 0.0
        %1755 = vmatprep.subr.mxu0 0.0
        %1756 = vmatpush1.xpose.msra.mxu0 0.0
        %1757 = vmatprep.subr.mxu0 0.0
        %1758 = vmatpush1.xpose.msra.mxu0 0.0
        %1759 = vmatprep.subr.mxu0 0.0
        %1760 = vmatpush1.xpose.msra.mxu0 0.0
        %1761 = vmatprep.subr.mxu0 0.0
        %1762 = vmatpush1.xpose.msra.mxu0 0.0
        %1763 = vmatprep.subr.mxu0 0.0
        %1764 = vmatpush1.xpose.msra.mxu0 0.0
        %1765 = vmatprep.subr.mxu0 0.0
        %1766 = vmatpush1.xpose.msra.mxu0 0.0
        %1767 = vmatprep.subr.mxu0 0.0
        %1768 = vmatpush1.xpose.msra.mxu0 0.0
        %1769 = vmatprep.subr.mxu0 0.0
        %1770 = vmatpush1.xpose.msra.mxu0 0.0
        %1771 = vmatprep.subr.mxu0 0.0
        %1772 = vmatpush1.xpose.msra.mxu0 0.0
        %1773 = vmatprep.subr.mxu0 0.0
        %1774 = vmatpush1.xpose.msra.mxu0 0.0
        %1775 = vmatprep.subr.mxu0 0.0
        %1776 = vmatpush1.xpose.msra.mxu0 0.0
        %1777 = vmatprep.subr.mxu0 0.0
        %1778 = vmatpush1.xpose.msra.mxu0 0.0
        %1779 = vmatprep.subr.mxu0 0.0
        %1780 = vmatpush1.xpose.msra.mxu0 0.0
        %1781 = vmatprep.subr.mxu0 0.0
        %1782 = vmatpush1.xpose.msra.mxu0 0.0
        %1783 = vmatprep.subr.mxu0 0.0
        %1784 = vmatpush1.xpose.msra.mxu0 0.0
        %1785 = vmatprep.subr.mxu0 0.0
        %1786 = vmatpush1.xpose.msra.mxu0 0.0
        %1787 = vmatprep.subr.mxu0 0.0
        %1788 = vmatpush1.xpose.msra.mxu0 0.0
        %1789 = vmatprep.subr.mxu0 0.0
        %1790 = vmatpush1.xpose.msra.mxu0 0.0
        %1791 = vmatprep.subr.mxu0 0.0
        %1792 = vmatpush1.xpose.msra.mxu0 0.0
        %1793 = vmatprep.mubr.f32.mxu0 0.0
        %1794 = vmatmul.mubr.f32.gmra.mrb[0].mxu0 %v1721
        %v1795 = vpop.f32.mrb[0].mxu0
        %v1796 = vadd.f32 %v665, %v1795
        %v1797 = vpop.f32.mrb[0].mxu0
        %1798 = vmatprep.mubr.f32.mxu0 0.0
        %1799 = vmatmul.mubr.f32.gmra.mrb[0].mxu0 %v1723
        %v1800 = vpop.f32.mrb[0].mxu0
        %v1801 = vadd.f32 %v665, %v1800
        %v1802 = vpop.f32.mrb[0].mxu0
        %1803 = vdwg.mxu0
        %v1804 = vsel %vm757, %v1796, -inf
        %1805 = vmax.xlane.f32.xlu0 %v1804
        %v1806 = vpop.xlane.xlu0 %1805
        %v1807 = vsel %vm757, %v1801, -inf
        %1808 = vmax.xlane.f32.xlu0 %v1807
        %v1809 = vpop.xlane.xlu0 %1808
        %v1810 = vsub.f32 %v1796, %v1806
        %v1811 = vsub.f32 %v1801, %v1809
        %v1812 = vmul.f32 %v1810, 1.442695
        %v1813 = vpow.pop %v1812
        %v1814 = vmul.f32 %v1811, 1.442695
        %v1815 = vpow.pop %v1814
        %v1816 = vsel %vm757, %v1813, 0.0
        %1817 = vadd.xlane.f32.xlu0 %v1816
        %v1818 = vpop.xlane.xlu0 %1817
        %v1819 = vsel %vm757, %v1815, 0.0
        %1820 = vadd.xlane.f32.xlu0 %v1819
        %v1821 = vpop.xlane.xlu0 %1820
        %v1822 = vrcp.pop %v1818
        %v1823 = vrcp.pop %v1821
        %v1824 = vmul.f32 %v1813, %v1822
        %v1825 = vmul.f32 %v1815, %v1823
        %1826 = vrot.lane.b32.xlu0 %v653, 44
        %v1827 = vpop.permute.xlu0 %1826
        %1828 = vrot.lane.b32.xlu0 %v658, 44
        %v1829 = vpop.permute.xlu0 %1828
        %v1833 = vsel %vm757, %v1824, 0
        %v1836 = vsel %vm757, %v1825, 0
        %1838 = vmatprep.subr.mxu0 0.0
        %1839 = vmatpush1.msra.mxu0 %v1827
        %1840 = vmatprep.subr.mxu0 0.0
        %1841 = vmatpush1.msra.mxu0 %v1829
        %1842 = vmatprep.subr.mxu0 0.0
        %1843 = vmatpush1.msra.mxu0 0.0
        %1844 = vmatprep.subr.mxu0 0.0
        %1845 = vmatpush1.msra.mxu0 0.0
        %1846 = vmatprep.subr.mxu0 0.0
        %1847 = vmatpush1.msra.mxu0 0.0
        %1848 = vmatprep.subr.mxu0 0.0
        %1849 = vmatpush1.msra.mxu0 0.0
        %1850 = vmatprep.subr.mxu0 0.0
        %1851 = vmatpush1.msra.mxu0 0.0
        %1852 = vmatprep.subr.mxu0 0.0
        %1853 = vmatpush1.msra.mxu0 0.0
        %1854 = vmatprep.subr.mxu0 0.0
        %1855 = vmatpush1.msra.mxu0 0.0
        %1856 = vmatprep.subr.mxu0 0.0
        %1857 = vmatpush1.msra.mxu0 0.0
        %1858 = vmatprep.subr.mxu0 0.0
        %1859 = vmatpush1.msra.mxu0 0.0
        %1860 = vmatprep.subr.mxu0 0.0
        %1861 = vmatpush1.msra.mxu0 0.0
        %1862 = vmatprep.subr.mxu0 0.0
        %1863 = vmatpush1.msra.mxu0 0.0
        %1864 = vmatprep.subr.mxu0 0.0
        %1865 = vmatpush1.msra.mxu0 0.0
        %1866 = vmatprep.subr.mxu0 0.0
        %1867 = vmatpush1.msra.mxu0 0.0
        %1868 = vmatprep.subr.mxu0 0.0
        %1869 = vmatpush1.msra.mxu0 0.0
        %1870 = vmatprep.subr.mxu0 0.0
        %1871 = vmatpush1.msra.mxu0 0.0
        %1872 = vmatprep.subr.mxu0 0.0
        %1873 = vmatpush1.msra.mxu0 0.0
        %1874 = vmatprep.subr.mxu0 0.0
        %1875 = vmatpush1.msra.mxu0 0.0
        %1876 = vmatprep.subr.mxu0 0.0
        %1877 = vmatpush1.msra.mxu0 0.0
        %1878 = vmatprep.subr.mxu0 0.0
        %1879 = vmatpush1.msra.mxu0 0.0
        %1880 = vmatprep.subr.mxu0 0.0
        %1881 = vmatpush1.msra.mxu0 0.0
        %1882 = vmatprep.subr.mxu0 0.0
        %1883 = vmatpush1.msra.mxu0 0.0
        %1884 = vmatprep.subr.mxu0 0.0
        %1885 = vmatpush1.msra.mxu0 0.0
        %1886 = vmatprep.subr.mxu0 0.0
        %1887 = vmatpush1.msra.mxu0 0.0
        %1888 = vmatprep.subr.mxu0 0.0
        %1889 = vmatpush1.msra.mxu0 0.0
        %1890 = vmatprep.subr.mxu0 0.0
        %1891 = vmatpush1.msra.mxu0 0.0
        %1892 = vmatprep.subr.mxu0 0.0
        %1893 = vmatpush1.msra.mxu0 0.0
        %1894 = vmatprep.subr.mxu0 0.0
        %1895 = vmatpush1.msra.mxu0 0.0
        %1896 = vmatprep.subr.mxu0 0.0
        %1897 = vmatpush1.msra.mxu0 0.0
        %1898 = vmatprep.subr.mxu0 0.0
        %1899 = vmatpush1.msra.mxu0 0.0
        %1900 = vmatprep.subr.mxu0 0.0
        %1901 = vmatpush1.msra.mxu0 0.0
        %1902 = vmatprep.mubr.f32.mxu0 0.0
        %1903 = vmatmul.mubr.f32.gmra.mrb[0].mxu0 %v1833
        %v1904 = vpop.f32.mrb[0].mxu0
        %v1905 = vadd.f32 0.0, %v1904
        %v1906 = vpop.f32.mrb[0].mxu0
        %1907 = vmatprep.mubr.f32.mxu0 0.0
        %1908 = vmatmul.mubr.f32.gmra.mrb[0].mxu0 %v1836
        %v1909 = vpop.f32.mrb[0].mxu0
        %v1910 = vadd.f32 0.0, %v1909
        %v1911 = vpop.f32.mrb[0].mxu0
        %1912 = vdwg.mxu0
        %1915 = vrot.lane.b32.xlu0 %v1905, 20
        %v1916 = vpop.permute.xlu0 %1915
        %1917 = vrot.lane.b32.xlu0 %v1910, 20
        %v1918 = vpop.permute.xlu0 %1917
        %vm1921 = vcmask 195744
        %1922 = vst.msk [vmem:[#allocation2] sm:$0xff] %vm1921, %v1916
        %1923 = vst.msk [vmem:[#allocation2 + $0x8] sm:$0xff] %vm1921, %v1918
        %1924 = vrot.lane.b32.xlu0 %v653, 104
        %v1925 = vpop.permute.xlu0 %1924
        %1926 = vrot.lane.b32.xlu0 %v658, 104
        %v1927 = vpop.permute.xlu0 %1926
        %1928 = vrot.lane.b32.xlu0 %v653, 72
        %v1929 = vpop.permute.xlu0 %1928
        %1930 = vrot.lane.b32.xlu0 %v658, 72
        %v1931 = vpop.permute.xlu0 %1930
        %v1932 = vsel %vm673, %v1925, 0
        %v1934 = vsel %vm673, %v1927, 0
        %v1936 = vsel %vm673, %v1929, 0
        %v1938 = vsel %vm673, %v1931, 0
        %1940 = vmatprep.subr.mxu0 0.0
        %1941 = vmatpush1.xpose.msra.mxu0 %v1936
        %1942 = vmatprep.subr.mxu0 0.0
        %1943 = vmatpush1.xpose.msra.mxu0 %v1938
        %1944 = vmatprep.subr.mxu0 0.0
        %1945 = vmatpush1.xpose.msra.mxu0 0.0
        %1946 = vmatprep.subr.mxu0 0.0
        %1947 = vmatpush1.xpose.msra.mxu0 0.0
        %1948 = vmatprep.subr.mxu0 0.0
        %1949 = vmatpush1.xpose.msra.mxu0 0.0
        %1950 = vmatprep.subr.mxu0 0.0
        %1951 = vmatpush1.xpose.msra.mxu0 0.0
        %1952 = vmatprep.subr.mxu0 0.0
        %1953 = vmatpush1.xpose.msra.mxu0 0.0
        %1954 = vmatprep.subr.mxu0 0.0
        %1955 = vmatpush1.xpose.msra.mxu0 0.0
        %1956 = vmatprep.subr.mxu0 0.0
        %1957 = vmatpush1.xpose.msra.mxu0 0.0
        %1958 = vmatprep.subr.mxu0 0.0
        %1959 = vmatpush1.xpose.msra.mxu0 0.0
        %1960 = vmatprep.subr.mxu0 0.0
        %1961 = vmatpush1.xpose.msra.mxu0 0.0
        %1962 = vmatprep.subr.mxu0 0.0
        %1963 = vmatpush1.xpose.msra.mxu0 0.0
        %1964 = vmatprep.subr.mxu0 0.0
        %1965 = vmatpush1.xpose.msra.mxu0 0.0
        %1966 = vmatprep.subr.mxu0 0.0
        %1967 = vmatpush1.xpose.msra.mxu0 0.0
        %1968 = vmatprep.subr.mxu0 0.0
        %1969 = vmatpush1.xpose.msra.mxu0 0.0
        %1970 = vmatprep.subr.mxu0 0.0
        %1971 = vmatpush1.xpose.msra.mxu0 0.0
        %1972 = vmatprep.subr.mxu0 0.0
        %1973 = vmatpush1.xpose.msra.mxu0 0.0
        %1974 = vmatprep.subr.mxu0 0.0
        %1975 = vmatpush1.xpose.msra.mxu0 0.0
        %1976 = vmatprep.subr.mxu0 0.0
        %1977 = vmatpush1.xpose.msra.mxu0 0.0
        %1978 = vmatprep.subr.mxu0 0.0
        %1979 = vmatpush1.xpose.msra.mxu0 0.0
        %1980 = vmatprep.subr.mxu0 0.0
        %1981 = vmatpush1.xpose.msra.mxu0 0.0
        %1982 = vmatprep.subr.mxu0 0.0
        %1983 = vmatpush1.xpose.msra.mxu0 0.0
        %1984 = vmatprep.subr.mxu0 0.0
        %1985 = vmatpush1.xpose.msra.mxu0 0.0
        %1986 = vmatprep.subr.mxu0 0.0
        %1987 = vmatpush1.xpose.msra.mxu0 0.0
        %1988 = vmatprep.subr.mxu0 0.0
        %1989 = vmatpush1.xpose.msra.mxu0 0.0
        %1990 = vmatprep.subr.mxu0 0.0
        %1991 = vmatpush1.xpose.msra.mxu0 0.0
        %1992 = vmatprep.subr.mxu0 0.0
        %1993 = vmatpush1.xpose.msra.mxu0 0.0
        %1994 = vmatprep.subr.mxu0 0.0
        %1995 = vmatpush1.xpose.msra.mxu0 0.0
        %1996 = vmatprep.subr.mxu0 0.0
        %1997 = vmatpush1.xpose.msra.mxu0 0.0
        %1998 = vmatprep.subr.mxu0 0.0
        %1999 = vmatpush1.xpose.msra.mxu0 0.0
        %2000 = vmatprep.subr.mxu0 0.0
        %2001 = vmatpush1.xpose.msra.mxu0 0.0
        %2002 = vmatprep.subr.mxu0 0.0
        %2003 = vmatpush1.xpose.msra.mxu0 0.0
        %2004 = vmatprep.mubr.f32.mxu0 0.0
        %2005 = vmatmul.mubr.f32.gmra.mrb[0].mxu0 %v1932
        %v2006 = vpop.f32.mrb[0].mxu0
        %v2007 = vadd.f32 %v665, %v2006
        %v2008 = vpop.f32.mrb[0].mxu0
        %2009 = vmatprep.mubr.f32.mxu0 0.0
        %2010 = vmatmul.mubr.f32.gmra.mrb[0].mxu0 %v1934
        %v2011 = vpop.f32.mrb[0].mxu0
        %v2012 = vadd.f32 %v665, %v2011
        %v2013 = vpop.f32.mrb[0].mxu0
        %2014 = vdwg.mxu0
        %v2015 = vsel %vm757, %v2007, -inf
        %2016 = vmax.xlane.f32.xlu0 %v2015
        %v2017 = vpop.xlane.xlu0 %2016
        %v2018 = vsel %vm757, %v2012, -inf
        %2019 = vmax.xlane.f32.xlu0 %v2018
        %v2020 = vpop.xlane.xlu0 %2019
        %v2021 = vsub.f32 %v2007, %v2017
        %v2022 = vsub.f32 %v2012, %v2020
        %v2023 = vmul.f32 %v2021, 1.442695
        %v2024 = vpow.pop %v2023
        %v2025 = vmul.f32 %v2022, 1.442695
        %v2026 = vpow.pop %v2025
        %v2027 = vsel %vm757, %v2024, 0.0
        %2028 = vadd.xlane.f32.xlu0 %v2027
        %v2029 = vpop.xlane.xlu0 %2028
        %v2030 = vsel %vm757, %v2026, 0.0
        %2031 = vadd.xlane.f32.xlu0 %v2030
        %v2032 = vpop.xlane.xlu0 %2031
        %v2033 = vrcp.pop %v2029
        %v2034 = vrcp.pop %v2032
        %v2035 = vmul.f32 %v2024, %v2033
        %v2036 = vmul.f32 %v2026, %v2034
        %2037 = vrot.lane.b32.xlu0 %v653, 40
        %v2038 = vpop.permute.xlu0 %2037
        %2039 = vrot.lane.b32.xlu0 %v658, 40
        %v2040 = vpop.permute.xlu0 %2039
        %v2044 = vsel %vm757, %v2035, 0
        %v2047 = vsel %vm757, %v2036, 0
        %2049 = vmatprep.subr.mxu0 0.0
        %2050 = vmatpush1.msra.mxu0 %v2038
        %2051 = vmatprep.subr.mxu0 0.0
        %2052 = vmatpush1.msra.mxu0 %v2040
        %2053 = vmatprep.subr.mxu0 0.0
        %2054 = vmatpush1.msra.mxu0 0.0
        %2055 = vmatprep.subr.mxu0 0.0
        %2056 = vmatpush1.msra.mxu0 0.0
        %2057 = vmatprep.subr.mxu0 0.0
        %2058 = vmatpush1.msra.mxu0 0.0
        %2059 = vmatprep.subr.mxu0 0.0
        %2060 = vmatpush1.msra.mxu0 0.0
        %2061 = vmatprep.subr.mxu0 0.0
        %2062 = vmatpush1.msra.mxu0 0.0
        %2063 = vmatprep.subr.mxu0 0.0
        %2064 = vmatpush1.msra.mxu0 0.0
        %2065 = vmatprep.subr.mxu0 0.0
        %2066 = vmatpush1.msra.mxu0 0.0
        %2067 = vmatprep.subr.mxu0 0.0
        %2068 = vmatpush1.msra.mxu0 0.0
        %2069 = vmatprep.subr.mxu0 0.0
        %2070 = vmatpush1.msra.mxu0 0.0
        %2071 = vmatprep.subr.mxu0 0.0
        %2072 = vmatpush1.msra.mxu0 0.0
        %2073 = vmatprep.subr.mxu0 0.0
        %2074 = vmatpush1.msra.mxu0 0.0
        %2075 = vmatprep.subr.mxu0 0.0
        %2076 = vmatpush1.msra.mxu0 0.0
        %2077 = vmatprep.subr.mxu0 0.0
        %2078 = vmatpush1.msra.mxu0 0.0
        %2079 = vmatprep.subr.mxu0 0.0
        %2080 = vmatpush1.msra.mxu0 0.0
        %2081 = vmatprep.subr.mxu0 0.0
        %2082 = vmatpush1.msra.mxu0 0.0
        %2083 = vmatprep.subr.mxu0 0.0
        %2084 = vmatpush1.msra.mxu0 0.0
        %2085 = vmatprep.subr.mxu0 0.0
        %2086 = vmatpush1.msra.mxu0 0.0
        %2087 = vmatprep.subr.mxu0 0.0
        %2088 = vmatpush1.msra.mxu0 0.0
        %2089 = vmatprep.subr.mxu0 0.0
        %2090 = vmatpush1.msra.mxu0 0.0
        %2091 = vmatprep.subr.mxu0 0.0
        %2092 = vmatpush1.msra.mxu0 0.0
        %2093 = vmatprep.subr.mxu0 0.0
        %2094 = vmatpush1.msra.mxu0 0.0
        %2095 = vmatprep.subr.mxu0 0.0
        %2096 = vmatpush1.msra.mxu0 0.0
        %2097 = vmatprep.subr.mxu0 0.0
        %2098 = vmatpush1.msra.mxu0 0.0
        %2099 = vmatprep.subr.mxu0 0.0
        %2100 = vmatpush1.msra.mxu0 0.0
        %2101 = vmatprep.subr.mxu0 0.0
        %2102 = vmatpush1.msra.mxu0 0.0
        %2103 = vmatprep.subr.mxu0 0.0
        %2104 = vmatpush1.msra.mxu0 0.0
        %2105 = vmatprep.subr.mxu0 0.0
        %2106 = vmatpush1.msra.mxu0 0.0
        %2107 = vmatprep.subr.mxu0 0.0
        %2108 = vmatpush1.msra.mxu0 0.0
        %2109 = vmatprep.subr.mxu0 0.0
        %2110 = vmatpush1.msra.mxu0 0.0
        %2111 = vmatprep.subr.mxu0 0.0
        %2112 = vmatpush1.msra.mxu0 0.0
        %2113 = vmatprep.mubr.f32.mxu0 0.0
        %2114 = vmatmul.mubr.f32.gmra.mrb[0].mxu0 %v2044
        %v2115 = vpop.f32.mrb[0].mxu0
        %v2116 = vadd.f32 0.0, %v2115
        %v2117 = vpop.f32.mrb[0].mxu0
        %2118 = vmatprep.mubr.f32.mxu0 0.0
        %2119 = vmatmul.mubr.f32.gmra.mrb[0].mxu0 %v2047
        %v2120 = vpop.f32.mrb[0].mxu0
        %v2121 = vadd.f32 0.0, %v2120
        %v2122 = vpop.f32.mrb[0].mxu0
        %2123 = vdwg.mxu0
        %2126 = vrot.lane.b32.xlu0 %v2116, 24
        %v2127 = vpop.permute.xlu0 %2126
        %2128 = vrot.lane.b32.xlu0 %v2121, 24
        %v2129 = vpop.permute.xlu0 %2128
        %vm2132 = vcmask 228544
        %2133 = vst.msk [vmem:[#allocation2] sm:$0xff] %vm2132, %v2127
        %2134 = vst.msk [vmem:[#allocation2 + $0x8] sm:$0xff] %vm2132, %v2129
        %2135 = vrot.lane.b32.xlu0 %v653, 100
        %v2136 = vpop.permute.xlu0 %2135
        %2137 = vrot.lane.b32.xlu0 %v658, 100
        %v2138 = vpop.permute.xlu0 %2137
        %2139 = vrot.lane.b32.xlu0 %v653, 68
        %v2140 = vpop.permute.xlu0 %2139
        %2141 = vrot.lane.b32.xlu0 %v658, 68
        %v2142 = vpop.permute.xlu0 %2141
        %v2143 = vsel %vm673, %v2136, 0
        %v2145 = vsel %vm673, %v2138, 0
        %v2147 = vsel %vm673, %v2140, 0
        %v2149 = vsel %vm673, %v2142, 0
        %2151 = vmatprep.subr.mxu0 0.0
        %2152 = vmatpush1.xpose.msra.mxu0 %v2147
        %2153 = vmatprep.subr.mxu0 0.0
        %2154 = vmatpush1.xpose.msra.mxu0 %v2149
        %2155 = vmatprep.subr.mxu0 0.0
        %2156 = vmatpush1.xpose.msra.mxu0 0.0
        %2157 = vmatprep.subr.mxu0 0.0
        %2158 = vmatpush1.xpose.msra.mxu0 0.0
        %2159 = vmatprep.subr.mxu0 0.0
        %2160 = vmatpush1.xpose.msra.mxu0 0.0
        %2161 = vmatprep.subr.mxu0 0.0
        %2162 = vmatpush1.xpose.msra.mxu0 0.0
        %2163 = vmatprep.subr.mxu0 0.0
        %2164 = vmatpush1.xpose.msra.mxu0 0.0
        %2165 = vmatprep.subr.mxu0 0.0
        %2166 = vmatpush1.xpose.msra.mxu0 0.0
        %2167 = vmatprep.subr.mxu0 0.0
        %2168 = vmatpush1.xpose.msra.mxu0 0.0
        %2169 = vmatprep.subr.mxu0 0.0
        %2170 = vmatpush1.xpose.msra.mxu0 0.0
        %2171 = vmatprep.subr.mxu0 0.0
        %2172 = vmatpush1.xpose.msra.mxu0 0.0
        %2173 = vmatprep.subr.mxu0 0.0
        %2174 = vmatpush1.xpose.msra.mxu0 0.0
        %2175 = vmatprep.subr.mxu0 0.0
        %2176 = vmatpush1.xpose.msra.mxu0 0.0
        %2177 = vmatprep.subr.mxu0 0.0
        %2178 = vmatpush1.xpose.msra.mxu0 0.0
        %2179 = vmatprep.subr.mxu0 0.0
        %2180 = vmatpush1.xpose.msra.mxu0 0.0
        %2181 = vmatprep.subr.mxu0 0.0
        %2182 = vmatpush1.xpose.msra.mxu0 0.0
        %2183 = vmatprep.subr.mxu0 0.0
        %2184 = vmatpush1.xpose.msra.mxu0 0.0
        %2185 = vmatprep.subr.mxu0 0.0
        %2186 = vmatpush1.xpose.msra.mxu0 0.0
        %2187 = vmatprep.subr.mxu0 0.0
        %2188 = vmatpush1.xpose.msra.mxu0 0.0
        %2189 = vmatprep.subr.mxu0 0.0
        %2190 = vmatpush1.xpose.msra.mxu0 0.0
        %2191 = vmatprep.subr.mxu0 0.0
        %2192 = vmatpush1.xpose.msra.mxu0 0.0
        %2193 = vmatprep.subr.mxu0 0.0
        %2194 = vmatpush1.xpose.msra.mxu0 0.0
        %2195 = vmatprep.subr.mxu0 0.0
        %2196 = vmatpush1.xpose.msra.mxu0 0.0
        %2197 = vmatprep.subr.mxu0 0.0
        %2198 = vmatpush1.xpose.msra.mxu0 0.0
        %2199 = vmatprep.subr.mxu0 0.0
        %2200 = vmatpush1.xpose.msra.mxu0 0.0
        %2201 = vmatprep.subr.mxu0 0.0
        %2202 = vmatpush1.xpose.msra.mxu0 0.0
        %2203 = vmatprep.subr.mxu0 0.0
        %2204 = vmatpush1.xpose.msra.mxu0 0.0
        %2205 = vmatprep.subr.mxu0 0.0
        %2206 = vmatpush1.xpose.msra.mxu0 0.0
        %2207 = vmatprep.subr.mxu0 0.0
        %2208 = vmatpush1.xpose.msra.mxu0 0.0
        %2209 = vmatprep.subr.mxu0 0.0
        %2210 = vmatpush1.xpose.msra.mxu0 0.0
        %2211 = vmatprep.subr.mxu0 0.0
        %2212 = vmatpush1.xpose.msra.mxu0 0.0
        %2213 = vmatprep.subr.mxu0 0.0
        %2214 = vmatpush1.xpose.msra.mxu0 0.0
        %2215 = vmatprep.mubr.f32.mxu0 0.0
        %2216 = vmatmul.mubr.f32.gmra.mrb[0].mxu0 %v2143
        %v2217 = vpop.f32.mrb[0].mxu0
        %v2218 = vadd.f32 %v665, %v2217
        %v2219 = vpop.f32.mrb[0].mxu0
        %2220 = vmatprep.mubr.f32.mxu0 0.0
        %2221 = vmatmul.mubr.f32.gmra.mrb[0].mxu0 %v2145
        %v2222 = vpop.f32.mrb[0].mxu0
        %v2223 = vadd.f32 %v665, %v2222
        %v2224 = vpop.f32.mrb[0].mxu0
        %2225 = vdwg.mxu0
        %v2226 = vsel %vm757, %v2218, -inf
        %2227 = vmax.xlane.f32.xlu0 %v2226
        %v2228 = vpop.xlane.xlu0 %2227
        %v2229 = vsel %vm757, %v2223, -inf
        %2230 = vmax.xlane.f32.xlu0 %v2229
        %v2231 = vpop.xlane.xlu0 %2230
        %v2232 = vsub.f32 %v2218, %v2228
        %v2233 = vsub.f32 %v2223, %v2231
        %v2234 = vmul.f32 %v2232, 1.442695
        %v2235 = vpow.pop %v2234
        %v2236 = vmul.f32 %v2233, 1.442695
        %v2237 = vpow.pop %v2236
        %v2238 = vsel %vm757, %v2235, 0.0
        %2239 = vadd.xlane.f32.xlu0 %v2238
        %v2240 = vpop.xlane.xlu0 %2239
        %v2241 = vsel %vm757, %v2237, 0.0
        %2242 = vadd.xlane.f32.xlu0 %v2241
        %v2243 = vpop.xlane.xlu0 %2242
        %v2244 = vrcp.pop %v2240
        %v2245 = vrcp.pop %v2243
        %v2246 = vmul.f32 %v2235, %v2244
        %v2247 = vmul.f32 %v2237, %v2245
        %2248 = vrot.lane.b32.xlu0 %v653, 36
        %v2249 = vpop.permute.xlu0 %2248
        %2250 = vrot.lane.b32.xlu0 %v658, 36
        %v2251 = vpop.permute.xlu0 %2250
        %v2255 = vsel %vm757, %v2246, 0
        %v2258 = vsel %vm757, %v2247, 0
        %2260 = vmatprep.subr.mxu0 0.0
        %2261 = vmatpush1.msra.mxu0 %v2249
        %2262 = vmatprep.subr.mxu0 0.0
        %2263 = vmatpush1.msra.mxu0 %v2251
        %2264 = vmatprep.subr.mxu0 0.0
        %2265 = vmatpush1.msra.mxu0 0.0
        %2266 = vmatprep.subr.mxu0 0.0
        %2267 = vmatpush1.msra.mxu0 0.0
        %2268 = vmatprep.subr.mxu0 0.0
        %2269 = vmatpush1.msra.mxu0 0.0
        %2270 = vmatprep.subr.mxu0 0.0
        %2271 = vmatpush1.msra.mxu0 0.0
        %2272 = vmatprep.subr.mxu0 0.0
        %2273 = vmatpush1.msra.mxu0 0.0
        %2274 = vmatprep.subr.mxu0 0.0
        %2275 = vmatpush1.msra.mxu0 0.0
        %2276 = vmatprep.subr.mxu0 0.0
        %2277 = vmatpush1.msra.mxu0 0.0
        %2278 = vmatprep.subr.mxu0 0.0
        %2279 = vmatpush1.msra.mxu0 0.0
        %2280 = vmatprep.subr.mxu0 0.0
        %2281 = vmatpush1.msra.mxu0 0.0
        %2282 = vmatprep.subr.mxu0 0.0
        %2283 = vmatpush1.msra.mxu0 0.0
        %2284 = vmatprep.subr.mxu0 0.0
        %2285 = vmatpush1.msra.mxu0 0.0
        %2286 = vmatprep.subr.mxu0 0.0
        %2287 = vmatpush1.msra.mxu0 0.0
        %2288 = vmatprep.subr.mxu0 0.0
        %2289 = vmatpush1.msra.mxu0 0.0
        %2290 = vmatprep.subr.mxu0 0.0
        %2291 = vmatpush1.msra.mxu0 0.0
        %2292 = vmatprep.subr.mxu0 0.0
        %2293 = vmatpush1.msra.mxu0 0.0
        %2294 = vmatprep.subr.mxu0 0.0
        %2295 = vmatpush1.msra.mxu0 0.0
        %2296 = vmatprep.subr.mxu0 0.0
        %2297 = vmatpush1.msra.mxu0 0.0
        %2298 = vmatprep.subr.mxu0 0.0
        %2299 = vmatpush1.msra.mxu0 0.0
        %2300 = vmatprep.subr.mxu0 0.0
        %2301 = vmatpush1.msra.mxu0 0.0
        %2302 = vmatprep.subr.mxu0 0.0
        %2303 = vmatpush1.msra.mxu0 0.0
        %2304 = vmatprep.subr.mxu0 0.0
        %2305 = vmatpush1.msra.mxu0 0.0
        %2306 = vmatprep.subr.mxu0 0.0
        %2307 = vmatpush1.msra.mxu0 0.0
        %2308 = vmatprep.subr.mxu0 0.0
        %2309 = vmatpush1.msra.mxu0 0.0
        %2310 = vmatprep.subr.mxu0 0.0
        %2311 = vmatpush1.msra.mxu0 0.0
        %2312 = vmatprep.subr.mxu0 0.0
        %2313 = vmatpush1.msra.mxu0 0.0
        %2314 = vmatprep.subr.mxu0 0.0
        %2315 = vmatpush1.msra.mxu0 0.0
        %2316 = vmatprep.subr.mxu0 0.0
        %2317 = vmatpush1.msra.mxu0 0.0
        %2318 = vmatprep.subr.mxu0 0.0
        %2319 = vmatpush1.msra.mxu0 0.0
        %2320 = vmatprep.subr.mxu0 0.0
        %2321 = vmatpush1.msra.mxu0 0.0
        %2322 = vmatprep.subr.mxu0 0.0
        %2323 = vmatpush1.msra.mxu0 0.0
        %2324 = vmatprep.mubr.f32.mxu0 0.0
        %2325 = vmatmul.mubr.f32.gmra.mrb[0].mxu0 %v2255
        %v2326 = vpop.f32.mrb[0].mxu0
        %v2327 = vadd.f32 0.0, %v2326
        %v2328 = vpop.f32.mrb[0].mxu0
        %2329 = vmatprep.mubr.f32.mxu0 0.0
        %2330 = vmatmul.mubr.f32.gmra.mrb[0].mxu0 %v2258
        %v2331 = vpop.f32.mrb[0].mxu0
        %v2332 = vadd.f32 0.0, %v2331
        %v2333 = vpop.f32.mrb[0].mxu0
        %2334 = vdwg.mxu0
        %2337 = vrot.lane.b32.xlu0 %v2327, 28
        %v2338 = vpop.permute.xlu0 %2337
        %2339 = vrot.lane.b32.xlu0 %v2332, 28
        %v2340 = vpop.permute.xlu0 %2339
        %vm2343 = vcmask 261344
        %2344 = vst.msk [vmem:[#allocation2] sm:$0xff] %vm2343, %v2338
        %2345 = vst.msk [vmem:[#allocation2 + $0x8] sm:$0xff] %vm2343, %v2340
        %v2346 = vld [vmem:[#allocation2] sm:$0xff]
        %v2347 = vld [vmem:[#allocation2 + $0x8] sm:$0xff]
        %v2348 = vld [vmem:[%s4] sm:$0xff]
        %v2349 = vld [vmem:[%s4 + $0x8] sm:$0xff]
        %v2350 = vld [vmem:[%s4 + $0x10] sm:$0xff]
        %v2351 = vld [vmem:[%s4 + $0x18] sm:$0xff]
        %v2352 = vld [vmem:[%s5] sm:$0x1]
        %v2354 = vlaneseq
        %v2355 = vshrl.u32 %v2354, 7
        %v2356 = vsub.s32 0, %v2355
        %v2357 = vrot.slane %v2352, %v2356
        %v2360 = vsel %vm579, %v2346, 0
        %v2363 = vsel %vm579, %v2347, 0
        %2365 = vmatprep.subr.mxu0 0.0
        %2366 = vmatpush1.msra.mxu0 %v2348
        %2367 = vmatprep.subr.mxu0 0.0
        %2368 = vmatpush1.msra.mxu0 %v2349
        %2369 = vmatprep.subr.mxu0 0.0
        %2370 = vmatpush1.msra.mxu0 %v2350
        %2371 = vmatprep.subr.mxu0 0.0
        %2372 = vmatpush1.msra.mxu0 %v2351
        %2373 = vmatprep.subr.mxu0 0.0
        %2374 = vmatpush1.msra.mxu0 0.0
        %2375 = vmatprep.subr.mxu0 0.0
        %2376 = vmatpush1.msra.mxu0 0.0
        %2377 = vmatprep.subr.mxu0 0.0
        %2378 = vmatpush1.msra.mxu0 0.0
        %2379 = vmatprep.subr.mxu0 0.0
        %2380 = vmatpush1.msra.mxu0 0.0
        %2381 = vmatprep.subr.mxu0 0.0
        %2382 = vmatpush1.msra.mxu0 0.0
        %2383 = vmatprep.subr.mxu0 0.0
        %2384 = vmatpush1.msra.mxu0 0.0
        %2385 = vmatprep.subr.mxu0 0.0
        %2386 = vmatpush1.msra.mxu0 0.0
        %2387 = vmatprep.subr.mxu0 0.0
        %2388 = vmatpush1.msra.mxu0 0.0
        %2389 = vmatprep.subr.mxu0 0.0
        %2390 = vmatpush1.msra.mxu0 0.0
        %2391 = vmatprep.subr.mxu0 0.0
        %2392 = vmatpush1.msra.mxu0 0.0
        %2393 = vmatprep.subr.mxu0 0.0
        %2394 = vmatpush1.msra.mxu0 0.0
        %2395 = vmatprep.subr.mxu0 0.0
        %2396 = vmatpush1.msra.mxu0 0.0
        %2397 = vmatprep.subr.mxu0 0.0
        %2398 = vmatpush1.msra.mxu0 0.0
        %2399 = vmatprep.subr.mxu0 0.0
        %2400 = vmatpush1.msra.mxu0 0.0
        %2401 = vmatprep.subr.mxu0 0.0
        %2402 = vmatpush1.msra.mxu0 0.0
        %2403 = vmatprep.subr.mxu0 0.0
        %2404 = vmatpush1.msra.mxu0 0.0
        %2405 = vmatprep.subr.mxu0 0.0
        %2406 = vmatpush1.msra.mxu0 0.0
        %2407 = vmatprep.subr.mxu0 0.0
        %2408 = vmatpush1.msra.mxu0 0.0
        %2409 = vmatprep.subr.mxu0 0.0
        %2410 = vmatpush1.msra.mxu0 0.0
        %2411 = vmatprep.subr.mxu0 0.0
        %2412 = vmatpush1.msra.mxu0 0.0
        %2413 = vmatprep.subr.mxu0 0.0
        %2414 = vmatpush1.msra.mxu0 0.0
        %2415 = vmatprep.subr.mxu0 0.0
        %2416 = vmatpush1.msra.mxu0 0.0
        %2417 = vmatprep.subr.mxu0 0.0
        %2418 = vmatpush1.msra.mxu0 0.0
        %2419 = vmatprep.subr.mxu0 0.0
        %2420 = vmatpush1.msra.mxu0 0.0
        %2421 = vmatprep.subr.mxu0 0.0
        %2422 = vmatpush1.msra.mxu0 0.0
        %2423 = vmatprep.subr.mxu0 0.0
        %2424 = vmatpush1.msra.mxu0 0.0
        %2425 = vmatprep.subr.mxu0 0.0
        %2426 = vmatpush1.msra.mxu0 0.0
        %2427 = vmatprep.subr.mxu0 0.0
        %2428 = vmatpush1.msra.mxu0 0.0
        %2429 = vmatprep.mubr.f32.mxu0 0.0
        %2430 = vmatmul.mubr.f32.gmra.mrb[0].mxu0 %v2360
        %v2431 = vpop.f32.mrb[0].mxu0
        %v2432 = vadd.f32 %v2357, %v2431
        %v2433 = vpop.f32.mrb[0].mxu0
        %2434 = vmatprep.mubr.f32.mxu0 0.0
        %2435 = vmatmul.mubr.f32.gmra.mrb[0].mxu0 %v2363
        %v2436 = vpop.f32.mrb[0].mxu0
        %v2437 = vadd.f32 %v2357, %v2436
        %v2438 = vpop.f32.mrb[0].mxu0
        %2439 = vdwg.mxu0
        %v2440 = vadd.f32 %v565, %v2432
        %v2441 = vadd.f32 %v566, %v2437
        %v2442 = vld [vmem:[%s6] sm:$0x1]
        %v2443 = vld [vmem:[%s7] sm:$0x1]
        %v2444 = vsel %vm579, %v2440, 0.0
        %2445 = vadd.xlane.f32.xlu0 %v2444
        %v2446 = vpop.xlane.xlu0 %2445
        %v2447 = vsel %vm579, %v2441, 0.0
        %2448 = vadd.xlane.f32.xlu0 %v2447
        %v2449 = vpop.xlane.xlu0 %2448
        %v2450 = vrcp.pop 32.0
        %v2451 = vmul.f32 %v2446, %v2450
        %v2452 = vmul.f32 %v2449, %v2450
        %v2453 = vsub.f32 %v2440, %v2451
        %v2454 = vsub.f32 %v2441, %v2452
        %v2455 = vmul.f32 %v2453, %v2453
        %v2456 = vmul.f32 %v2454, %v2454
        %v2457 = vsel %vm579, %v2455, 0.0
        %2458 = vadd.xlane.f32.xlu0 %v2457
        %v2459 = vpop.xlane.xlu0 %2458
        %v2460 = vsel %vm579, %v2456, 0.0
        %2461 = vadd.xlane.f32.xlu0 %v2460
        %v2462 = vpop.xlane.xlu0 %2461
        %v2463 = vmul.f32 %v2459, %v2450
        %v2464 = vmul.f32 %v2462, %v2450
        %v2465 = vadd.f32 %v2463, 1e-05
        %v2466 = vadd.f32 %v2464, 1e-05
        %v2467 = vrsqrt.pop %v2465
        %v2468 = vrsqrt.pop %v2466
        %v2469 = vmul.f32 %v2453, %v2467
        %v2470 = vmul.f32 %v2454, %v2468
        %v2472 = vlaneseq
        %v2473 = vshrl.u32 %v2472, 7
        %v2474 = vsub.s32 0, %v2473
        %v2475 = vrot.slane %v2442, %v2474
        %v2477 = vmul.f32 %v2469, %v2475
        %v2478 = vmul.f32 %v2470, %v2475
        %v2480 = vlaneseq
        %v2481 = vshrl.u32 %v2480, 7
        %v2482 = vsub.s32 0, %v2481
        %v2483 = vrot.slane %v2443, %v2482
        %v2485 = vadd.f32 %v2477, %v2483
        %v2486 = vadd.f32 %v2478, %v2483
        %v2487 = vpack.c.bf16 %v2486, %v2485
        %v2488 = vld [vmem:[#allocation3] sm:$0xff]
        %v2489 = vld [vmem:[#allocation3 + $0x8] sm:$0xff]
        %v2490 = vld [vmem:[#allocation3 + $0x40] sm:$0xff]
        %v2491 = vld [vmem:[#allocation3 + $0x48] sm:$0xff]
        %v2492 = vld [vmem:[#allocation3 + $0x80] sm:$0xff]
        %v2493 = vld [vmem:[#allocation3 + $0x88] sm:$0xff]
        %v2494 = vld [vmem:[#allocation3 + $0xc0] sm:$0xff]
        %v2495 = vld [vmem:[#allocation3 + $0xc8] sm:$0xff]
        %v2496 = vld [vmem:[%s9] sm:$0xf]
        %v2498 = vlaneseq
        %v2499 = vshrl.u32 %v2498, 7
        %v2500 = vsub.s32 0, %v2499
        %v2501 = vrot.slane %v2496, %v2500
        %v2502 = vlaneseq
        %v2503 = vshrl.u32 %v2502, 7
        %v2504 = vsub.s32 1, %v2503
        %v2505 = vrot.slane %v2496, %v2504
        %v2506 = vlaneseq
        %v2507 = vshrl.u32 %v2506, 7
        %v2508 = vsub.s32 2, %v2507
        %v2509 = vrot.slane %v2496, %v2508
        %v2510 = vlaneseq
        %v2511 = vshrl.u32 %v2510, 7
        %v2512 = vsub.s32 3, %v2511
        %v2513 = vrot.slane %v2496, %v2512
        %v2526 = vunpack.c.l.b16 %v2488
        %v2527 = vunpack.c.h.b16 %v2488
        %v2528 = vunpack.c.l.b16 %v2489
        %v2529 = vunpack.c.h.b16 %v2489
        %v2530 = vunpack.c.l.b16 %v2490
        %v2531 = vunpack.c.h.b16 %v2490
        %v2532 = vunpack.c.l.b16 %v2491
        %v2533 = vunpack.c.h.b16 %v2491
        %v2534 = vunpack.c.l.b16 %v2492
        %v2535 = vunpack.c.h.b16 %v2492
        %v2536 = vunpack.c.l.b16 %v2493
        %v2537 = vunpack.c.h.b16 %v2493
        %v2538 = vunpack.c.l.b16 %v2494
        %v2539 = vunpack.c.h.b16 %v2494
        %v2540 = vunpack.c.l.b16 %v2495
        %v2541 = vunpack.c.h.b16 %v2495
        %v2542 = vpack.c.b16 %v2530, %v2526
        %v2543 = vpack.c.b16 %v2531, %v2527
        %v2544 = vpack.c.b16 %v2532, %v2528
        %v2545 = vpack.c.b16 %v2533, %v2529
        %v2546 = vpack.c.b16 %v2538, %v2534
        %v2547 = vpack.c.b16 %v2539, %v2535
        %v2548 = vpack.c.b16 %v2540, %v2536
        %v2549 = vpack.c.b16 %v2541, %v2537
        %v2559 = vsel %vm579, %v2487, 0
        %2561 = vmatprep.subr.bf16.mxu0 %v2543
        %2562 = vmatpush1.bf16.msra.mxu0 %v2542
        %2563 = vmatprep.subr.bf16.mxu0 %v2547
        %2564 = vmatpush1.bf16.msra.mxu0 %v2546
        %2565 = vmatprep.subr.bf16.mxu0 0
        %2566 = vmatpush1.bf16.msra.mxu0 0
        %2567 = vmatprep.subr.bf16.mxu0 0
        %2568 = vmatpush1.bf16.msra.mxu0 0
        %2569 = vmatprep.subr.bf16.mxu0 0
        %2570 = vmatpush1.bf16.msra.mxu0 0
        %2571 = vmatprep.subr.bf16.mxu0 0
        %2572 = vmatpush1.bf16.msra.mxu0 0
        %2573 = vmatprep.subr.bf16.mxu0 0
        %2574 = vmatpush1.bf16.msra.mxu0 0
        %2575 = vmatprep.subr.bf16.mxu0 0
        %2576 = vmatpush1.bf16.msra.mxu0 0
        %2577 = vmatprep.subr.bf16.mxu0 0
        %2578 = vmatpush1.bf16.msra.mxu0 0
        %2579 = vmatprep.subr.bf16.mxu0 0
        %2580 = vmatpush1.bf16.msra.mxu0 0
        %2581 = vmatprep.subr.bf16.mxu0 0
        %2582 = vmatpush1.bf16.msra.mxu0 0
        %2583 = vmatprep.subr.bf16.mxu0 0
        %2584 = vmatpush1.bf16.msra.mxu0 0
        %2585 = vmatprep.subr.bf16.mxu0 0
        %2586 = vmatpush1.bf16.msra.mxu0 0
        %2587 = vmatprep.subr.bf16.mxu0 0
        %2588 = vmatpush1.bf16.msra.mxu0 0
        %2589 = vmatprep.subr.bf16.mxu0 0
        %2590 = vmatpush1.bf16.msra.mxu0 0
        %2591 = vmatprep.subr.bf16.mxu0 0
        %2592 = vmatpush1.bf16.msra.mxu0 0
        %2593 = vmatprep.mubr.bf16.mxu0 0
        %2594 = vmatmul.mubr.bf16.gmra.mrb[0].mxu0 %v2559
        %v2595 = vpop.f32.mrb[0].mxu0
        %v2596 = vadd.f32 %v2501, %v2595
        %v2597 = vpop.f32.mrb[0].mxu0
        %v2598 = vadd.f32 %v2505, %v2597
        %v2599 = vpop.f32.mrb[0].mxu0
        %v2600 = vadd.f32 %v2501, %v2599
        %v2601 = vpop.f32.mrb[0].mxu0
        %v2602 = vadd.f32 %v2505, %v2601
        %2603 = vdwg.mxu0
        %2604 = vmatprep.subr.bf16.mxu0 %v2545
        %2605 = vmatpush1.bf16.msra.mxu0 %v2544
        %2606 = vmatprep.subr.bf16.mxu0 %v2549
        %2607 = vmatpush1.bf16.msra.mxu0 %v2548
        %2608 = vmatprep.subr.bf16.mxu0 0
        %2609 = vmatpush1.bf16.msra.mxu0 0
        %2610 = vmatprep.subr.bf16.mxu0 0
        %2611 = vmatpush1.bf16.msra.mxu0 0
        %2612 = vmatprep.subr.bf16.mxu0 0
        %2613 = vmatpush1.bf16.msra.mxu0 0
        %2614 = vmatprep.subr.bf16.mxu0 0
        %2615 = vmatpush1.bf16.msra.mxu0 0
        %2616 = vmatprep.subr.bf16.mxu0 0
        %2617 = vmatpush1.bf16.msra.mxu0 0
        %2618 = vmatprep.subr.bf16.mxu0 0
        %2619 = vmatpush1.bf16.msra.mxu0 0
        %2620 = vmatprep.subr.bf16.mxu0 0
        %2621 = vmatpush1.bf16.msra.mxu0 0
        %2622 = vmatprep.subr.bf16.mxu0 0
        %2623 = vmatpush1.bf16.msra.mxu0 0
        %2624 = vmatprep.subr.bf16.mxu0 0
        %2625 = vmatpush1.bf16.msra.mxu0 0
        %2626 = vmatprep.subr.bf16.mxu0 0
        %2627 = vmatpush1.bf16.msra.mxu0 0
        %2628 = vmatprep.subr.bf16.mxu0 0
        %2629 = vmatpush1.bf16.msra.mxu0 0
        %2630 = vmatprep.subr.bf16.mxu0 0
        %2631 = vmatpush1.bf16.msra.mxu0 0
        %2632 = vmatprep.subr.bf16.mxu0 0
        %2633 = vmatpush1.bf16.msra.mxu0 0
        %2634 = vmatprep.subr.bf16.mxu0 0
        %2635 = vmatpush1.bf16.msra.mxu0 0
        %2636 = vmatprep.mubr.bf16.mxu0 0
        %2637 = vmatmul.mubr.bf16.gmra.mrb[0].mxu0 %v2559
        %v2638 = vpop.f32.mrb[0].mxu0
        %v2639 = vadd.f32 %v2509, %v2638
        %v2640 = vpop.f32.mrb[0].mxu0
        %v2641 = vadd.f32 %v2513, %v2640
        %v2642 = vpop.f32.mrb[0].mxu0
        %v2643 = vadd.f32 %v2509, %v2642
        %v2644 = vpop.f32.mrb[0].mxu0
        %v2645 = vadd.f32 %v2513, %v2644
        %2646 = vdwg.mxu0
        %v2647 = vmax.f32 %v2596, 0.0
        %v2648 = vmax.f32 %v2598, 0.0
        %v2649 = vmax.f32 %v2639, 0.0
        %v2650 = vmax.f32 %v2641, 0.0
        %v2651 = vmax.f32 %v2600, 0.0
        %v2652 = vmax.f32 %v2602, 0.0
        %v2653 = vmax.f32 %v2643, 0.0
        %v2654 = vmax.f32 %v2645, 0.0
        %v2655 = vpack.c.bf16 %v2651, %v2647
        %v2656 = vpack.c.bf16 %v2652, %v2648
        %v2657 = vpack.c.bf16 %v2653, %v2649
        %v2658 = vpack.c.bf16 %v2654, %v2650
        %v2659 = vld [vmem:[#allocation5] sm:$0xff]
        %v2660 = vld [vmem:[#allocation5 + $0x8] sm:$0xff]
        %v2661 = vld [vmem:[#allocation5 + $0x40] sm:$0xff]
        %v2662 = vld [vmem:[#allocation5 + $0x48] sm:$0xff]
        %v2663 = vld [vmem:[#allocation5 + $0x80] sm:$0xff]
        %v2664 = vld [vmem:[#allocation5 + $0x88] sm:$0xff]
        %v2665 = vld [vmem:[#allocation5 + $0xc0] sm:$0xff]
        %v2666 = vld [vmem:[#allocation5 + $0xc8] sm:$0xff]
        %v2667 = vld [vmem:[#allocation3 + $0x10] sm:$0xff]
        %v2668 = vld [vmem:[#allocation3 + $0x18] sm:$0xff]
        %v2669 = vld [vmem:[#allocation3 + $0x50] sm:$0xff]
        %v2670 = vld [vmem:[#allocation3 + $0x58] sm:$0xff]
        %v2671 = vld [vmem:[#allocation3 + $0x90] sm:$0xff]
        %v2672 = vld [vmem:[#allocation3 + $0x98] sm:$0xff]
        %v2673 = vld [vmem:[#allocation3 + $0xd0] sm:$0xff]
        %v2674 = vld [vmem:[#allocation3 + $0xd8] sm:$0xff]
        %v2675 = vld [vmem:[%s9 + $0x4] sm:$0xf]
        %v2677 = vlaneseq
        %v2678 = vshrl.u32 %v2677, 7
        %v2679 = vsub.s32 0, %v2678
        %v2680 = vrot.slane %v2675, %v2679
        %v2681 = vlaneseq
        %v2682 = vshrl.u32 %v2681, 7
        %v2683 = vsub.s32 1, %v2682
        %v2684 = vrot.slane %v2675, %v2683
        %v2685 = vlaneseq
        %v2686 = vshrl.u32 %v2685, 7
        %v2687 = vsub.s32 2, %v2686
        %v2688 = vrot.slane %v2675, %v2687
        %v2689 = vlaneseq
        %v2690 = vshrl.u32 %v2689, 7
        %v2691 = vsub.s32 3, %v2690
        %v2692 = vrot.slane %v2675, %v2691
        %v2705 = vunpack.c.l.b16 %v2667
        %v2706 = vunpack.c.h.b16 %v2667
        %v2707 = vunpack.c.l.b16 %v2668
        %v2708 = vunpack.c.h.b16 %v2668
        %v2709 = vunpack.c.l.b16 %v2669
        %v2710 = vunpack.c.h.b16 %v2669
        %v2711 = vunpack.c.l.b16 %v2670
        %v2712 = vunpack.c.h.b16 %v2670
        %v2713 = vunpack.c.l.b16 %v2671
        %v2714 = vunpack.c.h.b16 %v2671
        %v2715 = vunpack.c.l.b16 %v2672
        %v2716 = vunpack.c.h.b16 %v2672
        %v2717 = vunpack.c.l.b16 %v2673
        %v2718 = vunpack.c.h.b16 %v2673
        %v2719 = vunpack.c.l.b16 %v2674
        %v2720 = vunpack.c.h.b16 %v2674
        %v2721 = vpack.c.b16 %v2709, %v2705
        %v2722 = vpack.c.b16 %v2710, %v2706
        %v2723 = vpack.c.b16 %v2711, %v2707
        %v2724 = vpack.c.b16 %v2712, %v2708
        %v2725 = vpack.c.b16 %v2717, %v2713
        %v2726 = vpack.c.b16 %v2718, %v2714
        %v2727 = vpack.c.b16 %v2719, %v2715
        %v2728 = vpack.c.b16 %v2720, %v2716
        %2737 = vmatprep.subr.bf16.mxu0 %v2722
        %2738 = vmatpush1.bf16.msra.mxu0 %v2721
        %2739 = vmatprep.subr.bf16.mxu0 %v2726
        %2740 = vmatpush1.bf16.msra.mxu0 %v2725
        %2741 = vmatprep.subr.bf16.mxu0 0
        %2742 = vmatpush1.bf16.msra.mxu0 0
        %2743 = vmatprep.subr.bf16.mxu0 0
        %2744 = vmatpush1.bf16.msra.mxu0 0
        %2745 = vmatprep.subr.bf16.mxu0 0
        %2746 = vmatpush1.bf16.msra.mxu0 0
        %2747 = vmatprep.subr.bf16.mxu0 0
        %2748 = vmatpush1.bf16.msra.mxu0 0
        %2749 = vmatprep.subr.bf16.mxu0 0
        %2750 = vmatpush1.bf16.msra.mxu0 0
        %2751 = vmatprep.subr.bf16.mxu0 0
        %2752 = vmatpush1.bf16.msra.mxu0 0
        %2753 = vmatprep.subr.bf16.mxu0 0
        %2754 = vmatpush1.bf16.msra.mxu0 0
        %2755 = vmatprep.subr.bf16.mxu0 0
        %2756 = vmatpush1.bf16.msra.mxu0 0
        %2757 = vmatprep.subr.bf16.mxu0 0
        %2758 = vmatpush1.bf16.msra.mxu0 0
        %2759 = vmatprep.subr.bf16.mxu0 0
        %2760 = vmatpush1.bf16.msra.mxu0 0
        %2761 = vmatprep.subr.bf16.mxu0 0
        %2762 = vmatpush1.bf16.msra.mxu0 0
        %2763 = vmatprep.subr.bf16.mxu0 0
        %2764 = vmatpush1.bf16.msra.mxu0 0
        %2765 = vmatprep.subr.bf16.mxu0 0
        %2766 = vmatpush1.bf16.msra.mxu0 0
        %2767 = vmatprep.subr.bf16.mxu0 0
        %2768 = vmatpush1.bf16.msra.mxu0 0
        %2769 = vmatprep.mubr.bf16.mxu0 0
        %2770 = vmatmul.mubr.bf16.gmra.mrb[0].mxu0 %v2559
        %v2771 = vpop.f32.mrb[0].mxu0
        %v2772 = vadd.f32 %v2680, %v2771
        %v2773 = vpop.f32.mrb[0].mxu0
        %v2774 = vadd.f32 %v2684, %v2773
        %v2775 = vpop.f32.mrb[0].mxu0
        %v2776 = vadd.f32 %v2680, %v2775
        %v2777 = vpop.f32.mrb[0].mxu0
        %v2778 = vadd.f32 %v2684, %v2777
        %2779 = vdwg.mxu0
        %2780 = vmatprep.subr.bf16.mxu0 %v2724
        %2781 = vmatpush1.bf16.msra.mxu0 %v2723
        %2782 = vmatprep.subr.bf16.mxu0 %v2728
        %2783 = vmatpush1.bf16.msra.mxu0 %v2727
        %2784 = vmatprep.subr.bf16.mxu0 0
        %2785 = vmatpush1.bf16.msra.mxu0 0
        %2786 = vmatprep.subr.bf16.mxu0 0
        %2787 = vmatpush1.bf16.msra.mxu0 0
        %2788 = vmatprep.subr.bf16.mxu0 0
        %2789 = vmatpush1.bf16.msra.mxu0 0
        %2790 = vmatprep.subr.bf16.mxu0 0
        %2791 = vmatpush1.bf16.msra.mxu0 0
        %2792 = vmatprep.subr.bf16.mxu0 0
        %2793 = vmatpush1.bf16.msra.mxu0 0
        %2794 = vmatprep.subr.bf16.mxu0 0
        %2795 = vmatpush1.bf16.msra.mxu0 0
        %2796 = vmatprep.subr.bf16.mxu0 0
        %2797 = vmatpush1.bf16.msra.mxu0 0
        %2798 = vmatprep.subr.bf16.mxu0 0
        %2799 = vmatpush1.bf16.msra.mxu0 0
        %2800 = vmatprep.subr.bf16.mxu0 0
        %2801 = vmatpush1.bf16.msra.mxu0 0
        %2802 = vmatprep.subr.bf16.mxu0 0
        %2803 = vmatpush1.bf16.msra.mxu0 0
        %2804 = vmatprep.subr.bf16.mxu0 0
        %2805 = vmatpush1.bf16.msra.mxu0 0
        %2806 = vmatprep.subr.bf16.mxu0 0
        %2807 = vmatpush1.bf16.msra.mxu0 0
        %2808 = vmatprep.subr.bf16.mxu0 0
        %2809 = vmatpush1.bf16.msra.mxu0 0
        %2810 = vmatprep.subr.bf16.mxu0 0
        %2811 = vmatpush1.bf16.msra.mxu0 0
        %2812 = vmatprep.mubr.bf16.mxu0 0
        %2813 = vmatmul.mubr.bf16.gmra.mrb[0].mxu0 %v2559
        %v2814 = vpop.f32.mrb[0].mxu0
        %v2815 = vadd.f32 %v2688, %v2814
        %v2816 = vpop.f32.mrb[0].mxu0
        %v2817 = vadd.f32 %v2692, %v2816
        %v2818 = vpop.f32.mrb[0].mxu0
        %v2819 = vadd.f32 %v2688, %v2818
        %v2820 = vpop.f32.mrb[0].mxu0
        %v2821 = vadd.f32 %v2692, %v2820
        %2822 = vdwg.mxu0
        %v2823 = vmax.f32 %v2772, 0.0
        %v2824 = vmax.f32 %v2774, 0.0
        %v2825 = vmax.f32 %v2815, 0.0
        %v2826 = vmax.f32 %v2817, 0.0
        %v2827 = vmax.f32 %v2776, 0.0
        %v2828 = vmax.f32 %v2778, 0.0
        %v2829 = vmax.f32 %v2819, 0.0
        %v2830 = vmax.f32 %v2821, 0.0
        %v2831 = vpack.c.bf16 %v2827, %v2823
        %v2832 = vpack.c.bf16 %v2828, %v2824
        %v2833 = vpack.c.bf16 %v2829, %v2825
        %v2834 = vpack.c.bf16 %v2830, %v2826
        %v2835 = vld [vmem:[#allocation5 + $0x10] sm:$0xff]
        %v2836 = vld [vmem:[#allocation5 + $0x18] sm:$0xff]
        %v2837 = vld [vmem:[#allocation5 + $0x50] sm:$0xff]
        %v2838 = vld [vmem:[#allocation5 + $0x58] sm:$0xff]
        %v2839 = vld [vmem:[#allocation5 + $0x90] sm:$0xff]
        %v2840 = vld [vmem:[#allocation5 + $0x98] sm:$0xff]
        %v2841 = vld [vmem:[#allocation5 + $0xd0] sm:$0xff]
        %v2842 = vld [vmem:[#allocation5 + $0xd8] sm:$0xff]
        %v2851 = vunpack.c.l.b16 %v2835
        %v2852 = vunpack.c.h.b16 %v2835
        %v2853 = vunpack.c.l.b16 %v2836
        %v2854 = vunpack.c.h.b16 %v2836
        %v2855 = vunpack.c.l.b16 %v2837
        %v2856 = vunpack.c.h.b16 %v2837
        %v2857 = vunpack.c.l.b16 %v2838
        %v2858 = vunpack.c.h.b16 %v2838
        %v2859 = vunpack.c.l.b16 %v2839
        %v2860 = vunpack.c.h.b16 %v2839
        %v2861 = vunpack.c.l.b16 %v2840
        %v2862 = vunpack.c.h.b16 %v2840
        %v2863 = vunpack.c.l.b16 %v2841
        %v2864 = vunpack.c.h.b16 %v2841
        %v2865 = vunpack.c.l.b16 %v2842
        %v2866 = vunpack.c.h.b16 %v2842
        %v2867 = vpack.c.b16 %v2855, %v2851
        %v2868 = vpack.c.b16 %v2856, %v2852
        %v2869 = vpack.c.b16 %v2857, %v2853
        %v2870 = vpack.c.b16 %v2858, %v2854
        %v2871 = vpack.c.b16 %v2863, %v2859
        %v2872 = vpack.c.b16 %v2864, %v2860
        %v2873 = vpack.c.b16 %v2865, %v2861
        %v2874 = vpack.c.b16 %v2866, %v2862
        %2883 = vmatprep.subr.bf16.mxu0 %v2868
        %2884 = vmatpush1.bf16.xpose.msra.mxu0 %v2867
        %2885 = vmatprep.subr.bf16.mxu0 %v2872
        %2886 = vmatpush1.bf16.xpose.msra.mxu0 %v2871
        %2887 = vmatprep.subr.bf16.mxu0 0
        %2888 = vmatpush1.bf16.xpose.msra.mxu0 0
        %2889 = vmatprep.subr.bf16.mxu0 0
        %2890 = vmatpush1.bf16.xpose.msra.mxu0 0
        %2891 = vmatprep.subr.bf16.mxu0 0
        %2892 = vmatpush1.bf16.xpose.msra.mxu0 0
        %2893 = vmatprep.subr.bf16.mxu0 0
        %2894 = vmatpush1.bf16.xpose.msra.mxu0 0
        %2895 = vmatprep.subr.bf16.mxu0 0
        %2896 = vmatpush1.bf16.xpose.msra.mxu0 0
        %2897 = vmatprep.subr.bf16.mxu0 0
        %2898 = vmatpush1.bf16.xpose.msra.mxu0 0
        %2899 = vmatprep.subr.bf16.mxu0 0
        %2900 = vmatpush1.bf16.xpose.msra.mxu0 0
        %2901 = vmatprep.subr.bf16.mxu0 0
        %2902 = vmatpush1.bf16.xpose.msra.mxu0 0
        %2903 = vmatprep.subr.bf16.mxu0 0
        %2904 = vmatpush1.bf16.xpose.msra.mxu0 0
        %2905 = vmatprep.subr.bf16.mxu0 0
        %2906 = vmatpush1.bf16.xpose.msra.mxu0 0
        %2907 = vmatprep.subr.bf16.mxu0 0
        %2908 = vmatpush1.bf16.xpose.msra.mxu0 0
        %2909 = vmatprep.subr.bf16.mxu0 0
        %2910 = vmatpush1.bf16.xpose.msra.mxu0 0
        %2911 = vmatprep.subr.bf16.mxu0 0
        %2912 = vmatpush1.bf16.xpose.msra.mxu0 0
        %2913 = vmatprep.subr.bf16.mxu0 0
        %2914 = vmatpush1.bf16.xpose.msra.mxu0 0
        %2915 = vmatprep.mubr.bf16.mxu0 %v2832
        %2916 = vmatmul.mubr.bf16.gmra.mrb[0].mxu0 %v2831
        %v2917 = vpop.f32.mrb[0].mxu0
        %v2918 = vadd.f32 0.0, %v2917
        %v2919 = vpop.f32.mrb[0].mxu0
        %v2920 = vpop.f32.mrb[0].mxu0
        %v2921 = vadd.f32 0.0, %v2920
        %v2922 = vpop.f32.mrb[0].mxu0
        %2923 = vdwg.mxu0
        %2924 = vmatprep.subr.bf16.mxu0 %v2870
        %2925 = vmatpush1.bf16.xpose.msra.mxu0 %v2869
        %2926 = vmatprep.subr.bf16.mxu0 %v2874
        %2927 = vmatpush1.bf16.xpose.msra.mxu0 %v2873
        %2928 = vmatprep.subr.bf16.mxu0 0
        %2929 = vmatpush1.bf16.xpose.msra.mxu0 0
        %2930 = vmatprep.subr.bf16.mxu0 0
        %2931 = vmatpush1.bf16.xpose.msra.mxu0 0
        %2932 = vmatprep.subr.bf16.mxu0 0
        %2933 = vmatpush1.bf16.xpose.msra.mxu0 0
        %2934 = vmatprep.subr.bf16.mxu0 0
        %2935 = vmatpush1.bf16.xpose.msra.mxu0 0
        %2936 = vmatprep.subr.bf16.mxu0 0
        %2937 = vmatpush1.bf16.xpose.msra.mxu0 0
        %2938 = vmatprep.subr.bf16.mxu0 0
        %2939 = vmatpush1.bf16.xpose.msra.mxu0 0
        %2940 = vmatprep.subr.bf16.mxu0 0
        %2941 = vmatpush1.bf16.xpose.msra.mxu0 0
        %2942 = vmatprep.subr.bf16.mxu0 0
        %2943 = vmatpush1.bf16.xpose.msra.mxu0 0
        %2944 = vmatprep.subr.bf16.mxu0 0
        %2945 = vmatpush1.bf16.xpose.msra.mxu0 0
        %2946 = vmatprep.subr.bf16.mxu0 0
        %2947 = vmatpush1.bf16.xpose.msra.mxu0 0
        %2948 = vmatprep.subr.bf16.mxu0 0
        %2949 = vmatpush1.bf16.xpose.msra.mxu0 0
        %2950 = vmatprep.subr.bf16.mxu0 0
        %2951 = vmatpush1.bf16.xpose.msra.mxu0 0
        %2952 = vmatprep.subr.bf16.mxu0 0
        %2953 = vmatpush1.bf16.xpose.msra.mxu0 0
        %2954 = vmatprep.subr.bf16.mxu0 0
        %2955 = vmatpush1.bf16.xpose.msra.mxu0 0
        %2956 = vmatprep.mubr.bf16.mxu0 %v2834
        %2957 = vmatmul.mubr.bf16.gmra.mrb[0].mxu0 %v2833
        %v2958 = vpop.f32.mrb[0].mxu0
        %v2959 = vadd.f32 %v2918, %v2958
        %v2960 = vpop.f32.mrb[0].mxu0
        %v2961 = vpop.f32.mrb[0].mxu0
        %v2962 = vadd.f32 %v2921, %v2961
        %v2963 = vpop.f32.mrb[0].mxu0
        %2964 = vdwg.mxu0
        %v2973 = vunpack.c.l.b16 %v2659
        %v2974 = vunpack.c.h.b16 %v2659
        %v2975 = vunpack.c.l.b16 %v2660
        %v2976 = vunpack.c.h.b16 %v2660
        %v2977 = vunpack.c.l.b16 %v2661
        %v2978 = vunpack.c.h.b16 %v2661
        %v2979 = vunpack.c.l.b16 %v2662
        %v2980 = vunpack.c.h.b16 %v2662
        %v2981 = vunpack.c.l.b16 %v2663
        %v2982 = vunpack.c.h.b16 %v2663
        %v2983 = vunpack.c.l.b16 %v2664
        %v2984 = vunpack.c.h.b16 %v2664
        %v2985 = vunpack.c.l.b16 %v2665
        %v2986 = vunpack.c.h.b16 %v2665
        %v2987 = vunpack.c.l.b16 %v2666
        %v2988 = vunpack.c.h.b16 %v2666
        %v2989 = vpack.c.b16 %v2977, %v2973
        %v2990 = vpack.c.b16 %v2978, %v2974
        %v2991 = vpack.c.b16 %v2979, %v2975
        %v2992 = vpack.c.b16 %v2980, %v2976
        %v2993 = vpack.c.b16 %v2985, %v2981
        %v2994 = vpack.c.b16 %v2986, %v2982
        %v2995 = vpack.c.b16 %v2987, %v2983
        %v2996 = vpack.c.b16 %v2988, %v2984
        %3005 = vmatprep.subr.bf16.mxu0 %v2990
        %3006 = vmatpush1.bf16.xpose.msra.mxu0 %v2989
        %3007 = vmatprep.subr.bf16.mxu0 %v2994
        %3008 = vmatpush1.bf16.xpose.msra.mxu0 %v2993
        %3009 = vmatprep.subr.bf16.mxu0 0
        %3010 = vmatpush1.bf16.xpose.msra.mxu0 0
        %3011 = vmatprep.subr.bf16.mxu0 0
        %3012 = vmatpush1.bf16.xpose.msra.mxu0 0
        %3013 = vmatprep.subr.bf16.mxu0 0
        %3014 = vmatpush1.bf16.xpose.msra.mxu0 0
        %3015 = vmatprep.subr.bf16.mxu0 0
        %3016 = vmatpush1.bf16.xpose.msra.mxu0 0
        %3017 = vmatprep.subr.bf16.mxu0 0
        %3018 = vmatpush1.bf16.xpose.msra.mxu0 0
        %3019 = vmatprep.subr.bf16.mxu0 0
        %3020 = vmatpush1.bf16.xpose.msra.mxu0 0
        %3021 = vmatprep.subr.bf16.mxu0 0
        %3022 = vmatpush1.bf16.xpose.msra.mxu0 0
        %3023 = vmatprep.subr.bf16.mxu0 0
        %3024 = vmatpush1.bf16.xpose.msra.mxu0 0
        %3025 = vmatprep.subr.bf16.mxu0 0
        %3026 = vmatpush1.bf16.xpose.msra.mxu0 0
        %3027 = vmatprep.subr.bf16.mxu0 0
        %3028 = vmatpush1.bf16.xpose.msra.mxu0 0
        %3029 = vmatprep.subr.bf16.mxu0 0
        %3030 = vmatpush1.bf16.xpose.msra.mxu0 0
        %3031 = vmatprep.subr.bf16.mxu0 0
        %3032 = vmatpush1.bf16.xpose.msra.mxu0 0
        %3033 = vmatprep.subr.bf16.mxu0 0
        %3034 = vmatpush1.bf16.xpose.msra.mxu0 0
        %3035 = vmatprep.subr.bf16.mxu0 0
        %3036 = vmatpush1.bf16.xpose.msra.mxu0 0
        %3037 = vmatprep.mubr.bf16.mxu0 %v2656
        %3038 = vmatmul.mubr.bf16.gmra.mrb[0].mxu0 %v2655
        %v3039 = vpop.f32.mrb[0].mxu0
        %v3040 = vadd.f32 %v2959, %v3039
        %v3041 = vpop.f32.mrb[0].mxu0
        %v3042 = vpop.f32.mrb[0].mxu0
        %v3043 = vadd.f32 %v2962, %v3042
        %v3044 = vpop.f32.mrb[0].mxu0
        %3045 = vdwg.mxu0
        %3046 = vmatprep.subr.bf16.mxu0 %v2992
        %3047 = vmatpush1.bf16.xpose.msra.mxu0 %v2991
        %3048 = vmatprep.subr.bf16.mxu0 %v2996
        %3049 = vmatpush1.bf16.xpose.msra.mxu0 %v2995
        %3050 = vmatprep.subr.bf16.mxu0 0
        %3051 = vmatpush1.bf16.xpose.msra.mxu0 0
        %3052 = vmatprep.subr.bf16.mxu0 0
        %3053 = vmatpush1.bf16.xpose.msra.mxu0 0
        %3054 = vmatprep.subr.bf16.mxu0 0
        %3055 = vmatpush1.bf16.xpose.msra.mxu0 0
        %3056 = vmatprep.subr.bf16.mxu0 0
        %3057 = vmatpush1.bf16.xpose.msra.mxu0 0
        %3058 = vmatprep.subr.bf16.mxu0 0
        %3059 = vmatpush1.bf16.xpose.msra.mxu0 0
        %3060 = vmatprep.subr.bf16.mxu0 0
        %3061 = vmatpush1.bf16.xpose.msra.mxu0 0
        %3062 = vmatprep.subr.bf16.mxu0 0
        %3063 = vmatpush1.bf16.xpose.msra.mxu0 0
        %3064 = vmatprep.subr.bf16.mxu0 0
        %3065 = vmatpush1.bf16.xpose.msra.mxu0 0
        %3066 = vmatprep.subr.bf16.mxu0 0
        %3067 = vmatpush1.bf16.xpose.msra.mxu0 0
        %3068 = vmatprep.subr.bf16.mxu0 0
        %3069 = vmatpush1.bf16.xpose.msra.mxu0 0
        %3070 = vmatprep.subr.bf16.mxu0 0
        %3071 = vmatpush1.bf16.xpose.msra.mxu0 0
        %3072 = vmatprep.subr.bf16.mxu0 0
        %3073 = vmatpush1.bf16.xpose.msra.mxu0 0
        %3074 = vmatprep.subr.bf16.mxu0 0
        %3075 = vmatpush1.bf16.xpose.msra.mxu0 0
        %3076 = vmatprep.subr.bf16.mxu0 0
        %3077 = vmatpush1.bf16.xpose.msra.mxu0 0
        %3078 = vmatprep.mubr.bf16.mxu0 %v2658
        %3079 = vmatmul.mubr.bf16.gmra.mrb[0].mxu0 %v2657
        %v3080 = vpop.f32.mrb[0].mxu0
        %v3081 = vadd.f32 %v3040, %v3080
        %v3082 = vpop.f32.mrb[0].mxu0
        %v3083 = vpop.f32.mrb[0].mxu0
        %v3084 = vadd.f32 %v3043, %v3083
        %v3085 = vpop.f32.mrb[0].mxu0
        %3086 = vdwg.mxu0
        %v3087 = vld [vmem:[#allocation3 + $0x20] sm:$0xff]
        %v3088 = vld [vmem:[#allocation3 + $0x28] sm:$0xff]
        %v3089 = vld [vmem:[#allocation3 + $0x60] sm:$0xff]
        %v3090 = vld [vmem:[#allocation3 + $0x68] sm:$0xff]
        %v3091 = vld [vmem:[#allocation3 + $0xa0] sm:$0xff]
        %v3092 = vld [vmem:[#allocation3 + $0xa8] sm:$0xff]
        %v3093 = vld [vmem:[#allocation3 + $0xe0] sm:$0xff]
        %v3094 = vld [vmem:[#allocation3 + $0xe8] sm:$0xff]
        %v3095 = vld [vmem:[%s9 + $0x8] sm:$0xf]
        %v3097 = vlaneseq
        %v3098 = vshrl.u32 %v3097, 7
        %v3099 = vsub.s32 0, %v3098
        %v3100 = vrot.slane %v3095, %v3099
        %v3101 = vlaneseq
        %v3102 = vshrl.u32 %v3101, 7
        %v3103 = vsub.s32 1, %v3102
        %v3104 = vrot.slane %v3095, %v3103
        %v3105 = vlaneseq
        %v3106 = vshrl.u32 %v3105, 7
        %v3107 = vsub.s32 2, %v3106
        %v3108 = vrot.slane %v3095, %v3107
        %v3109 = vlaneseq
        %v3110 = vshrl.u32 %v3109, 7
        %v3111 = vsub.s32 3, %v3110
        %v3112 = vrot.slane %v3095, %v3111
        %v3125 = vunpack.c.l.b16 %v3087
        %v3126 = vunpack.c.h.b16 %v3087
        %v3127 = vunpack.c.l.b16 %v3088
        %v3128 = vunpack.c.h.b16 %v3088
        %v3129 = vunpack.c.l.b16 %v3089
        %v3130 = vunpack.c.h.b16 %v3089
        %v3131 = vunpack.c.l.b16 %v3090
        %v3132 = vunpack.c.h.b16 %v3090
        %v3133 = vunpack.c.l.b16 %v3091
        %v3134 = vunpack.c.h.b16 %v3091
        %v3135 = vunpack.c.l.b16 %v3092
        %v3136 = vunpack.c.h.b16 %v3092
        %v3137 = vunpack.c.l.b16 %v3093
        %v3138 = vunpack.c.h.b16 %v3093
        %v3139 = vunpack.c.l.b16 %v3094
        %v3140 = vunpack.c.h.b16 %v3094
        %v3141 = vpack.c.b16 %v3129, %v3125
        %v3142 = vpack.c.b16 %v3130, %v3126
        %v3143 = vpack.c.b16 %v3131, %v3127
        %v3144 = vpack.c.b16 %v3132, %v3128
        %v3145 = vpack.c.b16 %v3137, %v3133
        %v3146 = vpack.c.b16 %v3138, %v3134
        %v3147 = vpack.c.b16 %v3139, %v3135
        %v3148 = vpack.c.b16 %v3140, %v3136
        %3157 = vmatprep.subr.bf16.mxu0 %v3142
        %3158 = vmatpush1.bf16.msra.mxu0 %v3141
        %3159 = vmatprep.subr.bf16.mxu0 %v3146
        %3160 = vmatpush1.bf16.msra.mxu0 %v3145
        %3161 = vmatprep.subr.bf16.mxu0 0
        %3162 = vmatpush1.bf16.msra.mxu0 0
        %3163 = vmatprep.subr.bf16.mxu0 0
        %3164 = vmatpush1.bf16.msra.mxu0 0
        %3165 = vmatprep.subr.bf16.mxu0 0
        %3166 = vmatpush1.bf16.msra.mxu0 0
        %3167 = vmatprep.subr.bf16.mxu0 0
        %3168 = vmatpush1.bf16.msra.mxu0 0
        %3169 = vmatprep.subr.bf16.mxu0 0
        %3170 = vmatpush1.bf16.msra.mxu0 0
        %3171 = vmatprep.subr.bf16.mxu0 0
        %3172 = vmatpush1.bf16.msra.mxu0 0
        %3173 = vmatprep.subr.bf16.mxu0 0
        %3174 = vmatpush1.bf16.msra.mxu0 0
        %3175 = vmatprep.subr.bf16.mxu0 0
        %3176 = vmatpush1.bf16.msra.mxu0 0
        %3177 = vmatprep.subr.bf16.mxu0 0
        %3178 = vmatpush1.bf16.msra.mxu0 0
        %3179 = vmatprep.subr.bf16.mxu0 0
        %3180 = vmatpush1.bf16.msra.mxu0 0
        %3181 = vmatprep.subr.bf16.mxu0 0
        %3182 = vmatpush1.bf16.msra.mxu0 0
        %3183 = vmatprep.subr.bf16.mxu0 0
        %3184 = vmatpush1.bf16.msra.mxu0 0
        %3185 = vmatprep.subr.bf16.mxu0 0
        %3186 = vmatpush1.bf16.msra.mxu0 0
        %3187 = vmatprep.subr.bf16.mxu0 0
        %3188 = vmatpush1.bf16.msra.mxu0 0
        %3189 = vmatprep.mubr.bf16.mxu0 0
        %3190 = vmatmul.mubr.bf16.gmra.mrb[0].mxu0 %v2559
        %v3191 = vpop.f32.mrb[0].mxu0
        %v3192 = vadd.f32 %v3100, %v3191
        %v3193 = vpop.f32.mrb[0].mxu0
        %v3194 = vadd.f32 %v3104, %v3193
        %v3195 = vpop.f32.mrb[0].mxu0
        %v3196 = vadd.f32 %v3100, %v3195
        %v3197 = vpop.f32.mrb[0].mxu0
        %v3198 = vadd.f32 %v3104, %v3197
        %3199 = vdwg.mxu0
        %3200 = vmatprep.subr.bf16.mxu0 %v3144
        %3201 = vmatpush1.bf16.msra.mxu0 %v3143
        %3202 = vmatprep.subr.bf16.mxu0 %v3148
        %3203 = vmatpush1.bf16.msra.mxu0 %v3147
        %3204 = vmatprep.subr.bf16.mxu0 0
        %3205 = vmatpush1.bf16.msra.mxu0 0
        %3206 = vmatprep.subr.bf16.mxu0 0
        %3207 = vmatpush1.bf16.msra.mxu0 0
        %3208 = vmatprep.subr.bf16.mxu0 0
        %3209 = vmatpush1.bf16.msra.mxu0 0
        %3210 = vmatprep.subr.bf16.mxu0 0
        %3211 = vmatpush1.bf16.msra.mxu0 0
        %3212 = vmatprep.subr.bf16.mxu0 0
        %3213 = vmatpush1.bf16.msra.mxu0 0
        %3214 = vmatprep.subr.bf16.mxu0 0
        %3215 = vmatpush1.bf16.msra.mxu0 0
        %3216 = vmatprep.subr.bf16.mxu0 0
        %3217 = vmatpush1.bf16.msra.mxu0 0
        %3218 = vmatprep.subr.bf16.mxu0 0
        %3219 = vmatpush1.bf16.msra.mxu0 0
        %3220 = vmatprep.subr.bf16.mxu0 0
        %3221 = vmatpush1.bf16.msra.mxu0 0
        %3222 = vmatprep.subr.bf16.mxu0 0
        %3223 = vmatpush1.bf16.msra.mxu0 0
        %3224 = vmatprep.subr.bf16.mxu0 0
        %3225 = vmatpush1.bf16.msra.mxu0 0
        %3226 = vmatprep.subr.bf16.mxu0 0
        %3227 = vmatpush1.bf16.msra.mxu0 0
        %3228 = vmatprep.subr.bf16.mxu0 0
        %3229 = vmatpush1.bf16.msra.mxu0 0
        %3230 = vmatprep.subr.bf16.mxu0 0
        %3231 = vmatpush1.bf16.msra.mxu0 0
        %3232 = vmatprep.mubr.bf16.mxu0 0
        %3233 = vmatmul.mubr.bf16.gmra.mrb[0].mxu0 %v2559
        %v3234 = vpop.f32.mrb[0].mxu0
        %v3235 = vadd.f32 %v3108, %v3234
        %v3236 = vpop.f32.mrb[0].mxu0
        %v3237 = vadd.f32 %v3112, %v3236
        %v3238 = vpop.f32.mrb[0].mxu0
        %v3239 = vadd.f32 %v3108, %v3238
        %v3240 = vpop.f32.mrb[0].mxu0
        %v3241 = vadd.f32 %v3112, %v3240
        %3242 = vdwg.mxu0
        %v3243 = vmax.f32 %v3192, 0.0
        %v3244 = vmax.f32 %v3194, 0.0
        %v3245 = vmax.f32 %v3235, 0.0
        %v3246 = vmax.f32 %v3237, 0.0
        %v3247 = vmax.f32 %v3196, 0.0
        %v3248 = vmax.f32 %v3198, 0.0
        %v3249 = vmax.f32 %v3239, 0.0
        %v3250 = vmax.f32 %v3241, 0.0
        %v3251 = vpack.c.bf16 %v3247, %v3243
        %v3252 = vpack.c.bf16 %v3248, %v3244
        %v3253 = vpack.c.bf16 %v3249, %v3245
        %v3254 = vpack.c.bf16 %v3250, %v3246
        %v3255 = vld [vmem:[#allocation5 + $0x20] sm:$0xff]
        %v3256 = vld [vmem:[#allocation5 + $0x28] sm:$0xff]
        %v3257 = vld [vmem:[#allocation5 + $0x60] sm:$0xff]
        %v3258 = vld [vmem:[#allocation5 + $0x68] sm:$0xff]
        %v3259 = vld [vmem:[#allocation5 + $0xa0] sm:$0xff]
        %v3260 = vld [vmem:[#allocation5 + $0xa8] sm:$0xff]
        %v3261 = vld [vmem:[#allocation5 + $0xe0] sm:$0xff]
        %v3262 = vld [vmem:[#allocation5 + $0xe8] sm:$0xff]
        %v3271 = vunpack.c.l.b16 %v3255
        %v3272 = vunpack.c.h.b16 %v3255
        %v3273 = vunpack.c.l.b16 %v3256
        %v3274 = vunpack.c.h.b16 %v3256
        %v3275 = vunpack.c.l.b16 %v3257
        %v3276 = vunpack.c.h.b16 %v3257
        %v3277 = vunpack.c.l.b16 %v3258
        %v3278 = vunpack.c.h.b16 %v3258
        %v3279 = vunpack.c.l.b16 %v3259
        %v3280 = vunpack.c.h.b16 %v3259
        %v3281 = vunpack.c.l.b16 %v3260
        %v3282 = vunpack.c.h.b16 %v3260
        %v3283 = vunpack.c.l.b16 %v3261
        %v3284 = vunpack.c.h.b16 %v3261
        %v3285 = vunpack.c.l.b16 %v3262
        %v3286 = vunpack.c.h.b16 %v3262
        %v3287 = vpack.c.b16 %v3275, %v3271
        %v3288 = vpack.c.b16 %v3276, %v3272
        %v3289 = vpack.c.b16 %v3277, %v3273
        %v3290 = vpack.c.b16 %v3278, %v3274
        %v3291 = vpack.c.b16 %v3283, %v3279
        %v3292 = vpack.c.b16 %v3284, %v3280
        %v3293 = vpack.c.b16 %v3285, %v3281
        %v3294 = vpack.c.b16 %v3286, %v3282
        %3303 = vmatprep.subr.bf16.mxu0 %v3288
        %3304 = vmatpush1.bf16.xpose.msra.mxu0 %v3287
        %3305 = vmatprep.subr.bf16.mxu0 %v3292
        %3306 = vmatpush1.bf16.xpose.msra.mxu0 %v3291
        %3307 = vmatprep.subr.bf16.mxu0 0
        %3308 = vmatpush1.bf16.xpose.msra.mxu0 0
        %3309 = vmatprep.subr.bf16.mxu0 0
        %3310 = vmatpush1.bf16.xpose.msra.mxu0 0
        %3311 = vmatprep.subr.bf16.mxu0 0
        %3312 = vmatpush1.bf16.xpose.msra.mxu0 0
        %3313 = vmatprep.subr.bf16.mxu0 0
        %3314 = vmatpush1.bf16.xpose.msra.mxu0 0
        %3315 = vmatprep.subr.bf16.mxu0 0
        %3316 = vmatpush1.bf16.xpose.msra.mxu0 0
        %3317 = vmatprep.subr.bf16.mxu0 0
        %3318 = vmatpush1.bf16.xpose.msra.mxu0 0
        %3319 = vmatprep.subr.bf16.mxu0 0
        %3320 = vmatpush1.bf16.xpose.msra.mxu0 0
        %3321 = vmatprep.subr.bf16.mxu0 0
        %3322 = vmatpush1.bf16.xpose.msra.mxu0 0
        %3323 = vmatprep.subr.bf16.mxu0 0
        %3324 = vmatpush1.bf16.xpose.msra.mxu0 0
        %3325 = vmatprep.subr.bf16.mxu0 0
        %3326 = vmatpush1.bf16.xpose.msra.mxu0 0
        %3327 = vmatprep.subr.bf16.mxu0 0
        %3328 = vmatpush1.bf16.xpose.msra.mxu0 0
        %3329 = vmatprep.subr.bf16.mxu0 0
        %3330 = vmatpush1.bf16.xpose.msra.mxu0 0
        %3331 = vmatprep.subr.bf16.mxu0 0
        %3332 = vmatpush1.bf16.xpose.msra.mxu0 0
        %3333 = vmatprep.subr.bf16.mxu0 0
        %3334 = vmatpush1.bf16.xpose.msra.mxu0 0
        %3335 = vmatprep.mubr.bf16.mxu0 %v3252
        %3336 = vmatmul.mubr.bf16.gmra.mrb[0].mxu0 %v3251
        %v3337 = vpop.f32.mrb[0].mxu0
        %v3338 = vadd.f32 0.0, %v3337
        %v3339 = vpop.f32.mrb[0].mxu0
        %v3340 = vpop.f32.mrb[0].mxu0
        %v3341 = vadd.f32 0.0, %v3340
        %v3342 = vpop.f32.mrb[0].mxu0
        %3343 = vdwg.mxu0
        %3344 = vmatprep.subr.bf16.mxu0 %v3290
        %3345 = vmatpush1.bf16.xpose.msra.mxu0 %v3289
        %3346 = vmatprep.subr.bf16.mxu0 %v3294
        %3347 = vmatpush1.bf16.xpose.msra.mxu0 %v3293
        %3348 = vmatprep.subr.bf16.mxu0 0
        %3349 = vmatpush1.bf16.xpose.msra.mxu0 0
        %3350 = vmatprep.subr.bf16.mxu0 0
        %3351 = vmatpush1.bf16.xpose.msra.mxu0 0
        %3352 = vmatprep.subr.bf16.mxu0 0
        %3353 = vmatpush1.bf16.xpose.msra.mxu0 0
        %3354 = vmatprep.subr.bf16.mxu0 0
        %3355 = vmatpush1.bf16.xpose.msra.mxu0 0
        %3356 = vmatprep.subr.bf16.mxu0 0
        %3357 = vmatpush1.bf16.xpose.msra.mxu0 0
        %3358 = vmatprep.subr.bf16.mxu0 0
        %3359 = vmatpush1.bf16.xpose.msra.mxu0 0
        %3360 = vmatprep.subr.bf16.mxu0 0
        %3361 = vmatpush1.bf16.xpose.msra.mxu0 0
        %3362 = vmatprep.subr.bf16.mxu0 0
        %3363 = vmatpush1.bf16.xpose.msra.mxu0 0
        %3364 = vmatprep.subr.bf16.mxu0 0
        %3365 = vmatpush1.bf16.xpose.msra.mxu0 0
        %3366 = vmatprep.subr.bf16.mxu0 0
        %3367 = vmatpush1.bf16.xpose.msra.mxu0 0
        %3368 = vmatprep.subr.bf16.mxu0 0
        %3369 = vmatpush1.bf16.xpose.msra.mxu0 0
        %3370 = vmatprep.subr.bf16.mxu0 0
        %3371 = vmatpush1.bf16.xpose.msra.mxu0 0
        %3372 = vmatprep.subr.bf16.mxu0 0
        %3373 = vmatpush1.bf16.xpose.msra.mxu0 0
        %3374 = vmatprep.subr.bf16.mxu0 0
        %3375 = vmatpush1.bf16.xpose.msra.mxu0 0
        %3376 = vmatprep.mubr.bf16.mxu0 %v3254
        %3377 = vmatmul.mubr.bf16.gmra.mrb[0].mxu0 %v3253
        %v3378 = vpop.f32.mrb[0].mxu0
        %v3379 = vadd.f32 %v3338, %v3378
        %v3380 = vpop.f32.mrb[0].mxu0
        %v3381 = vpop.f32.mrb[0].mxu0
        %v3382 = vadd.f32 %v3341, %v3381
        %v3383 = vpop.f32.mrb[0].mxu0
        %3384 = vdwg.mxu0
        %v3385 = vadd.f32 %v3081, %v3379
        %v3386 = vadd.f32 %v3084, %v3382
        %v3387 = vld [vmem:[#allocation3 + $0x30] sm:$0xff]
        %v3388 = vld [vmem:[#allocation3 + $0x38] sm:$0xff]
        %v3389 = vld [vmem:[#allocation3 + $0x70] sm:$0xff]
        %v3390 = vld [vmem:[#allocation3 + $0x78] sm:$0xff]
        %v3391 = vld [vmem:[#allocation3 + $0xb0] sm:$0xff]
        %v3392 = vld [vmem:[#allocation3 + $0xb8] sm:$0xff]
        %v3393 = vld [vmem:[#allocation3 + $0xf0] sm:$0xff]
        %v3394 = vld [vmem:[#allocation3 + $0xf8] sm:$0xff]
        %v3395 = vld [vmem:[%s9 + $0xc] sm:$0xf]
        %v3397 = vlaneseq
        %v3398 = vshrl.u32 %v3397, 7
        %v3399 = vsub.s32 0, %v3398
        %v3400 = vrot.slane %v3395, %v3399
        %v3401 = vlaneseq
        %v3402 = vshrl.u32 %v3401, 7
        %v3403 = vsub.s32 1, %v3402
        %v3404 = vrot.slane %v3395, %v3403
        %v3405 = vlaneseq
        %v3406 = vshrl.u32 %v3405, 7
        %v3407 = vsub.s32 2, %v3406
        %v3408 = vrot.slane %v3395, %v3407
        %v3409 = vlaneseq
        %v3410 = vshrl.u32 %v3409, 7
        %v3411 = vsub.s32 3, %v3410
        %v3412 = vrot.slane %v3395, %v3411
        %v3425 = vunpack.c.l.b16 %v3387
        %v3426 = vunpack.c.h.b16 %v3387
        %v3427 = vunpack.c.l.b16 %v3388
        %v3428 = vunpack.c.h.b16 %v3388
        %v3429 = vunpack.c.l.b16 %v3389
        %v3430 = vunpack.c.h.b16 %v3389
        %v3431 = vunpack.c.l.b16 %v3390
        %v3432 = vunpack.c.h.b16 %v3390
        %v3433 = vunpack.c.l.b16 %v3391
        %v3434 = vunpack.c.h.b16 %v3391
        %v3435 = vunpack.c.l.b16 %v3392
        %v3436 = vunpack.c.h.b16 %v3392
        %v3437 = vunpack.c.l.b16 %v3393
        %v3438 = vunpack.c.h.b16 %v3393
        %v3439 = vunpack.c.l.b16 %v3394
        %v3440 = vunpack.c.h.b16 %v3394
        %v3441 = vpack.c.b16 %v3429, %v3425
        %v3442 = vpack.c.b16 %v3430, %v3426
        %v3443 = vpack.c.b16 %v3431, %v3427
        %v3444 = vpack.c.b16 %v3432, %v3428
        %v3445 = vpack.c.b16 %v3437, %v3433
        %v3446 = vpack.c.b16 %v3438, %v3434
        %v3447 = vpack.c.b16 %v3439, %v3435
        %v3448 = vpack.c.b16 %v3440, %v3436
        %3457 = vmatprep.subr.bf16.mxu0 %v3442
        %3458 = vmatpush1.bf16.msra.mxu0 %v3441
        %3459 = vmatprep.subr.bf16.mxu0 %v3446
        %3460 = vmatpush1.bf16.msra.mxu0 %v3445
        %3461 = vmatprep.subr.bf16.mxu0 0
        %3462 = vmatpush1.bf16.msra.mxu0 0
        %3463 = vmatprep.subr.bf16.mxu0 0
        %3464 = vmatpush1.bf16.msra.mxu0 0
        %3465 = vmatprep.subr.bf16.mxu0 0
        %3466 = vmatpush1.bf16.msra.mxu0 0
        %3467 = vmatprep.subr.bf16.mxu0 0
        %3468 = vmatpush1.bf16.msra.mxu0 0
        %3469 = vmatprep.subr.bf16.mxu0 0
        %3470 = vmatpush1.bf16.msra.mxu0 0
        %3471 = vmatprep.subr.bf16.mxu0 0
        %3472 = vmatpush1.bf16.msra.mxu0 0
        %3473 = vmatprep.subr.bf16.mxu0 0
        %3474 = vmatpush1.bf16.msra.mxu0 0
        %3475 = vmatprep.subr.bf16.mxu0 0
        %3476 = vmatpush1.bf16.msra.mxu0 0
        %3477 = vmatprep.subr.bf16.mxu0 0
        %3478 = vmatpush1.bf16.msra.mxu0 0
        %3479 = vmatprep.subr.bf16.mxu0 0
        %3480 = vmatpush1.bf16.msra.mxu0 0
        %3481 = vmatprep.subr.bf16.mxu0 0
        %3482 = vmatpush1.bf16.msra.mxu0 0
        %3483 = vmatprep.subr.bf16.mxu0 0
        %3484 = vmatpush1.bf16.msra.mxu0 0
        %3485 = vmatprep.subr.bf16.mxu0 0
        %3486 = vmatpush1.bf16.msra.mxu0 0
        %3487 = vmatprep.subr.bf16.mxu0 0
        %3488 = vmatpush1.bf16.msra.mxu0 0
        %3489 = vmatprep.mubr.bf16.mxu0 0
        %3490 = vmatmul.mubr.bf16.gmra.mrb[0].mxu0 %v2559
        %v3491 = vpop.f32.mrb[0].mxu0
        %v3492 = vadd.f32 %v3400, %v3491
        %v3493 = vpop.f32.mrb[0].mxu0
        %v3494 = vadd.f32 %v3404, %v3493
        %v3495 = vpop.f32.mrb[0].mxu0
        %v3496 = vadd.f32 %v3400, %v3495
        %v3497 = vpop.f32.mrb[0].mxu0
        %v3498 = vadd.f32 %v3404, %v3497
        %3499 = vdwg.mxu0
        %3500 = vmatprep.subr.bf16.mxu0 %v3444
        %3501 = vmatpush1.bf16.msra.mxu0 %v3443
        %3502 = vmatprep.subr.bf16.mxu0 %v3448
        %3503 = vmatpush1.bf16.msra.mxu0 %v3447
        %3504 = vmatprep.subr.bf16.mxu0 0
        %3505 = vmatpush1.bf16.msra.mxu0 0
        %3506 = vmatprep.subr.bf16.mxu0 0
        %3507 = vmatpush1.bf16.msra.mxu0 0
        %3508 = vmatprep.subr.bf16.mxu0 0
        %3509 = vmatpush1.bf16.msra.mxu0 0
        %3510 = vmatprep.subr.bf16.mxu0 0
        %3511 = vmatpush1.bf16.msra.mxu0 0
        %3512 = vmatprep.subr.bf16.mxu0 0
        %3513 = vmatpush1.bf16.msra.mxu0 0
        %3514 = vmatprep.subr.bf16.mxu0 0
        %3515 = vmatpush1.bf16.msra.mxu0 0
        %3516 = vmatprep.subr.bf16.mxu0 0
        %3517 = vmatpush1.bf16.msra.mxu0 0
        %3518 = vmatprep.subr.bf16.mxu0 0
        %3519 = vmatpush1.bf16.msra.mxu0 0
        %3520 = vmatprep.subr.bf16.mxu0 0
        %3521 = vmatpush1.bf16.msra.mxu0 0
        %3522 = vmatprep.subr.bf16.mxu0 0
        %3523 = vmatpush1.bf16.msra.mxu0 0
        %3524 = vmatprep.subr.bf16.mxu0 0
        %3525 = vmatpush1.bf16.msra.mxu0 0
        %3526 = vmatprep.subr.bf16.mxu0 0
        %3527 = vmatpush1.bf16.msra.mxu0 0
        %3528 = vmatprep.subr.bf16.mxu0 0
        %3529 = vmatpush1.bf16.msra.mxu0 0
        %3530 = vmatprep.subr.bf16.mxu0 0
        %3531 = vmatpush1.bf16.msra.mxu0 0
        %3532 = vmatprep.mubr.bf16.mxu0 0
        %3533 = vmatmul.mubr.bf16.gmra.mrb[0].mxu0 %v2559
        %v3534 = vpop.f32.mrb[0].mxu0
        %v3535 = vadd.f32 %v3408, %v3534
        %v3536 = vpop.f32.mrb[0].mxu0
        %v3537 = vadd.f32 %v3412, %v3536
        %v3538 = vpop.f32.mrb[0].mxu0
        %v3539 = vadd.f32 %v3408, %v3538
        %v3540 = vpop.f32.mrb[0].mxu0
        %v3541 = vadd.f32 %v3412, %v3540
        %3542 = vdwg.mxu0
        %v3543 = vmax.f32 %v3492, 0.0
        %v3544 = vmax.f32 %v3494, 0.0
        %v3545 = vmax.f32 %v3535, 0.0
        %v3546 = vmax.f32 %v3537, 0.0
        %v3547 = vmax.f32 %v3496, 0.0
        %v3548 = vmax.f32 %v3498, 0.0
        %v3549 = vmax.f32 %v3539, 0.0
        %v3550 = vmax.f32 %v3541, 0.0
        %v3551 = vpack.c.bf16 %v3547, %v3543
        %v3552 = vpack.c.bf16 %v3548, %v3544
        %v3553 = vpack.c.bf16 %v3549, %v3545
        %v3554 = vpack.c.bf16 %v3550, %v3546
        %v3555 = vld [vmem:[#allocation5 + $0x30] sm:$0xff]
        %v3556 = vld [vmem:[#allocation5 + $0x38] sm:$0xff]
        %v3557 = vld [vmem:[#allocation5 + $0x70] sm:$0xff]
        %v3558 = vld [vmem:[#allocation5 + $0x78] sm:$0xff]
        %v3559 = vld [vmem:[#allocation5 + $0xb0] sm:$0xff]
        %v3560 = vld [vmem:[#allocation5 + $0xb8] sm:$0xff]
        %v3561 = vld [vmem:[#allocation5 + $0xf0] sm:$0xff]
        %v3562 = vld [vmem:[#allocation5 + $0xf8] sm:$0xff]
        %v3571 = vunpack.c.l.b16 %v3555
        %v3572 = vunpack.c.h.b16 %v3555
        %v3573 = vunpack.c.l.b16 %v3556
        %v3574 = vunpack.c.h.b16 %v3556
        %v3575 = vunpack.c.l.b16 %v3557
        %v3576 = vunpack.c.h.b16 %v3557
        %v3577 = vunpack.c.l.b16 %v3558
        %v3578 = vunpack.c.h.b16 %v3558
        %v3579 = vunpack.c.l.b16 %v3559
        %v3580 = vunpack.c.h.b16 %v3559
        %v3581 = vunpack.c.l.b16 %v3560
        %v3582 = vunpack.c.h.b16 %v3560
        %v3583 = vunpack.c.l.b16 %v3561
        %v3584 = vunpack.c.h.b16 %v3561
        %v3585 = vunpack.c.l.b16 %v3562
        %v3586 = vunpack.c.h.b16 %v3562
        %v3587 = vpack.c.b16 %v3575, %v3571
        %v3588 = vpack.c.b16 %v3576, %v3572
        %v3589 = vpack.c.b16 %v3577, %v3573
        %v3590 = vpack.c.b16 %v3578, %v3574
        %v3591 = vpack.c.b16 %v3583, %v3579
        %v3592 = vpack.c.b16 %v3584, %v3580
        %v3593 = vpack.c.b16 %v3585, %v3581
        %v3594 = vpack.c.b16 %v3586, %v3582
        %3603 = vmatprep.subr.bf16.mxu0 %v3588
        %3604 = vmatpush1.bf16.xpose.msra.mxu0 %v3587
        %3605 = vmatprep.subr.bf16.mxu0 %v3592
        %3606 = vmatpush1.bf16.xpose.msra.mxu0 %v3591
        %3607 = vmatprep.subr.bf16.mxu0 0
        %3608 = vmatpush1.bf16.xpose.msra.mxu0 0
        %3609 = vmatprep.subr.bf16.mxu0 0
        %3610 = vmatpush1.bf16.xpose.msra.mxu0 0
        %3611 = vmatprep.subr.bf16.mxu0 0
        %3612 = vmatpush1.bf16.xpose.msra.mxu0 0
        %3613 = vmatprep.subr.bf16.mxu0 0
        %3614 = vmatpush1.bf16.xpose.msra.mxu0 0
        %3615 = vmatprep.subr.bf16.mxu0 0
        %3616 = vmatpush1.bf16.xpose.msra.mxu0 0
        %3617 = vmatprep.subr.bf16.mxu0 0
        %3618 = vmatpush1.bf16.xpose.msra.mxu0 0
        %3619 = vmatprep.subr.bf16.mxu0 0
        %3620 = vmatpush1.bf16.xpose.msra.mxu0 0
        %3621 = vmatprep.subr.bf16.mxu0 0
        %3622 = vmatpush1.bf16.xpose.msra.mxu0 0
        %3623 = vmatprep.subr.bf16.mxu0 0
        %3624 = vmatpush1.bf16.xpose.msra.mxu0 0
        %3625 = vmatprep.subr.bf16.mxu0 0
        %3626 = vmatpush1.bf16.xpose.msra.mxu0 0
        %3627 = vmatprep.subr.bf16.mxu0 0
        %3628 = vmatpush1.bf16.xpose.msra.mxu0 0
        %3629 = vmatprep.subr.bf16.mxu0 0
        %3630 = vmatpush1.bf16.xpose.msra.mxu0 0
        %3631 = vmatprep.subr.bf16.mxu0 0
        %3632 = vmatpush1.bf16.xpose.msra.mxu0 0
        %3633 = vmatprep.subr.bf16.mxu0 0
        %3634 = vmatpush1.bf16.xpose.msra.mxu0 0
        %3635 = vmatprep.mubr.bf16.mxu0 %v3552
        %3636 = vmatmul.mubr.bf16.gmra.mrb[0].mxu0 %v3551
        %v3637 = vpop.f32.mrb[0].mxu0
        %v3638 = vadd.f32 0.0, %v3637
        %v3639 = vpop.f32.mrb[0].mxu0
        %v3640 = vpop.f32.mrb[0].mxu0
        %v3641 = vadd.f32 0.0, %v3640
        %v3642 = vpop.f32.mrb[0].mxu0
        %3643 = vdwg.mxu0
        %3644 = vmatprep.subr.bf16.mxu0 %v3590
        %3645 = vmatpush1.bf16.xpose.msra.mxu0 %v3589
        %3646 = vmatprep.subr.bf16.mxu0 %v3594
        %3647 = vmatpush1.bf16.xpose.msra.mxu0 %v3593
        %3648 = vmatprep.subr.bf16.mxu0 0
        %3649 = vmatpush1.bf16.xpose.msra.mxu0 0
        %3650 = vmatprep.subr.bf16.mxu0 0
        %3651 = vmatpush1.bf16.xpose.msra.mxu0 0
        %3652 = vmatprep.subr.bf16.mxu0 0
        %3653 = vmatpush1.bf16.xpose.msra.mxu0 0
        %3654 = vmatprep.subr.bf16.mxu0 0
        %3655 = vmatpush1.bf16.xpose.msra.mxu0 0
        %3656 = vmatprep.subr.bf16.mxu0 0
        %3657 = vmatpush1.bf16.xpose.msra.mxu0 0
        %3658 = vmatprep.subr.bf16.mxu0 0
        %3659 = vmatpush1.bf16.xpose.msra.mxu0 0
        %3660 = vmatprep.subr.bf16.mxu0 0
        %3661 = vmatpush1.bf16.xpose.msra.mxu0 0
        %3662 = vmatprep.subr.bf16.mxu0 0
        %3663 = vmatpush1.bf16.xpose.msra.mxu0 0
        %3664 = vmatprep.subr.bf16.mxu0 0
        %3665 = vmatpush1.bf16.xpose.msra.mxu0 0
        %3666 = vmatprep.subr.bf16.mxu0 0
        %3667 = vmatpush1.bf16.xpose.msra.mxu0 0
        %3668 = vmatprep.subr.bf16.mxu0 0
        %3669 = vmatpush1.bf16.xpose.msra.mxu0 0
        %3670 = vmatprep.subr.bf16.mxu0 0
        %3671 = vmatpush1.bf16.xpose.msra.mxu0 0
        %3672 = vmatprep.subr.bf16.mxu0 0
        %3673 = vmatpush1.bf16.xpose.msra.mxu0 0
        %3674 = vmatprep.subr.bf16.mxu0 0
        %3675 = vmatpush1.bf16.xpose.msra.mxu0 0
        %3676 = vmatprep.mubr.bf16.mxu0 %v3554
        %3677 = vmatmul.mubr.bf16.gmra.mrb[0].mxu0 %v3553
        %v3678 = vpop.f32.mrb[0].mxu0
        %v3679 = vadd.f32 %v3638, %v3678
        %v3680 = vpop.f32.mrb[0].mxu0
        %v3681 = vpop.f32.mrb[0].mxu0
        %v3682 = vadd.f32 %v3641, %v3681
        %v3683 = vpop.f32.mrb[0].mxu0
        %3684 = vdwg.mxu0
        %v3685 = vadd.f32 %v3385, %v3679
        %v3686 = vadd.f32 %v3386, %v3682
        %v3687 = vld [vmem:[%s11] sm:$0x1]
        %v3689 = vlaneseq
        %v3690 = vshrl.u32 %v3689, 7
        %v3691 = vsub.s32 0, %v3690
        %v3692 = vrot.slane %v3687, %v3691
        %v3694 = vadd.f32 %v3685, %v3692
        %v3695 = vadd.f32 %v3686, %v3692
        %v3696 = vadd.f32 %v2485, %v3694
        %v3697 = vadd.f32 %v2486, %v3695
        %v3698 = vld [vmem:[%s12] sm:$0x1]
        %v3699 = vld [vmem:[%s13] sm:$0x1]
        %v3700 = vsel %vm579, %v3696, 0.0
        %3701 = vadd.xlane.f32.xlu0 %v3700
        %v3702 = vpop.xlane.xlu0 %3701
        %v3703 = vsel %vm579, %v3697, 0.0
        %3704 = vadd.xlane.f32.xlu0 %v3703
        %v3705 = vpop.xlane.xlu0 %3704
        %v3706 = vmul.f32 %v3702, %v2450
        %v3707 = vmul.f32 %v3705, %v2450
        %v3708 = vsub.f32 %v3696, %v3706
        %v3709 = vsub.f32 %v3697, %v3707
        %v3710 = vmul.f32 %v3708, %v3708
        %v3711 = vmul.f32 %v3709, %v3709
        %v3712 = vsel %vm579, %v3710, 0.0
        %3713 = vadd.xlane.f32.xlu0 %v3712
        %v3714 = vpop.xlane.xlu0 %3713
        %v3715 = vsel %vm579, %v3711, 0.0
        %3716 = vadd.xlane.f32.xlu0 %v3715
        %v3717 = vpop.xlane.xlu0 %3716
        %v3718 = vmul.f32 %v3714, %v2450
        %v3719 = vmul.f32 %v3717, %v2450
        %v3720 = vadd.f32 %v3718, 1e-05
        %v3721 = vadd.f32 %v3719, 1e-05
        %v3722 = vrsqrt.pop %v3720
        %v3723 = vrsqrt.pop %v3721
        %v3724 = vmul.f32 %v3708, %v3722
        %v3725 = vmul.f32 %v3709, %v3723
        %v3727 = vlaneseq
        %v3728 = vshrl.u32 %v3727, 7
        %v3729 = vsub.s32 0, %v3728
        %v3730 = vrot.slane %v3698, %v3729
        %v3732 = vmul.f32 %v3724, %v3730
        %v3733 = vmul.f32 %v3725, %v3730
        %v3735 = vlaneseq
        %v3736 = vshrl.u32 %v3735, 7
        %v3737 = vsub.s32 0, %v3736
        %v3738 = vrot.slane %v3699, %v3737
        %v3740 = vadd.f32 %v3732, %v3738
        %v3741 = vadd.f32 %v3733, %v3738
        %s3742 = scalar_lea.vmem %s2, 32
        %v3743 = vld [vmem:[%s3742] sm:$0xff]
        %v3744 = vld [vmem:[%s3742 + $0x8] sm:$0xff]
        %v3745 = vld [vmem:[%s3742 + $0x10] sm:$0xff]
        %v3746 = vld [vmem:[%s3742 + $0x18] sm:$0xff]
        %s3747 = scalar_lea.vmem %s3, 1
        %v3748 = vld [vmem:[%s3747] sm:$0x1]
        %v3750 = vlaneseq
        %v3751 = vshrl.u32 %v3750, 7
        %v3752 = vsub.s32 0, %v3751
        %v3753 = vrot.slane %v3748, %v3752
        %v3756 = vsel %vm579, %v3740, 0
        %v3759 = vsel %vm579, %v3741, 0
        %3761 = vmatprep.subr.mxu0 0.0
        %3762 = vmatpush1.msra.mxu0 %v3743
        %3763 = vmatprep.subr.mxu0 0.0
        %3764 = vmatpush1.msra.mxu0 %v3744
        %3765 = vmatprep.subr.mxu0 0.0
        %3766 = vmatpush1.msra.mxu0 %v3745
        %3767 = vmatprep.subr.mxu0 0.0
        %3768 = vmatpush1.msra.mxu0 %v3746
        %3769 = vmatprep.subr.mxu0 0.0
        %3770 = vmatpush1.msra.mxu0 0.0
        %3771 = vmatprep.subr.mxu0 0.0
        %3772 = vmatpush1.msra.mxu0 0.0
        %3773 = vmatprep.subr.mxu0 0.0
        %3774 = vmatpush1.msra.mxu0 0.0
        %3775 = vmatprep.subr.mxu0 0.0
        %3776 = vmatpush1.msra.mxu0 0.0
        %3777 = vmatprep.subr.mxu0 0.0
        %3778 = vmatpush1.msra.mxu0 0.0
        %3779 = vmatprep.subr.mxu0 0.0
        %3780 = vmatpush1.msra.mxu0 0.0
        %3781 = vmatprep.subr.mxu0 0.0
        %3782 = vmatpush1.msra.mxu0 0.0
        %3783 = vmatprep.subr.mxu0 0.0
        %3784 = vmatpush1.msra.mxu0 0.0
        %3785 = vmatprep.subr.mxu0 0.0
        %3786 = vmatpush1.msra.mxu0 0.0
        %3787 = vmatprep.subr.mxu0 0.0
        %3788 = vmatpush1.msra.mxu0 0.0
        %3789 = vmatprep.subr.mxu0 0.0
        %3790 = vmatpush1.msra.mxu0 0.0
        %3791 = vmatprep.subr.mxu0 0.0
        %3792 = vmatpush1.msra.mxu0 0.0
        %3793 = vmatprep.subr.mxu0 0.0
        %3794 = vmatpush1.msra.mxu0 0.0
        %3795 = vmatprep.subr.mxu0 0.0
        %3796 = vmatpush1.msra.mxu0 0.0
        %3797 = vmatprep.subr.mxu0 0.0
        %3798 = vmatpush1.msra.mxu0 0.0
        %3799 = vmatprep.subr.mxu0 0.0
        %3800 = vmatpush1.msra.mxu0 0.0
        %3801 = vmatprep.subr.mxu0 0.0
        %3802 = vmatpush1.msra.mxu0 0.0
        %3803 = vmatprep.subr.mxu0 0.0
        %3804 = vmatpush1.msra.mxu0 0.0
        %3805 = vmatprep.subr.mxu0 0.0
        %3806 = vmatpush1.msra.mxu0 0.0
        %3807 = vmatprep.subr.mxu0 0.0
        %3808 = vmatpush1.msra.mxu0 0.0
        %3809 = vmatprep.subr.mxu0 0.0
        %3810 = vmatpush1.msra.mxu0 0.0
        %3811 = vmatprep.subr.mxu0 0.0
        %3812 = vmatpush1.msra.mxu0 0.0
        %3813 = vmatprep.subr.mxu0 0.0
        %3814 = vmatpush1.msra.mxu0 0.0
        %3815 = vmatprep.subr.mxu0 0.0
        %3816 = vmatpush1.msra.mxu0 0.0
        %3817 = vmatprep.subr.mxu0 0.0
        %3818 = vmatpush1.msra.mxu0 0.0
        %3819 = vmatprep.subr.mxu0 0.0
        %3820 = vmatpush1.msra.mxu0 0.0
        %3821 = vmatprep.subr.mxu0 0.0
        %3822 = vmatpush1.msra.mxu0 0.0
        %3823 = vmatprep.subr.mxu0 0.0
        %3824 = vmatpush1.msra.mxu0 0.0
        %3825 = vmatprep.mubr.f32.mxu0 0.0
        %3826 = vmatmul.mubr.f32.gmra.mrb[0].mxu0 %v3756
        %v3827 = vpop.f32.mrb[0].mxu0
        %v3828 = vadd.f32 %v3753, %v3827
        %v3829 = vpop.f32.mrb[0].mxu0
        %3830 = vmatprep.mubr.f32.mxu0 0.0
        %3831 = vmatmul.mubr.f32.gmra.mrb[0].mxu0 %v3759
        %v3832 = vpop.f32.mrb[0].mxu0
        %v3833 = vadd.f32 %v3753, %v3832
        %v3834 = vpop.f32.mrb[0].mxu0
        %3835 = vdwg.mxu0
        %3838 = vrot.lane.b32.xlu0 %v3828, 96
        %v3839 = vpop.permute.xlu0 %3838
        %3840 = vrot.lane.b32.xlu0 %v3833, 96
        %v3841 = vpop.permute.xlu0 %3840
        %v3842 = vsel %vm673, %v3828, 0
        %v3844 = vsel %vm673, %v3833, 0
        %v3846 = vsel %vm673, %v3839, 0
        %v3848 = vsel %vm673, %v3841, 0
        %3850 = vmatprep.subr.mxu0 0.0
        %3851 = vmatpush1.xpose.msra.mxu0 %v3846
        %3852 = vmatprep.subr.mxu0 0.0
        %3853 = vmatpush1.xpose.msra.mxu0 %v3848
        %3854 = vmatprep.subr.mxu0 0.0
        %3855 = vmatpush1.xpose.msra.mxu0 0.0
        %3856 = vmatprep.subr.mxu0 0.0
        %3857 = vmatpush1.xpose.msra.mxu0 0.0
        %3858 = vmatprep.subr.mxu0 0.0
        %3859 = vmatpush1.xpose.msra.mxu0 0.0
        %3860 = vmatprep.subr.mxu0 0.0
        %3861 = vmatpush1.xpose.msra.mxu0 0.0
        %3862 = vmatprep.subr.mxu0 0.0
        %3863 = vmatpush1.xpose.msra.mxu0 0.0
        %3864 = vmatprep.subr.mxu0 0.0
        %3865 = vmatpush1.xpose.msra.mxu0 0.0
        %3866 = vmatprep.subr.mxu0 0.0
        %3867 = vmatpush1.xpose.msra.mxu0 0.0
        %3868 = vmatprep.subr.mxu0 0.0
        %3869 = vmatpush1.xpose.msra.mxu0 0.0
        %3870 = vmatprep.subr.mxu0 0.0
        %3871 = vmatpush1.xpose.msra.mxu0 0.0
        %3872 = vmatprep.subr.mxu0 0.0
        %3873 = vmatpush1.xpose.msra.mxu0 0.0
        %3874 = vmatprep.subr.mxu0 0.0
        %3875 = vmatpush1.xpose.msra.mxu0 0.0
        %3876 = vmatprep.subr.mxu0 0.0
        %3877 = vmatpush1.xpose.msra.mxu0 0.0
        %3878 = vmatprep.subr.mxu0 0.0
        %3879 = vmatpush1.xpose.msra.mxu0 0.0
        %3880 = vmatprep.subr.mxu0 0.0
        %3881 = vmatpush1.xpose.msra.mxu0 0.0
        %3882 = vmatprep.subr.mxu0 0.0
        %3883 = vmatpush1.xpose.msra.mxu0 0.0
        %3884 = vmatprep.subr.mxu0 0.0
        %3885 = vmatpush1.xpose.msra.mxu0 0.0
        %3886 = vmatprep.subr.mxu0 0.0
        %3887 = vmatpush1.xpose.msra.mxu0 0.0
        %3888 = vmatprep.subr.mxu0 0.0
        %3889 = vmatpush1.xpose.msra.mxu0 0.0
        %3890 = vmatprep.subr.mxu0 0.0
        %3891 = vmatpush1.xpose.msra.mxu0 0.0
        %3892 = vmatprep.subr.mxu0 0.0
        %3893 = vmatpush1.xpose.msra.mxu0 0.0
        %3894 = vmatprep.subr.mxu0 0.0
        %3895 = vmatpush1.xpose.msra.mxu0 0.0
        %3896 = vmatprep.subr.mxu0 0.0
        %3897 = vmatpush1.xpose.msra.mxu0 0.0
        %3898 = vmatprep.subr.mxu0 0.0
        %3899 = vmatpush1.xpose.msra.mxu0 0.0
        %3900 = vmatprep.subr.mxu0 0.0
        %3901 = vmatpush1.xpose.msra.mxu0 0.0
        %3902 = vmatprep.subr.mxu0 0.0
        %3903 = vmatpush1.xpose.msra.mxu0 0.0
        %3904 = vmatprep.subr.mxu0 0.0
        %3905 = vmatpush1.xpose.msra.mxu0 0.0
        %3906 = vmatprep.subr.mxu0 0.0
        %3907 = vmatpush1.xpose.msra.mxu0 0.0
        %3908 = vmatprep.subr.mxu0 0.0
        %3909 = vmatpush1.xpose.msra.mxu0 0.0
        %3910 = vmatprep.subr.mxu0 0.0
        %3911 = vmatpush1.xpose.msra.mxu0 0.0
        %3912 = vmatprep.subr.mxu0 0.0
        %3913 = vmatpush1.xpose.msra.mxu0 0.0
        %3914 = vmatprep.mubr.f32.mxu0 0.0
        %3915 = vmatmul.mubr.f32.gmra.mrb[0].mxu0 %v3842
        %v3916 = vpop.f32.mrb[0].mxu0
        %v3917 = vadd.f32 %v665, %v3916
        %v3918 = vpop.f32.mrb[0].mxu0
        %3919 = vmatprep.mubr.f32.mxu0 0.0
        %3920 = vmatmul.mubr.f32.gmra.mrb[0].mxu0 %v3844
        %v3921 = vpop.f32.mrb[0].mxu0
        %v3922 = vadd.f32 %v665, %v3921
        %v3923 = vpop.f32.mrb[0].mxu0
        %3924 = vdwg.mxu0
        %v3925 = vsel %vm757, %v3917, -inf
        %3926 = vmax.xlane.f32.xlu0 %v3925
        %v3927 = vpop.xlane.xlu0 %3926
        %v3928 = vsel %vm757, %v3922, -inf
        %3929 = vmax.xlane.f32.xlu0 %v3928
        %v3930 = vpop.xlane.xlu0 %3929
        %v3931 = vsub.f32 %v3917, %v3927
        %v3932 = vsub.f32 %v3922, %v3930
        %v3933 = vmul.f32 %v3931, 1.442695
        %v3934 = vpow.pop %v3933
        %v3935 = vmul.f32 %v3932, 1.442695
        %v3936 = vpow.pop %v3935
        %v3937 = vsel %vm757, %v3934, 0.0
        %3938 = vadd.xlane.f32.xlu0 %v3937
        %v3939 = vpop.xlane.xlu0 %3938
        %v3940 = vsel %vm757, %v3936, 0.0
        %3941 = vadd.xlane.f32.xlu0 %v3940
        %v3942 = vpop.xlane.xlu0 %3941
        %v3943 = vrcp.pop %v3939
        %v3944 = vrcp.pop %v3942
        %v3945 = vmul.f32 %v3934, %v3943
        %v3946 = vmul.f32 %v3936, %v3944
        %3947 = vrot.lane.b32.xlu0 %v3828, 64
        %v3948 = vpop.permute.xlu0 %3947
        %3949 = vrot.lane.b32.xlu0 %v3833, 64
        %v3950 = vpop.permute.xlu0 %3949
        %v3954 = vsel %vm757, %v3945, 0
        %v3957 = vsel %vm757, %v3946, 0
        %3959 = vmatprep.subr.mxu0 0.0
        %3960 = vmatpush1.msra.mxu0 %v3948
        %3961 = vmatprep.subr.mxu0 0.0
        %3962 = vmatpush1.msra.mxu0 %v3950
        %3963 = vmatprep.subr.mxu0 0.0
        %3964 = vmatpush1.msra.mxu0 0.0
        %3965 = vmatprep.subr.mxu0 0.0
        %3966 = vmatpush1.msra.mxu0 0.0
        %3967 = vmatprep.subr.mxu0 0.0
        %3968 = vmatpush1.msra.mxu0 0.0
        %3969 = vmatprep.subr.mxu0 0.0
        %3970 = vmatpush1.msra.mxu0 0.0
        %3971 = vmatprep.subr.mxu0 0.0
        %3972 = vmatpush1.msra.mxu0 0.0
        %3973 = vmatprep.subr.mxu0 0.0
        %3974 = vmatpush1.msra.mxu0 0.0
        %3975 = vmatprep.subr.mxu0 0.0
        %3976 = vmatpush1.msra.mxu0 0.0
        %3977 = vmatprep.subr.mxu0 0.0
        %3978 = vmatpush1.msra.mxu0 0.0
        %3979 = vmatprep.subr.mxu0 0.0
        %3980 = vmatpush1.msra.mxu0 0.0
        %3981 = vmatprep.subr.mxu0 0.0
        %3982 = vmatpush1.msra.mxu0 0.0
        %3983 = vmatprep.subr.mxu0 0.0
        %3984 = vmatpush1.msra.mxu0 0.0
        %3985 = vmatprep.subr.mxu0 0.0
        %3986 = vmatpush1.msra.mxu0 0.0
        %3987 = vmatprep.subr.mxu0 0.0
        %3988 = vmatpush1.msra.mxu0 0.0
        %3989 = vmatprep.subr.mxu0 0.0
        %3990 = vmatpush1.msra.mxu0 0.0
        %3991 = vmatprep.subr.mxu0 0.0
        %3992 = vmatpush1.msra.mxu0 0.0
        %3993 = vmatprep.subr.mxu0 0.0
        %3994 = vmatpush1.msra.mxu0 0.0
        %3995 = vmatprep.subr.mxu0 0.0
        %3996 = vmatpush1.msra.mxu0 0.0
        %3997 = vmatprep.subr.mxu0 0.0
        %3998 = vmatpush1.msra.mxu0 0.0
        %3999 = vmatprep.subr.mxu0 0.0
        %4000 = vmatpush1.msra.mxu0 0.0
        %4001 = vmatprep.subr.mxu0 0.0
        %4002 = vmatpush1.msra.mxu0 0.0
        %4003 = vmatprep.subr.mxu0 0.0
        %4004 = vmatpush1.msra.mxu0 0.0
        %4005 = vmatprep.subr.mxu0 0.0
        %4006 = vmatpush1.msra.mxu0 0.0
        %4007 = vmatprep.subr.mxu0 0.0
        %4008 = vmatpush1.msra.mxu0 0.0
        %4009 = vmatprep.subr.mxu0 0.0
        %4010 = vmatpush1.msra.mxu0 0.0
        %4011 = vmatprep.subr.mxu0 0.0
        %4012 = vmatpush1.msra.mxu0 0.0
        %4013 = vmatprep.subr.mxu0 0.0
        %4014 = vmatpush1.msra.mxu0 0.0
        %4015 = vmatprep.subr.mxu0 0.0
        %4016 = vmatpush1.msra.mxu0 0.0
        %4017 = vmatprep.subr.mxu0 0.0
        %4018 = vmatpush1.msra.mxu0 0.0
        %4019 = vmatprep.subr.mxu0 0.0
        %4020 = vmatpush1.msra.mxu0 0.0
        %4021 = vmatprep.subr.mxu0 0.0
        %4022 = vmatpush1.msra.mxu0 0.0
        %4023 = vmatprep.mubr.f32.mxu0 0.0
        %4024 = vmatmul.mubr.f32.gmra.mrb[0].mxu0 %v3954
        %v4025 = vpop.f32.mrb[0].mxu0
        %v4026 = vadd.f32 0.0, %v4025
        %v4027 = vpop.f32.mrb[0].mxu0
        %4028 = vmatprep.mubr.f32.mxu0 0.0
        %4029 = vmatmul.mubr.f32.gmra.mrb[0].mxu0 %v3957
        %v4030 = vpop.f32.mrb[0].mxu0
        %v4031 = vadd.f32 0.0, %v4030
        %v4032 = vpop.f32.mrb[0].mxu0
        %4033 = vdwg.mxu0
        %4034 = vst.msk [vmem:[#allocation2] sm:$0xff] %vm673, %v4026
        %4035 = vst.msk [vmem:[#allocation2 + $0x8] sm:$0xff] %vm673, %v4031
        %4036 = vrot.lane.b32.xlu0 %v3828, 124
        %v4037 = vpop.permute.xlu0 %4036
        %4038 = vrot.lane.b32.xlu0 %v3833, 124
        %v4039 = vpop.permute.xlu0 %4038
        %4040 = vrot.lane.b32.xlu0 %v3828, 92
        %v4041 = vpop.permute.xlu0 %4040
        %4042 = vrot.lane.b32.xlu0 %v3833, 92
        %v4043 = vpop.permute.xlu0 %4042
        %v4044 = vsel %vm673, %v4037, 0
        %v4046 = vsel %vm673, %v4039, 0
        %v4048 = vsel %vm673, %v4041, 0
        %v4050 = vsel %vm673, %v4043, 0
        %4052 = vmatprep.subr.mxu0 0.0
        %4053 = vmatpush1.xpose.msra.mxu0 %v4048
        %4054 = vmatprep.subr.mxu0 0.0
        %4055 = vmatpush1.xpose.msra.mxu0 %v4050
        %4056 = vmatprep.subr.mxu0 0.0
        %4057 = vmatpush1.xpose.msra.mxu0 0.0
        %4058 = vmatprep.subr.mxu0 0.0
        %4059 = vmatpush1.xpose.msra.mxu0 0.0
        %4060 = vmatprep.subr.mxu0 0.0
        %4061 = vmatpush1.xpose.msra.mxu0 0.0
        %4062 = vmatprep.subr.mxu0 0.0
        %4063 = vmatpush1.xpose.msra.mxu0 0.0
        %4064 = vmatprep.subr.mxu0 0.0
        %4065 = vmatpush1.xpose.msra.mxu0 0.0
        %4066 = vmatprep.subr.mxu0 0.0
        %4067 = vmatpush1.xpose.msra.mxu0 0.0
        %4068 = vmatprep.subr.mxu0 0.0
        %4069 = vmatpush1.xpose.msra.mxu0 0.0
        %4070 = vmatprep.subr.mxu0 0.0
        %4071 = vmatpush1.xpose.msra.mxu0 0.0
        %4072 = vmatprep.subr.mxu0 0.0
        %4073 = vmatpush1.xpose.msra.mxu0 0.0
        %4074 = vmatprep.subr.mxu0 0.0
        %4075 = vmatpush1.xpose.msra.mxu0 0.0
        %4076 = vmatprep.subr.mxu0 0.0
        %4077 = vmatpush1.xpose.msra.mxu0 0.0
        %4078 = vmatprep.subr.mxu0 0.0
        %4079 = vmatpush1.xpose.msra.mxu0 0.0
        %4080 = vmatprep.subr.mxu0 0.0
        %4081 = vmatpush1.xpose.msra.mxu0 0.0
        %4082 = vmatprep.subr.mxu0 0.0
        %4083 = vmatpush1.xpose.msra.mxu0 0.0
        %4084 = vmatprep.subr.mxu0 0.0
        %4085 = vmatpush1.xpose.msra.mxu0 0.0
        %4086 = vmatprep.subr.mxu0 0.0
        %4087 = vmatpush1.xpose.msra.mxu0 0.0
        %4088 = vmatprep.subr.mxu0 0.0
        %4089 = vmatpush1.xpose.msra.mxu0 0.0
        %4090 = vmatprep.subr.mxu0 0.0
        %4091 = vmatpush1.xpose.msra.mxu0 0.0
        %4092 = vmatprep.subr.mxu0 0.0
        %4093 = vmatpush1.xpose.msra.mxu0 0.0
        %4094 = vmatprep.subr.mxu0 0.0
        %4095 = vmatpush1.xpose.msra.mxu0 0.0
        %4096 = vmatprep.subr.mxu0 0.0
        %4097 = vmatpush1.xpose.msra.mxu0 0.0
        %4098 = vmatprep.subr.mxu0 0.0
        %4099 = vmatpush1.xpose.msra.mxu0 0.0
        %4100 = vmatprep.subr.mxu0 0.0
        %4101 = vmatpush1.xpose.msra.mxu0 0.0
        %4102 = vmatprep.subr.mxu0 0.0
        %4103 = vmatpush1.xpose.msra.mxu0 0.0
        %4104 = vmatprep.subr.mxu0 0.0
        %4105 = vmatpush1.xpose.msra.mxu0 0.0
        %4106 = vmatprep.subr.mxu0 0.0
        %4107 = vmatpush1.xpose.msra.mxu0 0.0
        %4108 = vmatprep.subr.mxu0 0.0
        %4109 = vmatpush1.xpose.msra.mxu0 0.0
        %4110 = vmatprep.subr.mxu0 0.0
        %4111 = vmatpush1.xpose.msra.mxu0 0.0
        %4112 = vmatprep.subr.mxu0 0.0
        %4113 = vmatpush1.xpose.msra.mxu0 0.0
        %4114 = vmatprep.subr.mxu0 0.0
        %4115 = vmatpush1.xpose.msra.mxu0 0.0
        %4116 = vmatprep.mubr.f32.mxu0 0.0
        %4117 = vmatmul.mubr.f32.gmra.mrb[0].mxu0 %v4044
        %v4118 = vpop.f32.mrb[0].mxu0
        %v4119 = vadd.f32 %v665, %v4118
        %v4120 = vpop.f32.mrb[0].mxu0
        %4121 = vmatprep.mubr.f32.mxu0 0.0
        %4122 = vmatmul.mubr.f32.gmra.mrb[0].mxu0 %v4046
        %v4123 = vpop.f32.mrb[0].mxu0
        %v4124 = vadd.f32 %v665, %v4123
        %v4125 = vpop.f32.mrb[0].mxu0
        %4126 = vdwg.mxu0
        %v4127 = vsel %vm757, %v4119, -inf
        %4128 = vmax.xlane.f32.xlu0 %v4127
        %v4129 = vpop.xlane.xlu0 %4128
        %v4130 = vsel %vm757, %v4124, -inf
        %4131 = vmax.xlane.f32.xlu0 %v4130
        %v4132 = vpop.xlane.xlu0 %4131
        %v4133 = vsub.f32 %v4119, %v4129
        %v4134 = vsub.f32 %v4124, %v4132
        %v4135 = vmul.f32 %v4133, 1.442695
        %v4136 = vpow.pop %v4135
        %v4137 = vmul.f32 %v4134, 1.442695
        %v4138 = vpow.pop %v4137
        %v4139 = vsel %vm757, %v4136, 0.0
        %4140 = vadd.xlane.f32.xlu0 %v4139
        %v4141 = vpop.xlane.xlu0 %4140
        %v4142 = vsel %vm757, %v4138, 0.0
        %4143 = vadd.xlane.f32.xlu0 %v4142
        %v4144 = vpop.xlane.xlu0 %4143
        %v4145 = vrcp.pop %v4141
        %v4146 = vrcp.pop %v4144
        %v4147 = vmul.f32 %v4136, %v4145
        %v4148 = vmul.f32 %v4138, %v4146
        %4149 = vrot.lane.b32.xlu0 %v3828, 60
        %v4150 = vpop.permute.xlu0 %4149
        %4151 = vrot.lane.b32.xlu0 %v3833, 60
        %v4152 = vpop.permute.xlu0 %4151
        %v4156 = vsel %vm757, %v4147, 0
        %v4159 = vsel %vm757, %v4148, 0
        %4161 = vmatprep.subr.mxu0 0.0
        %4162 = vmatpush1.msra.mxu0 %v4150
        %4163 = vmatprep.subr.mxu0 0.0
        %4164 = vmatpush1.msra.mxu0 %v4152
        %4165 = vmatprep.subr.mxu0 0.0
        %4166 = vmatpush1.msra.mxu0 0.0
        %4167 = vmatprep.subr.mxu0 0.0
        %4168 = vmatpush1.msra.mxu0 0.0
        %4169 = vmatprep.subr.mxu0 0.0
        %4170 = vmatpush1.msra.mxu0 0.0
        %4171 = vmatprep.subr.mxu0 0.0
        %4172 = vmatpush1.msra.mxu0 0.0
        %4173 = vmatprep.subr.mxu0 0.0
        %4174 = vmatpush1.msra.mxu0 0.0
        %4175 = vmatprep.subr.mxu0 0.0
        %4176 = vmatpush1.msra.mxu0 0.0
        %4177 = vmatprep.subr.mxu0 0.0
        %4178 = vmatpush1.msra.mxu0 0.0
        %4179 = vmatprep.subr.mxu0 0.0
        %4180 = vmatpush1.msra.mxu0 0.0
        %4181 = vmatprep.subr.mxu0 0.0
        %4182 = vmatpush1.msra.mxu0 0.0
        %4183 = vmatprep.subr.mxu0 0.0
        %4184 = vmatpush1.msra.mxu0 0.0
        %4185 = vmatprep.subr.mxu0 0.0
        %4186 = vmatpush1.msra.mxu0 0.0
        %4187 = vmatprep.subr.mxu0 0.0
        %4188 = vmatpush1.msra.mxu0 0.0
        %4189 = vmatprep.subr.mxu0 0.0
        %4190 = vmatpush1.msra.mxu0 0.0
        %4191 = vmatprep.subr.mxu0 0.0
        %4192 = vmatpush1.msra.mxu0 0.0
        %4193 = vmatprep.subr.mxu0 0.0
        %4194 = vmatpush1.msra.mxu0 0.0
        %4195 = vmatprep.subr.mxu0 0.0
        %4196 = vmatpush1.msra.mxu0 0.0
        %4197 = vmatprep.subr.mxu0 0.0
        %4198 = vmatpush1.msra.mxu0 0.0
        %4199 = vmatprep.subr.mxu0 0.0
        %4200 = vmatpush1.msra.mxu0 0.0
        %4201 = vmatprep.subr.mxu0 0.0
        %4202 = vmatpush1.msra.mxu0 0.0
        %4203 = vmatprep.subr.mxu0 0.0
        %4204 = vmatpush1.msra.mxu0 0.0
        %4205 = vmatprep.subr.mxu0 0.0
        %4206 = vmatpush1.msra.mxu0 0.0
        %4207 = vmatprep.subr.mxu0 0.0
        %4208 = vmatpush1.msra.mxu0 0.0
        %4209 = vmatprep.subr.mxu0 0.0
        %4210 = vmatpush1.msra.mxu0 0.0
        %4211 = vmatprep.subr.mxu0 0.0
        %4212 = vmatpush1.msra.mxu0 0.0
        %4213 = vmatprep.subr.mxu0 0.0
        %4214 = vmatpush1.msra.mxu0 0.0
        %4215 = vmatprep.subr.mxu0 0.0
        %4216 = vmatpush1.msra.mxu0 0.0
        %4217 = vmatprep.subr.mxu0 0.0
        %4218 = vmatpush1.msra.mxu0 0.0
        %4219 = vmatprep.subr.mxu0 0.0
        %4220 = vmatpush1.msra.mxu0 0.0
        %4221 = vmatprep.subr.mxu0 0.0
        %4222 = vmatpush1.msra.mxu0 0.0
        %4223 = vmatprep.subr.mxu0 0.0
        %4224 = vmatpush1.msra.mxu0 0.0
        %4225 = vmatprep.mubr.f32.mxu0 0.0
        %4226 = vmatmul.mubr.f32.gmra.mrb[0].mxu0 %v4156
        %v4227 = vpop.f32.mrb[0].mxu0
        %v4228 = vadd.f32 0.0, %v4227
        %v4229 = vpop.f32.mrb[0].mxu0
        %4230 = vmatprep.mubr.f32.mxu0 0.0
        %4231 = vmatmul.mubr.f32.gmra.mrb[0].mxu0 %v4159
        %v4232 = vpop.f32.mrb[0].mxu0
        %v4233 = vadd.f32 0.0, %v4232
        %v4234 = vpop.f32.mrb[0].mxu0
        %4235 = vdwg.mxu0
        %4238 = vrot.lane.b32.xlu0 %v4228, 4
        %v4239 = vpop.permute.xlu0 %4238
        %4240 = vrot.lane.b32.xlu0 %v4233, 4
        %v4241 = vpop.permute.xlu0 %4240
        %4244 = vst.msk [vmem:[#allocation2] sm:$0xff] %vm1077, %v4239
        %4245 = vst.msk [vmem:[#allocation2 + $0x8] sm:$0xff] %vm1077, %v4241
        %4246 = vrot.lane.b32.xlu0 %v3828, 120
        %v4247 = vpop.permute.xlu0 %4246
        %4248 = vrot.lane.b32.xlu0 %v3833, 120
        %v4249 = vpop.permute.xlu0 %4248
        %4250 = vrot.lane.b32.xlu0 %v3828, 88
        %v4251 = vpop.permute.xlu0 %4250
        %4252 = vrot.lane.b32.xlu0 %v3833, 88
        %v4253 = vpop.permute.xlu0 %4252
        %v4254 = vsel %vm673, %v4247, 0
        %v4256 = vsel %vm673, %v4249, 0
        %v4258 = vsel %vm673, %v4251, 0
        %v4260 = vsel %vm673, %v4253, 0
        %4262 = vmatprep.subr.mxu0 0.0
        %4263 = vmatpush1.xpose.msra.mxu0 %v4258
        %4264 = vmatprep.subr.mxu0 0.0
        %4265 = vmatpush1.xpose.msra.mxu0 %v4260
        %4266 = vmatprep.subr.mxu0 0.0
        %4267 = vmatpush1.xpose.msra.mxu0 0.0
        %4268 = vmatprep.subr.mxu0 0.0
        %4269 = vmatpush1.xpose.msra.mxu0 0.0
        %4270 = vmatprep.subr.mxu0 0.0
        %4271 = vmatpush1.xpose.msra.mxu0 0.0
        %4272 = vmatprep.subr.mxu0 0.0
        %4273 = vmatpush1.xpose.msra.mxu0 0.0
        %4274 = vmatprep.subr.mxu0 0.0
        %4275 = vmatpush1.xpose.msra.mxu0 0.0
        %4276 = vmatprep.subr.mxu0 0.0
        %4277 = vmatpush1.xpose.msra.mxu0 0.0
        %4278 = vmatprep.subr.mxu0 0.0
        %4279 = vmatpush1.xpose.msra.mxu0 0.0
        %4280 = vmatprep.subr.mxu0 0.0
        %4281 = vmatpush1.xpose.msra.mxu0 0.0
        %4282 = vmatprep.subr.mxu0 0.0
        %4283 = vmatpush1.xpose.msra.mxu0 0.0
        %4284 = vmatprep.subr.mxu0 0.0
        %4285 = vmatpush1.xpose.msra.mxu0 0.0
        %4286 = vmatprep.subr.mxu0 0.0
        %4287 = vmatpush1.xpose.msra.mxu0 0.0
        %4288 = vmatprep.subr.mxu0 0.0
        %4289 = vmatpush1.xpose.msra.mxu0 0.0
        %4290 = vmatprep.subr.mxu0 0.0
        %4291 = vmatpush1.xpose.msra.mxu0 0.0
        %4292 = vmatprep.subr.mxu0 0.0
        %4293 = vmatpush1.xpose.msra.mxu0 0.0
        %4294 = vmatprep.subr.mxu0 0.0
        %4295 = vmatpush1.xpose.msra.mxu0 0.0
        %4296 = vmatprep.subr.mxu0 0.0
        %4297 = vmatpush1.xpose.msra.mxu0 0.0
        %4298 = vmatprep.subr.mxu0 0.0
        %4299 = vmatpush1.xpose.msra.mxu0 0.0
        %4300 = vmatprep.subr.mxu0 0.0
        %4301 = vmatpush1.xpose.msra.mxu0 0.0
        %4302 = vmatprep.subr.mxu0 0.0
        %4303 = vmatpush1.xpose.msra.mxu0 0.0
        %4304 = vmatprep.subr.mxu0 0.0
        %4305 = vmatpush1.xpose.msra.mxu0 0.0
        %4306 = vmatprep.subr.mxu0 0.0
        %4307 = vmatpush1.xpose.msra.mxu0 0.0
        %4308 = vmatprep.subr.mxu0 0.0
        %4309 = vmatpush1.xpose.msra.mxu0 0.0
        %4310 = vmatprep.subr.mxu0 0.0
        %4311 = vmatpush1.xpose.msra.mxu0 0.0
        %4312 = vmatprep.subr.mxu0 0.0
        %4313 = vmatpush1.xpose.msra.mxu0 0.0
        %4314 = vmatprep.subr.mxu0 0.0
        %4315 = vmatpush1.xpose.msra.mxu0 0.0
        %4316 = vmatprep.subr.mxu0 0.0
        %4317 = vmatpush1.xpose.msra.mxu0 0.0
        %4318 = vmatprep.subr.mxu0 0.0
        %4319 = vmatpush1.xpose.msra.mxu0 0.0
        %4320 = vmatprep.subr.mxu0 0.0
        %4321 = vmatpush1.xpose.msra.mxu0 0.0
        %4322 = vmatprep.subr.mxu0 0.0
        %4323 = vmatpush1.xpose.msra.mxu0 0.0
        %4324 = vmatprep.subr.mxu0 0.0
        %4325 = vmatpush1.xpose.msra.mxu0 0.0
        %4326 = vmatprep.mubr.f32.mxu0 0.0
        %4327 = vmatmul.mubr.f32.gmra.mrb[0].mxu0 %v4254
        %v4328 = vpop.f32.mrb[0].mxu0
        %v4329 = vadd.f32 %v665, %v4328
        %v4330 = vpop.f32.mrb[0].mxu0
        %4331 = vmatprep.mubr.f32.mxu0 0.0
        %4332 = vmatmul.mubr.f32.gmra.mrb[0].mxu0 %v4256
        %v4333 = vpop.f32.mrb[0].mxu0
        %v4334 = vadd.f32 %v665, %v4333
        %v4335 = vpop.f32.mrb[0].mxu0
        %4336 = vdwg.mxu0
        %v4337 = vsel %vm757, %v4329, -inf
        %4338 = vmax.xlane.f32.xlu0 %v4337
        %v4339 = vpop.xlane.xlu0 %4338
        %v4340 = vsel %vm757, %v4334, -inf
        %4341 = vmax.xlane.f32.xlu0 %v4340
        %v4342 = vpop.xlane.xlu0 %4341
        %v4343 = vsub.f32 %v4329, %v4339
        %v4344 = vsub.f32 %v4334, %v4342
        %v4345 = vmul.f32 %v4343, 1.442695
        %v4346 = vpow.pop %v4345
        %v4347 = vmul.f32 %v4344, 1.442695
        %v4348 = vpow.pop %v4347
        %v4349 = vsel %vm757, %v4346, 0.0
        %4350 = vadd.xlane.f32.xlu0 %v4349
        %v4351 = vpop.xlane.xlu0 %4350
        %v4352 = vsel %vm757, %v4348, 0.0
        %4353 = vadd.xlane.f32.xlu0 %v4352
        %v4354 = vpop.xlane.xlu0 %4353
        %v4355 = vrcp.pop %v4351
        %v4356 = vrcp.pop %v4354
        %v4357 = vmul.f32 %v4346, %v4355
        %v4358 = vmul.f32 %v4348, %v4356
        %4359 = vrot.lane.b32.xlu0 %v3828, 56
        %v4360 = vpop.permute.xlu0 %4359
        %4361 = vrot.lane.b32.xlu0 %v3833, 56
        %v4362 = vpop.permute.xlu0 %4361
        %v4366 = vsel %vm757, %v4357, 0
        %v4369 = vsel %vm757, %v4358, 0
        %4371 = vmatprep.subr.mxu0 0.0
        %4372 = vmatpush1.msra.mxu0 %v4360
        %4373 = vmatprep.subr.mxu0 0.0
        %4374 = vmatpush1.msra.mxu0 %v4362
        %4375 = vmatprep.subr.mxu0 0.0
        %4376 = vmatpush1.msra.mxu0 0.0
        %4377 = vmatprep.subr.mxu0 0.0
        %4378 = vmatpush1.msra.mxu0 0.0
        %4379 = vmatprep.subr.mxu0 0.0
        %4380 = vmatpush1.msra.mxu0 0.0
        %4381 = vmatprep.subr.mxu0 0.0
        %4382 = vmatpush1.msra.mxu0 0.0
        %4383 = vmatprep.subr.mxu0 0.0
        %4384 = vmatpush1.msra.mxu0 0.0
        %4385 = vmatprep.subr.mxu0 0.0
        %4386 = vmatpush1.msra.mxu0 0.0
        %4387 = vmatprep.subr.mxu0 0.0
        %4388 = vmatpush1.msra.mxu0 0.0
        %4389 = vmatprep.subr.mxu0 0.0
        %4390 = vmatpush1.msra.mxu0 0.0
        %4391 = vmatprep.subr.mxu0 0.0
        %4392 = vmatpush1.msra.mxu0 0.0
        %4393 = vmatprep.subr.mxu0 0.0
        %4394 = vmatpush1.msra.mxu0 0.0
        %4395 = vmatprep.subr.mxu0 0.0
        %4396 = vmatpush1.msra.mxu0 0.0
        %4397 = vmatprep.subr.mxu0 0.0
        %4398 = vmatpush1.msra.mxu0 0.0
        %4399 = vmatprep.subr.mxu0 0.0
        %4400 = vmatpush1.msra.mxu0 0.0
        %4401 = vmatprep.subr.mxu0 0.0
        %4402 = vmatpush1.msra.mxu0 0.0
        %4403 = vmatprep.subr.mxu0 0.0
        %4404 = vmatpush1.msra.mxu0 0.0
        %4405 = vmatprep.subr.mxu0 0.0
        %4406 = vmatpush1.msra.mxu0 0.0
        %4407 = vmatprep.subr.mxu0 0.0
        %4408 = vmatpush1.msra.mxu0 0.0
        %4409 = vmatprep.subr.mxu0 0.0
        %4410 = vmatpush1.msra.mxu0 0.0
        %4411 = vmatprep.subr.mxu0 0.0
        %4412 = vmatpush1.msra.mxu0 0.0
        %4413 = vmatprep.subr.mxu0 0.0
        %4414 = vmatpush1.msra.mxu0 0.0
        %4415 = vmatprep.subr.mxu0 0.0
        %4416 = vmatpush1.msra.mxu0 0.0
        %4417 = vmatprep.subr.mxu0 0.0
        %4418 = vmatpush1.msra.mxu0 0.0
        %4419 = vmatprep.subr.mxu0 0.0
        %4420 = vmatpush1.msra.mxu0 0.0
        %4421 = vmatprep.subr.mxu0 0.0
        %4422 = vmatpush1.msra.mxu0 0.0
        %4423 = vmatprep.subr.mxu0 0.0
        %4424 = vmatpush1.msra.mxu0 0.0
        %4425 = vmatprep.subr.mxu0 0.0
        %4426 = vmatpush1.msra.mxu0 0.0
        %4427 = vmatprep.subr.mxu0 0.0
        %4428 = vmatpush1.msra.mxu0 0.0
        %4429 = vmatprep.subr.mxu0 0.0
        %4430 = vmatpush1.msra.mxu0 0.0
        %4431 = vmatprep.subr.mxu0 0.0
        %4432 = vmatpush1.msra.mxu0 0.0
        %4433 = vmatprep.subr.mxu0 0.0
        %4434 = vmatpush1.msra.mxu0 0.0
        %4435 = vmatprep.mubr.f32.mxu0 0.0
        %4436 = vmatmul.mubr.f32.gmra.mrb[0].mxu0 %v4366
        %v4437 = vpop.f32.mrb[0].mxu0
        %v4438 = vadd.f32 0.0, %v4437
        %v4439 = vpop.f32.mrb[0].mxu0
        %4440 = vmatprep.mubr.f32.mxu0 0.0
        %4441 = vmatmul.mubr.f32.gmra.mrb[0].mxu0 %v4369
        %v4442 = vpop.f32.mrb[0].mxu0
        %v4443 = vadd.f32 0.0, %v4442
        %v4444 = vpop.f32.mrb[0].mxu0
        %4445 = vdwg.mxu0
        %4448 = vrot.lane.b32.xlu0 %v4438, 8
        %v4449 = vpop.permute.xlu0 %4448
        %4450 = vrot.lane.b32.xlu0 %v4443, 8
        %v4451 = vpop.permute.xlu0 %4450
        %4454 = vst.msk [vmem:[#allocation2] sm:$0xff] %vm1288, %v4449
        %4455 = vst.msk [vmem:[#allocation2 + $0x8] sm:$0xff] %vm1288, %v4451
        %4456 = vrot.lane.b32.xlu0 %v3828, 116
        %v4457 = vpop.permute.xlu0 %4456
        %4458 = vrot.lane.b32.xlu0 %v3833, 116
        %v4459 = vpop.permute.xlu0 %4458
        %4460 = vrot.lane.b32.xlu0 %v3828, 84
        %v4461 = vpop.permute.xlu0 %4460
        %4462 = vrot.lane.b32.xlu0 %v3833, 84
        %v4463 = vpop.permute.xlu0 %4462
        %v4464 = vsel %vm673, %v4457, 0
        %v4466 = vsel %vm673, %v4459, 0
        %v4468 = vsel %vm673, %v4461, 0
        %v4470 = vsel %vm673, %v4463, 0
        %4472 = vmatprep.subr.mxu0 0.0
        %4473 = vmatpush1.xpose.msra.mxu0 %v4468
        %4474 = vmatprep.subr.mxu0 0.0
        %4475 = vmatpush1.xpose.msra.mxu0 %v4470
        %4476 = vmatprep.subr.mxu0 0.0
        %4477 = vmatpush1.xpose.msra.mxu0 0.0
        %4478 = vmatprep.subr.mxu0 0.0
        %4479 = vmatpush1.xpose.msra.mxu0 0.0
        %4480 = vmatprep.subr.mxu0 0.0
        %4481 = vmatpush1.xpose.msra.mxu0 0.0
        %4482 = vmatprep.subr.mxu0 0.0
        %4483 = vmatpush1.xpose.msra.mxu0 0.0
        %4484 = vmatprep.subr.mxu0 0.0
        %4485 = vmatpush1.xpose.msra.mxu0 0.0
        %4486 = vmatprep.subr.mxu0 0.0
        %4487 = vmatpush1.xpose.msra.mxu0 0.0
        %4488 = vmatprep.subr.mxu0 0.0
        %4489 = vmatpush1.xpose.msra.mxu0 0.0
        %4490 = vmatprep.subr.mxu0 0.0
        %4491 = vmatpush1.xpose.msra.mxu0 0.0
        %4492 = vmatprep.subr.mxu0 0.0
        %4493 = vmatpush1.xpose.msra.mxu0 0.0
        %4494 = vmatprep.subr.mxu0 0.0
        %4495 = vmatpush1.xpose.msra.mxu0 0.0
        %4496 = vmatprep.subr.mxu0 0.0
        %4497 = vmatpush1.xpose.msra.mxu0 0.0
        %4498 = vmatprep.subr.mxu0 0.0
        %4499 = vmatpush1.xpose.msra.mxu0 0.0
        %4500 = vmatprep.subr.mxu0 0.0
        %4501 = vmatpush1.xpose.msra.mxu0 0.0
        %4502 = vmatprep.subr.mxu0 0.0
        %4503 = vmatpush1.xpose.msra.mxu0 0.0
        %4504 = vmatprep.subr.mxu0 0.0
        %4505 = vmatpush1.xpose.msra.mxu0 0.0
        %4506 = vmatprep.subr.mxu0 0.0
        %4507 = vmatpush1.xpose.msra.mxu0 0.0
        %4508 = vmatprep.subr.mxu0 0.0
        %4509 = vmatpush1.xpose.msra.mxu0 0.0
        %4510 = vmatprep.subr.mxu0 0.0
        %4511 = vmatpush1.xpose.msra.mxu0 0.0
        %4512 = vmatprep.subr.mxu0 0.0
        %4513 = vmatpush1.xpose.msra.mxu0 0.0
        %4514 = vmatprep.subr.mxu0 0.0
        %4515 = vmatpush1.xpose.msra.mxu0 0.0
        %4516 = vmatprep.subr.mxu0 0.0
        %4517 = vmatpush1.xpose.msra.mxu0 0.0
        %4518 = vmatprep.subr.mxu0 0.0
        %4519 = vmatpush1.xpose.msra.mxu0 0.0
        %4520 = vmatprep.subr.mxu0 0.0
        %4521 = vmatpush1.xpose.msra.mxu0 0.0
        %4522 = vmatprep.subr.mxu0 0.0
        %4523 = vmatpush1.xpose.msra.mxu0 0.0
        %4524 = vmatprep.subr.mxu0 0.0
        %4525 = vmatpush1.xpose.msra.mxu0 0.0
        %4526 = vmatprep.subr.mxu0 0.0
        %4527 = vmatpush1.xpose.msra.mxu0 0.0
        %4528 = vmatprep.subr.mxu0 0.0
        %4529 = vmatpush1.xpose.msra.mxu0 0.0
        %4530 = vmatprep.subr.mxu0 0.0
        %4531 = vmatpush1.xpose.msra.mxu0 0.0
        %4532 = vmatprep.subr.mxu0 0.0
        %4533 = vmatpush1.xpose.msra.mxu0 0.0
        %4534 = vmatprep.subr.mxu0 0.0
        %4535 = vmatpush1.xpose.msra.mxu0 0.0
        %4536 = vmatprep.mubr.f32.mxu0 0.0
        %4537 = vmatmul.mubr.f32.gmra.mrb[0].mxu0 %v4464
        %v4538 = vpop.f32.mrb[0].mxu0
        %v4539 = vadd.f32 %v665, %v4538
        %v4540 = vpop.f32.mrb[0].mxu0
        %4541 = vmatprep.mubr.f32.mxu0 0.0
        %4542 = vmatmul.mubr.f32.gmra.mrb[0].mxu0 %v4466
        %v4543 = vpop.f32.mrb[0].mxu0
        %v4544 = vadd.f32 %v665, %v4543
        %v4545 = vpop.f32.mrb[0].mxu0
        %4546 = vdwg.mxu0
        %v4547 = vsel %vm757, %v4539, -inf
        %4548 = vmax.xlane.f32.xlu0 %v4547
        %v4549 = vpop.xlane.xlu0 %4548
        %v4550 = vsel %vm757, %v4544, -inf
        %4551 = vmax.xlane.f32.xlu0 %v4550
        %v4552 = vpop.xlane.xlu0 %4551
        %v4553 = vsub.f32 %v4539, %v4549
        %v4554 = vsub.f32 %v4544, %v4552
        %v4555 = vmul.f32 %v4553, 1.442695
        %v4556 = vpow.pop %v4555
        %v4557 = vmul.f32 %v4554, 1.442695
        %v4558 = vpow.pop %v4557
        %v4559 = vsel %vm757, %v4556, 0.0
        %4560 = vadd.xlane.f32.xlu0 %v4559
        %v4561 = vpop.xlane.xlu0 %4560
        %v4562 = vsel %vm757, %v4558, 0.0
        %4563 = vadd.xlane.f32.xlu0 %v4562
        %v4564 = vpop.xlane.xlu0 %4563
        %v4565 = vrcp.pop %v4561
        %v4566 = vrcp.pop %v4564
        %v4567 = vmul.f32 %v4556, %v4565
        %v4568 = vmul.f32 %v4558, %v4566
        %4569 = vrot.lane.b32.xlu0 %v3828, 52
        %v4570 = vpop.permute.xlu0 %4569
        %4571 = vrot.lane.b32.xlu0 %v3833, 52
        %v4572 = vpop.permute.xlu0 %4571
        %v4576 = vsel %vm757, %v4567, 0
        %v4579 = vsel %vm757, %v4568, 0
        %4581 = vmatprep.subr.mxu0 0.0
        %4582 = vmatpush1.msra.mxu0 %v4570
        %4583 = vmatprep.subr.mxu0 0.0
        %4584 = vmatpush1.msra.mxu0 %v4572
        %4585 = vmatprep.subr.mxu0 0.0
        %4586 = vmatpush1.msra.mxu0 0.0
        %4587 = vmatprep.subr.mxu0 0.0
        %4588 = vmatpush1.msra.mxu0 0.0
        %4589 = vmatprep.subr.mxu0 0.0
        %4590 = vmatpush1.msra.mxu0 0.0
        %4591 = vmatprep.subr.mxu0 0.0
        %4592 = vmatpush1.msra.mxu0 0.0
        %4593 = vmatprep.subr.mxu0 0.0
        %4594 = vmatpush1.msra.mxu0 0.0
        %4595 = vmatprep.subr.mxu0 0.0
        %4596 = vmatpush1.msra.mxu0 0.0
        %4597 = vmatprep.subr.mxu0 0.0
        %4598 = vmatpush1.msra.mxu0 0.0
        %4599 = vmatprep.subr.mxu0 0.0
        %4600 = vmatpush1.msra.mxu0 0.0
        %4601 = vmatprep.subr.mxu0 0.0
        %4602 = vmatpush1.msra.mxu0 0.0
        %4603 = vmatprep.subr.mxu0 0.0
        %4604 = vmatpush1.msra.mxu0 0.0
        %4605 = vmatprep.subr.mxu0 0.0
        %4606 = vmatpush1.msra.mxu0 0.0
        %4607 = vmatprep.subr.mxu0 0.0
        %4608 = vmatpush1.msra.mxu0 0.0
        %4609 = vmatprep.subr.mxu0 0.0
        %4610 = vmatpush1.msra.mxu0 0.0
        %4611 = vmatprep.subr.mxu0 0.0
        %4612 = vmatpush1.msra.mxu0 0.0
        %4613 = vmatprep.subr.mxu0 0.0
        %4614 = vmatpush1.msra.mxu0 0.0
        %4615 = vmatprep.subr.mxu0 0.0
        %4616 = vmatpush1.msra.mxu0 0.0
        %4617 = vmatprep.subr.mxu0 0.0
        %4618 = vmatpush1.msra.mxu0 0.0
        %4619 = vmatprep.subr.mxu0 0.0
        %4620 = vmatpush1.msra.mxu0 0.0
        %4621 = vmatprep.subr.mxu0 0.0
        %4622 = vmatpush1.msra.mxu0 0.0
        %4623 = vmatprep.subr.mxu0 0.0
        %4624 = vmatpush1.msra.mxu0 0.0
        %4625 = vmatprep.subr.mxu0 0.0
        %4626 = vmatpush1.msra.mxu0 0.0
        %4627 = vmatprep.subr.mxu0 0.0
        %4628 = vmatpush1.msra.mxu0 0.0
        %4629 = vmatprep.subr.mxu0 0.0
        %4630 = vmatpush1.msra.mxu0 0.0
        %4631 = vmatprep.subr.mxu0 0.0
        %4632 = vmatpush1.msra.mxu0 0.0
        %4633 = vmatprep.subr.mxu0 0.0
        %4634 = vmatpush1.msra.mxu0 0.0
        %4635 = vmatprep.subr.mxu0 0.0
        %4636 = vmatpush1.msra.mxu0 0.0
        %4637 = vmatprep.subr.mxu0 0.0
        %4638 = vmatpush1.msra.mxu0 0.0
        %4639 = vmatprep.subr.mxu0 0.0
        %4640 = vmatpush1.msra.mxu0 0.0
        %4641 = vmatprep.subr.mxu0 0.0
        %4642 = vmatpush1.msra.mxu0 0.0
        %4643 = vmatprep.subr.mxu0 0.0
        %4644 = vmatpush1.msra.mxu0 0.0
        %4645 = vmatprep.mubr.f32.mxu0 0.0
        %4646 = vmatmul.mubr.f32.gmra.mrb[0].mxu0 %v4576
        %v4647 = vpop.f32.mrb[0].mxu0
        %v4648 = vadd.f32 0.0, %v4647
        %v4649 = vpop.f32.mrb[0].mxu0
        %4650 = vmatprep.mubr.f32.mxu0 0.0
        %4651 = vmatmul.mubr.f32.gmra.mrb[0].mxu0 %v4579
        %v4652 = vpop.f32.mrb[0].mxu0
        %v4653 = vadd.f32 0.0, %v4652
        %v4654 = vpop.f32.mrb[0].mxu0
        %4655 = vdwg.mxu0
        %4658 = vrot.lane.b32.xlu0 %v4648, 12
        %v4659 = vpop.permute.xlu0 %4658
        %4660 = vrot.lane.b32.xlu0 %v4653, 12
        %v4661 = vpop.permute.xlu0 %4660
        %4664 = vst.msk [vmem:[#allocation2] sm:$0xff] %vm1499, %v4659
        %4665 = vst.msk [vmem:[#allocation2 + $0x8] sm:$0xff] %vm1499, %v4661
        %4666 = vrot.lane.b32.xlu0 %v3828, 112
        %v4667 = vpop.permute.xlu0 %4666
        %4668 = vrot.lane.b32.xlu0 %v3833, 112
        %v4669 = vpop.permute.xlu0 %4668
        %4670 = vrot.lane.b32.xlu0 %v3828, 80
        %v4671 = vpop.permute.xlu0 %4670
        %4672 = vrot.lane.b32.xlu0 %v3833, 80
        %v4673 = vpop.permute.xlu0 %4672
        %v4674 = vsel %vm673, %v4667, 0
        %v4676 = vsel %vm673, %v4669, 0
        %v4678 = vsel %vm673, %v4671, 0
        %v4680 = vsel %vm673, %v4673, 0
        %4682 = vmatprep.subr.mxu0 0.0
        %4683 = vmatpush1.xpose.msra.mxu0 %v4678
        %4684 = vmatprep.subr.mxu0 0.0
        %4685 = vmatpush1.xpose.msra.mxu0 %v4680
        %4686 = vmatprep.subr.mxu0 0.0
        %4687 = vmatpush1.xpose.msra.mxu0 0.0
        %4688 = vmatprep.subr.mxu0 0.0
        %4689 = vmatpush1.xpose.msra.mxu0 0.0
        %4690 = vmatprep.subr.mxu0 0.0
        %4691 = vmatpush1.xpose.msra.mxu0 0.0
        %4692 = vmatprep.subr.mxu0 0.0
        %4693 = vmatpush1.xpose.msra.mxu0 0.0
        %4694 = vmatprep.subr.mxu0 0.0
        %4695 = vmatpush1.xpose.msra.mxu0 0.0
        %4696 = vmatprep.subr.mxu0 0.0
        %4697 = vmatpush1.xpose.msra.mxu0 0.0
        %4698 = vmatprep.subr.mxu0 0.0
        %4699 = vmatpush1.xpose.msra.mxu0 0.0
        %4700 = vmatprep.subr.mxu0 0.0
        %4701 = vmatpush1.xpose.msra.mxu0 0.0
        %4702 = vmatprep.subr.mxu0 0.0
        %4703 = vmatpush1.xpose.msra.mxu0 0.0
        %4704 = vmatprep.subr.mxu0 0.0
        %4705 = vmatpush1.xpose.msra.mxu0 0.0
        %4706 = vmatprep.subr.mxu0 0.0
        %4707 = vmatpush1.xpose.msra.mxu0 0.0
        %4708 = vmatprep.subr.mxu0 0.0
        %4709 = vmatpush1.xpose.msra.mxu0 0.0
        %4710 = vmatprep.subr.mxu0 0.0
        %4711 = vmatpush1.xpose.msra.mxu0 0.0
        %4712 = vmatprep.subr.mxu0 0.0
        %4713 = vmatpush1.xpose.msra.mxu0 0.0
        %4714 = vmatprep.subr.mxu0 0.0
        %4715 = vmatpush1.xpose.msra.mxu0 0.0
        %4716 = vmatprep.subr.mxu0 0.0
        %4717 = vmatpush1.xpose.msra.mxu0 0.0
        %4718 = vmatprep.subr.mxu0 0.0
        %4719 = vmatpush1.xpose.msra.mxu0 0.0
        %4720 = vmatprep.subr.mxu0 0.0
        %4721 = vmatpush1.xpose.msra.mxu0 0.0
        %4722 = vmatprep.subr.mxu0 0.0
        %4723 = vmatpush1.xpose.msra.mxu0 0.0
        %4724 = vmatprep.subr.mxu0 0.0
        %4725 = vmatpush1.xpose.msra.mxu0 0.0
        %4726 = vmatprep.subr.mxu0 0.0
        %4727 = vmatpush1.xpose.msra.mxu0 0.0
        %4728 = vmatprep.subr.mxu0 0.0
        %4729 = vmatpush1.xpose.msra.mxu0 0.0
        %4730 = vmatprep.subr.mxu0 0.0
        %4731 = vmatpush1.xpose.msra.mxu0 0.0
        %4732 = vmatprep.subr.mxu0 0.0
        %4733 = vmatpush1.xpose.msra.mxu0 0.0
        %4734 = vmatprep.subr.mxu0 0.0
        %4735 = vmatpush1.xpose.msra.mxu0 0.0
        %4736 = vmatprep.subr.mxu0 0.0
        %4737 = vmatpush1.xpose.msra.mxu0 0.0
        %4738 = vmatprep.subr.mxu0 0.0
        %4739 = vmatpush1.xpose.msra.mxu0 0.0
        %4740 = vmatprep.subr.mxu0 0.0
        %4741 = vmatpush1.xpose.msra.mxu0 0.0
        %4742 = vmatprep.subr.mxu0 0.0
        %4743 = vmatpush1.xpose.msra.mxu0 0.0
        %4744 = vmatprep.subr.mxu0 0.0
        %4745 = vmatpush1.xpose.msra.mxu0 0.0
        %4746 = vmatprep.mubr.f32.mxu0 0.0
        %4747 = vmatmul.mubr.f32.gmra.mrb[0].mxu0 %v4674
        %v4748 = vpop.f32.mrb[0].mxu0
        %v4749 = vadd.f32 %v665, %v4748
        %v4750 = vpop.f32.mrb[0].mxu0
        %4751 = vmatprep.mubr.f32.mxu0 0.0
        %4752 = vmatmul.mubr.f32.gmra.mrb[0].mxu0 %v4676
        %v4753 = vpop.f32.mrb[0].mxu0
        %v4754 = vadd.f32 %v665, %v4753
        %v4755 = vpop.f32.mrb[0].mxu0
        %4756 = vdwg.mxu0
        %v4757 = vsel %vm757, %v4749, -inf
        %4758 = vmax.xlane.f32.xlu0 %v4757
        %v4759 = vpop.xlane.xlu0 %4758
        %v4760 = vsel %vm757, %v4754, -inf
        %4761 = vmax.xlane.f32.xlu0 %v4760
        %v4762 = vpop.xlane.xlu0 %4761
        %v4763 = vsub.f32 %v4749, %v4759
        %v4764 = vsub.f32 %v4754, %v4762
        %v4765 = vmul.f32 %v4763, 1.442695
        %v4766 = vpow.pop %v4765
        %v4767 = vmul.f32 %v4764, 1.442695
        %v4768 = vpow.pop %v4767
        %v4769 = vsel %vm757, %v4766, 0.0
        %4770 = vadd.xlane.f32.xlu0 %v4769
        %v4771 = vpop.xlane.xlu0 %4770
        %v4772 = vsel %vm757, %v4768, 0.0
        %4773 = vadd.xlane.f32.xlu0 %v4772
        %v4774 = vpop.xlane.xlu0 %4773
        %v4775 = vrcp.pop %v4771
        %v4776 = vrcp.pop %v4774
        %v4777 = vmul.f32 %v4766, %v4775
        %v4778 = vmul.f32 %v4768, %v4776
        %4779 = vrot.lane.b32.xlu0 %v3828, 48
        %v4780 = vpop.permute.xlu0 %4779
        %4781 = vrot.lane.b32.xlu0 %v3833, 48
        %v4782 = vpop.permute.xlu0 %4781
        %v4786 = vsel %vm757, %v4777, 0
        %v4789 = vsel %vm757, %v4778, 0
        %4791 = vmatprep.subr.mxu0 0.0
        %4792 = vmatpush1.msra.mxu0 %v4780
        %4793 = vmatprep.subr.mxu0 0.0
        %4794 = vmatpush1.msra.mxu0 %v4782
        %4795 = vmatprep.subr.mxu0 0.0
        %4796 = vmatpush1.msra.mxu0 0.0
        %4797 = vmatprep.subr.mxu0 0.0
        %4798 = vmatpush1.msra.mxu0 0.0
        %4799 = vmatprep.subr.mxu0 0.0
        %4800 = vmatpush1.msra.mxu0 0.0
        %4801 = vmatprep.subr.mxu0 0.0
        %4802 = vmatpush1.msra.mxu0 0.0
        %4803 = vmatprep.subr.mxu0 0.0
        %4804 = vmatpush1.msra.mxu0 0.0
        %4805 = vmatprep.subr.mxu0 0.0
        %4806 = vmatpush1.msra.mxu0 0.0
        %4807 = vmatprep.subr.mxu0 0.0
        %4808 = vmatpush1.msra.mxu0 0.0
        %4809 = vmatprep.subr.mxu0 0.0
        %4810 = vmatpush1.msra.mxu0 0.0
        %4811 = vmatprep.subr.mxu0 0.0
        %4812 = vmatpush1.msra.mxu0 0.0
        %4813 = vmatprep.subr.mxu0 0.0
        %4814 = vmatpush1.msra.mxu0 0.0
        %4815 = vmatprep.subr.mxu0 0.0
        %4816 = vmatpush1.msra.mxu0 0.0
        %4817 = vmatprep.subr.mxu0 0.0
        %4818 = vmatpush1.msra.mxu0 0.0
        %4819 = vmatprep.subr.mxu0 0.0
        %4820 = vmatpush1.msra.mxu0 0.0
        %4821 = vmatprep.subr.mxu0 0.0
        %4822 = vmatpush1.msra.mxu0 0.0
        %4823 = vmatprep.subr.mxu0 0.0
        %4824 = vmatpush1.msra.mxu0 0.0
        %4825 = vmatprep.subr.mxu0 0.0
        %4826 = vmatpush1.msra.mxu0 0.0
        %4827 = vmatprep.subr.mxu0 0.0
        %4828 = vmatpush1.msra.mxu0 0.0
        %4829 = vmatprep.subr.mxu0 0.0
        %4830 = vmatpush1.msra.mxu0 0.0
        %4831 = vmatprep.subr.mxu0 0.0
        %4832 = vmatpush1.msra.mxu0 0.0
        %4833 = vmatprep.subr.mxu0 0.0
        %4834 = vmatpush1.msra.mxu0 0.0
        %4835 = vmatprep.subr.mxu0 0.0
        %4836 = vmatpush1.msra.mxu0 0.0
        %4837 = vmatprep.subr.mxu0 0.0
        %4838 = vmatpush1.msra.mxu0 0.0
        %4839 = vmatprep.subr.mxu0 0.0
        %4840 = vmatpush1.msra.mxu0 0.0
        %4841 = vmatprep.subr.mxu0 0.0
        %4842 = vmatpush1.msra.mxu0 0.0
        %4843 = vmatprep.subr.mxu0 0.0
        %4844 = vmatpush1.msra.mxu0 0.0
        %4845 = vmatprep.subr.mxu0 0.0
        %4846 = vmatpush1.msra.mxu0 0.0
        %4847 = vmatprep.subr.mxu0 0.0
        %4848 = vmatpush1.msra.mxu0 0.0
        %4849 = vmatprep.subr.mxu0 0.0
        %4850 = vmatpush1.msra.mxu0 0.0
        %4851 = vmatprep.subr.mxu0 0.0
        %4852 = vmatpush1.msra.mxu0 0.0
        %4853 = vmatprep.subr.mxu0 0.0
        %4854 = vmatpush1.msra.mxu0 0.0
        %4855 = vmatprep.mubr.f32.mxu0 0.0
        %4856 = vmatmul.mubr.f32.gmra.mrb[0].mxu0 %v4786
        %v4857 = vpop.f32.mrb[0].mxu0
        %v4858 = vadd.f32 0.0, %v4857
        %v4859 = vpop.f32.mrb[0].mxu0
        %4860 = vmatprep.mubr.f32.mxu0 0.0
        %4861 = vmatmul.mubr.f32.gmra.mrb[0].mxu0 %v4789
        %v4862 = vpop.f32.mrb[0].mxu0
        %v4863 = vadd.f32 0.0, %v4862
        %v4864 = vpop.f32.mrb[0].mxu0
        %4865 = vdwg.mxu0
        %4868 = vrot.lane.b32.xlu0 %v4858, 16
        %v4869 = vpop.permute.xlu0 %4868
        %4870 = vrot.lane.b32.xlu0 %v4863, 16
        %v4871 = vpop.permute.xlu0 %4870
        %4874 = vst.msk [vmem:[#allocation2] sm:$0xff] %vm1710, %v4869
        %4875 = vst.msk [vmem:[#allocation2 + $0x8] sm:$0xff] %vm1710, %v4871
        %4876 = vrot.lane.b32.xlu0 %v3828, 108
        %v4877 = vpop.permute.xlu0 %4876
        %4878 = vrot.lane.b32.xlu0 %v3833, 108
        %v4879 = vpop.permute.xlu0 %4878
        %4880 = vrot.lane.b32.xlu0 %v3828, 76
        %v4881 = vpop.permute.xlu0 %4880
        %4882 = vrot.lane.b32.xlu0 %v3833, 76
        %v4883 = vpop.permute.xlu0 %4882
        %v4884 = vsel %vm673, %v4877, 0
        %v4886 = vsel %vm673, %v4879, 0
        %v4888 = vsel %vm673, %v4881, 0
        %v4890 = vsel %vm673, %v4883, 0
        %4892 = vmatprep.subr.mxu0 0.0
        %4893 = vmatpush1.xpose.msra.mxu0 %v4888
        %4894 = vmatprep.subr.mxu0 0.0
        %4895 = vmatpush1.xpose.msra.mxu0 %v4890
        %4896 = vmatprep.subr.mxu0 0.0
        %4897 = vmatpush1.xpose.msra.mxu0 0.0
        %4898 = vmatprep.subr.mxu0 0.0
        %4899 = vmatpush1.xpose.msra.mxu0 0.0
        %4900 = vmatprep.subr.mxu0 0.0
        %4901 = vmatpush1.xpose.msra.mxu0 0.0
        %4902 = vmatprep.subr.mxu0 0.0
        %4903 = vmatpush1.xpose.msra.mxu0 0.0
        %4904 = vmatprep.subr.mxu0 0.0
        %4905 = vmatpush1.xpose.msra.mxu0 0.0
        %4906 = vmatprep.subr.mxu0 0.0
        %4907 = vmatpush1.xpose.msra.mxu0 0.0
        %4908 = vmatprep.subr.mxu0 0.0
        %4909 = vmatpush1.xpose.msra.mxu0 0.0
        %4910 = vmatprep.subr.mxu0 0.0
        %4911 = vmatpush1.xpose.msra.mxu0 0.0
        %4912 = vmatprep.subr.mxu0 0.0
        %4913 = vmatpush1.xpose.msra.mxu0 0.0
        %4914 = vmatprep.subr.mxu0 0.0
        %4915 = vmatpush1.xpose.msra.mxu0 0.0
        %4916 = vmatprep.subr.mxu0 0.0
        %4917 = vmatpush1.xpose.msra.mxu0 0.0
        %4918 = vmatprep.subr.mxu0 0.0
        %4919 = vmatpush1.xpose.msra.mxu0 0.0
        %4920 = vmatprep.subr.mxu0 0.0
        %4921 = vmatpush1.xpose.msra.mxu0 0.0
        %4922 = vmatprep.subr.mxu0 0.0
        %4923 = vmatpush1.xpose.msra.mxu0 0.0
        %4924 = vmatprep.subr.mxu0 0.0
        %4925 = vmatpush1.xpose.msra.mxu0 0.0
        %4926 = vmatprep.subr.mxu0 0.0
        %4927 = vmatpush1.xpose.msra.mxu0 0.0
        %4928 = vmatprep.subr.mxu0 0.0
        %4929 = vmatpush1.xpose.msra.mxu0 0.0
        %4930 = vmatprep.subr.mxu0 0.0
        %4931 = vmatpush1.xpose.msra.mxu0 0.0
        %4932 = vmatprep.subr.mxu0 0.0
        %4933 = vmatpush1.xpose.msra.mxu0 0.0
        %4934 = vmatprep.subr.mxu0 0.0
        %4935 = vmatpush1.xpose.msra.mxu0 0.0
        %4936 = vmatprep.subr.mxu0 0.0
        %4937 = vmatpush1.xpose.msra.mxu0 0.0
        %4938 = vmatprep.subr.mxu0 0.0
        %4939 = vmatpush1.xpose.msra.mxu0 0.0
        %4940 = vmatprep.subr.mxu0 0.0
        %4941 = vmatpush1.xpose.msra.mxu0 0.0
        %4942 = vmatprep.subr.mxu0 0.0
        %4943 = vmatpush1.xpose.msra.mxu0 0.0
        %4944 = vmatprep.subr.mxu0 0.0
        %4945 = vmatpush1.xpose.msra.mxu0 0.0
        %4946 = vmatprep.subr.mxu0 0.0
        %4947 = vmatpush1.xpose.msra.mxu0 0.0
        %4948 = vmatprep.subr.mxu0 0.0
        %4949 = vmatpush1.xpose.msra.mxu0 0.0
        %4950 = vmatprep.subr.mxu0 0.0
        %4951 = vmatpush1.xpose.msra.mxu0 0.0
        %4952 = vmatprep.subr.mxu0 0.0
        %4953 = vmatpush1.xpose.msra.mxu0 0.0
        %4954 = vmatprep.subr.mxu0 0.0
        %4955 = vmatpush1.xpose.msra.mxu0 0.0
        %4956 = vmatprep.mubr.f32.mxu0 0.0
        %4957 = vmatmul.mubr.f32.gmra.mrb[0].mxu0 %v4884
        %v4958 = vpop.f32.mrb[0].mxu0
        %v4959 = vadd.f32 %v665, %v4958
        %v4960 = vpop.f32.mrb[0].mxu0
        %4961 = vmatprep.mubr.f32.mxu0 0.0
        %4962 = vmatmul.mubr.f32.gmra.mrb[0].mxu0 %v4886
        %v4963 = vpop.f32.mrb[0].mxu0
        %v4964 = vadd.f32 %v665, %v4963
        %v4965 = vpop.f32.mrb[0].mxu0
        %4966 = vdwg.mxu0
        %v4967 = vsel %vm757, %v4959, -inf
        %4968 = vmax.xlane.f32.xlu0 %v4967
        %v4969 = vpop.xlane.xlu0 %4968
        %v4970 = vsel %vm757, %v4964, -inf
        %4971 = vmax.xlane.f32.xlu0 %v4970
        %v4972 = vpop.xlane.xlu0 %4971
        %v4973 = vsub.f32 %v4959, %v4969
        %v4974 = vsub.f32 %v4964, %v4972
        %v4975 = vmul.f32 %v4973, 1.442695
        %v4976 = vpow.pop %v4975
        %v4977 = vmul.f32 %v4974, 1.442695
        %v4978 = vpow.pop %v4977
        %v4979 = vsel %vm757, %v4976, 0.0
        %4980 = vadd.xlane.f32.xlu0 %v4979
        %v4981 = vpop.xlane.xlu0 %4980
        %v4982 = vsel %vm757, %v4978, 0.0
        %4983 = vadd.xlane.f32.xlu0 %v4982
        %v4984 = vpop.xlane.xlu0 %4983
        %v4985 = vrcp.pop %v4981
        %v4986 = vrcp.pop %v4984
        %v4987 = vmul.f32 %v4976, %v4985
        %v4988 = vmul.f32 %v4978, %v4986
        %4989 = vrot.lane.b32.xlu0 %v3828, 44
        %v4990 = vpop.permute.xlu0 %4989
        %4991 = vrot.lane.b32.xlu0 %v3833, 44
        %v4992 = vpop.permute.xlu0 %4991
        %v4996 = vsel %vm757, %v4987, 0
        %v4999 = vsel %vm757, %v4988, 0
        %5001 = vmatprep.subr.mxu0 0.0
        %5002 = vmatpush1.msra.mxu0 %v4990
        %5003 = vmatprep.subr.mxu0 0.0
        %5004 = vmatpush1.msra.mxu0 %v4992
        %5005 = vmatprep.subr.mxu0 0.0
        %5006 = vmatpush1.msra.mxu0 0.0
        %5007 = vmatprep.subr.mxu0 0.0
        %5008 = vmatpush1.msra.mxu0 0.0
        %5009 = vmatprep.subr.mxu0 0.0
        %5010 = vmatpush1.msra.mxu0 0.0
        %5011 = vmatprep.subr.mxu0 0.0
        %5012 = vmatpush1.msra.mxu0 0.0
        %5013 = vmatprep.subr.mxu0 0.0
        %5014 = vmatpush1.msra.mxu0 0.0
        %5015 = vmatprep.subr.mxu0 0.0
        %5016 = vmatpush1.msra.mxu0 0.0
        %5017 = vmatprep.subr.mxu0 0.0
        %5018 = vmatpush1.msra.mxu0 0.0
        %5019 = vmatprep.subr.mxu0 0.0
        %5020 = vmatpush1.msra.mxu0 0.0
        %5021 = vmatprep.subr.mxu0 0.0
        %5022 = vmatpush1.msra.mxu0 0.0
        %5023 = vmatprep.subr.mxu0 0.0
        %5024 = vmatpush1.msra.mxu0 0.0
        %5025 = vmatprep.subr.mxu0 0.0
        %5026 = vmatpush1.msra.mxu0 0.0
        %5027 = vmatprep.subr.mxu0 0.0
        %5028 = vmatpush1.msra.mxu0 0.0
        %5029 = vmatprep.subr.mxu0 0.0
        %5030 = vmatpush1.msra.mxu0 0.0
        %5031 = vmatprep.subr.mxu0 0.0
        %5032 = vmatpush1.msra.mxu0 0.0
        %5033 = vmatprep.subr.mxu0 0.0
        %5034 = vmatpush1.msra.mxu0 0.0
        %5035 = vmatprep.subr.mxu0 0.0
        %5036 = vmatpush1.msra.mxu0 0.0
        %5037 = vmatprep.subr.mxu0 0.0
        %5038 = vmatpush1.msra.mxu0 0.0
        %5039 = vmatprep.subr.mxu0 0.0
        %5040 = vmatpush1.msra.mxu0 0.0
        %5041 = vmatprep.subr.mxu0 0.0
        %5042 = vmatpush1.msra.mxu0 0.0
        %5043 = vmatprep.subr.mxu0 0.0
        %5044 = vmatpush1.msra.mxu0 0.0
        %5045 = vmatprep.subr.mxu0 0.0
        %5046 = vmatpush1.msra.mxu0 0.0
        %5047 = vmatprep.subr.mxu0 0.0
        %5048 = vmatpush1.msra.mxu0 0.0
        %5049 = vmatprep.subr.mxu0 0.0
        %5050 = vmatpush1.msra.mxu0 0.0
        %5051 = vmatprep.subr.mxu0 0.0
        %5052 = vmatpush1.msra.mxu0 0.0
        %5053 = vmatprep.subr.mxu0 0.0
        %5054 = vmatpush1.msra.mxu0 0.0
        %5055 = vmatprep.subr.mxu0 0.0
        %5056 = vmatpush1.msra.mxu0 0.0
        %5057 = vmatprep.subr.mxu0 0.0
        %5058 = vmatpush1.msra.mxu0 0.0
        %5059 = vmatprep.subr.mxu0 0.0
        %5060 = vmatpush1.msra.mxu0 0.0
        %5061 = vmatprep.subr.mxu0 0.0
        %5062 = vmatpush1.msra.mxu0 0.0
        %5063 = vmatprep.subr.mxu0 0.0
        %5064 = vmatpush1.msra.mxu0 0.0
        %5065 = vmatprep.mubr.f32.mxu0 0.0
        %5066 = vmatmul.mubr.f32.gmra.mrb[0].mxu0 %v4996
        %v5067 = vpop.f32.mrb[0].mxu0
        %v5068 = vadd.f32 0.0, %v5067
        %v5069 = vpop.f32.mrb[0].mxu0
        %5070 = vmatprep.mubr.f32.mxu0 0.0
        %5071 = vmatmul.mubr.f32.gmra.mrb[0].mxu0 %v4999
        %v5072 = vpop.f32.mrb[0].mxu0
        %v5073 = vadd.f32 0.0, %v5072
        %v5074 = vpop.f32.mrb[0].mxu0
        %5075 = vdwg.mxu0
        %5078 = vrot.lane.b32.xlu0 %v5068, 20
        %v5079 = vpop.permute.xlu0 %5078
        %5080 = vrot.lane.b32.xlu0 %v5073, 20
        %v5081 = vpop.permute.xlu0 %5080
        %5084 = vst.msk [vmem:[#allocation2] sm:$0xff] %vm1921, %v5079
        %5085 = vst.msk [vmem:[#allocation2 + $0x8] sm:$0xff] %vm1921, %v5081
        %5086 = vrot.lane.b32.xlu0 %v3828, 104
        %v5087 = vpop.permute.xlu0 %5086
        %5088 = vrot.lane.b32.xlu0 %v3833, 104
        %v5089 = vpop.permute.xlu0 %5088
        %5090 = vrot.lane.b32.xlu0 %v3828, 72
        %v5091 = vpop.permute.xlu0 %5090
        %5092 = vrot.lane.b32.xlu0 %v3833, 72
        %v5093 = vpop.permute.xlu0 %5092
        %v5094 = vsel %vm673, %v5087, 0
        %v5096 = vsel %vm673, %v5089, 0
        %v5098 = vsel %vm673, %v5091, 0
        %v5100 = vsel %vm673, %v5093, 0
        %5102 = vmatprep.subr.mxu0 0.0
        %5103 = vmatpush1.xpose.msra.mxu0 %v5098
        %5104 = vmatprep.subr.mxu0 0.0
        %5105 = vmatpush1.xpose.msra.mxu0 %v5100
        %5106 = vmatprep.subr.mxu0 0.0
        %5107 = vmatpush1.xpose.msra.mxu0 0.0
        %5108 = vmatprep.subr.mxu0 0.0
        %5109 = vmatpush1.xpose.msra.mxu0 0.0
        %5110 = vmatprep.subr.mxu0 0.0
        %5111 = vmatpush1.xpose.msra.mxu0 0.0
        %5112 = vmatprep.subr.mxu0 0.0
        %5113 = vmatpush1.xpose.msra.mxu0 0.0
        %5114 = vmatprep.subr.mxu0 0.0
        %5115 = vmatpush1.xpose.msra.mxu0 0.0
        %5116 = vmatprep.subr.mxu0 0.0
        %5117 = vmatpush1.xpose.msra.mxu0 0.0
        %5118 = vmatprep.subr.mxu0 0.0
        %5119 = vmatpush1.xpose.msra.mxu0 0.0
        %5120 = vmatprep.subr.mxu0 0.0
        %5121 = vmatpush1.xpose.msra.mxu0 0.0
        %5122 = vmatprep.subr.mxu0 0.0
        %5123 = vmatpush1.xpose.msra.mxu0 0.0
        %5124 = vmatprep.subr.mxu0 0.0
        %5125 = vmatpush1.xpose.msra.mxu0 0.0
        %5126 = vmatprep.subr.mxu0 0.0
        %5127 = vmatpush1.xpose.msra.mxu0 0.0
        %5128 = vmatprep.subr.mxu0 0.0
        %5129 = vmatpush1.xpose.msra.mxu0 0.0
        %5130 = vmatprep.subr.mxu0 0.0
        %5131 = vmatpush1.xpose.msra.mxu0 0.0
        %5132 = vmatprep.subr.mxu0 0.0
        %5133 = vmatpush1.xpose.msra.mxu0 0.0
        %5134 = vmatprep.subr.mxu0 0.0
        %5135 = vmatpush1.xpose.msra.mxu0 0.0
        %5136 = vmatprep.subr.mxu0 0.0
        %5137 = vmatpush1.xpose.msra.mxu0 0.0
        %5138 = vmatprep.subr.mxu0 0.0
        %5139 = vmatpush1.xpose.msra.mxu0 0.0
        %5140 = vmatprep.subr.mxu0 0.0
        %5141 = vmatpush1.xpose.msra.mxu0 0.0
        %5142 = vmatprep.subr.mxu0 0.0
        %5143 = vmatpush1.xpose.msra.mxu0 0.0
        %5144 = vmatprep.subr.mxu0 0.0
        %5145 = vmatpush1.xpose.msra.mxu0 0.0
        %5146 = vmatprep.subr.mxu0 0.0
        %5147 = vmatpush1.xpose.msra.mxu0 0.0
        %5148 = vmatprep.subr.mxu0 0.0
        %5149 = vmatpush1.xpose.msra.mxu0 0.0
        %5150 = vmatprep.subr.mxu0 0.0
        %5151 = vmatpush1.xpose.msra.mxu0 0.0
        %5152 = vmatprep.subr.mxu0 0.0
        %5153 = vmatpush1.xpose.msra.mxu0 0.0
        %5154 = vmatprep.subr.mxu0 0.0
        %5155 = vmatpush1.xpose.msra.mxu0 0.0
        %5156 = vmatprep.subr.mxu0 0.0
        %5157 = vmatpush1.xpose.msra.mxu0 0.0
        %5158 = vmatprep.subr.mxu0 0.0
        %5159 = vmatpush1.xpose.msra.mxu0 0.0
        %5160 = vmatprep.subr.mxu0 0.0
        %5161 = vmatpush1.xpose.msra.mxu0 0.0
        %5162 = vmatprep.subr.mxu0 0.0
        %5163 = vmatpush1.xpose.msra.mxu0 0.0
        %5164 = vmatprep.subr.mxu0 0.0
        %5165 = vmatpush1.xpose.msra.mxu0 0.0
        %5166 = vmatprep.mubr.f32.mxu0 0.0
        %5167 = vmatmul.mubr.f32.gmra.mrb[0].mxu0 %v5094
        %v5168 = vpop.f32.mrb[0].mxu0
        %v5169 = vadd.f32 %v665, %v5168
        %v5170 = vpop.f32.mrb[0].mxu0
        %5171 = vmatprep.mubr.f32.mxu0 0.0
        %5172 = vmatmul.mubr.f32.gmra.mrb[0].mxu0 %v5096
        %v5173 = vpop.f32.mrb[0].mxu0
        %v5174 = vadd.f32 %v665, %v5173
        %v5175 = vpop.f32.mrb[0].mxu0
        %5176 = vdwg.mxu0
        %v5177 = vsel %vm757, %v5169, -inf
        %5178 = vmax.xlane.f32.xlu0 %v5177
        %v5179 = vpop.xlane.xlu0 %5178
        %v5180 = vsel %vm757, %v5174, -inf
        %5181 = vmax.xlane.f32.xlu0 %v5180
        %v5182 = vpop.xlane.xlu0 %5181
        %v5183 = vsub.f32 %v5169, %v5179
        %v5184 = vsub.f32 %v5174, %v5182
        %v5185 = vmul.f32 %v5183, 1.442695
        %v5186 = vpow.pop %v5185
        %v5187 = vmul.f32 %v5184, 1.442695
        %v5188 = vpow.pop %v5187
        %v5189 = vsel %vm757, %v5186, 0.0
        %5190 = vadd.xlane.f32.xlu0 %v5189
        %v5191 = vpop.xlane.xlu0 %5190
        %v5192 = vsel %vm757, %v5188, 0.0
        %5193 = vadd.xlane.f32.xlu0 %v5192
        %v5194 = vpop.xlane.xlu0 %5193
        %v5195 = vrcp.pop %v5191
        %v5196 = vrcp.pop %v5194
        %v5197 = vmul.f32 %v5186, %v5195
        %v5198 = vmul.f32 %v5188, %v5196
        %5199 = vrot.lane.b32.xlu0 %v3828, 40
        %v5200 = vpop.permute.xlu0 %5199
        %5201 = vrot.lane.b32.xlu0 %v3833, 40
        %v5202 = vpop.permute.xlu0 %5201
        %v5206 = vsel %vm757, %v5197, 0
        %v5209 = vsel %vm757, %v5198, 0
        %5211 = vmatprep.subr.mxu0 0.0
        %5212 = vmatpush1.msra.mxu0 %v5200
        %5213 = vmatprep.subr.mxu0 0.0
        %5214 = vmatpush1.msra.mxu0 %v5202
        %5215 = vmatprep.subr.mxu0 0.0
        %5216 = vmatpush1.msra.mxu0 0.0
        %5217 = vmatprep.subr.mxu0 0.0
        %5218 = vmatpush1.msra.mxu0 0.0
        %5219 = vmatprep.subr.mxu0 0.0
        %5220 = vmatpush1.msra.mxu0 0.0
        %5221 = vmatprep.subr.mxu0 0.0
        %5222 = vmatpush1.msra.mxu0 0.0
        %5223 = vmatprep.subr.mxu0 0.0
        %5224 = vmatpush1.msra.mxu0 0.0
        %5225 = vmatprep.subr.mxu0 0.0
        %5226 = vmatpush1.msra.mxu0 0.0
        %5227 = vmatprep.subr.mxu0 0.0
        %5228 = vmatpush1.msra.mxu0 0.0
        %5229 = vmatprep.subr.mxu0 0.0
        %5230 = vmatpush1.msra.mxu0 0.0
        %5231 = vmatprep.subr.mxu0 0.0
        %5232 = vmatpush1.msra.mxu0 0.0
        %5233 = vmatprep.subr.mxu0 0.0
        %5234 = vmatpush1.msra.mxu0 0.0
        %5235 = vmatprep.subr.mxu0 0.0
        %5236 = vmatpush1.msra.mxu0 0.0
        %5237 = vmatprep.subr.mxu0 0.0
        %5238 = vmatpush1.msra.mxu0 0.0
        %5239 = vmatprep.subr.mxu0 0.0
        %5240 = vmatpush1.msra.mxu0 0.0
        %5241 = vmatprep.subr.mxu0 0.0
        %5242 = vmatpush1.msra.mxu0 0.0
        %5243 = vmatprep.subr.mxu0 0.0
        %5244 = vmatpush1.msra.mxu0 0.0
        %5245 = vmatprep.subr.mxu0 0.0
        %5246 = vmatpush1.msra.mxu0 0.0
        %5247 = vmatprep.subr.mxu0 0.0
        %5248 = vmatpush1.msra.mxu0 0.0
        %5249 = vmatprep.subr.mxu0 0.0
        %5250 = vmatpush1.msra.mxu0 0.0
        %5251 = vmatprep.subr.mxu0 0.0
        %5252 = vmatpush1.msra.mxu0 0.0
        %5253 = vmatprep.subr.mxu0 0.0
        %5254 = vmatpush1.msra.mxu0 0.0
        %5255 = vmatprep.subr.mxu0 0.0
        %5256 = vmatpush1.msra.mxu0 0.0
        %5257 = vmatprep.subr.mxu0 0.0
        %5258 = vmatpush1.msra.mxu0 0.0
        %5259 = vmatprep.subr.mxu0 0.0
        %5260 = vmatpush1.msra.mxu0 0.0
        %5261 = vmatprep.subr.mxu0 0.0
        %5262 = vmatpush1.msra.mxu0 0.0
        %5263 = vmatprep.subr.mxu0 0.0
        %5264 = vmatpush1.msra.mxu0 0.0
        %5265 = vmatprep.subr.mxu0 0.0
        %5266 = vmatpush1.msra.mxu0 0.0
        %5267 = vmatprep.subr.mxu0 0.0
        %5268 = vmatpush1.msra.mxu0 0.0
        %5269 = vmatprep.subr.mxu0 0.0
        %5270 = vmatpush1.msra.mxu0 0.0
        %5271 = vmatprep.subr.mxu0 0.0
        %5272 = vmatpush1.msra.mxu0 0.0
        %5273 = vmatprep.subr.mxu0 0.0
        %5274 = vmatpush1.msra.mxu0 0.0
        %5275 = vmatprep.mubr.f32.mxu0 0.0
        %5276 = vmatmul.mubr.f32.gmra.mrb[0].mxu0 %v5206
        %v5277 = vpop.f32.mrb[0].mxu0
        %v5278 = vadd.f32 0.0, %v5277
        %v5279 = vpop.f32.mrb[0].mxu0
        %5280 = vmatprep.mubr.f32.mxu0 0.0
        %5281 = vmatmul.mubr.f32.gmra.mrb[0].mxu0 %v5209
        %v5282 = vpop.f32.mrb[0].mxu0
        %v5283 = vadd.f32 0.0, %v5282
        %v5284 = vpop.f32.mrb[0].mxu0
        %5285 = vdwg.mxu0
        %5288 = vrot.lane.b32.xlu0 %v5278, 24
        %v5289 = vpop.permute.xlu0 %5288
        %5290 = vrot.lane.b32.xlu0 %v5283, 24
        %v5291 = vpop.permute.xlu0 %5290
        %5294 = vst.msk [vmem:[#allocation2] sm:$0xff] %vm2132, %v5289
        %5295 = vst.msk [vmem:[#allocation2 + $0x8] sm:$0xff] %vm2132, %v5291
        %5296 = vrot.lane.b32.xlu0 %v3828, 100
        %v5297 = vpop.permute.xlu0 %5296
        %5298 = vrot.lane.b32.xlu0 %v3833, 100
        %v5299 = vpop.permute.xlu0 %5298
        %5300 = vrot.lane.b32.xlu0 %v3828, 68
        %v5301 = vpop.permute.xlu0 %5300
        %5302 = vrot.lane.b32.xlu0 %v3833, 68
        %v5303 = vpop.permute.xlu0 %5302
        %v5304 = vsel %vm673, %v5297, 0
        %v5306 = vsel %vm673, %v5299, 0
        %v5308 = vsel %vm673, %v5301, 0
        %v5310 = vsel %vm673, %v5303, 0
        %5312 = vmatprep.subr.mxu0 0.0
        %5313 = vmatpush1.xpose.msra.mxu0 %v5308
        %5314 = vmatprep.subr.mxu0 0.0
        %5315 = vmatpush1.xpose.msra.mxu0 %v5310
        %5316 = vmatprep.subr.mxu0 0.0
        %5317 = vmatpush1.xpose.msra.mxu0 0.0
        %5318 = vmatprep.subr.mxu0 0.0
        %5319 = vmatpush1.xpose.msra.mxu0 0.0
        %5320 = vmatprep.subr.mxu0 0.0
        %5321 = vmatpush1.xpose.msra.mxu0 0.0
        %5322 = vmatprep.subr.mxu0 0.0
        %5323 = vmatpush1.xpose.msra.mxu0 0.0
        %5324 = vmatprep.subr.mxu0 0.0
        %5325 = vmatpush1.xpose.msra.mxu0 0.0
        %5326 = vmatprep.subr.mxu0 0.0
        %5327 = vmatpush1.xpose.msra.mxu0 0.0
        %5328 = vmatprep.subr.mxu0 0.0
        %5329 = vmatpush1.xpose.msra.mxu0 0.0
        %5330 = vmatprep.subr.mxu0 0.0
        %5331 = vmatpush1.xpose.msra.mxu0 0.0
        %5332 = vmatprep.subr.mxu0 0.0
        %5333 = vmatpush1.xpose.msra.mxu0 0.0
        %5334 = vmatprep.subr.mxu0 0.0
        %5335 = vmatpush1.xpose.msra.mxu0 0.0
        %5336 = vmatprep.subr.mxu0 0.0
        %5337 = vmatpush1.xpose.msra.mxu0 0.0
        %5338 = vmatprep.subr.mxu0 0.0
        %5339 = vmatpush1.xpose.msra.mxu0 0.0
        %5340 = vmatprep.subr.mxu0 0.0
        %5341 = vmatpush1.xpose.msra.mxu0 0.0
        %5342 = vmatprep.subr.mxu0 0.0
        %5343 = vmatpush1.xpose.msra.mxu0 0.0
        %5344 = vmatprep.subr.mxu0 0.0
        %5345 = vmatpush1.xpose.msra.mxu0 0.0
        %5346 = vmatprep.subr.mxu0 0.0
        %5347 = vmatpush1.xpose.msra.mxu0 0.0
        %5348 = vmatprep.subr.mxu0 0.0
        %5349 = vmatpush1.xpose.msra.mxu0 0.0
        %5350 = vmatprep.subr.mxu0 0.0
        %5351 = vmatpush1.xpose.msra.mxu0 0.0
        %5352 = vmatprep.subr.mxu0 0.0
        %5353 = vmatpush1.xpose.msra.mxu0 0.0
        %5354 = vmatprep.subr.mxu0 0.0
        %5355 = vmatpush1.xpose.msra.mxu0 0.0
        %5356 = vmatprep.subr.mxu0 0.0
        %5357 = vmatpush1.xpose.msra.mxu0 0.0
        %5358 = vmatprep.subr.mxu0 0.0
        %5359 = vmatpush1.xpose.msra.mxu0 0.0
        %5360 = vmatprep.subr.mxu0 0.0
        %5361 = vmatpush1.xpose.msra.mxu0 0.0
        %5362 = vmatprep.subr.mxu0 0.0
        %5363 = vmatpush1.xpose.msra.mxu0 0.0
        %5364 = vmatprep.subr.mxu0 0.0
        %5365 = vmatpush1.xpose.msra.mxu0 0.0
        %5366 = vmatprep.subr.mxu0 0.0
        %5367 = vmatpush1.xpose.msra.mxu0 0.0
        %5368 = vmatprep.subr.mxu0 0.0
        %5369 = vmatpush1.xpose.msra.mxu0 0.0
        %5370 = vmatprep.subr.mxu0 0.0
        %5371 = vmatpush1.xpose.msra.mxu0 0.0
        %5372 = vmatprep.subr.mxu0 0.0
        %5373 = vmatpush1.xpose.msra.mxu0 0.0
        %5374 = vmatprep.subr.mxu0 0.0
        %5375 = vmatpush1.xpose.msra.mxu0 0.0
        %5376 = vmatprep.mubr.f32.mxu0 0.0
        %5377 = vmatmul.mubr.f32.gmra.mrb[0].mxu0 %v5304
        %v5378 = vpop.f32.mrb[0].mxu0
        %v5379 = vadd.f32 %v665, %v5378
        %v5380 = vpop.f32.mrb[0].mxu0
        %5381 = vmatprep.mubr.f32.mxu0 0.0
        %5382 = vmatmul.mubr.f32.gmra.mrb[0].mxu0 %v5306
        %v5383 = vpop.f32.mrb[0].mxu0
        %v5384 = vadd.f32 %v665, %v5383
        %v5385 = vpop.f32.mrb[0].mxu0
        %5386 = vdwg.mxu0
        %v5387 = vsel %vm757, %v5379, -inf
        %5388 = vmax.xlane.f32.xlu0 %v5387
        %v5389 = vpop.xlane.xlu0 %5388
        %v5390 = vsel %vm757, %v5384, -inf
        %5391 = vmax.xlane.f32.xlu0 %v5390
        %v5392 = vpop.xlane.xlu0 %5391
        %v5393 = vsub.f32 %v5379, %v5389
        %v5394 = vsub.f32 %v5384, %v5392
        %v5395 = vmul.f32 %v5393, 1.442695
        %v5396 = vpow.pop %v5395
        %v5397 = vmul.f32 %v5394, 1.442695
        %v5398 = vpow.pop %v5397
        %v5399 = vsel %vm757, %v5396, 0.0
        %5400 = vadd.xlane.f32.xlu0 %v5399
        %v5401 = vpop.xlane.xlu0 %5400
        %v5402 = vsel %vm757, %v5398, 0.0
        %5403 = vadd.xlane.f32.xlu0 %v5402
        %v5404 = vpop.xlane.xlu0 %5403
        %v5405 = vrcp.pop %v5401
        %v5406 = vrcp.pop %v5404
        %v5407 = vmul.f32 %v5396, %v5405
        %v5408 = vmul.f32 %v5398, %v5406
        %5409 = vrot.lane.b32.xlu0 %v3828, 36
        %v5410 = vpop.permute.xlu0 %5409
        %5411 = vrot.lane.b32.xlu0 %v3833, 36
        %v5412 = vpop.permute.xlu0 %5411
        %v5416 = vsel %vm757, %v5407, 0
        %v5419 = vsel %vm757, %v5408, 0
        %5421 = vmatprep.subr.mxu0 0.0
        %5422 = vmatpush1.msra.mxu0 %v5410
        %5423 = vmatprep.subr.mxu0 0.0
        %5424 = vmatpush1.msra.mxu0 %v5412
        %5425 = vmatprep.subr.mxu0 0.0
        %5426 = vmatpush1.msra.mxu0 0.0
        %5427 = vmatprep.subr.mxu0 0.0
        %5428 = vmatpush1.msra.mxu0 0.0
        %5429 = vmatprep.subr.mxu0 0.0
        %5430 = vmatpush1.msra.mxu0 0.0
        %5431 = vmatprep.subr.mxu0 0.0
        %5432 = vmatpush1.msra.mxu0 0.0
        %5433 = vmatprep.subr.mxu0 0.0
        %5434 = vmatpush1.msra.mxu0 0.0
        %5435 = vmatprep.subr.mxu0 0.0
        %5436 = vmatpush1.msra.mxu0 0.0
        %5437 = vmatprep.subr.mxu0 0.0
        %5438 = vmatpush1.msra.mxu0 0.0
        %5439 = vmatprep.subr.mxu0 0.0
        %5440 = vmatpush1.msra.mxu0 0.0
        %5441 = vmatprep.subr.mxu0 0.0
        %5442 = vmatpush1.msra.mxu0 0.0
        %5443 = vmatprep.subr.mxu0 0.0
        %5444 = vmatpush1.msra.mxu0 0.0
        %5445 = vmatprep.subr.mxu0 0.0
        %5446 = vmatpush1.msra.mxu0 0.0
        %5447 = vmatprep.subr.mxu0 0.0
        %5448 = vmatpush1.msra.mxu0 0.0
        %5449 = vmatprep.subr.mxu0 0.0
        %5450 = vmatpush1.msra.mxu0 0.0
        %5451 = vmatprep.subr.mxu0 0.0
        %5452 = vmatpush1.msra.mxu0 0.0
        %5453 = vmatprep.subr.mxu0 0.0
        %5454 = vmatpush1.msra.mxu0 0.0
        %5455 = vmatprep.subr.mxu0 0.0
        %5456 = vmatpush1.msra.mxu0 0.0
        %5457 = vmatprep.subr.mxu0 0.0
        %5458 = vmatpush1.msra.mxu0 0.0
        %5459 = vmatprep.subr.mxu0 0.0
        %5460 = vmatpush1.msra.mxu0 0.0
        %5461 = vmatprep.subr.mxu0 0.0
        %5462 = vmatpush1.msra.mxu0 0.0
        %5463 = vmatprep.subr.mxu0 0.0
        %5464 = vmatpush1.msra.mxu0 0.0
        %5465 = vmatprep.subr.mxu0 0.0
        %5466 = vmatpush1.msra.mxu0 0.0
        %5467 = vmatprep.subr.mxu0 0.0
        %5468 = vmatpush1.msra.mxu0 0.0
        %5469 = vmatprep.subr.mxu0 0.0
        %5470 = vmatpush1.msra.mxu0 0.0
        %5471 = vmatprep.subr.mxu0 0.0
        %5472 = vmatpush1.msra.mxu0 0.0
        %5473 = vmatprep.subr.mxu0 0.0
        %5474 = vmatpush1.msra.mxu0 0.0
        %5475 = vmatprep.subr.mxu0 0.0
        %5476 = vmatpush1.msra.mxu0 0.0
        %5477 = vmatprep.subr.mxu0 0.0
        %5478 = vmatpush1.msra.mxu0 0.0
        %5479 = vmatprep.subr.mxu0 0.0
        %5480 = vmatpush1.msra.mxu0 0.0
        %5481 = vmatprep.subr.mxu0 0.0
        %5482 = vmatpush1.msra.mxu0 0.0
        %5483 = vmatprep.subr.mxu0 0.0
        %5484 = vmatpush1.msra.mxu0 0.0
        %5485 = vmatprep.mubr.f32.mxu0 0.0
        %5486 = vmatmul.mubr.f32.gmra.mrb[0].mxu0 %v5416
        %v5487 = vpop.f32.mrb[0].mxu0
        %v5488 = vadd.f32 0.0, %v5487
        %v5489 = vpop.f32.mrb[0].mxu0
        %5490 = vmatprep.mubr.f32.mxu0 0.0
        %5491 = vmatmul.mubr.f32.gmra.mrb[0].mxu0 %v5419
        %v5492 = vpop.f32.mrb[0].mxu0
        %v5493 = vadd.f32 0.0, %v5492
        %v5494 = vpop.f32.mrb[0].mxu0
        %5495 = vdwg.mxu0
        %5498 = vrot.lane.b32.xlu0 %v5488, 28
        %v5499 = vpop.permute.xlu0 %5498
        %5500 = vrot.lane.b32.xlu0 %v5493, 28
        %v5501 = vpop.permute.xlu0 %5500
        %5504 = vst.msk [vmem:[#allocation2] sm:$0xff] %vm2343, %v5499
        %5505 = vst.msk [vmem:[#allocation2 + $0x8] sm:$0xff] %vm2343, %v5501
        %v5506 = vld [vmem:[#allocation2] sm:$0xff]
        %v5507 = vld [vmem:[#allocation2 + $0x8] sm:$0xff]
        %s5508 = scalar_lea.vmem %s4, 32
        %v5509 = vld [vmem:[%s5508] sm:$0xff]
        %v5510 = vld [vmem:[%s5508 + $0x8] sm:$0xff]
        %v5511 = vld [vmem:[%s5508 + $0x10] sm:$0xff]
        %v5512 = vld [vmem:[%s5508 + $0x18] sm:$0xff]
        %s5513 = scalar_lea.vmem %s5, 1
        %v5514 = vld [vmem:[%s5513] sm:$0x1]
        %v5516 = vlaneseq
        %v5517 = vshrl.u32 %v5516, 7
        %v5518 = vsub.s32 0, %v5517
        %v5519 = vrot.slane %v5514, %v5518
        %v5522 = vsel %vm579, %v5506, 0
        %v5525 = vsel %vm579, %v5507, 0
        %5527 = vmatprep.subr.mxu0 0.0
        %5528 = vmatpush1.msra.mxu0 %v5509
        %5529 = vmatprep.subr.mxu0 0.0
        %5530 = vmatpush1.msra.mxu0 %v5510
        %5531 = vmatprep.subr.mxu0 0.0
        %5532 = vmatpush1.msra.mxu0 %v5511
        %5533 = vmatprep.subr.mxu0 0.0
        %5534 = vmatpush1.msra.mxu0 %v5512
        %5535 = vmatprep.subr.mxu0 0.0
        %5536 = vmatpush1.msra.mxu0 0.0
        %5537 = vmatprep.subr.mxu0 0.0
        %5538 = vmatpush1.msra.mxu0 0.0
        %5539 = vmatprep.subr.mxu0 0.0
        %5540 = vmatpush1.msra.mxu0 0.0
        %5541 = vmatprep.subr.mxu0 0.0
        %5542 = vmatpush1.msra.mxu0 0.0
        %5543 = vmatprep.subr.mxu0 0.0
        %5544 = vmatpush1.msra.mxu0 0.0
        %5545 = vmatprep.subr.mxu0 0.0
        %5546 = vmatpush1.msra.mxu0 0.0
        %5547 = vmatprep.subr.mxu0 0.0
        %5548 = vmatpush1.msra.mxu0 0.0
        %5549 = vmatprep.subr.mxu0 0.0
        %5550 = vmatpush1.msra.mxu0 0.0
        %5551 = vmatprep.subr.mxu0 0.0
        %5552 = vmatpush1.msra.mxu0 0.0
        %5553 = vmatprep.subr.mxu0 0.0
        %5554 = vmatpush1.msra.mxu0 0.0
        %5555 = vmatprep.subr.mxu0 0.0
        %5556 = vmatpush1.msra.mxu0 0.0
        %5557 = vmatprep.subr.mxu0 0.0
        %5558 = vmatpush1.msra.mxu0 0.0
        %5559 = vmatprep.subr.mxu0 0.0
        %5560 = vmatpush1.msra.mxu0 0.0
        %5561 = vmatprep.subr.mxu0 0.0
        %5562 = vmatpush1.msra.mxu0 0.0
        %5563 = vmatprep.subr.mxu0 0.0
        %5564 = vmatpush1.msra.mxu0 0.0
        %5565 = vmatprep.subr.mxu0 0.0
        %5566 = vmatpush1.msra.mxu0 0.0
        %5567 = vmatprep.subr.mxu0 0.0
        %5568 = vmatpush1.msra.mxu0 0.0
        %5569 = vmatprep.subr.mxu0 0.0
        %5570 = vmatpush1.msra.mxu0 0.0
        %5571 = vmatprep.subr.mxu0 0.0
        %5572 = vmatpush1.msra.mxu0 0.0
        %5573 = vmatprep.subr.mxu0 0.0
        %5574 = vmatpush1.msra.mxu0 0.0
        %5575 = vmatprep.subr.mxu0 0.0
        %5576 = vmatpush1.msra.mxu0 0.0
        %5577 = vmatprep.subr.mxu0 0.0
        %5578 = vmatpush1.msra.mxu0 0.0
        %5579 = vmatprep.subr.mxu0 0.0
        %5580 = vmatpush1.msra.mxu0 0.0
        %5581 = vmatprep.subr.mxu0 0.0
        %5582 = vmatpush1.msra.mxu0 0.0
        %5583 = vmatprep.subr.mxu0 0.0
        %5584 = vmatpush1.msra.mxu0 0.0
        %5585 = vmatprep.subr.mxu0 0.0
        %5586 = vmatpush1.msra.mxu0 0.0
        %5587 = vmatprep.subr.mxu0 0.0
        %5588 = vmatpush1.msra.mxu0 0.0
        %5589 = vmatprep.subr.mxu0 0.0
        %5590 = vmatpush1.msra.mxu0 0.0
        %5591 = vmatprep.mubr.f32.mxu0 0.0
        %5592 = vmatmul.mubr.f32.gmra.mrb[0].mxu0 %v5522
        %v5593 = vpop.f32.mrb[0].mxu0
        %v5594 = vadd.f32 %v5519, %v5593
        %v5595 = vpop.f32.mrb[0].mxu0
        %5596 = vmatprep.mubr.f32.mxu0 0.0
        %5597 = vmatmul.mubr.f32.gmra.mrb[0].mxu0 %v5525
        %v5598 = vpop.f32.mrb[0].mxu0
        %v5599 = vadd.f32 %v5519, %v5598
        %v5600 = vpop.f32.mrb[0].mxu0
        %5601 = vdwg.mxu0
        %v5602 = vadd.f32 %v3740, %v5594
        %v5603 = vadd.f32 %v3741, %v5599
        %s5604 = scalar_lea.vmem %s6, 1
        %v5605 = vld [vmem:[%s5604] sm:$0x1]
        %s5606 = scalar_lea.vmem %s7, 1
        %v5607 = vld [vmem:[%s5606] sm:$0x1]
        %v5608 = vsel %vm579, %v5602, 0.0
        %5609 = vadd.xlane.f32.xlu0 %v5608
        %v5610 = vpop.xlane.xlu0 %5609
        %v5611 = vsel %vm579, %v5603, 0.0
        %5612 = vadd.xlane.f32.xlu0 %v5611
        %v5613 = vpop.xlane.xlu0 %5612
        %v5614 = vmul.f32 %v5610, %v2450
        %v5615 = vmul.f32 %v5613, %v2450
        %v5616 = vsub.f32 %v5602, %v5614
        %v5617 = vsub.f32 %v5603, %v5615
        %v5618 = vmul.f32 %v5616, %v5616
        %v5619 = vmul.f32 %v5617, %v5617
        %v5620 = vsel %vm579, %v5618, 0.0
        %5621 = vadd.xlane.f32.xlu0 %v5620
        %v5622 = vpop.xlane.xlu0 %5621
        %v5623 = vsel %vm579, %v5619, 0.0
        %5624 = vadd.xlane.f32.xlu0 %v5623
        %v5625 = vpop.xlane.xlu0 %5624
        %v5626 = vmul.f32 %v5622, %v2450
        %v5627 = vmul.f32 %v5625, %v2450
        %v5628 = vadd.f32 %v5626, 1e-05
        %v5629 = vadd.f32 %v5627, 1e-05
        %v5630 = vrsqrt.pop %v5628
        %v5631 = vrsqrt.pop %v5629
        %v5632 = vmul.f32 %v5616, %v5630
        %v5633 = vmul.f32 %v5617, %v5631
        %v5635 = vlaneseq
        %v5636 = vshrl.u32 %v5635, 7
        %v5637 = vsub.s32 0, %v5636
        %v5638 = vrot.slane %v5605, %v5637
        %v5640 = vmul.f32 %v5632, %v5638
        %v5641 = vmul.f32 %v5633, %v5638
        %v5643 = vlaneseq
        %v5644 = vshrl.u32 %v5643, 7
        %v5645 = vsub.s32 0, %v5644
        %v5646 = vrot.slane %v5607, %v5645
        %v5648 = vadd.f32 %v5640, %v5646
        %v5649 = vadd.f32 %v5641, %v5646
        %v5650 = vpack.c.bf16 %v5649, %v5648
        %s5651 = scalar_lea.vmem [#allocation3], 256
        %v5652 = vld [vmem:[%s5651] sm:$0xff]
        %v5653 = vld [vmem:[%s5651 + $0x8] sm:$0xff]
        %v5654 = vld [vmem:[%s5651 + $0x40] sm:$0xff]
        %v5655 = vld [vmem:[%s5651 + $0x48] sm:$0xff]
        %v5656 = vld [vmem:[%s5651 + $0x80] sm:$0xff]
        %v5657 = vld [vmem:[%s5651 + $0x88] sm:$0xff]
        %v5658 = vld [vmem:[%s5651 + $0xc0] sm:$0xff]
        %v5659 = vld [vmem:[%s5651 + $0xc8] sm:$0xff]
        %s5660 = scalar_lea.vmem %s9, 16
        %v5661 = vld [vmem:[%s5660] sm:$0xf]
        %v5663 = vlaneseq
        %v5664 = vshrl.u32 %v5663, 7
        %v5665 = vsub.s32 0, %v5664
        %v5666 = vrot.slane %v5661, %v5665
        %v5667 = vlaneseq
        %v5668 = vshrl.u32 %v5667, 7
        %v5669 = vsub.s32 1, %v5668
        %v5670 = vrot.slane %v5661, %v5669
        %v5671 = vlaneseq
        %v5672 = vshrl.u32 %v5671, 7
        %v5673 = vsub.s32 2, %v5672
        %v5674 = vrot.slane %v5661, %v5673
        %v5675 = vlaneseq
        %v5676 = vshrl.u32 %v5675, 7
        %v5677 = vsub.s32 3, %v5676
        %v5678 = vrot.slane %v5661, %v5677
        %v5691 = vunpack.c.l.b16 %v5652
        %v5692 = vunpack.c.h.b16 %v5652
        %v5693 = vunpack.c.l.b16 %v5653
        %v5694 = vunpack.c.h.b16 %v5653
        %v5695 = vunpack.c.l.b16 %v5654
        %v5696 = vunpack.c.h.b16 %v5654
        %v5697 = vunpack.c.l.b16 %v5655
        %v5698 = vunpack.c.h.b16 %v5655
        %v5699 = vunpack.c.l.b16 %v5656
        %v5700 = vunpack.c.h.b16 %v5656
        %v5701 = vunpack.c.l.b16 %v5657
        %v5702 = vunpack.c.h.b16 %v5657
        %v5703 = vunpack.c.l.b16 %v5658
        %v5704 = vunpack.c.h.b16 %v5658
        %v5705 = vunpack.c.l.b16 %v5659
        %v5706 = vunpack.c.h.b16 %v5659
        %v5707 = vpack.c.b16 %v5695, %v5691
        %v5708 = vpack.c.b16 %v5696, %v5692
        %v5709 = vpack.c.b16 %v5697, %v5693
        %v5710 = vpack.c.b16 %v5698, %v5694
        %v5711 = vpack.c.b16 %v5703, %v5699
        %v5712 = vpack.c.b16 %v5704, %v5700
        %v5713 = vpack.c.b16 %v5705, %v5701
        %v5714 = vpack.c.b16 %v5706, %v5702
        %v5724 = vsel %vm579, %v5650, 0
        %5726 = vmatprep.subr.bf16.mxu0 %v5708
        %5727 = vmatpush1.bf16.msra.mxu0 %v5707
        %5728 = vmatprep.subr.bf16.mxu0 %v5712
        %5729 = vmatpush1.bf16.msra.mxu0 %v5711
        %5730 = vmatprep.subr.bf16.mxu0 0
        %5731 = vmatpush1.bf16.msra.mxu0 0
        %5732 = vmatprep.subr.bf16.mxu0 0
        %5733 = vmatpush1.bf16.msra.mxu0 0
        %5734 = vmatprep.subr.bf16.mxu0 0
        %5735 = vmatpush1.bf16.msra.mxu0 0
        %5736 = vmatprep.subr.bf16.mxu0 0
        %5737 = vmatpush1.bf16.msra.mxu0 0
        %5738 = vmatprep.subr.bf16.mxu0 0
        %5739 = vmatpush1.bf16.msra.mxu0 0
        %5740 = vmatprep.subr.bf16.mxu0 0
        %5741 = vmatpush1.bf16.msra.mxu0 0
        %5742 = vmatprep.subr.bf16.mxu0 0
        %5743 = vmatpush1.bf16.msra.mxu0 0
        %5744 = vmatprep.subr.bf16.mxu0 0
        %5745 = vmatpush1.bf16.msra.mxu0 0
        %5746 = vmatprep.subr.bf16.mxu0 0
        %5747 = vmatpush1.bf16.msra.mxu0 0
        %5748 = vmatprep.subr.bf16.mxu0 0
        %5749 = vmatpush1.bf16.msra.mxu0 0
        %5750 = vmatprep.subr.bf16.mxu0 0
        %5751 = vmatpush1.bf16.msra.mxu0 0
        %5752 = vmatprep.subr.bf16.mxu0 0
        %5753 = vmatpush1.bf16.msra.mxu0 0
        %5754 = vmatprep.subr.bf16.mxu0 0
        %5755 = vmatpush1.bf16.msra.mxu0 0
        %5756 = vmatprep.subr.bf16.mxu0 0
        %5757 = vmatpush1.bf16.msra.mxu0 0
        %5758 = vmatprep.mubr.bf16.mxu0 0
        %5759 = vmatmul.mubr.bf16.gmra.mrb[0].mxu0 %v5724
        %v5760 = vpop.f32.mrb[0].mxu0
        %v5761 = vadd.f32 %v5666, %v5760
        %v5762 = vpop.f32.mrb[0].mxu0
        %v5763 = vadd.f32 %v5670, %v5762
        %v5764 = vpop.f32.mrb[0].mxu0
        %v5765 = vadd.f32 %v5666, %v5764
        %v5766 = vpop.f32.mrb[0].mxu0
        %v5767 = vadd.f32 %v5670, %v5766
        %5768 = vdwg.mxu0
        %5769 = vmatprep.subr.bf16.mxu0 %v5710
        %5770 = vmatpush1.bf16.msra.mxu0 %v5709
        %5771 = vmatprep.subr.bf16.mxu0 %v5714
        %5772 = vmatpush1.bf16.msra.mxu0 %v5713
        %5773 = vmatprep.subr.bf16.mxu0 0
        %5774 = vmatpush1.bf16.msra.mxu0 0
        %5775 = vmatprep.subr.bf16.mxu0 0
        %5776 = vmatpush1.bf16.msra.mxu0 0
        %5777 = vmatprep.subr.bf16.mxu0 0
        %5778 = vmatpush1.bf16.msra.mxu0 0
        %5779 = vmatprep.subr.bf16.mxu0 0
        %5780 = vmatpush1.bf16.msra.mxu0 0
        %5781 = vmatprep.subr.bf16.mxu0 0
        %5782 = vmatpush1.bf16.msra.mxu0 0
        %5783 = vmatprep.subr.bf16.mxu0 0
        %5784 = vmatpush1.bf16.msra.mxu0 0
        %5785 = vmatprep.subr.bf16.mxu0 0
        %5786 = vmatpush1.bf16.msra.mxu0 0
        %5787 = vmatprep.subr.bf16.mxu0 0
        %5788 = vmatpush1.bf16.msra.mxu0 0
        %5789 = vmatprep.subr.bf16.mxu0 0
        %5790 = vmatpush1.bf16.msra.mxu0 0
        %5791 = vmatprep.subr.bf16.mxu0 0
        %5792 = vmatpush1.bf16.msra.mxu0 0
        %5793 = vmatprep.subr.bf16.mxu0 0
        %5794 = vmatpush1.bf16.msra.mxu0 0
        %5795 = vmatprep.subr.bf16.mxu0 0
        %5796 = vmatpush1.bf16.msra.mxu0 0
        %5797 = vmatprep.subr.bf16.mxu0 0
        %5798 = vmatpush1.bf16.msra.mxu0 0
        %5799 = vmatprep.subr.bf16.mxu0 0
        %5800 = vmatpush1.bf16.msra.mxu0 0
        %5801 = vmatprep.mubr.bf16.mxu0 0
        %5802 = vmatmul.mubr.bf16.gmra.mrb[0].mxu0 %v5724
        %v5803 = vpop.f32.mrb[0].mxu0
        %v5804 = vadd.f32 %v5674, %v5803
        %v5805 = vpop.f32.mrb[0].mxu0
        %v5806 = vadd.f32 %v5678, %v5805
        %v5807 = vpop.f32.mrb[0].mxu0
        %v5808 = vadd.f32 %v5674, %v5807
        %v5809 = vpop.f32.mrb[0].mxu0
        %v5810 = vadd.f32 %v5678, %v5809
        %5811 = vdwg.mxu0
        %v5812 = vmax.f32 %v5761, 0.0
        %v5813 = vmax.f32 %v5763, 0.0
        %v5814 = vmax.f32 %v5804, 0.0
        %v5815 = vmax.f32 %v5806, 0.0
        %v5816 = vmax.f32 %v5765, 0.0
        %v5817 = vmax.f32 %v5767, 0.0
        %v5818 = vmax.f32 %v5808, 0.0
        %v5819 = vmax.f32 %v5810, 0.0
        %v5820 = vpack.c.bf16 %v5816, %v5812
        %v5821 = vpack.c.bf16 %v5817, %v5813
        %v5822 = vpack.c.bf16 %v5818, %v5814
        %v5823 = vpack.c.bf16 %v5819, %v5815
        %s5824 = scalar_lea.vmem [#allocation5], 256
        %v5825 = vld [vmem:[%s5824] sm:$0xff]
        %v5826 = vld [vmem:[%s5824 + $0x8] sm:$0xff]
        %v5827 = vld [vmem:[%s5824 + $0x40] sm:$0xff]
        %v5828 = vld [vmem:[%s5824 + $0x48] sm:$0xff]
        %v5829 = vld [vmem:[%s5824 + $0x80] sm:$0xff]
        %v5830 = vld [vmem:[%s5824 + $0x88] sm:$0xff]
        %v5831 = vld [vmem:[%s5824 + $0xc0] sm:$0xff]
        %v5832 = vld [vmem:[%s5824 + $0xc8] sm:$0xff]
        %v5833 = vld [vmem:[%s5651 + $0x10] sm:$0xff]
        %v5834 = vld [vmem:[%s5651 + $0x18] sm:$0xff]
        %v5835 = vld [vmem:[%s5651 + $0x50] sm:$0xff]
        %v5836 = vld [vmem:[%s5651 + $0x58] sm:$0xff]
        %v5837 = vld [vmem:[%s5651 + $0x90] sm:$0xff]
        %v5838 = vld [vmem:[%s5651 + $0x98] sm:$0xff]
        %v5839 = vld [vmem:[%s5651 + $0xd0] sm:$0xff]
        %v5840 = vld [vmem:[%s5651 + $0xd8] sm:$0xff]
        %v5841 = vld [vmem:[%s5660 + $0x4] sm:$0xf]
        %v5843 = vlaneseq
        %v5844 = vshrl.u32 %v5843, 7
        %v5845 = vsub.s32 0, %v5844
        %v5846 = vrot.slane %v5841, %v5845
        %v5847 = vlaneseq
        %v5848 = vshrl.u32 %v5847, 7
        %v5849 = vsub.s32 1, %v5848
        %v5850 = vrot.slane %v5841, %v5849
        %v5851 = vlaneseq
        %v5852 = vshrl.u32 %v5851, 7
        %v5853 = vsub.s32 2, %v5852
        %v5854 = vrot.slane %v5841, %v5853
        %v5855 = vlaneseq
        %v5856 = vshrl.u32 %v5855, 7
        %v5857 = vsub.s32 3, %v5856
        %v5858 = vrot.slane %v5841, %v5857
        %v5871 = vunpack.c.l.b16 %v5833
        %v5872 = vunpack.c.h.b16 %v5833
        %v5873 = vunpack.c.l.b16 %v5834
        %v5874 = vunpack.c.h.b16 %v5834
        %v5875 = vunpack.c.l.b16 %v5835
        %v5876 = vunpack.c.h.b16 %v5835
        %v5877 = vunpack.c.l.b16 %v5836
        %v5878 = vunpack.c.h.b16 %v5836
        %v5879 = vunpack.c.l.b16 %v5837
        %v5880 = vunpack.c.h.b16 %v5837
        %v5881 = vunpack.c.l.b16 %v5838
        %v5882 = vunpack.c.h.b16 %v5838
        %v5883 = vunpack.c.l.b16 %v5839
        %v5884 = vunpack.c.h.b16 %v5839
        %v5885 = vunpack.c.l.b16 %v5840
        %v5886 = vunpack.c.h.b16 %v5840
        %v5887 = vpack.c.b16 %v5875, %v5871
        %v5888 = vpack.c.b16 %v5876, %v5872
        %v5889 = vpack.c.b16 %v5877, %v5873
        %v5890 = vpack.c.b16 %v5878, %v5874
        %v5891 = vpack.c.b16 %v5883, %v5879
        %v5892 = vpack.c.b16 %v5884, %v5880
        %v5893 = vpack.c.b16 %v5885, %v5881
        %v5894 = vpack.c.b16 %v5886, %v5882
        %5903 = vmatprep.subr.bf16.mxu0 %v5888
        %5904 = vmatpush1.bf16.msra.mxu0 %v5887
        %5905 = vmatprep.subr.bf16.mxu0 %v5892
        %5906 = vmatpush1.bf16.msra.mxu0 %v5891
        %5907 = vmatprep.subr.bf16.mxu0 0
        %5908 = vmatpush1.bf16.msra.mxu0 0
        %5909 = vmatprep.subr.bf16.mxu0 0
        %5910 = vmatpush1.bf16.msra.mxu0 0
        %5911 = vmatprep.subr.bf16.mxu0 0
        %5912 = vmatpush1.bf16.msra.mxu0 0
        %5913 = vmatprep.subr.bf16.mxu0 0
        %5914 = vmatpush1.bf16.msra.mxu0 0
        %5915 = vmatprep.subr.bf16.mxu0 0
        %5916 = vmatpush1.bf16.msra.mxu0 0
        %5917 = vmatprep.subr.bf16.mxu0 0
        %5918 = vmatpush1.bf16.msra.mxu0 0
        %5919 = vmatprep.subr.bf16.mxu0 0
        %5920 = vmatpush1.bf16.msra.mxu0 0
        %5921 = vmatprep.subr.bf16.mxu0 0
        %5922 = vmatpush1.bf16.msra.mxu0 0
        %5923 = vmatprep.subr.bf16.mxu0 0
        %5924 = vmatpush1.bf16.msra.mxu0 0
        %5925 = vmatprep.subr.bf16.mxu0 0
        %5926 = vmatpush1.bf16.msra.mxu0 0
        %5927 = vmatprep.subr.bf16.mxu0 0
        %5928 = vmatpush1.bf16.msra.mxu0 0
        %5929 = vmatprep.subr.bf16.mxu0 0
        %5930 = vmatpush1.bf16.msra.mxu0 0
        %5931 = vmatprep.subr.bf16.mxu0 0
        %5932 = vmatpush1.bf16.msra.mxu0 0
        %5933 = vmatprep.subr.bf16.mxu0 0
        %5934 = vmatpush1.bf16.msra.mxu0 0
        %5935 = vmatprep.mubr.bf16.mxu0 0
        %5936 = vmatmul.mubr.bf16.gmra.mrb[0].mxu0 %v5724
        %v5937 = vpop.f32.mrb[0].mxu0
        %v5938 = vadd.f32 %v5846, %v5937
        %v5939 = vpop.f32.mrb[0].mxu0
        %v5940 = vadd.f32 %v5850, %v5939
        %v5941 = vpop.f32.mrb[0].mxu0
        %v5942 = vadd.f32 %v5846, %v5941
        %v5943 = vpop.f32.mrb[0].mxu0
        %v5944 = vadd.f32 %v5850, %v5943
        %5945 = vdwg.mxu0
        %5946 = vmatprep.subr.bf16.mxu0 %v5890
        %5947 = vmatpush1.bf16.msra.mxu0 %v5889
        %5948 = vmatprep.subr.bf16.mxu0 %v5894
        %5949 = vmatpush1.bf16.msra.mxu0 %v5893
        %5950 = vmatprep.subr.bf16.mxu0 0
        %5951 = vmatpush1.bf16.msra.mxu0 0
        %5952 = vmatprep.subr.bf16.mxu0 0
        %5953 = vmatpush1.bf16.msra.mxu0 0
        %5954 = vmatprep.subr.bf16.mxu0 0
        %5955 = vmatpush1.bf16.msra.mxu0 0
        %5956 = vmatprep.subr.bf16.mxu0 0
        %5957 = vmatpush1.bf16.msra.mxu0 0
        %5958 = vmatprep.subr.bf16.mxu0 0
        %5959 = vmatpush1.bf16.msra.mxu0 0
        %5960 = vmatprep.subr.bf16.mxu0 0
        %5961 = vmatpush1.bf16.msra.mxu0 0
        %5962 = vmatprep.subr.bf16.mxu0 0
        %5963 = vmatpush1.bf16.msra.mxu0 0
        %5964 = vmatprep.subr.bf16.mxu0 0
        %5965 = vmatpush1.bf16.msra.mxu0 0
        %5966 = vmatprep.subr.bf16.mxu0 0
        %5967 = vmatpush1.bf16.msra.mxu0 0
        %5968 = vmatprep.subr.bf16.mxu0 0
        %5969 = vmatpush1.bf16.msra.mxu0 0
        %5970 = vmatprep.subr.bf16.mxu0 0
        %5971 = vmatpush1.bf16.msra.mxu0 0
        %5972 = vmatprep.subr.bf16.mxu0 0
        %5973 = vmatpush1.bf16.msra.mxu0 0
        %5974 = vmatprep.subr.bf16.mxu0 0
        %5975 = vmatpush1.bf16.msra.mxu0 0
        %5976 = vmatprep.subr.bf16.mxu0 0
        %5977 = vmatpush1.bf16.msra.mxu0 0
        %5978 = vmatprep.mubr.bf16.mxu0 0
        %5979 = vmatmul.mubr.bf16.gmra.mrb[0].mxu0 %v5724
        %v5980 = vpop.f32.mrb[0].mxu0
        %v5981 = vadd.f32 %v5854, %v5980
        %v5982 = vpop.f32.mrb[0].mxu0
        %v5983 = vadd.f32 %v5858, %v5982
        %v5984 = vpop.f32.mrb[0].mxu0
        %v5985 = vadd.f32 %v5854, %v5984
        %v5986 = vpop.f32.mrb[0].mxu0
        %v5987 = vadd.f32 %v5858, %v5986
        %5988 = vdwg.mxu0
        %v5989 = vmax.f32 %v5938, 0.0
        %v5990 = vmax.f32 %v5940, 0.0
        %v5991 = vmax.f32 %v5981, 0.0
        %v5992 = vmax.f32 %v5983, 0.0
        %v5993 = vmax.f32 %v5942, 0.0
        %v5994 = vmax.f32 %v5944, 0.0
        %v5995 = vmax.f32 %v5985, 0.0
        %v5996 = vmax.f32 %v5987, 0.0
        %v5997 = vpack.c.bf16 %v5993, %v5989
        %v5998 = vpack.c.bf16 %v5994, %v5990
        %v5999 = vpack.c.bf16 %v5995, %v5991
        %v6000 = vpack.c.bf16 %v5996, %v5992
        %v6001 = vld [vmem:[%s5824 + $0x10] sm:$0xff]
        %v6002 = vld [vmem:[%s5824 + $0x18] sm:$0xff]
        %v6003 = vld [vmem:[%s5824 + $0x50] sm:$0xff]
        %v6004 = vld [vmem:[%s5824 + $0x58] sm:$0xff]
        %v6005 = vld [vmem:[%s5824 + $0x90] sm:$0xff]
        %v6006 = vld [vmem:[%s5824 + $0x98] sm:$0xff]
        %v6007 = vld [vmem:[%s5824 + $0xd0] sm:$0xff]
        %v6008 = vld [vmem:[%s5824 + $0xd8] sm:$0xff]
        %v6017 = vunpack.c.l.b16 %v6001
        %v6018 = vunpack.c.h.b16 %v6001
        %v6019 = vunpack.c.l.b16 %v6002
        %v6020 = vunpack.c.h.b16 %v6002
        %v6021 = vunpack.c.l.b16 %v6003
        %v6022 = vunpack.c.h.b16 %v6003
        %v6023 = vunpack.c.l.b16 %v6004
        %v6024 = vunpack.c.h.b16 %v6004
        %v6025 = vunpack.c.l.b16 %v6005
        %v6026 = vunpack.c.h.b16 %v6005
        %v6027 = vunpack.c.l.b16 %v6006
        %v6028 = vunpack.c.h.b16 %v6006
        %v6029 = vunpack.c.l.b16 %v6007
        %v6030 = vunpack.c.h.b16 %v6007
        %v6031 = vunpack.c.l.b16 %v6008
        %v6032 = vunpack.c.h.b16 %v6008
        %v6033 = vpack.c.b16 %v6021, %v6017
        %v6034 = vpack.c.b16 %v6022, %v6018
        %v6035 = vpack.c.b16 %v6023, %v6019
        %v6036 = vpack.c.b16 %v6024, %v6020
        %v6037 = vpack.c.b16 %v6029, %v6025
        %v6038 = vpack.c.b16 %v6030, %v6026
        %v6039 = vpack.c.b16 %v6031, %v6027
        %v6040 = vpack.c.b16 %v6032, %v6028
        %6049 = vmatprep.subr.bf16.mxu0 %v6034
        %6050 = vmatpush1.bf16.xpose.msra.mxu0 %v6033
        %6051 = vmatprep.subr.bf16.mxu0 %v6038
        %6052 = vmatpush1.bf16.xpose.msra.mxu0 %v6037
        %6053 = vmatprep.subr.bf16.mxu0 0
        %6054 = vmatpush1.bf16.xpose.msra.mxu0 0
        %6055 = vmatprep.subr.bf16.mxu0 0
        %6056 = vmatpush1.bf16.xpose.msra.mxu0 0
        %6057 = vmatprep.subr.bf16.mxu0 0
        %6058 = vmatpush1.bf16.xpose.msra.mxu0 0
        %6059 = vmatprep.subr.bf16.mxu0 0
        %6060 = vmatpush1.bf16.xpose.msra.mxu0 0
        %6061 = vmatprep.subr.bf16.mxu0 0
        %6062 = vmatpush1.bf16.xpose.msra.mxu0 0
        %6063 = vmatprep.subr.bf16.mxu0 0
        %6064 = vmatpush1.bf16.xpose.msra.mxu0 0
        %6065 = vmatprep.subr.bf16.mxu0 0
        %6066 = vmatpush1.bf16.xpose.msra.mxu0 0
        %6067 = vmatprep.subr.bf16.mxu0 0
        %6068 = vmatpush1.bf16.xpose.msra.mxu0 0
        %6069 = vmatprep.subr.bf16.mxu0 0
        %6070 = vmatpush1.bf16.xpose.msra.mxu0 0
        %6071 = vmatprep.subr.bf16.mxu0 0
        %6072 = vmatpush1.bf16.xpose.msra.mxu0 0
        %6073 = vmatprep.subr.bf16.mxu0 0
        %6074 = vmatpush1.bf16.xpose.msra.mxu0 0
        %6075 = vmatprep.subr.bf16.mxu0 0
        %6076 = vmatpush1.bf16.xpose.msra.mxu0 0
        %6077 = vmatprep.subr.bf16.mxu0 0
        %6078 = vmatpush1.bf16.xpose.msra.mxu0 0
        %6079 = vmatprep.subr.bf16.mxu0 0
        %6080 = vmatpush1.bf16.xpose.msra.mxu0 0
        %6081 = vmatprep.mubr.bf16.mxu0 %v5998
        %6082 = vmatmul.mubr.bf16.gmra.mrb[0].mxu0 %v5997
        %v6083 = vpop.f32.mrb[0].mxu0
        %v6084 = vadd.f32 0.0, %v6083
        %v6085 = vpop.f32.mrb[0].mxu0
        %v6086 = vpop.f32.mrb[0].mxu0
        %v6087 = vpop.f32.mrb[0].mxu0
        %6088 = vdwg.mxu0
        %6089 = vmatprep.subr.bf16.mxu0 %v6036
        %6090 = vmatpush1.bf16.xpose.msra.mxu0 %v6035
        %6091 = vmatprep.subr.bf16.mxu0 %v6040
        %6092 = vmatpush1.bf16.xpose.msra.mxu0 %v6039
        %6093 = vmatprep.subr.bf16.mxu0 0
        %6094 = vmatpush1.bf16.xpose.msra.mxu0 0
        %6095 = vmatprep.subr.bf16.mxu0 0
        %6096 = vmatpush1.bf16.xpose.msra.mxu0 0
        %6097 = vmatprep.subr.bf16.mxu0 0
        %6098 = vmatpush1.bf16.xpose.msra.mxu0 0
        %6099 = vmatprep.subr.bf16.mxu0 0
        %6100 = vmatpush1.bf16.xpose.msra.mxu0 0
        %6101 = vmatprep.subr.bf16.mxu0 0
        %6102 = vmatpush1.bf16.xpose.msra.mxu0 0
        %6103 = vmatprep.subr.bf16.mxu0 0
        %6104 = vmatpush1.bf16.xpose.msra.mxu0 0
        %6105 = vmatprep.subr.bf16.mxu0 0
        %6106 = vmatpush1.bf16.xpose.msra.mxu0 0
        %6107 = vmatprep.subr.bf16.mxu0 0
        %6108 = vmatpush1.bf16.xpose.msra.mxu0 0
        %6109 = vmatprep.subr.bf16.mxu0 0
        %6110 = vmatpush1.bf16.xpose.msra.mxu0 0
        %6111 = vmatprep.subr.bf16.mxu0 0
        %6112 = vmatpush1.bf16.xpose.msra.mxu0 0
        %6113 = vmatprep.subr.bf16.mxu0 0
        %6114 = vmatpush1.bf16.xpose.msra.mxu0 0
        %6115 = vmatprep.subr.bf16.mxu0 0
        %6116 = vmatpush1.bf16.xpose.msra.mxu0 0
        %6117 = vmatprep.subr.bf16.mxu0 0
        %6118 = vmatpush1.bf16.xpose.msra.mxu0 0
        %6119 = vmatprep.subr.bf16.mxu0 0
        %6120 = vmatpush1.bf16.xpose.msra.mxu0 0
        %6121 = vmatprep.mubr.bf16.mxu0 %v6000
        %6122 = vmatmul.mubr.bf16.gmra.mrb[0].mxu0 %v5999
        %v6123 = vpop.f32.mrb[0].mxu0
        %v6124 = vadd.f32 %v6084, %v6123
        %v6125 = vpop.f32.mrb[0].mxu0
        %v6126 = vpop.f32.mrb[0].mxu0
        %v6127 = vpop.f32.mrb[0].mxu0
        %6128 = vdwg.mxu0
        %v6137 = vunpack.c.l.b16 %v5825
        %v6138 = vunpack.c.h.b16 %v5825
        %v6139 = vunpack.c.l.b16 %v5826
        %v6140 = vunpack.c.h.b16 %v5826
        %v6141 = vunpack.c.l.b16 %v5827
        %v6142 = vunpack.c.h.b16 %v5827
        %v6143 = vunpack.c.l.b16 %v5828
        %v6144 = vunpack.c.h.b16 %v5828
        %v6145 = vunpack.c.l.b16 %v5829
        %v6146 = vunpack.c.h.b16 %v5829
        %v6147 = vunpack.c.l.b16 %v5830
        %v6148 = vunpack.c.h.b16 %v5830
        %v6149 = vunpack.c.l.b16 %v5831
        %v6150 = vunpack.c.h.b16 %v5831
        %v6151 = vunpack.c.l.b16 %v5832
        %v6152 = vunpack.c.h.b16 %v5832
        %v6153 = vpack.c.b16 %v6141, %v6137
        %v6154 = vpack.c.b16 %v6142, %v6138
        %v6155 = vpack.c.b16 %v6143, %v6139
        %v6156 = vpack.c.b16 %v6144, %v6140
        %v6157 = vpack.c.b16 %v6149, %v6145
        %v6158 = vpack.c.b16 %v6150, %v6146
        %v6159 = vpack.c.b16 %v6151, %v6147
        %v6160 = vpack.c.b16 %v6152, %v6148
        %6169 = vmatprep.subr.bf16.mxu0 %v6154
        %6170 = vmatpush1.bf16.xpose.msra.mxu0 %v6153
        %6171 = vmatprep.subr.bf16.mxu0 %v6158
        %6172 = vmatpush1.bf16.xpose.msra.mxu0 %v6157
        %6173 = vmatprep.subr.bf16.mxu0 0
        %6174 = vmatpush1.bf16.xpose.msra.mxu0 0
        %6175 = vmatprep.subr.bf16.mxu0 0
        %6176 = vmatpush1.bf16.xpose.msra.mxu0 0
        %6177 = vmatprep.subr.bf16.mxu0 0
        %6178 = vmatpush1.bf16.xpose.msra.mxu0 0
        %6179 = vmatprep.subr.bf16.mxu0 0
        %6180 = vmatpush1.bf16.xpose.msra.mxu0 0
        %6181 = vmatprep.subr.bf16.mxu0 0
        %6182 = vmatpush1.bf16.xpose.msra.mxu0 0
        %6183 = vmatprep.subr.bf16.mxu0 0
        %6184 = vmatpush1.bf16.xpose.msra.mxu0 0
        %6185 = vmatprep.subr.bf16.mxu0 0
        %6186 = vmatpush1.bf16.xpose.msra.mxu0 0
        %6187 = vmatprep.subr.bf16.mxu0 0
        %6188 = vmatpush1.bf16.xpose.msra.mxu0 0
        %6189 = vmatprep.subr.bf16.mxu0 0
        %6190 = vmatpush1.bf16.xpose.msra.mxu0 0
        %6191 = vmatprep.subr.bf16.mxu0 0
        %6192 = vmatpush1.bf16.xpose.msra.mxu0 0
        %6193 = vmatprep.subr.bf16.mxu0 0
        %6194 = vmatpush1.bf16.xpose.msra.mxu0 0
        %6195 = vmatprep.subr.bf16.mxu0 0
        %6196 = vmatpush1.bf16.xpose.msra.mxu0 0
        %6197 = vmatprep.subr.bf16.mxu0 0
        %6198 = vmatpush1.bf16.xpose.msra.mxu0 0
        %6199 = vmatprep.subr.bf16.mxu0 0
        %6200 = vmatpush1.bf16.xpose.msra.mxu0 0
        %6201 = vmatprep.mubr.bf16.mxu0 %v5821
        %6202 = vmatmul.mubr.bf16.gmra.mrb[0].mxu0 %v5820
        %v6203 = vpop.f32.mrb[0].mxu0
        %v6204 = vadd.f32 %v6124, %v6203
        %v6205 = vpop.f32.mrb[0].mxu0
        %v6206 = vpop.f32.mrb[0].mxu0
        %v6207 = vpop.f32.mrb[0].mxu0
        %6208 = vdwg.mxu0
        %6209 = vmatprep.subr.bf16.mxu0 %v6156
        %6210 = vmatpush1.bf16.xpose.msra.mxu0 %v6155
        %6211 = vmatprep.subr.bf16.mxu0 %v6160
        %6212 = vmatpush1.bf16.xpose.msra.mxu0 %v6159
        %6213 = vmatprep.subr.bf16.mxu0 0
        %6214 = vmatpush1.bf16.xpose.msra.mxu0 0
        %6215 = vmatprep.subr.bf16.mxu0 0
        %6216 = vmatpush1.bf16.xpose.msra.mxu0 0
        %6217 = vmatprep.subr.bf16.mxu0 0
        %6218 = vmatpush1.bf16.xpose.msra.mxu0 0
        %6219 = vmatprep.subr.bf16.mxu0 0
        %6220 = vmatpush1.bf16.xpose.msra.mxu0 0
        %6221 = vmatprep.subr.bf16.mxu0 0
        %6222 = vmatpush1.bf16.xpose.msra.mxu0 0
        %6223 = vmatprep.subr.bf16.mxu0 0
        %6224 = vmatpush1.bf16.xpose.msra.mxu0 0
        %6225 = vmatprep.subr.bf16.mxu0 0
        %6226 = vmatpush1.bf16.xpose.msra.mxu0 0
        %6227 = vmatprep.subr.bf16.mxu0 0
        %6228 = vmatpush1.bf16.xpose.msra.mxu0 0
        %6229 = vmatprep.subr.bf16.mxu0 0
        %6230 = vmatpush1.bf16.xpose.msra.mxu0 0
        %6231 = vmatprep.subr.bf16.mxu0 0
        %6232 = vmatpush1.bf16.xpose.msra.mxu0 0
        %6233 = vmatprep.subr.bf16.mxu0 0
        %6234 = vmatpush1.bf16.xpose.msra.mxu0 0
        %6235 = vmatprep.subr.bf16.mxu0 0
        %6236 = vmatpush1.bf16.xpose.msra.mxu0 0
        %6237 = vmatprep.subr.bf16.mxu0 0
        %6238 = vmatpush1.bf16.xpose.msra.mxu0 0
        %6239 = vmatprep.subr.bf16.mxu0 0
        %6240 = vmatpush1.bf16.xpose.msra.mxu0 0
        %6241 = vmatprep.mubr.bf16.mxu0 %v5823
        %6242 = vmatmul.mubr.bf16.gmra.mrb[0].mxu0 %v5822
        %v6243 = vpop.f32.mrb[0].mxu0
        %v6244 = vadd.f32 %v6204, %v6243
        %v6245 = vpop.f32.mrb[0].mxu0
        %v6246 = vpop.f32.mrb[0].mxu0
        %v6247 = vpop.f32.mrb[0].mxu0
        %6248 = vdwg.mxu0
        %v6249 = vld [vmem:[%s5651 + $0x20] sm:$0xff]
        %v6250 = vld [vmem:[%s5651 + $0x28] sm:$0xff]
        %v6251 = vld [vmem:[%s5651 + $0x60] sm:$0xff]
        %v6252 = vld [vmem:[%s5651 + $0x68] sm:$0xff]
        %v6253 = vld [vmem:[%s5651 + $0xa0] sm:$0xff]
        %v6254 = vld [vmem:[%s5651 + $0xa8] sm:$0xff]
        %v6255 = vld [vmem:[%s5651 + $0xe0] sm:$0xff]
        %v6256 = vld [vmem:[%s5651 + $0xe8] sm:$0xff]
        %v6257 = vld [vmem:[%s5660 + $0x8] sm:$0xf]
        %v6259 = vlaneseq
        %v6260 = vshrl.u32 %v6259, 7
        %v6261 = vsub.s32 0, %v6260
        %v6262 = vrot.slane %v6257, %v6261
        %v6263 = vlaneseq
        %v6264 = vshrl.u32 %v6263, 7
        %v6265 = vsub.s32 1, %v6264
        %v6266 = vrot.slane %v6257, %v6265
        %v6267 = vlaneseq
        %v6268 = vshrl.u32 %v6267, 7
        %v6269 = vsub.s32 2, %v6268
        %v6270 = vrot.slane %v6257, %v6269
        %v6271 = vlaneseq
        %v6272 = vshrl.u32 %v6271, 7
        %v6273 = vsub.s32 3, %v6272
        %v6274 = vrot.slane %v6257, %v6273
        %v6287 = vunpack.c.l.b16 %v6249
        %v6288 = vunpack.c.h.b16 %v6249
        %v6289 = vunpack.c.l.b16 %v6250
        %v6290 = vunpack.c.h.b16 %v6250
        %v6291 = vunpack.c.l.b16 %v6251
        %v6292 = vunpack.c.h.b16 %v6251
        %v6293 = vunpack.c.l.b16 %v6252
        %v6294 = vunpack.c.h.b16 %v6252
        %v6295 = vunpack.c.l.b16 %v6253
        %v6296 = vunpack.c.h.b16 %v6253
        %v6297 = vunpack.c.l.b16 %v6254
        %v6298 = vunpack.c.h.b16 %v6254
        %v6299 = vunpack.c.l.b16 %v6255
        %v6300 = vunpack.c.h.b16 %v6255
        %v6301 = vunpack.c.l.b16 %v6256
        %v6302 = vunpack.c.h.b16 %v6256
        %v6303 = vpack.c.b16 %v6291, %v6287
        %v6304 = vpack.c.b16 %v6292, %v6288
        %v6305 = vpack.c.b16 %v6293, %v6289
        %v6306 = vpack.c.b16 %v6294, %v6290
        %v6307 = vpack.c.b16 %v6299, %v6295
        %v6308 = vpack.c.b16 %v6300, %v6296
        %v6309 = vpack.c.b16 %v6301, %v6297
        %v6310 = vpack.c.b16 %v6302, %v6298
        %6319 = vmatprep.subr.bf16.mxu0 %v6304
        %6320 = vmatpush1.bf16.msra.mxu0 %v6303
        %6321 = vmatprep.subr.bf16.mxu0 %v6308
        %6322 = vmatpush1.bf16.msra.mxu0 %v6307
        %6323 = vmatprep.subr.bf16.mxu0 0
        %6324 = vmatpush1.bf16.msra.mxu0 0
        %6325 = vmatprep.subr.bf16.mxu0 0
        %6326 = vmatpush1.bf16.msra.mxu0 0
        %6327 = vmatprep.subr.bf16.mxu0 0
        %6328 = vmatpush1.bf16.msra.mxu0 0
        %6329 = vmatprep.subr.bf16.mxu0 0
        %6330 = vmatpush1.bf16.msra.mxu0 0
        %6331 = vmatprep.subr.bf16.mxu0 0
        %6332 = vmatpush1.bf16.msra.mxu0 0
        %6333 = vmatprep.subr.bf16.mxu0 0
        %6334 = vmatpush1.bf16.msra.mxu0 0
        %6335 = vmatprep.subr.bf16.mxu0 0
        %6336 = vmatpush1.bf16.msra.mxu0 0
        %6337 = vmatprep.subr.bf16.mxu0 0
        %6338 = vmatpush1.bf16.msra.mxu0 0
        %6339 = vmatprep.subr.bf16.mxu0 0
        %6340 = vmatpush1.bf16.msra.mxu0 0
        %6341 = vmatprep.subr.bf16.mxu0 0
        %6342 = vmatpush1.bf16.msra.mxu0 0
        %6343 = vmatprep.subr.bf16.mxu0 0
        %6344 = vmatpush1.bf16.msra.mxu0 0
        %6345 = vmatprep.subr.bf16.mxu0 0
        %6346 = vmatpush1.bf16.msra.mxu0 0
        %6347 = vmatprep.subr.bf16.mxu0 0
        %6348 = vmatpush1.bf16.msra.mxu0 0
        %6349 = vmatprep.subr.bf16.mxu0 0
        %6350 = vmatpush1.bf16.msra.mxu0 0
        %6351 = vmatprep.mubr.bf16.mxu0 0
        %6352 = vmatmul.mubr.bf16.gmra.mrb[0].mxu0 %v5724
        %v6353 = vpop.f32.mrb[0].mxu0
        %v6354 = vadd.f32 %v6262, %v6353
        %v6355 = vpop.f32.mrb[0].mxu0
        %v6356 = vadd.f32 %v6266, %v6355
        %v6357 = vpop.f32.mrb[0].mxu0
        %v6358 = vadd.f32 %v6262, %v6357
        %v6359 = vpop.f32.mrb[0].mxu0
        %v6360 = vadd.f32 %v6266, %v6359
        %6361 = vdwg.mxu0
        %6362 = vmatprep.subr.bf16.mxu0 %v6306
        %6363 = vmatpush1.bf16.msra.mxu0 %v6305
        %6364 = vmatprep.subr.bf16.mxu0 %v6310
        %6365 = vmatpush1.bf16.msra.mxu0 %v6309
        %6366 = vmatprep.subr.bf16.mxu0 0
        %6367 = vmatpush1.bf16.msra.mxu0 0
        %6368 = vmatprep.subr.bf16.mxu0 0
        %6369 = vmatpush1.bf16.msra.mxu0 0
        %6370 = vmatprep.subr.bf16.mxu0 0
        %6371 = vmatpush1.bf16.msra.mxu0 0
        %6372 = vmatprep.subr.bf16.mxu0 0
        %6373 = vmatpush1.bf16.msra.mxu0 0
        %6374 = vmatprep.subr.bf16.mxu0 0
        %6375 = vmatpush1.bf16.msra.mxu0 0
        %6376 = vmatprep.subr.bf16.mxu0 0
        %6377 = vmatpush1.bf16.msra.mxu0 0
        %6378 = vmatprep.subr.bf16.mxu0 0
        %6379 = vmatpush1.bf16.msra.mxu0 0
        %6380 = vmatprep.subr.bf16.mxu0 0
        %6381 = vmatpush1.bf16.msra.mxu0 0
        %6382 = vmatprep.subr.bf16.mxu0 0
        %6383 = vmatpush1.bf16.msra.mxu0 0
        %6384 = vmatprep.subr.bf16.mxu0 0
        %6385 = vmatpush1.bf16.msra.mxu0 0
        %6386 = vmatprep.subr.bf16.mxu0 0
        %6387 = vmatpush1.bf16.msra.mxu0 0
        %6388 = vmatprep.subr.bf16.mxu0 0
        %6389 = vmatpush1.bf16.msra.mxu0 0
        %6390 = vmatprep.subr.bf16.mxu0 0
        %6391 = vmatpush1.bf16.msra.mxu0 0
        %6392 = vmatprep.subr.bf16.mxu0 0
        %6393 = vmatpush1.bf16.msra.mxu0 0
        %6394 = vmatprep.mubr.bf16.mxu0 0
        %6395 = vmatmul.mubr.bf16.gmra.mrb[0].mxu0 %v5724
        %v6396 = vpop.f32.mrb[0].mxu0
        %v6397 = vadd.f32 %v6270, %v6396
        %v6398 = vpop.f32.mrb[0].mxu0
        %v6399 = vadd.f32 %v6274, %v6398
        %v6400 = vpop.f32.mrb[0].mxu0
        %v6401 = vadd.f32 %v6270, %v6400
        %v6402 = vpop.f32.mrb[0].mxu0
        %v6403 = vadd.f32 %v6274, %v6402
        %6404 = vdwg.mxu0
        %v6405 = vmax.f32 %v6354, 0.0
        %v6406 = vmax.f32 %v6356, 0.0
        %v6407 = vmax.f32 %v6397, 0.0
        %v6408 = vmax.f32 %v6399, 0.0
        %v6409 = vmax.f32 %v6358, 0.0
        %v6410 = vmax.f32 %v6360, 0.0
        %v6411 = vmax.f32 %v6401, 0.0
        %v6412 = vmax.f32 %v6403, 0.0
        %v6413 = vpack.c.bf16 %v6409, %v6405
        %v6414 = vpack.c.bf16 %v6410, %v6406
        %v6415 = vpack.c.bf16 %v6411, %v6407
        %v6416 = vpack.c.bf16 %v6412, %v6408
        %v6417 = vld [vmem:[%s5824 + $0x20] sm:$0xff]
        %v6418 = vld [vmem:[%s5824 + $0x28] sm:$0xff]
        %v6419 = vld [vmem:[%s5824 + $0x60] sm:$0xff]
        %v6420 = vld [vmem:[%s5824 + $0x68] sm:$0xff]
        %v6421 = vld [vmem:[%s5824 + $0xa0] sm:$0xff]
        %v6422 = vld [vmem:[%s5824 + $0xa8] sm:$0xff]
        %v6423 = vld [vmem:[%s5824 + $0xe0] sm:$0xff]
        %v6424 = vld [vmem:[%s5824 + $0xe8] sm:$0xff]
        %v6433 = vunpack.c.l.b16 %v6417
        %v6434 = vunpack.c.h.b16 %v6417
        %v6435 = vunpack.c.l.b16 %v6418
        %v6436 = vunpack.c.h.b16 %v6418
        %v6437 = vunpack.c.l.b16 %v6419
        %v6438 = vunpack.c.h.b16 %v6419
        %v6439 = vunpack.c.l.b16 %v6420
        %v6440 = vunpack.c.h.b16 %v6420
        %v6441 = vunpack.c.l.b16 %v6421
        %v6442 = vunpack.c.h.b16 %v6421
        %v6443 = vunpack.c.l.b16 %v6422
        %v6444 = vunpack.c.h.b16 %v6422
        %v6445 = vunpack.c.l.b16 %v6423
        %v6446 = vunpack.c.h.b16 %v6423
        %v6447 = vunpack.c.l.b16 %v6424
        %v6448 = vunpack.c.h.b16 %v6424
        %v6449 = vpack.c.b16 %v6437, %v6433
        %v6450 = vpack.c.b16 %v6438, %v6434
        %v6451 = vpack.c.b16 %v6439, %v6435
        %v6452 = vpack.c.b16 %v6440, %v6436
        %v6453 = vpack.c.b16 %v6445, %v6441
        %v6454 = vpack.c.b16 %v6446, %v6442
        %v6455 = vpack.c.b16 %v6447, %v6443
        %v6456 = vpack.c.b16 %v6448, %v6444
        %6465 = vmatprep.subr.bf16.mxu0 %v6450
        %6466 = vmatpush1.bf16.xpose.msra.mxu0 %v6449
        %6467 = vmatprep.subr.bf16.mxu0 %v6454
        %6468 = vmatpush1.bf16.xpose.msra.mxu0 %v6453
        %6469 = vmatprep.subr.bf16.mxu0 0
        %6470 = vmatpush1.bf16.xpose.msra.mxu0 0
        %6471 = vmatprep.subr.bf16.mxu0 0
        %6472 = vmatpush1.bf16.xpose.msra.mxu0 0
        %6473 = vmatprep.subr.bf16.mxu0 0
        %6474 = vmatpush1.bf16.xpose.msra.mxu0 0
        %6475 = vmatprep.subr.bf16.mxu0 0
        %6476 = vmatpush1.bf16.xpose.msra.mxu0 0
        %6477 = vmatprep.subr.bf16.mxu0 0
        %6478 = vmatpush1.bf16.xpose.msra.mxu0 0
        %6479 = vmatprep.subr.bf16.mxu0 0
        %6480 = vmatpush1.bf16.xpose.msra.mxu0 0
        %6481 = vmatprep.subr.bf16.mxu0 0
        %6482 = vmatpush1.bf16.xpose.msra.mxu0 0
        %6483 = vmatprep.subr.bf16.mxu0 0
        %6484 = vmatpush1.bf16.xpose.msra.mxu0 0
        %6485 = vmatprep.subr.bf16.mxu0 0
        %6486 = vmatpush1.bf16.xpose.msra.mxu0 0
        %6487 = vmatprep.subr.bf16.mxu0 0
        %6488 = vmatpush1.bf16.xpose.msra.mxu0 0
        %6489 = vmatprep.subr.bf16.mxu0 0
        %6490 = vmatpush1.bf16.xpose.msra.mxu0 0
        %6491 = vmatprep.subr.bf16.mxu0 0
        %6492 = vmatpush1.bf16.xpose.msra.mxu0 0
        %6493 = vmatprep.subr.bf16.mxu0 0
        %6494 = vmatpush1.bf16.xpose.msra.mxu0 0
        %6495 = vmatprep.subr.bf16.mxu0 0
        %6496 = vmatpush1.bf16.xpose.msra.mxu0 0
        %6497 = vmatprep.mubr.bf16.mxu0 %v6414
        %6498 = vmatmul.mubr.bf16.gmra.mrb[0].mxu0 %v6413
        %v6499 = vpop.f32.mrb[0].mxu0
        %v6500 = vadd.f32 0.0, %v6499
        %v6501 = vpop.f32.mrb[0].mxu0
        %v6502 = vpop.f32.mrb[0].mxu0
        %v6503 = vpop.f32.mrb[0].mxu0
        %6504 = vdwg.mxu0
        %6505 = vmatprep.subr.bf16.mxu0 %v6452
        %6506 = vmatpush1.bf16.xpose.msra.mxu0 %v6451
        %6507 = vmatprep.subr.bf16.mxu0 %v6456
        %6508 = vmatpush1.bf16.xpose.msra.mxu0 %v6455
        %6509 = vmatprep.subr.bf16.mxu0 0
        %6510 = vmatpush1.bf16.xpose.msra.mxu0 0
        %6511 = vmatprep.subr.bf16.mxu0 0
        %6512 = vmatpush1.bf16.xpose.msra.mxu0 0
        %6513 = vmatprep.subr.bf16.mxu0 0
        %6514 = vmatpush1.bf16.xpose.msra.mxu0 0
        %6515 = vmatprep.subr.bf16.mxu0 0
        %6516 = vmatpush1.bf16.xpose.msra.mxu0 0
        %6517 = vmatprep.subr.bf16.mxu0 0
        %6518 = vmatpush1.bf16.xpose.msra.mxu0 0
        %6519 = vmatprep.subr.bf16.mxu0 0
        %6520 = vmatpush1.bf16.xpose.msra.mxu0 0
        %6521 = vmatprep.subr.bf16.mxu0 0
        %6522 = vmatpush1.bf16.xpose.msra.mxu0 0
        %6523 = vmatprep.subr.bf16.mxu0 0
        %6524 = vmatpush1.bf16.xpose.msra.mxu0 0
        %6525 = vmatprep.subr.bf16.mxu0 0
        %6526 = vmatpush1.bf16.xpose.msra.mxu0 0
        %6527 = vmatprep.subr.bf16.mxu0 0
        %6528 = vmatpush1.bf16.xpose.msra.mxu0 0
        %6529 = vmatprep.subr.bf16.mxu0 0
        %6530 = vmatpush1.bf16.xpose.msra.mxu0 0
        %6531 = vmatprep.subr.bf16.mxu0 0
        %6532 = vmatpush1.bf16.xpose.msra.mxu0 0
        %6533 = vmatprep.subr.bf16.mxu0 0
        %6534 = vmatpush1.bf16.xpose.msra.mxu0 0
        %6535 = vmatprep.subr.bf16.mxu0 0
        %6536 = vmatpush1.bf16.xpose.msra.mxu0 0
        %6537 = vmatprep.mubr.bf16.mxu0 %v6416
        %6538 = vmatmul.mubr.bf16.gmra.mrb[0].mxu0 %v6415
        %v6539 = vpop.f32.mrb[0].mxu0
        %v6540 = vadd.f32 %v6500, %v6539
        %v6541 = vpop.f32.mrb[0].mxu0
        %v6542 = vpop.f32.mrb[0].mxu0
        %v6543 = vpop.f32.mrb[0].mxu0
        %6544 = vdwg.mxu0
        %v6545 = vadd.f32 %v6244, %v6540
        %v6546 = vld [vmem:[%s5651 + $0x30] sm:$0xff]
        %v6547 = vld [vmem:[%s5651 + $0x38] sm:$0xff]
        %v6548 = vld [vmem:[%s5651 + $0x70] sm:$0xff]
        %v6549 = vld [vmem:[%s5651 + $0x78] sm:$0xff]
        %v6550 = vld [vmem:[%s5651 + $0xb0] sm:$0xff]
        %v6551 = vld [vmem:[%s5651 + $0xb8] sm:$0xff]
        %v6552 = vld [vmem:[%s5651 + $0xf0] sm:$0xff]
        %v6553 = vld [vmem:[%s5651 + $0xf8] sm:$0xff]
        %v6554 = vld [vmem:[%s5660 + $0xc] sm:$0xf]
        %v6556 = vlaneseq
        %v6557 = vshrl.u32 %v6556, 7
        %v6558 = vsub.s32 0, %v6557
        %v6559 = vrot.slane %v6554, %v6558
        %v6560 = vlaneseq
        %v6561 = vshrl.u32 %v6560, 7
        %v6562 = vsub.s32 1, %v6561
        %v6563 = vrot.slane %v6554, %v6562
        %v6564 = vlaneseq
        %v6565 = vshrl.u32 %v6564, 7
        %v6566 = vsub.s32 2, %v6565
        %v6567 = vrot.slane %v6554, %v6566
        %v6568 = vlaneseq
        %v6569 = vshrl.u32 %v6568, 7
        %v6570 = vsub.s32 3, %v6569
        %v6571 = vrot.slane %v6554, %v6570
        %v6584 = vunpack.c.l.b16 %v6546
        %v6585 = vunpack.c.h.b16 %v6546
        %v6586 = vunpack.c.l.b16 %v6547
        %v6587 = vunpack.c.h.b16 %v6547
        %v6588 = vunpack.c.l.b16 %v6548
        %v6589 = vunpack.c.h.b16 %v6548
        %v6590 = vunpack.c.l.b16 %v6549
        %v6591 = vunpack.c.h.b16 %v6549
        %v6592 = vunpack.c.l.b16 %v6550
        %v6593 = vunpack.c.h.b16 %v6550
        %v6594 = vunpack.c.l.b16 %v6551
        %v6595 = vunpack.c.h.b16 %v6551
        %v6596 = vunpack.c.l.b16 %v6552
        %v6597 = vunpack.c.h.b16 %v6552
        %v6598 = vunpack.c.l.b16 %v6553
        %v6599 = vunpack.c.h.b16 %v6553
        %v6600 = vpack.c.b16 %v6588, %v6584
        %v6601 = vpack.c.b16 %v6589, %v6585
        %v6602 = vpack.c.b16 %v6590, %v6586
        %v6603 = vpack.c.b16 %v6591, %v6587
        %v6604 = vpack.c.b16 %v6596, %v6592
        %v6605 = vpack.c.b16 %v6597, %v6593
        %v6606 = vpack.c.b16 %v6598, %v6594
        %v6607 = vpack.c.b16 %v6599, %v6595
        %6616 = vmatprep.subr.bf16.mxu0 %v6601
        %6617 = vmatpush1.bf16.msra.mxu0 %v6600
        %6618 = vmatprep.subr.bf16.mxu0 %v6605
        %6619 = vmatpush1.bf16.msra.mxu0 %v6604
        %6620 = vmatprep.subr.bf16.mxu0 0
        %6621 = vmatpush1.bf16.msra.mxu0 0
        %6622 = vmatprep.subr.bf16.mxu0 0
        %6623 = vmatpush1.bf16.msra.mxu0 0
        %6624 = vmatprep.subr.bf16.mxu0 0
        %6625 = vmatpush1.bf16.msra.mxu0 0
        %6626 = vmatprep.subr.bf16.mxu0 0
        %6627 = vmatpush1.bf16.msra.mxu0 0
        %6628 = vmatprep.subr.bf16.mxu0 0
        %6629 = vmatpush1.bf16.msra.mxu0 0
        %6630 = vmatprep.subr.bf16.mxu0 0
        %6631 = vmatpush1.bf16.msra.mxu0 0
        %6632 = vmatprep.subr.bf16.mxu0 0
        %6633 = vmatpush1.bf16.msra.mxu0 0
        %6634 = vmatprep.subr.bf16.mxu0 0
        %6635 = vmatpush1.bf16.msra.mxu0 0
        %6636 = vmatprep.subr.bf16.mxu0 0
        %6637 = vmatpush1.bf16.msra.mxu0 0
        %6638 = vmatprep.subr.bf16.mxu0 0
        %6639 = vmatpush1.bf16.msra.mxu0 0
        %6640 = vmatprep.subr.bf16.mxu0 0
        %6641 = vmatpush1.bf16.msra.mxu0 0
        %6642 = vmatprep.subr.bf16.mxu0 0
        %6643 = vmatpush1.bf16.msra.mxu0 0
        %6644 = vmatprep.subr.bf16.mxu0 0
        %6645 = vmatpush1.bf16.msra.mxu0 0
        %6646 = vmatprep.subr.bf16.mxu0 0
        %6647 = vmatpush1.bf16.msra.mxu0 0
        %6648 = vmatprep.mubr.bf16.mxu0 0
        %6649 = vmatmul.mubr.bf16.gmra.mrb[0].mxu0 %v5724
        %v6650 = vpop.f32.mrb[0].mxu0
        %v6651 = vadd.f32 %v6559, %v6650
        %v6652 = vpop.f32.mrb[0].mxu0
        %v6653 = vadd.f32 %v6563, %v6652
        %v6654 = vpop.f32.mrb[0].mxu0
        %v6655 = vadd.f32 %v6559, %v6654
        %v6656 = vpop.f32.mrb[0].mxu0
        %v6657 = vadd.f32 %v6563, %v6656
        %6658 = vdwg.mxu0
        %6659 = vmatprep.subr.bf16.mxu0 %v6603
        %6660 = vmatpush1.bf16.msra.mxu0 %v6602
        %6661 = vmatprep.subr.bf16.mxu0 %v6607
        %6662 = vmatpush1.bf16.msra.mxu0 %v6606
        %6663 = vmatprep.subr.bf16.mxu0 0
        %6664 = vmatpush1.bf16.msra.mxu0 0
        %6665 = vmatprep.subr.bf16.mxu0 0
        %6666 = vmatpush1.bf16.msra.mxu0 0
        %6667 = vmatprep.subr.bf16.mxu0 0
        %6668 = vmatpush1.bf16.msra.mxu0 0
        %6669 = vmatprep.subr.bf16.mxu0 0
        %6670 = vmatpush1.bf16.msra.mxu0 0
        %6671 = vmatprep.subr.bf16.mxu0 0
        %6672 = vmatpush1.bf16.msra.mxu0 0
        %6673 = vmatprep.subr.bf16.mxu0 0
        %6674 = vmatpush1.bf16.msra.mxu0 0
        %6675 = vmatprep.subr.bf16.mxu0 0
        %6676 = vmatpush1.bf16.msra.mxu0 0
        %6677 = vmatprep.subr.bf16.mxu0 0
        %6678 = vmatpush1.bf16.msra.mxu0 0
        %6679 = vmatprep.subr.bf16.mxu0 0
        %6680 = vmatpush1.bf16.msra.mxu0 0
        %6681 = vmatprep.subr.bf16.mxu0 0
        %6682 = vmatpush1.bf16.msra.mxu0 0
        %6683 = vmatprep.subr.bf16.mxu0 0
        %6684 = vmatpush1.bf16.msra.mxu0 0
        %6685 = vmatprep.subr.bf16.mxu0 0
        %6686 = vmatpush1.bf16.msra.mxu0 0
        %6687 = vmatprep.subr.bf16.mxu0 0
        %6688 = vmatpush1.bf16.msra.mxu0 0
        %6689 = vmatprep.subr.bf16.mxu0 0
        %6690 = vmatpush1.bf16.msra.mxu0 0
        %6691 = vmatprep.mubr.bf16.mxu0 0
        %6692 = vmatmul.mubr.bf16.gmra.mrb[0].mxu0 %v5724
        %v6693 = vpop.f32.mrb[0].mxu0
        %v6694 = vadd.f32 %v6567, %v6693
        %v6695 = vpop.f32.mrb[0].mxu0
        %v6696 = vadd.f32 %v6571, %v6695
        %v6697 = vpop.f32.mrb[0].mxu0
        %v6698 = vadd.f32 %v6567, %v6697
        %v6699 = vpop.f32.mrb[0].mxu0
        %v6700 = vadd.f32 %v6571, %v6699
        %6701 = vdwg.mxu0
        %v6702 = vmax.f32 %v6651, 0.0
        %v6703 = vmax.f32 %v6653, 0.0
        %v6704 = vmax.f32 %v6694, 0.0
        %v6705 = vmax.f32 %v6696, 0.0
        %v6706 = vmax.f32 %v6655, 0.0
        %v6707 = vmax.f32 %v6657, 0.0
        %v6708 = vmax.f32 %v6698, 0.0
        %v6709 = vmax.f32 %v6700, 0.0
        %v6710 = vpack.c.bf16 %v6706, %v6702
        %v6711 = vpack.c.bf16 %v6707, %v6703
        %v6712 = vpack.c.bf16 %v6708, %v6704
        %v6713 = vpack.c.bf16 %v6709, %v6705
        %v6714 = vld [vmem:[%s5824 + $0x30] sm:$0xff]
        %v6715 = vld [vmem:[%s5824 + $0x38] sm:$0xff]
        %v6716 = vld [vmem:[%s5824 + $0x70] sm:$0xff]
        %v6717 = vld [vmem:[%s5824 + $0x78] sm:$0xff]
        %v6718 = vld [vmem:[%s5824 + $0xb0] sm:$0xff]
        %v6719 = vld [vmem:[%s5824 + $0xb8] sm:$0xff]
        %v6720 = vld [vmem:[%s5824 + $0xf0] sm:$0xff]
        %v6721 = vld [vmem:[%s5824 + $0xf8] sm:$0xff]
        %v6730 = vunpack.c.l.b16 %v6714
        %v6731 = vunpack.c.h.b16 %v6714
        %v6732 = vunpack.c.l.b16 %v6715
        %v6733 = vunpack.c.h.b16 %v6715
        %v6734 = vunpack.c.l.b16 %v6716
        %v6735 = vunpack.c.h.b16 %v6716
        %v6736 = vunpack.c.l.b16 %v6717
        %v6737 = vunpack.c.h.b16 %v6717
        %v6738 = vunpack.c.l.b16 %v6718
        %v6739 = vunpack.c.h.b16 %v6718
        %v6740 = vunpack.c.l.b16 %v6719
        %v6741 = vunpack.c.h.b16 %v6719
        %v6742 = vunpack.c.l.b16 %v6720
        %v6743 = vunpack.c.h.b16 %v6720
        %v6744 = vunpack.c.l.b16 %v6721
        %v6745 = vunpack.c.h.b16 %v6721
        %v6746 = vpack.c.b16 %v6734, %v6730
        %v6747 = vpack.c.b16 %v6735, %v6731
        %v6748 = vpack.c.b16 %v6736, %v6732
        %v6749 = vpack.c.b16 %v6737, %v6733
        %v6750 = vpack.c.b16 %v6742, %v6738
        %v6751 = vpack.c.b16 %v6743, %v6739
        %v6752 = vpack.c.b16 %v6744, %v6740
        %v6753 = vpack.c.b16 %v6745, %v6741
        %6762 = vmatprep.subr.bf16.mxu0 %v6747
        %6763 = vmatpush1.bf16.xpose.msra.mxu0 %v6746
        %6764 = vmatprep.subr.bf16.mxu0 %v6751
        %6765 = vmatpush1.bf16.xpose.msra.mxu0 %v6750
        %6766 = vmatprep.subr.bf16.mxu0 0
        %6767 = vmatpush1.bf16.xpose.msra.mxu0 0
        %6768 = vmatprep.subr.bf16.mxu0 0
        %6769 = vmatpush1.bf16.xpose.msra.mxu0 0
        %6770 = vmatprep.subr.bf16.mxu0 0
        %6771 = vmatpush1.bf16.xpose.msra.mxu0 0
        %6772 = vmatprep.subr.bf16.mxu0 0
        %6773 = vmatpush1.bf16.xpose.msra.mxu0 0
        %6774 = vmatprep.subr.bf16.mxu0 0
        %6775 = vmatpush1.bf16.xpose.msra.mxu0 0
        %6776 = vmatprep.subr.bf16.mxu0 0
        %6777 = vmatpush1.bf16.xpose.msra.mxu0 0
        %6778 = vmatprep.subr.bf16.mxu0 0
        %6779 = vmatpush1.bf16.xpose.msra.mxu0 0
        %6780 = vmatprep.subr.bf16.mxu0 0
        %6781 = vmatpush1.bf16.xpose.msra.mxu0 0
        %6782 = vmatprep.subr.bf16.mxu0 0
        %6783 = vmatpush1.bf16.xpose.msra.mxu0 0
        %6784 = vmatprep.subr.bf16.mxu0 0
        %6785 = vmatpush1.bf16.xpose.msra.mxu0 0
        %6786 = vmatprep.subr.bf16.mxu0 0
        %6787 = vmatpush1.bf16.xpose.msra.mxu0 0
        %6788 = vmatprep.subr.bf16.mxu0 0
        %6789 = vmatpush1.bf16.xpose.msra.mxu0 0
        %6790 = vmatprep.subr.bf16.mxu0 0
        %6791 = vmatpush1.bf16.xpose.msra.mxu0 0
        %6792 = vmatprep.subr.bf16.mxu0 0
        %6793 = vmatpush1.bf16.xpose.msra.mxu0 0
        %6794 = vmatprep.mubr.bf16.mxu0 %v6711
        %6795 = vmatmul.mubr.bf16.gmra.mrb[0].mxu0 %v6710
        %v6796 = vpop.f32.mrb[0].mxu0
        %v6797 = vadd.f32 0.0, %v6796
        %v6798 = vpop.f32.mrb[0].mxu0
        %v6799 = vpop.f32.mrb[0].mxu0
        %v6800 = vpop.f32.mrb[0].mxu0
        %6801 = vdwg.mxu0
        %6802 = vmatprep.subr.bf16.mxu0 %v6749
        %6803 = vmatpush1.bf16.xpose.msra.mxu0 %v6748
        %6804 = vmatprep.subr.bf16.mxu0 %v6753
        %6805 = vmatpush1.bf16.xpose.msra.mxu0 %v6752
        %6806 = vmatprep.subr.bf16.mxu0 0
        %6807 = vmatpush1.bf16.xpose.msra.mxu0 0
        %6808 = vmatprep.subr.bf16.mxu0 0
        %6809 = vmatpush1.bf16.xpose.msra.mxu0 0
        %6810 = vmatprep.subr.bf16.mxu0 0
        %6811 = vmatpush1.bf16.xpose.msra.mxu0 0
        %6812 = vmatprep.subr.bf16.mxu0 0
        %6813 = vmatpush1.bf16.xpose.msra.mxu0 0
        %6814 = vmatprep.subr.bf16.mxu0 0
        %6815 = vmatpush1.bf16.xpose.msra.mxu0 0
        %6816 = vmatprep.subr.bf16.mxu0 0
        %6817 = vmatpush1.bf16.xpose.msra.mxu0 0
        %6818 = vmatprep.subr.bf16.mxu0 0
        %6819 = vmatpush1.bf16.xpose.msra.mxu0 0
        %6820 = vmatprep.subr.bf16.mxu0 0
        %6821 = vmatpush1.bf16.xpose.msra.mxu0 0
        %6822 = vmatprep.subr.bf16.mxu0 0
        %6823 = vmatpush1.bf16.xpose.msra.mxu0 0
        %6824 = vmatprep.subr.bf16.mxu0 0
        %6825 = vmatpush1.bf16.xpose.msra.mxu0 0
        %6826 = vmatprep.subr.bf16.mxu0 0
        %6827 = vmatpush1.bf16.xpose.msra.mxu0 0
        %6828 = vmatprep.subr.bf16.mxu0 0
        %6829 = vmatpush1.bf16.xpose.msra.mxu0 0
        %6830 = vmatprep.subr.bf16.mxu0 0
        %6831 = vmatpush1.bf16.xpose.msra.mxu0 0
        %6832 = vmatprep.subr.bf16.mxu0 0
        %6833 = vmatpush1.bf16.xpose.msra.mxu0 0
        %6834 = vmatprep.mubr.bf16.mxu0 %v6713
        %6835 = vmatmul.mubr.bf16.gmra.mrb[0].mxu0 %v6712
        %v6836 = vpop.f32.mrb[0].mxu0
        %v6837 = vadd.f32 %v6797, %v6836
        %v6838 = vpop.f32.mrb[0].mxu0
        %v6839 = vpop.f32.mrb[0].mxu0
        %v6840 = vpop.f32.mrb[0].mxu0
        %6841 = vdwg.mxu0
        %v6842 = vadd.f32 %v6545, %v6837
        %s6843 = scalar_lea.vmem %s11, 1
        %v6844 = vld [vmem:[%s6843] sm:$0x1]
        %v6846 = vlaneseq
        %v6847 = vshrl.u32 %v6846, 7
        %v6848 = vsub.s32 0, %v6847
        %v6849 = vrot.slane %v6844, %v6848
        %v6851 = vadd.f32 %v6842, %v6849
        %v6852 = vadd.f32 %v5648, %v6851
        %s6853 = scalar_lea.vmem %s12, 1
        %v6854 = vld [vmem:[%s6853] sm:$0x1]
        %s6855 = scalar_lea.vmem %s13, 1
        %v6856 = vld [vmem:[%s6855] sm:$0x1]
        %v6857 = vsel %vm579, %v6852, 0.0
        %6858 = vadd.xlane.f32.xlu0 %v6857
        %v6859 = vpop.xlane.xlu0 %6858
        %v6860 = vmul.f32 %v6859, %v2450
        %v6861 = vsub.f32 %v6852, %v6860
        %v6862 = vmul.f32 %v6861, %v6861
        %v6863 = vsel %vm579, %v6862, 0.0
        %6864 = vadd.xlane.f32.xlu0 %v6863
        %v6865 = vpop.xlane.xlu0 %6864
        %v6866 = vmul.f32 %v6865, %v2450
        %v6867 = vadd.f32 %v6866, 1e-05
        %v6868 = vrsqrt.pop %v6867
        %v6869 = vmul.f32 %v6861, %v6868
        %v6871 = vlaneseq
        %v6872 = vshrl.u32 %v6871, 7
        %v6873 = vsub.s32 0, %v6872
        %v6874 = vrot.slane %v6854, %v6873
        %v6876 = vmul.f32 %v6869, %v6874
        %v6878 = vlaneseq
        %v6879 = vshrl.u32 %v6878, 7
        %v6880 = vsub.s32 0, %v6879
        %v6881 = vrot.slane %v6856, %v6880
        %v6883 = vadd.f32 %v6876, %v6881
        %v6884 = vld [vmem:[%s14] sm:$0xff]
        %v6885 = vld [vmem:[%s14 + $0x8] sm:$0xff]
        %v6886 = vld [vmem:[%s14 + $0x10] sm:$0xff]
        %v6887 = vld [vmem:[%s14 + $0x18] sm:$0xff]
        %v6888 = vld [vmem:[%s15] sm:$0x1]
        %v6890 = vsel %vm579, %v6883, 0
        %6892 = vmatprep.subr.mxu0 0.0
        %6893 = vmatpush1.msra.mxu0 %v6884
        %6894 = vmatprep.subr.mxu0 0.0
        %6895 = vmatpush1.msra.mxu0 %v6885
        %6896 = vmatprep.subr.mxu0 0.0
        %6897 = vmatpush1.msra.mxu0 %v6886
        %6898 = vmatprep.subr.mxu0 0.0
        %6899 = vmatpush1.msra.mxu0 %v6887
        %6900 = vmatprep.subr.mxu0 0.0
        %6901 = vmatpush1.msra.mxu0 0.0
        %6902 = vmatprep.subr.mxu0 0.0
        %6903 = vmatpush1.msra.mxu0 0.0
        %6904 = vmatprep.subr.mxu0 0.0
        %6905 = vmatpush1.msra.mxu0 0.0
        %6906 = vmatprep.subr.mxu0 0.0
        %6907 = vmatpush1.msra.mxu0 0.0
        %6908 = vmatprep.subr.mxu0 0.0
        %6909 = vmatpush1.msra.mxu0 0.0
        %6910 = vmatprep.subr.mxu0 0.0
        %6911 = vmatpush1.msra.mxu0 0.0
        %6912 = vmatprep.subr.mxu0 0.0
        %6913 = vmatpush1.msra.mxu0 0.0
        %6914 = vmatprep.subr.mxu0 0.0
        %6915 = vmatpush1.msra.mxu0 0.0
        %6916 = vmatprep.subr.mxu0 0.0
        %6917 = vmatpush1.msra.mxu0 0.0
        %6918 = vmatprep.subr.mxu0 0.0
        %6919 = vmatpush1.msra.mxu0 0.0
        %6920 = vmatprep.subr.mxu0 0.0
        %6921 = vmatpush1.msra.mxu0 0.0
        %6922 = vmatprep.subr.mxu0 0.0
        %6923 = vmatpush1.msra.mxu0 0.0
        %6924 = vmatprep.subr.mxu0 0.0
        %6925 = vmatpush1.msra.mxu0 0.0
        %6926 = vmatprep.subr.mxu0 0.0
        %6927 = vmatpush1.msra.mxu0 0.0
        %6928 = vmatprep.subr.mxu0 0.0
        %6929 = vmatpush1.msra.mxu0 0.0
        %6930 = vmatprep.subr.mxu0 0.0
        %6931 = vmatpush1.msra.mxu0 0.0
        %6932 = vmatprep.subr.mxu0 0.0
        %6933 = vmatpush1.msra.mxu0 0.0
        %6934 = vmatprep.subr.mxu0 0.0
        %6935 = vmatpush1.msra.mxu0 0.0
        %6936 = vmatprep.subr.mxu0 0.0
        %6937 = vmatpush1.msra.mxu0 0.0
        %6938 = vmatprep.subr.mxu0 0.0
        %6939 = vmatpush1.msra.mxu0 0.0
        %6940 = vmatprep.subr.mxu0 0.0
        %6941 = vmatpush1.msra.mxu0 0.0
        %6942 = vmatprep.subr.mxu0 0.0
        %6943 = vmatpush1.msra.mxu0 0.0
        %6944 = vmatprep.subr.mxu0 0.0
        %6945 = vmatpush1.msra.mxu0 0.0
        %6946 = vmatprep.subr.mxu0 0.0
        %6947 = vmatpush1.msra.mxu0 0.0
        %6948 = vmatprep.subr.mxu0 0.0
        %6949 = vmatpush1.msra.mxu0 0.0
        %6950 = vmatprep.subr.mxu0 0.0
        %6951 = vmatpush1.msra.mxu0 0.0
        %6952 = vmatprep.subr.mxu0 0.0
        %6953 = vmatpush1.msra.mxu0 0.0
        %6954 = vmatprep.subr.mxu0 0.0
        %6955 = vmatpush1.msra.mxu0 0.0
        %6956 = vmatprep.mubr.f32.mxu0 0.0
        %6957 = vmatmul.mubr.f32.gmra.mrb[0].mxu0 %v6890
        %v6958 = vpop.f32.mrb[0].mxu0
        %v6959 = vadd.f32 %v6888, %v6958
        %v6960 = vpop.f32.mrb[0].mxu0
        %6961 = vdwg.mxu0
        %v6962 = vlaneseq
        %v6963 = vshrl.u32 %v6962, 7
        %v6964 = vsub.s32 0, %v6963
        %v6965 = vrot.slane %v6959, %v6964
        %6966 = vst.msk [vmem:[%s563] sm:$0xff] %vm579, %v6965
        %p6967 = scmp.lt.s32.totalorder %s29, 1
        %s6968 = scalar_select %p6967, %s29, 1
        %s6969 = smul.addr %s6968, 8
        %s6970 = scalar_lea.vmem %s16, %s6969
        // Predicated region
        $region93: #{_forward.1} parent=83 // pred_check
          %p6971 = pneg %p393
        $region94: #{_forward.1} parent=83 // pred_check_branch
          %6973 = sbr.rel (%p6971) target = $region96
        $region95: #{_forward.1} parent=83 // pred_region
          _
        $region96: #{_forward.1} parent=83 // pred_fallthru
          _
      $region84: #{_forward.1} parent=5 // pred_fallthru
        _
      %p6974 = scmp.le.s32.totalorder 2, %s24
      // Predicated region
      $region97: #{_forward.1} parent=5 // pred_check
        %p6975 = pneg %p6974
      $region98: #{_forward.1} parent=5 // pred_check_branch
        %6977 = sbr.rel (%p6975) target = $region100
      $region99: #{_forward.1} parent=5 // pred_region
        %s6978 = ssub.s32 %s24, 2
        // Predicated region
        $region101: #{_forward.1} parent=99 // pred_check
          %p6979 = pneg %p399
        $region102: #{_forward.1} parent=99 // pred_check_branch
          %6981 = sbr.rel (%p6979) target = $region104
        $region103: #{_forward.1} parent=99 // pred_region
          %p6982 = scmp.lt.s32.totalorder %s30, 1
          %s6983 = scalar_select %p6982, %s30, 1
          %s6984 = smul.addr %s6983, 8
          %s6985 = scalar_lea.vmem %s16, %s6984
        $region104: #{_forward.1} parent=99 // pred_fallthru
          _
      $region100: #{_forward.1} parent=5 // pred_fallthru
        _
    $region6: #{_forward.1} parent=1 // loop_footer
      %s28 = sadd.s32 1, %s24
    $region7: #{_forward.1} parent=1 // loop_footer_branch
      %23 = sbr.rel target = $region3
    $region8: #{_forward.1} parent=1 // loop_exit
      _
    %6986 = vsyncpa [#allocation4], 1
    %s6987 = scalar_lea.sflag [#allocation4], 1
    %6988 = vsyncpa %s6987, 1
    %6989 = vsyncpa [#allocation6], 1

</llo_original>
